<compile_context>
chip_gen: v6e
topology: v6e:2x2x1
jax: 0.10.0
libtpu: 0.0.40
codegen_flags: <defaults>
</compile_context>

<pallas_src>
import jax
import jax.numpy as jnp
from jax import lax
from jax.experimental import pallas as pl
from jax.experimental.pallas import tpu as pltpu

LAG = 30      # node_x.reshape(-1, fea_dim, 30) hard-codes the 30-step window
FEA_DIM = 1   # nodes-branch time_att broadcast requires fea_dim * 30 == lag
HID = 32      # hid_dim / n_hidden_1
OUT_CH = 32   # out_channels


# ----------------------------------------------------------------------------
# Helpers for specs / VMEM budgeting.
# ----------------------------------------------------------------------------
def _full_block(arr):
    """BlockSpec covering the whole (small) array, constant across the grid."""
    nd = arr.ndim
    return pl.BlockSpec(arr.shape, lambda i, _nd=nd: (0,) * _nd)


def _vmem_limit_bytes(arrays, headroom=4 << 20):
    total = 0
    for a in arrays:
        total += int(a.size) * jnp.dtype(a.dtype).itemsize
    # double-buffered operands + headroom, clamped to a range safe on
    # v5e (16 MiB default scoped) / v6e / v7x (32 MiB default, 64 MiB physical).
    return int(min(max(2 * total + headroom, 8 << 20), 32 << 20))


# ----------------------------------------------------------------------------
# Stage 1: combined (series | nodes) ATT-LSTM, per-node (embarrassingly
# parallel over nodes).
#
# Combined layout:
#   h / c            : [Nt, 2H]  columns [0:H]=series, [H:2H]=nodes
#   gates            : [Nt, 8H]  [i_s|i_n|f_s|f_n|g_s|g_n|o_s|o_n], each H wide
#   whh_ref (bf16)   : [2H, 8H]  block diagonal -> one MXU matmul per step
#   wih_ref / b_ref  : [1, 8H]
#   watt_ref         : [T, 2H]   (series attn | nodes attn)
# ----------------------------------------------------------------------------
def lstm_att_kernel(x_ref, wih_ref, whh_ref, b_ref, watt_ref,
                    wfcs_ref, bfcs_ref, wfcn_ref, bfcn_ref,
                    x1s_ref, embn_ref):
    H = HID
    T = LAG

    x = x_ref[...]                         # [Nt, T] f32 (node-major, time on lanes)
    wih = wih_ref[...]                     # [1, 8H]
    b = b_ref[...]                         # [1, 8H]
    whh = whh_ref[...]                     # [2H, 8H] bf16, block diagonal
    watt = watt_ref[...]                   # [T, 2H]

    n = x.shape[0]
    c = jnp.zeros((n, 2 * H), jnp.float32)
    h = jnp.zeros((n, 2 * H), jnp.float32)
    h_bf = h.astype(jnp.bfloat16)

    # Online (flash-style) softmax state for the two time-attention heads.
    m_s = jnp.full((n, 1), -jnp.inf, jnp.float32)
    m_n = jnp.full((n, 1), -jnp.inf, jnp.float32)
    l_s = jnp.zeros((n, 1), jnp.float32)
    l_n = jnp.zeros((n, 1), jnp.float32)
    acc_s = jnp.zeros((n, H), jnp.float32)
    acc_n = jnp.zeros((n, H), jnp.float32)

    # T = 30 is fixed -> static unroll, static slices only (no dynamic VMEM
    # indexing on the recurrence path); state stays in vregs.
    # TODO(synk): at large N switch to lax.fori_loop with a bounded unroll
    # (e.g. 4) to limit live ranges / vreg pressure.
    for t in range(T):
        gates = (x[:, t:t + 1] * wih + b
                 + jnp.dot(h_bf, whh, preferred_element_type=jnp.float32))
        i = jax.nn.sigmoid(gates[:, 0 * H:2 * H])
        f = jax.nn.sigmoid(gates[:, 2 * H:4 * H])
        g = jnp.tanh(gates[:, 4 * H:6 * H])
        o = jax.nn.sigmoid(gates[:, 6 * H:8 * H])
        c = f * c + i * g
        h = o * jnp.tanh(c)
        h_bf = h.astype(jnp.bfloat16)

        # time-attention scores for this step (per branch), then the online
        # softmax-weighted accumulation (== softmax over T applied to ht).
        prod = h * watt[t:t + 1, :]                            # [Nt, 2H]
        s_s = jnp.sum(prod[:, :H], axis=1, keepdims=True)      # [Nt, 1]
        s_n = jnp.sum(prod[:, H:], axis=1, keepdims=True)      # [Nt, 1]

        m_s_new = jnp.maximum(m_s, s_s)
        a_s = jnp.exp(m_s - m_s_new)
        p_s = jnp.exp(s_s - m_s_new)
        l_s = a_s * l_s + p_s
        acc_s = a_s * acc_s + p_s * h[:, :H]
        m_s = m_s_new

        m_n_new = jnp.maximum(m_n, s_n)
        a_n = jnp.exp(m_n - m_n_new)
        p_n = jnp.exp(s_n - m_n_new)
        l_n = a_n * l_n + p_n
        acc_n = a_n * acc_n + p_n * h[:, H:]
        m_n = m_n_new

    att_ht_s = acc_s / l_s                 # exact normalization (sums to 1)
    att_ht_n = acc_n / l_n

    # fc + ReLU head of each ATT_LSTM.
    x1s_ref[...] = jnp.maximum(
        jnp.dot(att_ht_s, wfcs_ref[...], preferred_element_type=jnp.float32)
        + bfcs_ref[...], 0.0)
    embn_ref[...] = jnp.maximum(
        jnp.dot(att_ht_n, wfcn_ref[...], preferred_element_type=jnp.float32)
        + bfcn_ref[...], 0.0)


def lstm_att_stage(x, p):
    """x: [N, T] node-major sequence. Returns (x1s [N,O], emb_node [N,O])."""
    N, T = x.shape
    O = OUT_CH
    tn = N if N <= 256 else 256            # node tile; single tile at demo size
    # TODO(synk): for N > 256 with N % 256 != 0, pad the node axis.
    grid = (pl.cdiv(N, tn),)

    weights = (p["wih"], p["whh_bf16"], p["b"], p["watt"],
               p["wfc_s_t"], p["bfc_s"], p["wfc_n_t"], p["bfc_n"])
    in_specs = ([pl.BlockSpec((tn, T), lambda i: (i, 0))]
                + [_full_block(w) for w in weights])
    out_specs = (pl.BlockSpec((tn, O), lambda i: (i, 0)),
                 pl.BlockSpec((tn, O), lambda i: (i, 0)))
    out_shape = (jax.ShapeDtypeStruct((N, O), jnp.float32),
                 jax.ShapeDtypeStruct((N, O), jnp.float32))

    return pl.pallas_call(
        lstm_att_kernel,
        grid=grid,
        in_specs=in_specs,
        out_specs=out_specs,
        out_shape=out_shape,
        compiler_params=pltpu.CompilerParams(
            dimension_semantics=("parallel",),
            vmem_limit_bytes=_vmem_limit_bytes((x, *weights))),
    )(x, *weights)


# ----------------------------------------------------------------------------
# Stage 2: GCNConv x2 (dense normalized adjacency) + dropout + head.
# The global mean pool is folded into the second hop's adjacency (a2).
# ----------------------------------------------------------------------------
def gcn_head_kernel(x1s_ref, embn_ref, a1_ref, a2_ref, mask_ref,
                    w1_ref, b1_ref, w2_ref, b2_ref,
                    wss_ref, wsn_ref, bs_ref, out_ref):
    emb = embn_ref[...]                                          # [N, O]
    h1 = jnp.dot(a1_ref[...],
                 jnp.dot(emb, w1_ref[...], preferred_element_type=jnp.float32),
                 preferred_element_type=jnp.float32) + b1_ref[...]   # [N, H]
    h1 = h1 * mask_ref[...]                 # dropout mask pre-scaled by 1/(1-p)
    # second GCN hop with the mean-pool folded into a2 = pool @ a_hat
    # (pool rows sum to 1, so adding b2 afterwards is exact).
    x2n = jnp.dot(a2_ref[...],
                  jnp.dot(h1, w2_ref[...], preferred_element_type=jnp.float32),
                  preferred_element_type=jnp.float32) + b2_ref[...]  # [N, O]

    # linear_sales + ReLU on the (implicit) concat [x1s | x2n]:
    # VPU multiply + lane reduction instead of two [N,32]x[32,1] MXU passes.
    pred = (jnp.sum(x1s_ref[...] * wss_ref[...], axis=1, keepdims=True)
            + jnp.sum(x2n * wsn_ref[...], axis=1, keepdims=True)
            + bs_ref[...])                                       # [N, 1]
    out_ref[...] = jnp.maximum(pred, 0.0)


def gcn_head_stage(x1s, emb_node, a_hat, a2, mask, p):
    N = a_hat.shape[0]
    ops = (x1s, emb_node, a_hat, a2, mask,
           p["w1_t"], p["b1"], p["w2_t"], p["b2"],
           p["ws_s"], p["ws_n"], p["bs"])
    return pl.pallas_call(
        gcn_head_kernel,
        out_shape=jax.ShapeDtypeStruct((N, 1), jnp.float32),
        in_specs=[pl.BlockSpec(memory_space=pltpu.MemorySpace.VMEM)] * len(ops),
        out_specs=pl.BlockSpec(memory_space=pltpu.MemorySpace.VMEM),
        compiler_params=pltpu.CompilerParams(
            vmem_limit_bytes=_vmem_limit_bytes(ops)),
    )(*ops)


# ----------------------------------------------------------------------------
# JAX glue: GCN normalization, pooling matrix, parameter init / combination.
# ----------------------------------------------------------------------------
def gcn_norm_dense(edge_index, edge_weight, n):
    row, col = edge_index[0], edge_index[1]
    loop = jnp.arange(n, dtype=edge_index.dtype)
    row = jnp.concatenate([row, loop])
    col = jnp.concatenate([col, loop])
    ew = jnp.concatenate([edge_weight, jnp.ones((n,), jnp.float32)])
    deg = jnp.zeros((n,), jnp.float32).at[col].add(ew)
    dinv = jnp.where(deg > 0, 1.0 / jnp.sqrt(deg), 0.0)
    norm = dinv[row] * ew * dinv[col]
    # out_i = sum_{(j->i)} norm * x_j  =>  A_hat[i, j] += norm
    return jnp.zeros((n, n), jnp.float32).at[col, row].add(norm)


def mean_pool_matrix(batch, num_graphs):
    onehot = (jnp.arange(num_graphs, dtype=batch.dtype)[:, None]
              == batch[None, :]).astype(jnp.float32)              # [G, N]
    cnt = jnp.sum(onehot, axis=1, keepdims=True)
    return onehot / jnp.maximum(cnt, 1.0)


def init_att_lstm_params(key, lag, in_dim, hidden, out_dim):
    ks = jax.random.split(key, 7)
    s = 0.1
    wih = s * jax.random.normal(ks[0], (4 * hidden, in_dim), jnp.float32)
    whh = s * jax.random.normal(ks[1], (4 * hidden, hidden), jnp.float32)
    b_ih = s * jax.random.normal(ks[2], (4 * hidden,), jnp.float32)
    b_hh = s * jax.random.normal(ks[3], (4 * hidden,), jnp.float32)
    watt = s * jax.random.normal(ks[4], (lag, hidden), jnp.float32)
    wfc = s * jax.random.normal(ks[5], (out_dim, hidden), jnp.float32)
    bfc = s * jax.random.normal(ks[6], (out_dim,), jnp.float32)
    return {
        "wih_t": wih.T.reshape(in_dim, 4 * hidden),   # [1, 4H] (in_dim == 1)
        "whh_t": whh.T,                               # [H, 4H], gate order i,f,g,o
        "b": (b_ih + b_hh).reshape(1, 4 * hidden),    # [1, 4H]
        "watt": watt,                                 # [T, H]
        "wfc_t": wfc.T,                               # [H, O]
        "bfc": bfc.reshape(1, out_dim),               # [1, O]
    }


def combine_lstm_branches(ps, pn, hidden):
    """Interleave the two ATT-LSTM recurrences into one block-diagonal LSTM.

    Gate column layout: [i_s | i_n | f_s | f_n | g_s | g_n | o_s | o_n].
    """
    H = hidden

    def interleave(a_s, a_n):
        parts = []
        for g in range(4):
            parts.append(a_s[:, g * H:(g + 1) * H])
            parts.append(a_n[:, g * H:(g + 1) * H])
        return jnp.concatenate(parts, axis=1)

    whh = jnp.zeros((2 * H, 8 * H), jnp.float32)
    for g in range(4):
        whh = whh.at[:H, (2 * g) * H:(2 * g + 1) * H].set(
            ps["whh_t"][:, g * H:(g + 1) * H])
        whh = whh.at[H:, (2 * g + 1) * H:(2 * g + 2) * H].set(
            pn["whh_t"][:, g * H:(g + 1) * H])
    return {
        "wih": interleave(ps["wih_t"], pn["wih_t"]),                # [1, 8H]
        "b": interleave(ps["b"], pn["b"]),                          # [1, 8H]
        "whh_bf16": whh.astype(jnp.bfloat16),                       # [2H, 8H]
        "watt": jnp.concatenate([ps["watt"], pn["watt"]], axis=1),  # [T, 2H]
        "wfc_s_t": ps["wfc_t"], "bfc_s": ps["bfc"],
        "wfc_n_t": pn["wfc_t"], "bfc_n": pn["bfc"],
    }


def init_params(key):
    k1, k2, k3, k4, k5, k6, k7, k8, kdrop = jax.random.split(key, 9)
    s = 0.1
    p = combine_lstm_branches(
        init_att_lstm_params(k1, LAG, FEA_DIM, HID, OUT_CH),
        init_att_lstm_params(k2, LAG, 1, HID, OUT_CH),
        HID)
    p.update({
        "w1_t": s * jax.random.normal(k3, (OUT_CH, HID), jnp.float32),
        "b1": s * jax.random.normal(k4, (1, HID), jnp.float32),
        "w2_t": s * jax.random.normal(k5, (HID, OUT_CH), jnp.float32),
        "b2": s * jax.random.normal(k6, (1, OUT_CH), jnp.float32),
        "ws_s": s * jax.random.normal(k7, (1, OUT_CH), jnp.float32),
        "ws_n": s * jax.random.normal(k8, (1, OUT_CH), jnp.float32),
        "bs": jnp.zeros((1, 1), jnp.float32),
        "dropout_key": kdrop,
    })
    return p


# ----------------------------------------------------------------------------
# TRENDSPOT2 forward (jittable: num_graphs == N is static).
# ----------------------------------------------------------------------------
def trendspot2_forward(node_x, edge_index, edge_weight, batch, params):
    n = node_x.shape[0]
    assert node_x.shape[1] == FEA_DIM * LAG
    # With fea_dim == 1 the series branch (reshape(-1,1,30).transpose(2,1)) and
    # the nodes branch (unsqueeze(1).transpose(2,1)) see the SAME [N,30,1]
    # sequence, so node_x [N, T] is fed once, node-major (time along lanes).
    a_hat = gcn_norm_dense(edge_index, edge_weight, n)           # [N, N]
    # num_graphs == n statically (torch cat([x1s, x2n]) only works then).
    pool = mean_pool_matrix(batch, n)                            # [N, N]
    a2 = jnp.dot(pool, a_hat)        # mean pool folded into the 2nd GCN hop

    # TODO(synk): dropout mask built host-side with jax.random (fixed key,
    # training=True like the torch module); could move to pltpu.prng_* in-kernel.
    keep = jax.random.bernoulli(params["dropout_key"], 0.5, (n, HID))
    mask = keep.astype(jnp.float32) * 2.0                        # p = 0.5

    x1s, emb_node = lstm_att_stage(node_x, params)               # [N, O] x2
    pred = gcn_head_stage(x1s, emb_node, a_hat, a2, mask, params)  # [N, 1]
    return pred[:, 0]


if __name__ == "__main__":
    key = jax.random.PRNGKey(0)
    kx, kw, kp = jax.random.split(key, 3)

    N = 8
    node_x = jax.random.normal(kx, (N, FEA_DIM * LAG), jnp.float32)  # [8, 30]

    # bidirectional ring graph: 16 directed edges
    src = jnp.arange(N, dtype=jnp.int32)
    dst = (src + 1) % N
    edge_index = jnp.concatenate(
        [jnp.stack([src, dst]), jnp.stack([dst, src])], axis=1)       # [2, 16]
    edge_attr = 0.5 + jax.random.uniform(kw, (edge_index.shape[1],), jnp.float32)
    # one graph per node so cat([x1s, x2n], dim=1) is shape-consistent,
    # matching the torch module's implicit assumption.
    batch = jnp.arange(N, dtype=jnp.int32)

    params = init_params(kp)

    fwd = jax.jit(trendspot2_forward)
    pred = jax.block_until_ready(fwd(node_x, edge_index, edge_attr, batch, params))
    assert pred.shape == (N,)
    print("KERNEL_OK")
</pallas_src>

<mosaic_0001>
module attributes {stable_mosaic.version = 11 : i64} {
  func.func private @main(%arg0: i32) attributes {dimension_semantics = [#tpu.dimension_semantics<core_parallel>], iteration_bounds = array<i64: 2>, tpu.core_type = #tpu.core_type<sc_scalar_subcore>, window_params = []} {
    return
  }
}

module attributes {stable_mosaic.version = 11 : i64} {
  func.func private @main(%arg0: i32) attributes {dimension_semantics = [#tpu.dimension_semantics<core_parallel>], iteration_bounds = array<i64: 2>, tpu.core_type = #tpu.core_type<sc_scalar_subcore>, window_params = []} {
    return
  }
}

module attributes {stable_mosaic.version = 11 : i64} {
  func.func @gcn_head_kernel(%arg0: memref<8x32xf32, #tpu.memory_space<vmem>>, %arg1: memref<8x32xf32, #tpu.memory_space<vmem>>, %arg2: memref<8x8xf32, #tpu.memory_space<vmem>>, %arg3: memref<8x8xf32, #tpu.memory_space<vmem>>, %arg4: memref<8x32xf32, #tpu.memory_space<vmem>>, %arg5: memref<32x32xf32, #tpu.memory_space<vmem>>, %arg6: memref<1x32xf32, #tpu.memory_space<vmem>>, %arg7: memref<32x32xf32, #tpu.memory_space<vmem>>, %arg8: memref<1x32xf32, #tpu.memory_space<vmem>>, %arg9: memref<1x32xf32, #tpu.memory_space<vmem>>, %arg10: memref<1x32xf32, #tpu.memory_space<vmem>>, %arg11: memref<1x1xf32, #tpu.memory_space<vmem>>, %arg12: memref<8x1xf32, #tpu.memory_space<vmem>>) attributes {dimension_semantics = [], scalar_prefetch = 0 : i64, scratch_operands = 0 : i64, tpu.core_type = #tpu.core_type<tc>} {
    %c0 = arith.constant 0 : index
    %c0_0 = arith.constant 0 : index
    %0 = vector.load %arg1[%c0, %c0_0] : memref<8x32xf32, #tpu.memory_space<vmem>>, vector<8x32xf32>
    %c0_1 = arith.constant 0 : index
    %c0_2 = arith.constant 0 : index
    %1 = vector.load %arg2[%c0_1, %c0_2] : memref<8x8xf32, #tpu.memory_space<vmem>>, vector<8x8xf32>
    %c0_3 = arith.constant 0 : index
    %c0_4 = arith.constant 0 : index
    %2 = vector.load %arg5[%c0_3, %c0_4] : memref<32x32xf32, #tpu.memory_space<vmem>>, vector<32x32xf32>
    %cst = arith.constant dense<0.000000e+00> : vector<8x32xf32>
    %3 = tpu.matmul %0, %2, %cst {dimension_numbers = #tpu.dot_dimension_numbers<[1], [0], [0], [1], [0, 0, 1, 1], [], []>} : vector<8x32xf32>, vector<32x32xf32>, vector<8x32xf32> -> vector<8x32xf32>
    %cst_5 = arith.constant dense<0.000000e+00> : vector<8x32xf32>
    %4 = tpu.matmul %1, %3, %cst_5 {dimension_numbers = #tpu.dot_dimension_numbers<[1], [0], [0], [1], [0, 0, 1, 1], [], []>} : vector<8x8xf32>, vector<8x32xf32>, vector<8x32xf32> -> vector<8x32xf32>
    %c0_6 = arith.constant 0 : index
    %c0_7 = arith.constant 0 : index
    %5 = vector.load %arg6[%c0_6, %c0_7] : memref<1x32xf32, #tpu.memory_space<vmem>>, vector<1x32xf32>
    %6 = vector.broadcast %5 : vector<1x32xf32> to vector<8x32xf32>
    %7 = arith.addf %4, %6 : vector<8x32xf32>
    %c0_8 = arith.constant 0 : index
    %c0_9 = arith.constant 0 : index
    %8 = vector.load %arg4[%c0_8, %c0_9] : memref<8x32xf32, #tpu.memory_space<vmem>>, vector<8x32xf32>
    %9 = arith.mulf %7, %8 : vector<8x32xf32>
    %c0_10 = arith.constant 0 : index
    %c0_11 = arith.constant 0 : index
    %10 = vector.load %arg3[%c0_10, %c0_11] : memref<8x8xf32, #tpu.memory_space<vmem>>, vector<8x8xf32>
    %c0_12 = arith.constant 0 : index
    %c0_13 = arith.constant 0 : index
    %11 = vector.load %arg7[%c0_12, %c0_13] : memref<32x32xf32, #tpu.memory_space<vmem>>, vector<32x32xf32>
    %cst_14 = arith.constant dense<0.000000e+00> : vector<8x32xf32>
    %12 = tpu.matmul %9, %11, %cst_14 {dimension_numbers = #tpu.dot_dimension_numbers<[1], [0], [0], [1], [0, 0, 1, 1], [], []>} : vector<8x32xf32>, vector<32x32xf32>, vector<8x32xf32> -> vector<8x32xf32>
    %cst_15 = arith.constant dense<0.000000e+00> : vector<8x32xf32>
    %13 = tpu.matmul %10, %12, %cst_15 {dimension_numbers = #tpu.dot_dimension_numbers<[1], [0], [0], [1], [0, 0, 1, 1], [], []>} : vector<8x8xf32>, vector<8x32xf32>, vector<8x32xf32> -> vector<8x32xf32>
    %c0_16 = arith.constant 0 : index
    %c0_17 = arith.constant 0 : index
    %14 = vector.load %arg8[%c0_16, %c0_17] : memref<1x32xf32, #tpu.memory_space<vmem>>, vector<1x32xf32>
    %15 = vector.broadcast %14 : vector<1x32xf32> to vector<8x32xf32>
    %16 = arith.addf %13, %15 : vector<8x32xf32>
    %c0_18 = arith.constant 0 : index
    %c0_19 = arith.constant 0 : index
    %17 = vector.load %arg0[%c0_18, %c0_19] : memref<8x32xf32, #tpu.memory_space<vmem>>, vector<8x32xf32>
    %c0_20 = arith.constant 0 : index
    %c0_21 = arith.constant 0 : index
    %18 = vector.load %arg9[%c0_20, %c0_21] : memref<1x32xf32, #tpu.memory_space<vmem>>, vector<1x32xf32>
    %19 = vector.broadcast %18 : vector<1x32xf32> to vector<8x32xf32>
    %20 = arith.mulf %17, %19 : vector<8x32xf32>
    %cst_22 = arith.constant dense<0.000000e+00> : vector<8xf32>
    %21 = vector.multi_reduction <add>, %20, %cst_22 [1] : vector<8x32xf32> to vector<8xf32>
    %22 = vector.shape_cast %21 : vector<8xf32> to vector<8x1xf32>
    %c0_23 = arith.constant 0 : index
    %c0_24 = arith.constant 0 : index
    %23 = vector.load %arg10[%c0_23, %c0_24] : memref<1x32xf32, #tpu.memory_space<vmem>>, vector<1x32xf32>
    %24 = vector.broadcast %23 : vector<1x32xf32> to vector<8x32xf32>
    %25 = arith.mulf %16, %24 : vector<8x32xf32>
    %cst_25 = arith.constant dense<0.000000e+00> : vector<8xf32>
    %26 = vector.multi_reduction <add>, %25, %cst_25 [1] : vector<8x32xf32> to vector<8xf32>
    %27 = vector.shape_cast %26 : vector<8xf32> to vector<8x1xf32>
    %28 = arith.addf %22, %27 : vector<8x1xf32>
    %c0_26 = arith.constant 0 : index
    %c0_27 = arith.constant 0 : index
    %29 = vector.load %arg11[%c0_26, %c0_27] : memref<1x1xf32, #tpu.memory_space<vmem>>, vector<1x1xf32>
    %30 = vector.broadcast %29 : vector<1x1xf32> to vector<8x1xf32>
    %31 = arith.addf %28, %30 : vector<8x1xf32>
    %cst_28 = arith.constant 0.000000e+00 : f32
    %32 = vector.broadcast %cst_28 : f32 to vector<8x1xf32>
    %33 = arith.maximumf %31, %32 : vector<8x1xf32>
    %c0_29 = arith.constant 0 : index
    %c0_30 = arith.constant 0 : index
    %34 = vector.load %arg12[%c0_29, %c0_30] : memref<8x1xf32, #tpu.memory_space<vmem>>, vector<8x1xf32>
    tpu.vector_store %arg12[%c0_29, %c0_30], %33 {strides = array<i32>} : memref<8x1xf32, #tpu.memory_space<vmem>>, vector<8x1xf32>,
    return
  }
}

module attributes {stable_mosaic.version = 11 : i64} {
  func.func @lstm_att_kernel(%arg0: i32, %arg1: memref<8x30xf32, #tpu.memory_space<vmem>>, %arg2: memref<1x256xf32, #tpu.memory_space<vmem>>, %arg3: memref<64x256xbf16, #tpu.memory_space<vmem>>, %arg4: memref<1x256xf32, #tpu.memory_space<vmem>>, %arg5: memref<30x64xf32, #tpu.memory_space<vmem>>, %arg6: memref<32x32xf32, #tpu.memory_space<vmem>>, %arg7: memref<1x32xf32, #tpu.memory_space<vmem>>, %arg8: memref<32x32xf32, #tpu.memory_space<vmem>>, %arg9: memref<1x32xf32, #tpu.memory_space<vmem>>, %arg10: memref<8x32xf32, #tpu.memory_space<vmem>>, %arg11: memref<8x32xf32, #tpu.memory_space<vmem>>) attributes {dimension_semantics = [#tpu.dimension_semantics<parallel>], iteration_bounds = array<i64: 1>, scalar_prefetch = 0 : i64, scratch_operands = 0 : i64, tpu.core_type = #tpu.core_type<tc>, window_params = [{transform_indices = @transform_0, window_bounds = array<i64: 8, 30>}, {pipeline_mode = #tpu.pipeline_mode<synchronous>, transform_indices = @transform_1, window_bounds = array<i64: 1, 256>}, {pipeline_mode = #tpu.pipeline_mode<synchronous>, transform_indices = @transform_2, window_bounds = array<i64: 64, 256>}, {pipeline_mode = #tpu.pipeline_mode<synchronous>, transform_indices = @transform_3, window_bounds = array<i64: 1, 256>}, {pipeline_mode = #tpu.pipeline_mode<synchronous>, transform_indices = @transform_4, window_bounds = array<i64: 30, 64>}, {pipeline_mode = #tpu.pipeline_mode<synchronous>, transform_indices = @transform_5, window_bounds = array<i64: 32, 32>}, {pipeline_mode = #tpu.pipeline_mode<synchronous>, transform_indices = @transform_6, window_bounds = array<i64: 1, 32>}, {pipeline_mode = #tpu.pipeline_mode<synchronous>, transform_indices = @transform_7, window_bounds = array<i64: 32, 32>}, {pipeline_mode = #tpu.pipeline_mode<synchronous>, transform_indices = @transform_8, window_bounds = array<i64: 1, 32>}, {transform_indices = @transform_9, window_bounds = array<i64: 8, 32>}, {transform_indices = @transform_10, window_bounds = array<i64: 8, 32>}]} {
    %c0 = arith.constant 0 : index
    %c0_0 = arith.constant 0 : index
    %0 = vector.load %arg1[%c0, %c0_0] : memref<8x30xf32, #tpu.memory_space<vmem>>, vector<8x30xf32>
    %c0_1 = arith.constant 0 : index
    %c0_2 = arith.constant 0 : index
    %1 = vector.load %arg2[%c0_1, %c0_2] : memref<1x256xf32, #tpu.memory_space<vmem>>, vector<1x256xf32>
    %c0_3 = arith.constant 0 : index
    %c0_4 = arith.constant 0 : index
    %2 = vector.load %arg4[%c0_3, %c0_4] : memref<1x256xf32, #tpu.memory_space<vmem>>, vector<1x256xf32>
    %c0_5 = arith.constant 0 : index
    %c0_6 = arith.constant 0 : index
    %3 = vector.load %arg3[%c0_5, %c0_6] : memref<64x256xbf16, #tpu.memory_space<vmem>>, vector<64x256xbf16>
    %c0_7 = arith.constant 0 : index
    %c0_8 = arith.constant 0 : index
    %4 = vector.load %arg5[%c0_7, %c0_8] : memref<30x64xf32, #tpu.memory_space<vmem>>, vector<30x64xf32>
    %cst = arith.constant 0.000000e+00 : f32
    %5 = vector.broadcast %cst : f32 to vector<8x64xf32>
    %cst_9 = arith.constant 0.000000e+00 : f32
    %6 = vector.broadcast %cst_9 : f32 to vector<8x64xf32>
    %7 = arith.truncf %6 : vector<8x64xf32> to vector<8x64xbf16>
    %cst_10 = arith.constant 0xFF800000 : f32
    %8 = vector.broadcast %cst_10 : f32 to vector<8x1xf32>
    %cst_11 = arith.constant 0xFF800000 : f32
    %9 = vector.broadcast %cst_11 : f32 to vector<8x1xf32>
    %cst_12 = arith.constant 0.000000e+00 : f32
    %10 = vector.broadcast %cst_12 : f32 to vector<8x1xf32>
    %cst_13 = arith.constant 0.000000e+00 : f32
    %11 = vector.broadcast %cst_13 : f32 to vector<8x1xf32>
    %cst_14 = arith.constant 0.000000e+00 : f32
    %12 = vector.broadcast %cst_14 : f32 to vector<8x32xf32>
    %cst_15 = arith.constant 0.000000e+00 : f32
    %13 = vector.broadcast %cst_15 : f32 to vector<8x32xf32>
    %14 = vector.extract_strided_slice %0 {offsets = [0, 0], sizes = [8, 1], strides = [1, 1]} : vector<8x30xf32> to vector<8x1xf32>
    %15 = vector.broadcast %14 : vector<8x1xf32> to vector<8x256xf32>
    %16 = vector.broadcast %1 : vector<1x256xf32> to vector<8x256xf32>
    %17 = arith.mulf %15, %16 : vector<8x256xf32>
    %18 = vector.broadcast %2 : vector<1x256xf32> to vector<8x256xf32>
    %19 = arith.addf %17, %18 : vector<8x256xf32>
    %cst_16 = arith.constant dense<0.000000e+00> : vector<8x256xf32>
    %20 = tpu.matmul %7, %3, %cst_16 {dimension_numbers = #tpu.dot_dimension_numbers<[1], [0], [0], [1], [0, 0, 1, 1], [], []>} : vector<8x64xbf16>, vector<64x256xbf16>, vector<8x256xf32> -> vector<8x256xf32>
    %21 = arith.addf %19, %20 : vector<8x256xf32>
    %22 = vector.extract_strided_slice %21 {offsets = [0, 0], sizes = [8, 64], strides = [1, 1]} : vector<8x256xf32> to vector<8x64xf32>
    %23 = arith.negf %22 : vector<8x64xf32>
    %24 = math.exp %23 : vector<8x64xf32>
    %cst_17 = arith.constant 1.000000e+00 : f32
    %25 = vector.broadcast %cst_17 : f32 to vector<8x64xf32>
    %26 = arith.addf %25, %24 : vector<8x64xf32>
    %27 = arith.divf %25, %26 : vector<8x64xf32>
    %28 = vector.extract_strided_slice %21 {offsets = [0, 64], sizes = [8, 64], strides = [1, 1]} : vector<8x256xf32> to vector<8x64xf32>
    %29 = arith.negf %28 : vector<8x64xf32>
    %30 = math.exp %29 : vector<8x64xf32>
    %cst_18 = arith.constant 1.000000e+00 : f32
    %31 = vector.broadcast %cst_18 : f32 to vector<8x64xf32>
    %32 = arith.addf %31, %30 : vector<8x64xf32>
    %33 = arith.divf %31, %32 : vector<8x64xf32>
    %34 = vector.extract_strided_slice %21 {offsets = [0, 128], sizes = [8, 64], strides = [1, 1]} : vector<8x256xf32> to vector<8x64xf32>
    %35 = math.tanh %34 : vector<8x64xf32>
    %36 = vector.extract_strided_slice %21 {offsets = [0, 192], sizes = [8, 64], strides = [1, 1]} : vector<8x256xf32> to vector<8x64xf32>
    %37 = arith.negf %36 : vector<8x64xf32>
    %38 = math.exp %37 : vector<8x64xf32>
    %cst_19 = arith.constant 1.000000e+00 : f32
    %39 = vector.broadcast %cst_19 : f32 to vector<8x64xf32>
    %40 = arith.addf %39, %38 : vector<8x64xf32>
    %41 = arith.divf %39, %40 : vector<8x64xf32>
    %42 = arith.mulf %33, %5 : vector<8x64xf32>
    %43 = arith.mulf %27, %35 : vector<8x64xf32>
    %44 = arith.addf %42, %43 : vector<8x64xf32>
    %45 = math.tanh %44 : vector<8x64xf32>
    %46 = arith.mulf %41, %45 : vector<8x64xf32>
    %47 = arith.truncf %46 : vector<8x64xf32> to vector<8x64xbf16>
    %48 = vector.extract_strided_slice %4 {offsets = [0, 0], sizes = [1, 64], strides = [1, 1]} : vector<30x64xf32> to vector<1x64xf32>
    %49 = vector.broadcast %48 : vector<1x64xf32> to vector<8x64xf32>
    %50 = arith.mulf %46, %49 : vector<8x64xf32>
    %51 = vector.extract_strided_slice %50 {offsets = [0, 0], sizes = [8, 32], strides = [1, 1]} : vector<8x64xf32> to vector<8x32xf32>
    %cst_20 = arith.constant dense<0.000000e+00> : vector<8xf32>
    %52 = vector.multi_reduction <add>, %51, %cst_20 [1] : vector<8x32xf32> to vector<8xf32>
    %53 = vector.shape_cast %52 : vector<8xf32> to vector<8x1xf32>
    %54 = vector.extract_strided_slice %50 {offsets = [0, 32], sizes = [8, 32], strides = [1, 1]} : vector<8x64xf32> to vector<8x32xf32>
    %cst_21 = arith.constant dense<0.000000e+00> : vector<8xf32>
    %55 = vector.multi_reduction <add>, %54, %cst_21 [1] : vector<8x32xf32> to vector<8xf32>
    %56 = vector.shape_cast %55 : vector<8xf32> to vector<8x1xf32>
    %57 = arith.maximumf %8, %53 : vector<8x1xf32>
    %58 = arith.subf %8, %57 : vector<8x1xf32>
    %59 = math.exp %58 : vector<8x1xf32>
    %60 = arith.subf %53, %57 : vector<8x1xf32>
    %61 = math.exp %60 : vector<8x1xf32>
    %62 = arith.mulf %59, %10 : vector<8x1xf32>
    %63 = arith.addf %62, %61 : vector<8x1xf32>
    %64 = vector.broadcast %59 : vector<8x1xf32> to vector<8x32xf32>
    %65 = arith.mulf %64, %12 : vector<8x32xf32>
    %66 = vector.extract_strided_slice %46 {offsets = [0, 0], sizes = [8, 32], strides = [1, 1]} : vector<8x64xf32> to vector<8x32xf32>
    %67 = vector.broadcast %61 : vector<8x1xf32> to vector<8x32xf32>
    %68 = arith.mulf %67, %66 : vector<8x32xf32>
    %69 = arith.addf %65, %68 : vector<8x32xf32>
    %70 = arith.maximumf %9, %56 : vector<8x1xf32>
    %71 = arith.subf %9, %70 : vector<8x1xf32>
    %72 = math.exp %71 : vector<8x1xf32>
    %73 = arith.subf %56, %70 : vector<8x1xf32>
    %74 = math.exp %73 : vector<8x1xf32>
    %75 = arith.mulf %72, %11 : vector<8x1xf32>
    %76 = arith.addf %75, %74 : vector<8x1xf32>
    %77 = vector.broadcast %72 : vector<8x1xf32> to vector<8x32xf32>
    %78 = arith.mulf %77, %13 : vector<8x32xf32>
    %79 = vector.extract_strided_slice %46 {offsets = [0, 32], sizes = [8, 32], strides = [1, 1]} : vector<8x64xf32> to vector<8x32xf32>
    %80 = vector.broadcast %74 : vector<8x1xf32> to vector<8x32xf32>
    %81 = arith.mulf %80, %79 : vector<8x32xf32>
    %82 = arith.addf %78, %81 : vector<8x32xf32>
    %83 = vector.extract_strided_slice %0 {offsets = [0, 1], sizes = [8, 1], strides = [1, 1]} : vector<8x30xf32> to vector<8x1xf32>
    %84 = vector.broadcast %83 : vector<8x1xf32> to vector<8x256xf32>
    %85 = vector.broadcast %1 : vector<1x256xf32> to vector<8x256xf32>
    %86 = arith.mulf %84, %85 : vector<8x256xf32>
    %87 = vector.broadcast %2 : vector<1x256xf32> to vector<8x256xf32>
    %88 = arith.addf %86, %87 : vector<8x256xf32>
    %cst_22 = arith.constant dense<0.000000e+00> : vector<8x256xf32>
    %89 = tpu.matmul %47, %3, %cst_22 {dimension_numbers = #tpu.dot_dimension_numbers<[1], [0], [0], [1], [0, 0, 1, 1], [], []>} : vector<8x64xbf16>, vector<64x256xbf16>, vector<8x256xf32> -> vector<8x256xf32>
    %90 = arith.addf %88, %89 : vector<8x256xf32>
    %91 = vector.extract_strided_slice %90 {offsets = [0, 0], sizes = [8, 64], strides = [1, 1]} : vector<8x256xf32> to vector<8x64xf32>
    %92 = arith.negf %91 : vector<8x64xf32>
    %93 = math.exp %92 : vector<8x64xf32>
    %cst_23 = arith.constant 1.000000e+00 : f32
    %94 = vector.broadcast %cst_23 : f32 to vector<8x64xf32>
    %95 = arith.addf %94, %93 : vector<8x64xf32>
    %96 = arith.divf %94, %95 : vector<8x64xf32>
    %97 = vector.extract_strided_slice %90 {offsets = [0, 64], sizes = [8, 64], strides = [1, 1]} : vector<8x256xf32> to vector<8x64xf32>
    %98 = arith.negf %97 : vector<8x64xf32>
    %99 = math.exp %98 : vector<8x64xf32>
    %cst_24 = arith.constant 1.000000e+00 : f32
    %100 = vector.broadcast %cst_24 : f32 to vector<8x64xf32>
    %101 = arith.addf %100, %99 : vector<8x64xf32>
    %102 = arith.divf %100, %101 : vector<8x64xf32>
    %103 = vector.extract_strided_slice %90 {offsets = [0, 128], sizes = [8, 64], strides = [1, 1]} : vector<8x256xf32> to vector<8x64xf32>
    %104 = math.tanh %103 : vector<8x64xf32>
    %105 = vector.extract_strided_slice %90 {offsets = [0, 192], sizes = [8, 64], strides = [1, 1]} : vector<8x256xf32> to vector<8x64xf32>
    %106 = arith.negf %105 : vector<8x64xf32>
    %107 = math.exp %106 : vector<8x64xf32>
    %cst_25 = arith.constant 1.000000e+00 : f32
    %108 = vector.broadcast %cst_25 : f32 to vector<8x64xf32>
    %109 = arith.addf %108, %107 : vector<8x64xf32>
    %110 = arith.divf %108, %109 : vector<8x64xf32>
    %111 = arith.mulf %102, %44 : vector<8x64xf32>
    %112 = arith.mulf %96, %104 : vector<8x64xf32>
    %113 = arith.addf %111, %112 : vector<8x64xf32>
    %114 = math.tanh %113 : vector<8x64xf32>
    %115 = arith.mulf %110, %114 : vector<8x64xf32>
    %116 = arith.truncf %115 : vector<8x64xf32> to vector<8x64xbf16>
    %117 = vector.extract_strided_slice %4 {offsets = [1, 0], sizes = [1, 64], strides = [1, 1]} : vector<30x64xf32> to vector<1x64xf32>
    %118 = vector.broadcast %117 : vector<1x64xf32> to vector<8x64xf32>
    %119 = arith.mulf %115, %118 : vector<8x64xf32>
    %120 = vector.extract_strided_slice %119 {offsets = [0, 0], sizes = [8, 32], strides = [1, 1]} : vector<8x64xf32> to vector<8x32xf32>
    %cst_26 = arith.constant dense<0.000000e+00> : vector<8xf32>
    %121 = vector.multi_reduction <add>, %120, %cst_26 [1] : vector<8x32xf32> to vector<8xf32>
    %122 = vector.shape_cast %121 : vector<8xf32> to vector<8x1xf32>
    %123 = vector.extract_strided_slice %119 {offsets = [0, 32], sizes = [8, 32], strides = [1, 1]} : vector<8x64xf32> to vector<8x32xf32>
    %cst_27 = arith.constant dense<0.000000e+00> : vector<8xf32>
    %124 = vector.multi_reduction <add>, %123, %cst_27 [1] : vector<8x32xf32> to vector<8xf32>
    %125 = vector.shape_cast %124 : vector<8xf32> to vector<8x1xf32>
    %126 = arith.maximumf %57, %122 : vector<8x1xf32>
    %127 = arith.subf %57, %126 : vector<8x1xf32>
    %128 = math.exp %127 : vector<8x1xf32>
    %129 = arith.subf %122, %126 : vector<8x1xf32>
    %130 = math.exp %129 : vector<8x1xf32>
    %131 = arith.mulf %128, %63 : vector<8x1xf32>
    %132 = arith.addf %131, %130 : vector<8x1xf32>
    %133 = vector.broadcast %128 : vector<8x1xf32> to vector<8x32xf32>
    %134 = arith.mulf %133, %69 : vector<8x32xf32>
    %135 = vector.extract_strided_slice %115 {offsets = [0, 0], sizes = [8, 32], strides = [1, 1]} : vector<8x64xf32> to vector<8x32xf32>
    %136 = vector.broadcast %130 : vector<8x1xf32> to vector<8x32xf32>
    %137 = arith.mulf %136, %135 : vector<8x32xf32>
    %138 = arith.addf %134, %137 : vector<8x32xf32>
    %139 = arith.maximumf %70, %125 : vector<8x1xf32>
    %140 = arith.subf %70, %139 : vector<8x1xf32>
    %141 = math.exp %140 : vector<8x1xf32>
    %142 = arith.subf %125, %139 : vector<8x1xf32>
    %143 = math.exp %142 : vector<8x1xf32>
    %144 = arith.mulf %141, %76 : vector<8x1xf32>
    %145 = arith.addf %144, %143 : vector<8x1xf32>
    %146 = vector.broadcast %141 : vector<8x1xf32> to vector<8x32xf32>
    %147 = arith.mulf %146, %82 : vector<8x32xf32>
    %148 = vector.extract_strided_slice %115 {offsets = [0, 32], sizes = [8, 32], strides = [1, 1]} : vector<8x64xf32> to vector<8x32xf32>
    %149 = vector.broadcast %143 : vector<8x1xf32> to vector<8x32xf32>
    %150 = arith.mulf %149, %148 : vector<8x32xf32>
    %151 = arith.addf %147, %150 : vector<8x32xf32>
    %152 = vector.extract_strided_slice %0 {offsets = [0, 2], sizes = [8, 1], strides = [1, 1]} : vector<8x30xf32> to vector<8x1xf32>
    %153 = vector.broadcast %152 : vector<8x1xf32> to vector<8x256xf32>
    %154 = vector.broadcast %1 : vector<1x256xf32> to vector<8x256xf32>
    %155 = arith.mulf %153, %154 : vector<8x256xf32>
    %156 = vector.broadcast %2 : vector<1x256xf32> to vector<8x256xf32>
    %157 = arith.addf %155, %156 : vector<8x256xf32>
    %cst_28 = arith.constant dense<0.000000e+00> : vector<8x256xf32>
    %158 = tpu.matmul %116, %3, %cst_28 {dimension_numbers = #tpu.dot_dimension_numbers<[1], [0], [0], [1], [0, 0, 1, 1], [], []>} : vector<8x64xbf16>, vector<64x256xbf16>, vector<8x256xf32> -> vector<8x256xf32>
    %159 = arith.addf %157, %158 : vector<8x256xf32>
    %160 = vector.extract_strided_slice %159 {offsets = [0, 0], sizes = [8, 64], strides = [1, 1]} : vector<8x256xf32> to vector<8x64xf32>
    %161 = arith.negf %160 : vector<8x64xf32>
    %162 = math.exp %161 : vector<8x64xf32>
    %cst_29 = arith.constant 1.000000e+00 : f32
    %163 = vector.broadcast %cst_29 : f32 to vector<8x64xf32>
    %164 = arith.addf %163, %162 : vector<8x64xf32>
    %165 = arith.divf %163, %164 : vector<8x64xf32>
    %166 = vector.extract_strided_slice %159 {offsets = [0, 64], sizes = [8, 64], strides = [1, 1]} : vector<8x256xf32> to vector<8x64xf32>
    %167 = arith.negf %166 : vector<8x64xf32>
    %168 = math.exp %167 : vector<8x64xf32>
    %cst_30 = arith.constant 1.000000e+00 : f32
    %169 = vector.broadcast %cst_30 : f32 to vector<8x64xf32>
    %170 = arith.addf %169, %168 : vector<8x64xf32>
    %171 = arith.divf %169, %170 : vector<8x64xf32>
    %172 = vector.extract_strided_slice %159 {offsets = [0, 128], sizes = [8, 64], strides = [1, 1]} : vector<8x256xf32> to vector<8x64xf32>
    %173 = math.tanh %172 : vector<8x64xf32>
    %174 = vector.extract_strided_slice %159 {offsets = [0, 192], sizes = [8, 64], strides = [1, 1]} : vector<8x256xf32> to vector<8x64xf32>
    %175 = arith.negf %174 : vector<8x64xf32>
    %176 = math.exp %175 : vector<8x64xf32>
    %cst_31 = arith.constant 1.000000e+00 : f32
    %177 = vector.broadcast %cst_31 : f32 to vector<8x64xf32>
    %178 = arith.addf %177, %176 : vector<8x64xf32>
    %179 = arith.divf %177, %178 : vector<8x64xf32>
    %180 = arith.mulf %171, %113 : vector<8x64xf32>
    %181 = arith.mulf %165, %173 : vector<8x64xf32>
    %182 = arith.addf %180, %181 : vector<8x64xf32>
    %183 = math.tanh %182 : vector<8x64xf32>
    %184 = arith.mulf %179, %183 : vector<8x64xf32>
    %185 = arith.truncf %184 : vector<8x64xf32> to vector<8x64xbf16>
    %186 = vector.extract_strided_slice %4 {offsets = [2, 0], sizes = [1, 64], strides = [1, 1]} : vector<30x64xf32> to vector<1x64xf32>
    %187 = vector.broadcast %186 : vector<1x64xf32> to vector<8x64xf32>
    %188 = arith.mulf %184, %187 : vector<8x64xf32>
    %189 = vector.extract_strided_slice %188 {offsets = [0, 0], sizes = [8, 32], strides = [1, 1]} : vector<8x64xf32> to vector<8x32xf32>
    %cst_32 = arith.constant dense<0.000000e+00> : vector<8xf32>
    %190 = vector.multi_reduction <add>, %189, %cst_32 [1] : vector<8x32xf32> to vector<8xf32>
    %191 = vector.shape_cast %190 : vector<8xf32> to vector<8x1xf32>
    %192 = vector.extract_strided_slice %188 {offsets = [0, 32], sizes = [8, 32], strides = [1, 1]} : vector<8x64xf32> to vector<8x32xf32>
    %cst_33 = arith.constant dense<0.000000e+00> : vector<8xf32>
    %193 = vector.multi_reduction <add>, %192, %cst_33 [1] : vector<8x32xf32> to vector<8xf32>
    %194 = vector.shape_cast %193 : vector<8xf32> to vector<8x1xf32>
    %195 = arith.maximumf %126, %191 : vector<8x1xf32>
    %196 = arith.subf %126, %195 : vector<8x1xf32>
    %197 = math.exp %196 : vector<8x1xf32>
    %198 = arith.subf %191, %195 : vector<8x1xf32>
    %199 = math.exp %198 : vector<8x1xf32>
    %200 = arith.mulf %197, %132 : vector<8x1xf32>
    %201 = arith.addf %200, %199 : vector<8x1xf32>
    %202 = vector.broadcast %197 : vector<8x1xf32> to vector<8x32xf32>
    %203 = arith.mulf %202, %138 : vector<8x32xf32>
    %204 = vector.extract_strided_slice %184 {offsets = [0, 0], sizes = [8, 32], strides = [1, 1]} : vector<8x64xf32> to vector<8x32xf32>
    %205 = vector.broadcast %199 : vector<8x1xf32> to vector<8x32xf32>
    %206 = arith.mulf %205, %204 : vector<8x32xf32>
    %207 = arith.addf %203, %206 : vector<8x32xf32>
    %208 = arith.maximumf %139, %194 : vector<8x1xf32>
    %209 = arith.subf %139, %208 : vector<8x1xf32>
    %210 = math.exp %209 : vector<8x1xf32>
    %211 = arith.subf %194, %208 : vector<8x1xf32>
    %212 = math.exp %211 : vector<8x1xf32>
    %213 = arith.mulf %210, %145 : vector<8x1xf32>
    %214 = arith.addf %213, %212 : vector<8x1xf32>
    %215 = vector.broadcast %210 : vector<8x1xf32> to vector<8x32xf32>
    %216 = arith.mulf %215, %151 : vector<8x32xf32>
    %217 = vector.extract_strided_slice %184 {offsets = [0, 32], sizes = [8, 32], strides = [1, 1]} : vector<8x64xf32> to vector<8x32xf32>
    %218 = vector.broadcast %212 : vector<8x1xf32> to vector<8x32xf32>
    %219 = arith.mulf %218, %217 : vector<8x32xf32>
    %220 = arith.addf %216, %219 : vector<8x32xf32>
    %221 = vector.extract_strided_slice %0 {offsets = [0, 3], sizes = [8, 1], strides = [1, 1]} : vector<8x30xf32> to vector<8x1xf32>
    %222 = vector.broadcast %221 : vector<8x1xf32> to vector<8x256xf32>
    %223 = vector.broadcast %1 : vector<1x256xf32> to vector<8x256xf32>
    %224 = arith.mulf %222, %223 : vector<8x256xf32>
    %225 = vector.broadcast %2 : vector<1x256xf32> to vector<8x256xf32>
    %226 = arith.addf %224, %225 : vector<8x256xf32>
    %cst_34 = arith.constant dense<0.000000e+00> : vector<8x256xf32>
    %227 = tpu.matmul %185, %3, %cst_34 {dimension_numbers = #tpu.dot_dimension_numbers<[1], [0], [0], [1], [0, 0, 1, 1], [], []>} : vector<8x64xbf16>, vector<64x256xbf16>, vector<8x256xf32> -> vector<8x256xf32>
    %228 = arith.addf %226, %227 : vector<8x256xf32>
    %229 = vector.extract_strided_slice %228 {offsets = [0, 0], sizes = [8, 64], strides = [1, 1]} : vector<8x256xf32> to vector<8x64xf32>
    %230 = arith.negf %229 : vector<8x64xf32>
    %231 = math.exp %230 : vector<8x64xf32>
    %cst_35 = arith.constant 1.000000e+00 : f32
    %232 = vector.broadcast %cst_35 : f32 to vector<8x64xf32>
    %233 = arith.addf %232, %231 : vector<8x64xf32>
    %234 = arith.divf %232, %233 : vector<8x64xf32>
    %235 = vector.extract_strided_slice %228 {offsets = [0, 64], sizes = [8, 64], strides = [1, 1]} : vector<8x256xf32> to vector<8x64xf32>
    %236 = arith.negf %235 : vector<8x64xf32>
    %237 = math.exp %236 : vector<8x64xf32>
    %cst_36 = arith.constant 1.000000e+00 : f32
    %238 = vector.broadcast %cst_36 : f32 to vector<8x64xf32>
    %239 = arith.addf %238, %237 : vector<8x64xf32>
    %240 = arith.divf %238, %239 : vector<8x64xf32>
    %241 = vector.extract_strided_slice %228 {offsets = [0, 128], sizes = [8, 64], strides = [1, 1]} : vector<8x256xf32> to vector<8x64xf32>
    %242 = math.tanh %241 : vector<8x64xf32>
    %243 = vector.extract_strided_slice %228 {offsets = [0, 192], sizes = [8, 64], strides = [1, 1]} : vector<8x256xf32> to vector<8x64xf32>
    %244 = arith.negf %243 : vector<8x64xf32>
    %245 = math.exp %244 : vector<8x64xf32>
    %cst_37 = arith.constant 1.000000e+00 : f32
    %246 = vector.broadcast %cst_37 : f32 to vector<8x64xf32>
    %247 = arith.addf %246, %245 : vector<8x64xf32>
    %248 = arith.divf %246, %247 : vector<8x64xf32>
    %249 = arith.mulf %240, %182 : vector<8x64xf32>
    %250 = arith.mulf %234, %242 : vector<8x64xf32>
    %251 = arith.addf %249, %250 : vector<8x64xf32>
    %252 = math.tanh %251 : vector<8x64xf32>
    %253 = arith.mulf %248, %252 : vector<8x64xf32>
    %254 = arith.truncf %253 : vector<8x64xf32> to vector<8x64xbf16>
    %255 = vector.extract_strided_slice %4 {offsets = [3, 0], sizes = [1, 64], strides = [1, 1]} : vector<30x64xf32> to vector<1x64xf32>
    %256 = vector.broadcast %255 : vector<1x64xf32> to vector<8x64xf32>
    %257 = arith.mulf %253, %256 : vector<8x64xf32>
    %258 = vector.extract_strided_slice %257 {offsets = [0, 0], sizes = [8, 32], strides = [1, 1]} : vector<8x64xf32> to vector<8x32xf32>
    %cst_38 = arith.constant dense<0.000000e+00> : vector<8xf32>
    %259 = vector.multi_reduction <add>, %258, %cst_38 [1] : vector<8x32xf32> to vector<8xf32>
    %260 = vector.shape_cast %259 : vector<8xf32> to vector<8x1xf32>
    %261 = vector.extract_strided_slice %257 {offsets = [0, 32], sizes = [8, 32], strides = [1, 1]} : vector<8x64xf32> to vector<8x32xf32>
    %cst_39 = arith.constant dense<0.000000e+00> : vector<8xf32>
    %262 = vector.multi_reduction <add>, %261, %cst_39 [1] : vector<8x32xf32> to vector<8xf32>
    %263 = vector.shape_cast %262 : vector<8xf32> to vector<8x1xf32>
    %264 = arith.maximumf %195, %260 : vector<8x1xf32>
    %265 = arith.subf %195, %264 : vector<8x1xf32>
    %266 = math.exp %265 : vector<8x1xf32>
    %267 = arith.subf %260, %264 : vector<8x1xf32>
    %268 = math.exp %267 : vector<8x1xf32>
    %269 = arith.mulf %266, %201 : vector<8x1xf32>
    %270 = arith.addf %269, %268 : vector<8x1xf32>
    %271 = vector.broadcast %266 : vector<8x1xf32> to vector<8x32xf32>
    %272 = arith.mulf %271, %207 : vector<8x32xf32>
    %273 = vector.extract_strided_slice %253 {offsets = [0, 0], sizes = [8, 32], strides = [1, 1]} : vector<8x64xf32> to vector<8x32xf32>
    %274 = vector.broadcast %268 : vector<8x1xf32> to vector<8x32xf32>
    %275 = arith.mulf %274, %273 : vector<8x32xf32>
    %276 = arith.addf %272, %275 : vector<8x32xf32>
    %277 = arith.maximumf %208, %263 : vector<8x1xf32>
    %278 = arith.subf %208, %277 : vector<8x1xf32>
    %279 = math.exp %278 : vector<8x1xf32>
    %280 = arith.subf %263, %277 : vector<8x1xf32>
    %281 = math.exp %280 : vector<8x1xf32>
    %282 = arith.mulf %279, %214 : vector<8x1xf32>
    %283 = arith.addf %282, %281 : vector<8x1xf32>
    %284 = vector.broadcast %279 : vector<8x1xf32> to vector<8x32xf32>
    %285 = arith.mulf %284, %220 : vector<8x32xf32>
    %286 = vector.extract_strided_slice %253 {offsets = [0, 32], sizes = [8, 32], strides = [1, 1]} : vector<8x64xf32> to vector<8x32xf32>
    %287 = vector.broadcast %281 : vector<8x1xf32> to vector<8x32xf32>
    %288 = arith.mulf %287, %286 : vector<8x32xf32>
    %289 = arith.addf %285, %288 : vector<8x32xf32>
    %290 = vector.extract_strided_slice %0 {offsets = [0, 4], sizes = [8, 1], strides = [1, 1]} : vector<8x30xf32> to vector<8x1xf32>
    %291 = vector.broadcast %290 : vector<8x1xf32> to vector<8x256xf32>
    %292 = vector.broadcast %1 : vector<1x256xf32> to vector<8x256xf32>
    %293 = arith.mulf %291, %292 : vector<8x256xf32>
    %294 = vector.broadcast %2 : vector<1x256xf32> to vector<8x256xf32>
    %295 = arith.addf %293, %294 : vector<8x256xf32>
    %cst_40 = arith.constant dense<0.000000e+00> : vector<8x256xf32>
    %296 = tpu.matmul %254, %3, %cst_40 {dimension_numbers = #tpu.dot_dimension_numbers<[1], [0], [0], [1], [0, 0, 1, 1], [], []>} : vector<8x64xbf16>, vector<64x256xbf16>, vector<8x256xf32> -> vector<8x256xf32>
    %297 = arith.addf %295, %296 : vector<8x256xf32>
    %298 = vector.extract_strided_slice %297 {offsets = [0, 0], sizes = [8, 64], strides = [1, 1]} : vector<8x256xf32> to vector<8x64xf32>
    %299 = arith.negf %298 : vector<8x64xf32>
    %300 = math.exp %299 : vector<8x64xf32>
    %cst_41 = arith.constant 1.000000e+00 : f32
    %301 = vector.broadcast %cst_41 : f32 to vector<8x64xf32>
    %302 = arith.addf %301, %300 : vector<8x64xf32>
    %303 = arith.divf %301, %302 : vector<8x64xf32>
    %304 = vector.extract_strided_slice %297 {offsets = [0, 64], sizes = [8, 64], strides = [1, 1]} : vector<8x256xf32> to vector<8x64xf32>
    %305 = arith.negf %304 : vector<8x64xf32>
    %306 = math.exp %305 : vector<8x64xf32>
    %cst_42 = arith.constant 1.000000e+00 : f32
    %307 = vector.broadcast %cst_42 : f32 to vector<8x64xf32>
    %308 = arith.addf %307, %306 : vector<8x64xf32>
    %309 = arith.divf %307, %308 : vector<8x64xf32>
    %310 = vector.extract_strided_slice %297 {offsets = [0, 128], sizes = [8, 64], strides = [1, 1]} : vector<8x256xf32> to vector<8x64xf32>
    %311 = math.tanh %310 : vector<8x64xf32>
    %312 = vector.extract_strided_slice %297 {offsets = [0, 192], sizes = [8, 64], strides = [1, 1]} : vector<8x256xf32> to vector<8x64xf32>
    %313 = arith.negf %312 : vector<8x64xf32>
    %314 = math.exp %313 : vector<8x64xf32>
    %cst_43 = arith.constant 1.000000e+00 : f32
    %315 = vector.broadcast %cst_43 : f32 to vector<8x64xf32>
    %316 = arith.addf %315, %314 : vector<8x64xf32>
    %317 = arith.divf %315, %316 : vector<8x64xf32>
    %318 = arith.mulf %309, %251 : vector<8x64xf32>
    %319 = arith.mulf %303, %311 : vector<8x64xf32>
    %320 = arith.addf %318, %319 : vector<8x64xf32>
    %321 = math.tanh %320 : vector<8x64xf32>
    %322 = arith.mulf %317, %321 : vector<8x64xf32>
    %323 = arith.truncf %322 : vector<8x64xf32> to vector<8x64xbf16>
    %324 = vector.extract_strided_slice %4 {offsets = [4, 0], sizes = [1, 64], strides = [1, 1]} : vector<30x64xf32> to vector<1x64xf32>
    %325 = vector.broadcast %324 : vector<1x64xf32> to vector<8x64xf32>
    %326 = arith.mulf %322, %325 : vector<8x64xf32>
    %327 = vector.extract_strided_slice %326 {offsets = [0, 0], sizes = [8, 32], strides = [1, 1]} : vector<8x64xf32> to vector<8x32xf32>
    %cst_44 = arith.constant dense<0.000000e+00> : vector<8xf32>
    %328 = vector.multi_reduction <add>, %327, %cst_44 [1] : vector<8x32xf32> to vector<8xf32>
    %329 = vector.shape_cast %328 : vector<8xf32> to vector<8x1xf32>
    %330 = vector.extract_strided_slice %326 {offsets = [0, 32], sizes = [8, 32], strides = [1, 1]} : vector<8x64xf32> to vector<8x32xf32>
    %cst_45 = arith.constant dense<0.000000e+00> : vector<8xf32>
    %331 = vector.multi_reduction <add>, %330, %cst_45 [1] : vector<8x32xf32> to vector<8xf32>
    %332 = vector.shape_cast %331 : vector<8xf32> to vector<8x1xf32>
    %333 = arith.maximumf %264, %329 : vector<8x1xf32>
    %334 = arith.subf %264, %333 : vector<8x1xf32>
    %335 = math.exp %334 : vector<8x1xf32>
    %336 = arith.subf %329, %333 : vector<8x1xf32>
    %337 = math.exp %336 : vector<8x1xf32>
    %338 = arith.mulf %335, %270 : vector<8x1xf32>
    %339 = arith.addf %338, %337 : vector<8x1xf32>
    %340 = vector.broadcast %335 : vector<8x1xf32> to vector<8x32xf32>
    %341 = arith.mulf %340, %276 : vector<8x32xf32>
    %342 = vector.extract_strided_slice %322 {offsets = [0, 0], sizes = [8, 32], strides = [1, 1]} : vector<8x64xf32> to vector<8x32xf32>
    %343 = vector.broadcast %337 : vector<8x1xf32> to vector<8x32xf32>
    %344 = arith.mulf %343, %342 : vector<8x32xf32>
    %345 = arith.addf %341, %344 : vector<8x32xf32>
    %346 = arith.maximumf %277, %332 : vector<8x1xf32>
    %347 = arith.subf %277, %346 : vector<8x1xf32>
    %348 = math.exp %347 : vector<8x1xf32>
    %349 = arith.subf %332, %346 : vector<8x1xf32>
    %350 = math.exp %349 : vector<8x1xf32>
    %351 = arith.mulf %348, %283 : vector<8x1xf32>
    %352 = arith.addf %351, %350 : vector<8x1xf32>
    %353 = vector.broadcast %348 : vector<8x1xf32> to vector<8x32xf32>
    %354 = arith.mulf %353, %289 : vector<8x32xf32>
    %355 = vector.extract_strided_slice %322 {offsets = [0, 32], sizes = [8, 32], strides = [1, 1]} : vector<8x64xf32> to vector<8x32xf32>
    %356 = vector.broadcast %350 : vector<8x1xf32> to vector<8x32xf32>
    %357 = arith.mulf %356, %355 : vector<8x32xf32>
    %358 = arith.addf %354, %357 : vector<8x32xf32>
    %359 = vector.extract_strided_slice %0 {offsets = [0, 5], sizes = [8, 1], strides = [1, 1]} : vector<8x30xf32> to vector<8x1xf32>
    %360 = vector.broadcast %359 : vector<8x1xf32> to vector<8x256xf32>
    %361 = vector.broadcast %1 : vector<1x256xf32> to vector<8x256xf32>
    %362 = arith.mulf %360, %361 : vector<8x256xf32>
    %363 = vector.broadcast %2 : vector<1x256xf32> to vector<8x256xf32>
    %364 = arith.addf %362, %363 : vector<8x256xf32>
    %cst_46 = arith.constant dense<0.000000e+00> : vector<8x256xf32>
    %365 = tpu.matmul %323, %3, %cst_46 {dimension_numbers = #tpu.dot_dimension_numbers<[1], [0], [0], [1], [0, 0, 1, 1], [], []>} : vector<8x64xbf16>, vector<64x256xbf16>, vector<8x256xf32> -> vector<8x256xf32>
    %366 = arith.addf %364, %365 : vector<8x256xf32>
    %367 = vector.extract_strided_slice %366 {offsets = [0, 0], sizes = [8, 64], strides = [1, 1]} : vector<8x256xf32> to vector<8x64xf32>
    %368 = arith.negf %367 : vector<8x64xf32>
    %369 = math.exp %368 : vector<8x64xf32>
    %cst_47 = arith.constant 1.000000e+00 : f32
    %370 = vector.broadcast %cst_47 : f32 to vector<8x64xf32>
    %371 = arith.addf %370, %369 : vector<8x64xf32>
    %372 = arith.divf %370, %371 : vector<8x64xf32>
    %373 = vector.extract_strided_slice %366 {offsets = [0, 64], sizes = [8, 64], strides = [1, 1]} : vector<8x256xf32> to vector<8x64xf32>
    %374 = arith.negf %373 : vector<8x64xf32>
    %375 = math.exp %374 : vector<8x64xf32>
    %cst_48 = arith.constant 1.000000e+00 : f32
    %376 = vector.broadcast %cst_48 : f32 to vector<8x64xf32>
    %377 = arith.addf %376, %375 : vector<8x64xf32>
    %378 = arith.divf %376, %377 : vector<8x64xf32>
    %379 = vector.extract_strided_slice %366 {offsets = [0, 128], sizes = [8, 64], strides = [1, 1]} : vector<8x256xf32> to vector<8x64xf32>
    %380 = math.tanh %379 : vector<8x64xf32>
    %381 = vector.extract_strided_slice %366 {offsets = [0, 192], sizes = [8, 64], strides = [1, 1]} : vector<8x256xf32> to vector<8x64xf32>
    %382 = arith.negf %381 : vector<8x64xf32>
    %383 = math.exp %382 : vector<8x64xf32>
    %cst_49 = arith.constant 1.000000e+00 : f32
    %384 = vector.broadcast %cst_49 : f32 to vector<8x64xf32>
    %385 = arith.addf %384, %383 : vector<8x64xf32>
    %386 = arith.divf %384, %385 : vector<8x64xf32>
    %387 = arith.mulf %378, %320 : vector<8x64xf32>
    %388 = arith.mulf %372, %380 : vector<8x64xf32>
    %389 = arith.addf %387, %388 : vector<8x64xf32>
    %390 = math.tanh %389 : vector<8x64xf32>
    %391 = arith.mulf %386, %390 : vector<8x64xf32>
    %392 = arith.truncf %391 : vector<8x64xf32> to vector<8x64xbf16>
    %393 = vector.extract_strided_slice %4 {offsets = [5, 0], sizes = [1, 64], strides = [1, 1]} : vector<30x64xf32> to vector<1x64xf32>
    %394 = vector.broadcast %393 : vector<1x64xf32> to vector<8x64xf32>
    %395 = arith.mulf %391, %394 : vector<8x64xf32>
    %396 = vector.extract_strided_slice %395 {offsets = [0, 0], sizes = [8, 32], strides = [1, 1]} : vector<8x64xf32> to vector<8x32xf32>
    %cst_50 = arith.constant dense<0.000000e+00> : vector<8xf32>
    %397 = vector.multi_reduction <add>, %396, %cst_50 [1] : vector<8x32xf32> to vector<8xf32>
    %398 = vector.shape_cast %397 : vector<8xf32> to vector<8x1xf32>
    %399 = vector.extract_strided_slice %395 {offsets = [0, 32], sizes = [8, 32], strides = [1, 1]} : vector<8x64xf32> to vector<8x32xf32>
    %cst_51 = arith.constant dense<0.000000e+00> : vector<8xf32>
    %400 = vector.multi_reduction <add>, %399, %cst_51 [1] : vector<8x32xf32> to vector<8xf32>
    %401 = vector.shape_cast %400 : vector<8xf32> to vector<8x1xf32>
    %402 = arith.maximumf %333, %398 : vector<8x1xf32>
    %403 = arith.subf %333, %402 : vector<8x1xf32>
    %404 = math.exp %403 : vector<8x1xf32>
    %405 = arith.subf %398, %402 : vector<8x1xf32>
    %406 = math.exp %405 : vector<8x1xf32>
    %407 = arith.mulf %404, %339 : vector<8x1xf32>
    %408 = arith.addf %407, %406 : vector<8x1xf32>
    %409 = vector.broadcast %404 : vector<8x1xf32> to vector<8x32xf32>
    %410 = arith.mulf %409, %345 : vector<8x32xf32>
    %411 = vector.extract_strided_slice %391 {offsets = [0, 0], sizes = [8, 32], strides = [1, 1]} : vector<8x64xf32> to vector<8x32xf32>
    %412 = vector.broadcast %406 : vector<8x1xf32> to vector<8x32xf32>
    %413 = arith.mulf %412, %411 : vector<8x32xf32>
    %414 = arith.addf %410, %413 : vector<8x32xf32>
    %415 = arith.maximumf %346, %401 : vector<8x1xf32>
    %416 = arith.subf %346, %415 : vector<8x1xf32>
    %417 = math.exp %416 : vector<8x1xf32>
    %418 = arith.subf %401, %415 : vector<8x1xf32>
    %419 = math.exp %418 : vector<8x1xf32>
    %420 = arith.mulf %417, %352 : vector<8x1xf32>
    %421 = arith.addf %420, %419 : vector<8x1xf32>
    %422 = vector.broadcast %417 : vector<8x1xf32> to vector<8x32xf32>
    %423 = arith.mulf %422, %358 : vector<8x32xf32>
    %424 = vector.extract_strided_slice %391 {offsets = [0, 32], sizes = [8, 32], strides = [1, 1]} : vector<8x64xf32> to vector<8x32xf32>
    %425 = vector.broadcast %419 : vector<8x1xf32> to vector<8x32xf32>
    %426 = arith.mulf %425, %424 : vector<8x32xf32>
    %427 = arith.addf %423, %426 : vector<8x32xf32>
    %428 = vector.extract_strided_slice %0 {offsets = [0, 6], sizes = [8, 1], strides = [1, 1]} : vector<8x30xf32> to vector<8x1xf32>
    %429 = vector.broadcast %428 : vector<8x1xf32> to vector<8x256xf32>
    %430 = vector.broadcast %1 : vector<1x256xf32> to vector<8x256xf32>
    %431 = arith.mulf %429, %430 : vector<8x256xf32>
    %432 = vector.broadcast %2 : vector<1x256xf32> to vector<8x256xf32>
    %433 = arith.addf %431, %432 : vector<8x256xf32>
    %cst_52 = arith.constant dense<0.000000e+00> : vector<8x256xf32>
    %434 = tpu.matmul %392, %3, %cst_52 {dimension_numbers = #tpu.dot_dimension_numbers<[1], [0], [0], [1], [0, 0, 1, 1], [], []>} : vector<8x64xbf16>, vector<64x256xbf16>, vector<8x256xf32> -> vector<8x256xf32>
    %435 = arith.addf %433, %434 : vector<8x256xf32>
    %436 = vector.extract_strided_slice %435 {offsets = [0, 0], sizes = [8, 64], strides = [1, 1]} : vector<8x256xf32> to vector<8x64xf32>
    %437 = arith.negf %436 : vector<8x64xf32>
    %438 = math.exp %437 : vector<8x64xf32>
    %cst_53 = arith.constant 1.000000e+00 : f32
    %439 = vector.broadcast %cst_53 : f32 to vector<8x64xf32>
    %440 = arith.addf %439, %438 : vector<8x64xf32>
    %441 = arith.divf %439, %440 : vector<8x64xf32>
    %442 = vector.extract_strided_slice %435 {offsets = [0, 64], sizes = [8, 64], strides = [1, 1]} : vector<8x256xf32> to vector<8x64xf32>
    %443 = arith.negf %442 : vector<8x64xf32>
    %444 = math.exp %443 : vector<8x64xf32>
    %cst_54 = arith.constant 1.000000e+00 : f32
    %445 = vector.broadcast %cst_54 : f32 to vector<8x64xf32>
    %446 = arith.addf %445, %444 : vector<8x64xf32>
    %447 = arith.divf %445, %446 : vector<8x64xf32>
    %448 = vector.extract_strided_slice %435 {offsets = [0, 128], sizes = [8, 64], strides = [1, 1]} : vector<8x256xf32> to vector<8x64xf32>
    %449 = math.tanh %448 : vector<8x64xf32>
    %450 = vector.extract_strided_slice %435 {offsets = [0, 192], sizes = [8, 64], strides = [1, 1]} : vector<8x256xf32> to vector<8x64xf32>
    %451 = arith.negf %450 : vector<8x64xf32>
    %452 = math.exp %451 : vector<8x64xf32>
    %cst_55 = arith.constant 1.000000e+00 : f32
    %453 = vector.broadcast %cst_55 : f32 to vector<8x64xf32>
    %454 = arith.addf %453, %452 : vector<8x64xf32>
    %455 = arith.divf %453, %454 : vector<8x64xf32>
    %456 = arith.mulf %447, %389 : vector<8x64xf32>
    %457 = arith.mulf %441, %449 : vector<8x64xf32>
    %458 = arith.addf %456, %457 : vector<8x64xf32>
    %459 = math.tanh %458 : vector<8x64xf32>
    %460 = arith.mulf %455, %459 : vector<8x64xf32>
    %461 = arith.truncf %460 : vector<8x64xf32> to vector<8x64xbf16>
    %462 = vector.extract_strided_slice %4 {offsets = [6, 0], sizes = [1, 64], strides = [1, 1]} : vector<30x64xf32> to vector<1x64xf32>
    %463 = vector.broadcast %462 : vector<1x64xf32> to vector<8x64xf32>
    %464 = arith.mulf %460, %463 : vector<8x64xf32>
    %465 = vector.extract_strided_slice %464 {offsets = [0, 0], sizes = [8, 32], strides = [1, 1]} : vector<8x64xf32> to vector<8x32xf32>
    %cst_56 = arith.constant dense<0.000000e+00> : vector<8xf32>
    %466 = vector.multi_reduction <add>, %465, %cst_56 [1] : vector<8x32xf32> to vector<8xf32>
    %467 = vector.shape_cast %466 : vector<8xf32> to vector<8x1xf32>
    %468 = vector.extract_strided_slice %464 {offsets = [0, 32], sizes = [8, 32], strides = [1, 1]} : vector<8x64xf32> to vector<8x32xf32>
    %cst_57 = arith.constant dense<0.000000e+00> : vector<8xf32>
    %469 = vector.multi_reduction <add>, %468, %cst_57 [1] : vector<8x32xf32> to vector<8xf32>
    %470 = vector.shape_cast %469 : vector<8xf32> to vector<8x1xf32>
    %471 = arith.maximumf %402, %467 : vector<8x1xf32>
    %472 = arith.subf %402, %471 : vector<8x1xf32>
    %473 = math.exp %472 : vector<8x1xf32>
    %474 = arith.subf %467, %471 : vector<8x1xf32>
    %475 = math.exp %474 : vector<8x1xf32>
    %476 = arith.mulf %473, %408 : vector<8x1xf32>
    %477 = arith.addf %476, %475 : vector<8x1xf32>
    %478 = vector.broadcast %473 : vector<8x1xf32> to vector<8x32xf32>
    %479 = arith.mulf %478, %414 : vector<8x32xf32>
    %480 = vector.extract_strided_slice %460 {offsets = [0, 0], sizes = [8, 32], strides = [1, 1]} : vector<8x64xf32> to vector<8x32xf32>
    %481 = vector.broadcast %475 : vector<8x1xf32> to vector<8x32xf32>
    %482 = arith.mulf %481, %480 : vector<8x32xf32>
    %483 = arith.addf %479, %482 : vector<8x32xf32>
    %484 = arith.maximumf %415, %470 : vector<8x1xf32>
    %485 = arith.subf %415, %484 : vector<8x1xf32>
    %486 = math.exp %485 : vector<8x1xf32>
    %487 = arith.subf %470, %484 : vector<8x1xf32>
    %488 = math.exp %487 : vector<8x1xf32>
    %489 = arith.mulf %486, %421 : vector<8x1xf32>
    %490 = arith.addf %489, %488 : vector<8x1xf32>
    %491 = vector.broadcast %486 : vector<8x1xf32> to vector<8x32xf32>
    %492 = arith.mulf %491, %427 : vector<8x32xf32>
    %493 = vector.extract_strided_slice %460 {offsets = [0, 32], sizes = [8, 32], strides = [1, 1]} : vector<8x64xf32> to vector<8x32xf32>
    %494 = vector.broadcast %488 : vector<8x1xf32> to vector<8x32xf32>
    %495 = arith.mulf %494, %493 : vector<8x32xf32>
    %496 = arith.addf %492, %495 : vector<8x32xf32>
    %497 = vector.extract_strided_slice %0 {offsets = [0, 7], sizes = [8, 1], strides = [1, 1]} : vector<8x30xf32> to vector<8x1xf32>
    %498 = vector.broadcast %497 : vector<8x1xf32> to vector<8x256xf32>
    %499 = vector.broadcast %1 : vector<1x256xf32> to vector<8x256xf32>
    %500 = arith.mulf %498, %499 : vector<8x256xf32>
    %501 = vector.broadcast %2 : vector<1x256xf32> to vector<8x256xf32>
    %502 = arith.addf %500, %501 : vector<8x256xf32>
    %cst_58 = arith.constant dense<0.000000e+00> : vector<8x256xf32>
    %503 = tpu.matmul %461, %3, %cst_58 {dimension_numbers = #tpu.dot_dimension_numbers<[1], [0], [0], [1], [0, 0, 1, 1], [], []>} : vector<8x64xbf16>, vector<64x256xbf16>, vector<8x256xf32> -> vector<8x256xf32>
    %504 = arith.addf %502, %503 : vector<8x256xf32>
    %505 = vector.extract_strided_slice %504 {offsets = [0, 0], sizes = [8, 64], strides = [1, 1]} : vector<8x256xf32> to vector<8x64xf32>
    %506 = arith.negf %505 : vector<8x64xf32>
    %507 = math.exp %506 : vector<8x64xf32>
    %cst_59 = arith.constant 1.000000e+00 : f32
    %508 = vector.broadcast %cst_59 : f32 to vector<8x64xf32>
    %509 = arith.addf %508, %507 : vector<8x64xf32>
    %510 = arith.divf %508, %509 : vector<8x64xf32>
    %511 = vector.extract_strided_slice %504 {offsets = [0, 64], sizes = [8, 64], strides = [1, 1]} : vector<8x256xf32> to vector<8x64xf32>
    %512 = arith.negf %511 : vector<8x64xf32>
    %513 = math.exp %512 : vector<8x64xf32>
    %cst_60 = arith.constant 1.000000e+00 : f32
    %514 = vector.broadcast %cst_60 : f32 to vector<8x64xf32>
    %515 = arith.addf %514, %513 : vector<8x64xf32>
    %516 = arith.divf %514, %515 : vector<8x64xf32>
    %517 = vector.extract_strided_slice %504 {offsets = [0, 128], sizes = [8, 64], strides = [1, 1]} : vector<8x256xf32> to vector<8x64xf32>
    %518 = math.tanh %517 : vector<8x64xf32>
    %519 = vector.extract_strided_slice %504 {offsets = [0, 192], sizes = [8, 64], strides = [1, 1]} : vector<8x256xf32> to vector<8x64xf32>
    %520 = arith.negf %519 : vector<8x64xf32>
    %521 = math.exp %520 : vector<8x64xf32>
    %cst_61 = arith.constant 1.000000e+00 : f32
    %522 = vector.broadcast %cst_61 : f32 to vector<8x64xf32>
    %523 = arith.addf %522, %521 : vector<8x64xf32>
    %524 = arith.divf %522, %523 : vector<8x64xf32>
    %525 = arith.mulf %516, %458 : vector<8x64xf32>
    %526 = arith.mulf %510, %518 : vector<8x64xf32>
    %527 = arith.addf %525, %526 : vector<8x64xf32>
    %528 = math.tanh %527 : vector<8x64xf32>
    %529 = arith.mulf %524, %528 : vector<8x64xf32>
    %530 = arith.truncf %529 : vector<8x64xf32> to vector<8x64xbf16>
    %531 = vector.extract_strided_slice %4 {offsets = [7, 0], sizes = [1, 64], strides = [1, 1]} : vector<30x64xf32> to vector<1x64xf32>
    %532 = vector.broadcast %531 : vector<1x64xf32> to vector<8x64xf32>
    %533 = arith.mulf %529, %532 : vector<8x64xf32>
    %534 = vector.extract_strided_slice %533 {offsets = [0, 0], sizes = [8, 32], strides = [1, 1]} : vector<8x64xf32> to vector<8x32xf32>
    %cst_62 = arith.constant dense<0.000000e+00> : vector<8xf32>
    %535 = vector.multi_reduction <add>, %534, %cst_62 [1] : vector<8x32xf32> to vector<8xf32>
    %536 = vector.shape_cast %535 : vector<8xf32> to vector<8x1xf32>
    %537 = vector.extract_strided_slice %533 {offsets = [0, 32], sizes = [8, 32], strides = [1, 1]} : vector<8x64xf32> to vector<8x32xf32>
    %cst_63 = arith.constant dense<0.000000e+00> : vector<8xf32>
    %538 = vector.multi_reduction <add>, %537, %cst_63 [1] : vector<8x32xf32> to vector<8xf32>
    %539 = vector.shape_cast %538 : vector<8xf32> to vector<8x1xf32>
    %540 = arith.maximumf %471, %536 : vector<8x1xf32>
    %541 = arith.subf %471, %540 : vector<8x1xf32>
    %542 = math.exp %541 : vector<8x1xf32>
    %543 = arith.subf %536, %540 : vector<8x1xf32>
    %544 = math.exp %543 : vector<8x1xf32>
    %545 = arith.mulf %542, %477 : vector<8x1xf32>
    %546 = arith.addf %545, %544 : vector<8x1xf32>
    %547 = vector.broadcast %542 : vector<8x1xf32> to vector<8x32xf32>
    %548 = arith.mulf %547, %483 : vector<8x32xf32>
    %549 = vector.extract_strided_slice %529 {offsets = [0, 0], sizes = [8, 32], strides = [1, 1]} : vector<8x64xf32> to vector<8x32xf32>
    %550 = vector.broadcast %544 : vector<8x1xf32> to vector<8x32xf32>
    %551 = arith.mulf %550, %549 : vector<8x32xf32>
    %552 = arith.addf %548, %551 : vector<8x32xf32>
    %553 = arith.maximumf %484, %539 : vector<8x1xf32>
    %554 = arith.subf %484, %553 : vector<8x1xf32>
    %555 = math.exp %554 : vector<8x1xf32>
    %556 = arith.subf %539, %553 : vector<8x1xf32>
    %557 = math.exp %556 : vector<8x1xf32>
    %558 = arith.mulf %555, %490 : vector<8x1xf32>
    %559 = arith.addf %558, %557 : vector<8x1xf32>
    %560 = vector.broadcast %555 : vector<8x1xf32> to vector<8x32xf32>
    %561 = arith.mulf %560, %496 : vector<8x32xf32>
    %562 = vector.extract_strided_slice %529 {offsets = [0, 32], sizes = [8, 32], strides = [1, 1]} : vector<8x64xf32> to vector<8x32xf32>
    %563 = vector.broadcast %557 : vector<8x1xf32> to vector<8x32xf32>
    %564 = arith.mulf %563, %562 : vector<8x32xf32>
    %565 = arith.addf %561, %564 : vector<8x32xf32>
    %566 = vector.extract_strided_slice %0 {offsets = [0, 8], sizes = [8, 1], strides = [1, 1]} : vector<8x30xf32> to vector<8x1xf32>
    %567 = vector.broadcast %566 : vector<8x1xf32> to vector<8x256xf32>
    %568 = vector.broadcast %1 : vector<1x256xf32> to vector<8x256xf32>
    %569 = arith.mulf %567, %568 : vector<8x256xf32>
    %570 = vector.broadcast %2 : vector<1x256xf32> to vector<8x256xf32>
    %571 = arith.addf %569, %570 : vector<8x256xf32>
    %cst_64 = arith.constant dense<0.000000e+00> : vector<8x256xf32>
    %572 = tpu.matmul %530, %3, %cst_64 {dimension_numbers = #tpu.dot_dimension_numbers<[1], [0], [0], [1], [0, 0, 1, 1], [], []>} : vector<8x64xbf16>, vector<64x256xbf16>, vector<8x256xf32> -> vector<8x256xf32>
    %573 = arith.addf %571, %572 : vector<8x256xf32>
    %574 = vector.extract_strided_slice %573 {offsets = [0, 0], sizes = [8, 64], strides = [1, 1]} : vector<8x256xf32> to vector<8x64xf32>
    %575 = arith.negf %574 : vector<8x64xf32>
    %576 = math.exp %575 : vector<8x64xf32>
    %cst_65 = arith.constant 1.000000e+00 : f32
    %577 = vector.broadcast %cst_65 : f32 to vector<8x64xf32>
    %578 = arith.addf %577, %576 : vector<8x64xf32>
    %579 = arith.divf %577, %578 : vector<8x64xf32>
    %580 = vector.extract_strided_slice %573 {offsets = [0, 64], sizes = [8, 64], strides = [1, 1]} : vector<8x256xf32> to vector<8x64xf32>
    %581 = arith.negf %580 : vector<8x64xf32>
    %582 = math.exp %581 : vector<8x64xf32>
    %cst_66 = arith.constant 1.000000e+00 : f32
    %583 = vector.broadcast %cst_66 : f32 to vector<8x64xf32>
    %584 = arith.addf %583, %582 : vector<8x64xf32>
    %585 = arith.divf %583, %584 : vector<8x64xf32>
    %586 = vector.extract_strided_slice %573 {offsets = [0, 128], sizes = [8, 64], strides = [1, 1]} : vector<8x256xf32> to vector<8x64xf32>
    %587 = math.tanh %586 : vector<8x64xf32>
    %588 = vector.extract_strided_slice %573 {offsets = [0, 192], sizes = [8, 64], strides = [1, 1]} : vector<8x256xf32> to vector<8x64xf32>
    %589 = arith.negf %588 : vector<8x64xf32>
    %590 = math.exp %589 : vector<8x64xf32>
    %cst_67 = arith.constant 1.000000e+00 : f32
    %591 = vector.broadcast %cst_67 : f32 to vector<8x64xf32>
    %592 = arith.addf %591, %590 : vector<8x64xf32>
    %593 = arith.divf %591, %592 : vector<8x64xf32>
    %594 = arith.mulf %585, %527 : vector<8x64xf32>
    %595 = arith.mulf %579, %587 : vector<8x64xf32>
    %596 = arith.addf %594, %595 : vector<8x64xf32>
    %597 = math.tanh %596 : vector<8x64xf32>
    %598 = arith.mulf %593, %597 : vector<8x64xf32>
    %599 = arith.truncf %598 : vector<8x64xf32> to vector<8x64xbf16>
    %600 = vector.extract_strided_slice %4 {offsets = [8, 0], sizes = [1, 64], strides = [1, 1]} : vector<30x64xf32> to vector<1x64xf32>
    %601 = vector.broadcast %600 : vector<1x64xf32> to vector<8x64xf32>
    %602 = arith.mulf %598, %601 : vector<8x64xf32>
    %603 = vector.extract_strided_slice %602 {offsets = [0, 0], sizes = [8, 32], strides = [1, 1]} : vector<8x64xf32> to vector<8x32xf32>
    %cst_68 = arith.constant dense<0.000000e+00> : vector<8xf32>
    %604 = vector.multi_reduction <add>, %603, %cst_68 [1] : vector<8x32xf32> to vector<8xf32>
    %605 = vector.shape_cast %604 : vector<8xf32> to vector<8x1xf32>
    %606 = vector.extract_strided_slice %602 {offsets = [0, 32], sizes = [8, 32], strides = [1, 1]} : vector<8x64xf32> to vector<8x32xf32>
    %cst_69 = arith.constant dense<0.000000e+00> : vector<8xf32>
    %607 = vector.multi_reduction <add>, %606, %cst_69 [1] : vector<8x32xf32> to vector<8xf32>
    %608 = vector.shape_cast %607 : vector<8xf32> to vector<8x1xf32>
    %609 = arith.maximumf %540, %605 : vector<8x1xf32>
    %610 = arith.subf %540, %609 : vector<8x1xf32>
    %611 = math.exp %610 : vector<8x1xf32>
    %612 = arith.subf %605, %609 : vector<8x1xf32>
    %613 = math.exp %612 : vector<8x1xf32>
    %614 = arith.mulf %611, %546 : vector<8x1xf32>
    %615 = arith.addf %614, %613 : vector<8x1xf32>
    %616 = vector.broadcast %611 : vector<8x1xf32> to vector<8x32xf32>
    %617 = arith.mulf %616, %552 : vector<8x32xf32>
    %618 = vector.extract_strided_slice %598 {offsets = [0, 0], sizes = [8, 32], strides = [1, 1]} : vector<8x64xf32> to vector<8x32xf32>
    %619 = vector.broadcast %613 : vector<8x1xf32> to vector<8x32xf32>
    %620 = arith.mulf %619, %618 : vector<8x32xf32>
    %621 = arith.addf %617, %620 : vector<8x32xf32>
    %622 = arith.maximumf %553, %608 : vector<8x1xf32>
    %623 = arith.subf %553, %622 : vector<8x1xf32>
    %624 = math.exp %623 : vector<8x1xf32>
    %625 = arith.subf %608, %622 : vector<8x1xf32>
    %626 = math.exp %625 : vector<8x1xf32>
    %627 = arith.mulf %624, %559 : vector<8x1xf32>
    %628 = arith.addf %627, %626 : vector<8x1xf32>
    %629 = vector.broadcast %624 : vector<8x1xf32> to vector<8x32xf32>
    %630 = arith.mulf %629, %565 : vector<8x32xf32>
    %631 = vector.extract_strided_slice %598 {offsets = [0, 32], sizes = [8, 32], strides = [1, 1]} : vector<8x64xf32> to vector<8x32xf32>
    %632 = vector.broadcast %626 : vector<8x1xf32> to vector<8x32xf32>
    %633 = arith.mulf %632, %631 : vector<8x32xf32>
    %634 = arith.addf %630, %633 : vector<8x32xf32>
    %635 = vector.extract_strided_slice %0 {offsets = [0, 9], sizes = [8, 1], strides = [1, 1]} : vector<8x30xf32> to vector<8x1xf32>
    %636 = vector.broadcast %635 : vector<8x1xf32> to vector<8x256xf32>
    %637 = vector.broadcast %1 : vector<1x256xf32> to vector<8x256xf32>
    %638 = arith.mulf %636, %637 : vector<8x256xf32>
    %639 = vector.broadcast %2 : vector<1x256xf32> to vector<8x256xf32>
    %640 = arith.addf %638, %639 : vector<8x256xf32>
    %cst_70 = arith.constant dense<0.000000e+00> : vector<8x256xf32>
    %641 = tpu.matmul %599, %3, %cst_70 {dimension_numbers = #tpu.dot_dimension_numbers<[1], [0], [0], [1], [0, 0, 1, 1], [], []>} : vector<8x64xbf16>, vector<64x256xbf16>, vector<8x256xf32> -> vector<8x256xf32>
    %642 = arith.addf %640, %641 : vector<8x256xf32>
    %643 = vector.extract_strided_slice %642 {offsets = [0, 0], sizes = [8, 64], strides = [1, 1]} : vector<8x256xf32> to vector<8x64xf32>
    %644 = arith.negf %643 : vector<8x64xf32>
    %645 = math.exp %644 : vector<8x64xf32>
    %cst_71 = arith.constant 1.000000e+00 : f32
    %646 = vector.broadcast %cst_71 : f32 to vector<8x64xf32>
    %647 = arith.addf %646, %645 : vector<8x64xf32>
    %648 = arith.divf %646, %647 : vector<8x64xf32>
    %649 = vector.extract_strided_slice %642 {offsets = [0, 64], sizes = [8, 64], strides = [1, 1]} : vector<8x256xf32> to vector<8x64xf32>
    %650 = arith.negf %649 : vector<8x64xf32>
    %651 = math.exp %650 : vector<8x64xf32>
    %cst_72 = arith.constant 1.000000e+00 : f32
    %652 = vector.broadcast %cst_72 : f32 to vector<8x64xf32>
    %653 = arith.addf %652, %651 : vector<8x64xf32>
    %654 = arith.divf %652, %653 : vector<8x64xf32>
    %655 = vector.extract_strided_slice %642 {offsets = [0, 128], sizes = [8, 64], strides = [1, 1]} : vector<8x256xf32> to vector<8x64xf32>
    %656 = math.tanh %655 : vector<8x64xf32>
    %657 = vector.extract_strided_slice %642 {offsets = [0, 192], sizes = [8, 64], strides = [1, 1]} : vector<8x256xf32> to vector<8x64xf32>
    %658 = arith.negf %657 : vector<8x64xf32>
    %659 = math.exp %658 : vector<8x64xf32>
    %cst_73 = arith.constant 1.000000e+00 : f32
    %660 = vector.broadcast %cst_73 : f32 to vector<8x64xf32>
    %661 = arith.addf %660, %659 : vector<8x64xf32>
    %662 = arith.divf %660, %661 : vector<8x64xf32>
    %663 = arith.mulf %654, %596 : vector<8x64xf32>
    %664 = arith.mulf %648, %656 : vector<8x64xf32>
    %665 = arith.addf %663, %664 : vector<8x64xf32>
    %666 = math.tanh %665 : vector<8x64xf32>
    %667 = arith.mulf %662, %666 : vector<8x64xf32>
    %668 = arith.truncf %667 : vector<8x64xf32> to vector<8x64xbf16>
    %669 = vector.extract_strided_slice %4 {offsets = [9, 0], sizes = [1, 64], strides = [1, 1]} : vector<30x64xf32> to vector<1x64xf32>
    %670 = vector.broadcast %669 : vector<1x64xf32> to vector<8x64xf32>
    %671 = arith.mulf %667, %670 : vector<8x64xf32>
    %672 = vector.extract_strided_slice %671 {offsets = [0, 0], sizes = [8, 32], strides = [1, 1]} : vector<8x64xf32> to vector<8x32xf32>
    %cst_74 = arith.constant dense<0.000000e+00> : vector<8xf32>
    %673 = vector.multi_reduction <add>, %672, %cst_74 [1] : vector<8x32xf32> to vector<8xf32>
    %674 = vector.shape_cast %673 : vector<8xf32> to vector<8x1xf32>
    %675 = vector.extract_strided_slice %671 {offsets = [0, 32], sizes = [8, 32], strides = [1, 1]} : vector<8x64xf32> to vector<8x32xf32>
    %cst_75 = arith.constant dense<0.000000e+00> : vector<8xf32>
    %676 = vector.multi_reduction <add>, %675, %cst_75 [1] : vector<8x32xf32> to vector<8xf32>
    %677 = vector.shape_cast %676 : vector<8xf32> to vector<8x1xf32>
    %678 = arith.maximumf %609, %674 : vector<8x1xf32>
    %679 = arith.subf %609, %678 : vector<8x1xf32>
    %680 = math.exp %679 : vector<8x1xf32>
    %681 = arith.subf %674, %678 : vector<8x1xf32>
    %682 = math.exp %681 : vector<8x1xf32>
    %683 = arith.mulf %680, %615 : vector<8x1xf32>
    %684 = arith.addf %683, %682 : vector<8x1xf32>
    %685 = vector.broadcast %680 : vector<8x1xf32> to vector<8x32xf32>
    %686 = arith.mulf %685, %621 : vector<8x32xf32>
    %687 = vector.extract_strided_slice %667 {offsets = [0, 0], sizes = [8, 32], strides = [1, 1]} : vector<8x64xf32> to vector<8x32xf32>
    %688 = vector.broadcast %682 : vector<8x1xf32> to vector<8x32xf32>
    %689 = arith.mulf %688, %687 : vector<8x32xf32>
    %690 = arith.addf %686, %689 : vector<8x32xf32>
    %691 = arith.maximumf %622, %677 : vector<8x1xf32>
    %692 = arith.subf %622, %691 : vector<8x1xf32>
    %693 = math.exp %692 : vector<8x1xf32>
    %694 = arith.subf %677, %691 : vector<8x1xf32>
    %695 = math.exp %694 : vector<8x1xf32>
    %696 = arith.mulf %693, %628 : vector<8x1xf32>
    %697 = arith.addf %696, %695 : vector<8x1xf32>
    %698 = vector.broadcast %693 : vector<8x1xf32> to vector<8x32xf32>
    %699 = arith.mulf %698, %634 : vector<8x32xf32>
    %700 = vector.extract_strided_slice %667 {offsets = [0, 32], sizes = [8, 32], strides = [1, 1]} : vector<8x64xf32> to vector<8x32xf32>
    %701 = vector.broadcast %695 : vector<8x1xf32> to vector<8x32xf32>
    %702 = arith.mulf %701, %700 : vector<8x32xf32>
    %703 = arith.addf %699, %702 : vector<8x32xf32>
    %704 = vector.extract_strided_slice %0 {offsets = [0, 10], sizes = [8, 1], strides = [1, 1]} : vector<8x30xf32> to vector<8x1xf32>
    %705 = vector.broadcast %704 : vector<8x1xf32> to vector<8x256xf32>
    %706 = vector.broadcast %1 : vector<1x256xf32> to vector<8x256xf32>
    %707 = arith.mulf %705, %706 : vector<8x256xf32>
    %708 = vector.broadcast %2 : vector<1x256xf32> to vector<8x256xf32>
    %709 = arith.addf %707, %708 : vector<8x256xf32>
    %cst_76 = arith.constant dense<0.000000e+00> : vector<8x256xf32>
    %710 = tpu.matmul %668, %3, %cst_76 {dimension_numbers = #tpu.dot_dimension_numbers<[1], [0], [0], [1], [0, 0, 1, 1], [], []>} : vector<8x64xbf16>, vector<64x256xbf16>, vector<8x256xf32> -> vector<8x256xf32>
    %711 = arith.addf %709, %710 : vector<8x256xf32>
    %712 = vector.extract_strided_slice %711 {offsets = [0, 0], sizes = [8, 64], strides = [1, 1]} : vector<8x256xf32> to vector<8x64xf32>
    %713 = arith.negf %712 : vector<8x64xf32>
    %714 = math.exp %713 : vector<8x64xf32>
    %cst_77 = arith.constant 1.000000e+00 : f32
    %715 = vector.broadcast %cst_77 : f32 to vector<8x64xf32>
    %716 = arith.addf %715, %714 : vector<8x64xf32>
    %717 = arith.divf %715, %716 : vector<8x64xf32>
    %718 = vector.extract_strided_slice %711 {offsets = [0, 64], sizes = [8, 64], strides = [1, 1]} : vector<8x256xf32> to vector<8x64xf32>
    %719 = arith.negf %718 : vector<8x64xf32>
    %720 = math.exp %719 : vector<8x64xf32>
    %cst_78 = arith.constant 1.000000e+00 : f32
    %721 = vector.broadcast %cst_78 : f32 to vector<8x64xf32>
    %722 = arith.addf %721, %720 : vector<8x64xf32>
    %723 = arith.divf %721, %722 : vector<8x64xf32>
    %724 = vector.extract_strided_slice %711 {offsets = [0, 128], sizes = [8, 64], strides = [1, 1]} : vector<8x256xf32> to vector<8x64xf32>
    %725 = math.tanh %724 : vector<8x64xf32>
    %726 = vector.extract_strided_slice %711 {offsets = [0, 192], sizes = [8, 64], strides = [1, 1]} : vector<8x256xf32> to vector<8x64xf32>
    %727 = arith.negf %726 : vector<8x64xf32>
    %728 = math.exp %727 : vector<8x64xf32>
    %cst_79 = arith.constant 1.000000e+00 : f32
    %729 = vector.broadcast %cst_79 : f32 to vector<8x64xf32>
    %730 = arith.addf %729, %728 : vector<8x64xf32>
    %731 = arith.divf %729, %730 : vector<8x64xf32>
    %732 = arith.mulf %723, %665 : vector<8x64xf32>
    %733 = arith.mulf %717, %725 : vector<8x64xf32>
    %734 = arith.addf %732, %733 : vector<8x64xf32>
    %735 = math.tanh %734 : vector<8x64xf32>
    %736 = arith.mulf %731, %735 : vector<8x64xf32>
    %737 = arith.truncf %736 : vector<8x64xf32> to vector<8x64xbf16>
    %738 = vector.extract_strided_slice %4 {offsets = [10, 0], sizes = [1, 64], strides = [1, 1]} : vector<30x64xf32> to vector<1x64xf32>
    %739 = vector.broadcast %738 : vector<1x64xf32> to vector<8x64xf32>
    %740 = arith.mulf %736, %739 : vector<8x64xf32>
    %741 = vector.extract_strided_slice %740 {offsets = [0, 0], sizes = [8, 32], strides = [1, 1]} : vector<8x64xf32> to vector<8x32xf32>
    %cst_80 = arith.constant dense<0.000000e+00> : vector<8xf32>
    %742 = vector.multi_reduction <add>, %741, %cst_80 [1] : vector<8x32xf32> to vector<8xf32>
    %743 = vector.shape_cast %742 : vector<8xf32> to vector<8x1xf32>
    %744 = vector.extract_strided_slice %740 {offsets = [0, 32], sizes = [8, 32], strides = [1, 1]} : vector<8x64xf32> to vector<8x32xf32>
    %cst_81 = arith.constant dense<0.000000e+00> : vector<8xf32>
    %745 = vector.multi_reduction <add>, %744, %cst_81 [1] : vector<8x32xf32> to vector<8xf32>
    %746 = vector.shape_cast %745 : vector<8xf32> to vector<8x1xf32>
    %747 = arith.maximumf %678, %743 : vector<8x1xf32>
    %748 = arith.subf %678, %747 : vector<8x1xf32>
    %749 = math.exp %748 : vector<8x1xf32>
    %750 = arith.subf %743, %747 : vector<8x1xf32>
    %751 = math.exp %750 : vector<8x1xf32>
    %752 = arith.mulf %749, %684 : vector<8x1xf32>
    %753 = arith.addf %752, %751 : vector<8x1xf32>
    %754 = vector.broadcast %749 : vector<8x1xf32> to vector<8x32xf32>
    %755 = arith.mulf %754, %690 : vector<8x32xf32>
    %756 = vector.extract_strided_slice %736 {offsets = [0, 0], sizes = [8, 32], strides = [1, 1]} : vector<8x64xf32> to vector<8x32xf32>
    %757 = vector.broadcast %751 : vector<8x1xf32> to vector<8x32xf32>
    %758 = arith.mulf %757, %756 : vector<8x32xf32>
    %759 = arith.addf %755, %758 : vector<8x32xf32>
    %760 = arith.maximumf %691, %746 : vector<8x1xf32>
    %761 = arith.subf %691, %760 : vector<8x1xf32>
    %762 = math.exp %761 : vector<8x1xf32>
    %763 = arith.subf %746, %760 : vector<8x1xf32>
    %764 = math.exp %763 : vector<8x1xf32>
    %765 = arith.mulf %762, %697 : vector<8x1xf32>
    %766 = arith.addf %765, %764 : vector<8x1xf32>
    %767 = vector.broadcast %762 : vector<8x1xf32> to vector<8x32xf32>
    %768 = arith.mulf %767, %703 : vector<8x32xf32>
    %769 = vector.extract_strided_slice %736 {offsets = [0, 32], sizes = [8, 32], strides = [1, 1]} : vector<8x64xf32> to vector<8x32xf32>
    %770 = vector.broadcast %764 : vector<8x1xf32> to vector<8x32xf32>
    %771 = arith.mulf %770, %769 : vector<8x32xf32>
    %772 = arith.addf %768, %771 : vector<8x32xf32>
    %773 = vector.extract_strided_slice %0 {offsets = [0, 11], sizes = [8, 1], strides = [1, 1]} : vector<8x30xf32> to vector<8x1xf32>
    %774 = vector.broadcast %773 : vector<8x1xf32> to vector<8x256xf32>
    %775 = vector.broadcast %1 : vector<1x256xf32> to vector<8x256xf32>
    %776 = arith.mulf %774, %775 : vector<8x256xf32>
    %777 = vector.broadcast %2 : vector<1x256xf32> to vector<8x256xf32>
    %778 = arith.addf %776, %777 : vector<8x256xf32>
    %cst_82 = arith.constant dense<0.000000e+00> : vector<8x256xf32>
    %779 = tpu.matmul %737, %3, %cst_82 {dimension_numbers = #tpu.dot_dimension_numbers<[1], [0], [0], [1], [0, 0, 1, 1], [], []>} : vector<8x64xbf16>, vector<64x256xbf16>, vector<8x256xf32> -> vector<8x256xf32>
    %780 = arith.addf %778, %779 : vector<8x256xf32>
    %781 = vector.extract_strided_slice %780 {offsets = [0, 0], sizes = [8, 64], strides = [1, 1]} : vector<8x256xf32> to vector<8x64xf32>
    %782 = arith.negf %781 : vector<8x64xf32>
    %783 = math.exp %782 : vector<8x64xf32>
    %cst_83 = arith.constant 1.000000e+00 : f32
    %784 = vector.broadcast %cst_83 : f32 to vector<8x64xf32>
    %785 = arith.addf %784, %783 : vector<8x64xf32>
    %786 = arith.divf %784, %785 : vector<8x64xf32>
    %787 = vector.extract_strided_slice %780 {offsets = [0, 64], sizes = [8, 64], strides = [1, 1]} : vector<8x256xf32> to vector<8x64xf32>
    %788 = arith.negf %787 : vector<8x64xf32>
    %789 = math.exp %788 : vector<8x64xf32>
    %cst_84 = arith.constant 1.000000e+00 : f32
    %790 = vector.broadcast %cst_84 : f32 to vector<8x64xf32>
    %791 = arith.addf %790, %789 : vector<8x64xf32>
    %792 = arith.divf %790, %791 : vector<8x64xf32>
    %793 = vector.extract_strided_slice %780 {offsets = [0, 128], sizes = [8, 64], strides = [1, 1]} : vector<8x256xf32> to vector<8x64xf32>
    %794 = math.tanh %793 : vector<8x64xf32>
    %795 = vector.extract_strided_slice %780 {offsets = [0, 192], sizes = [8, 64], strides = [1, 1]} : vector<8x256xf32> to vector<8x64xf32>
    %796 = arith.negf %795 : vector<8x64xf32>
    %797 = math.exp %796 : vector<8x64xf32>
    %cst_85 = arith.constant 1.000000e+00 : f32
    %798 = vector.broadcast %cst_85 : f32 to vector<8x64xf32>
    %799 = arith.addf %798, %797 : vector<8x64xf32>
    %800 = arith.divf %798, %799 : vector<8x64xf32>
    %801 = arith.mulf %792, %734 : vector<8x64xf32>
    %802 = arith.mulf %786, %794 : vector<8x64xf32>
    %803 = arith.addf %801, %802 : vector<8x64xf32>
    %804 = math.tanh %803 : vector<8x64xf32>
    %805 = arith.mulf %800, %804 : vector<8x64xf32>
    %806 = arith.truncf %805 : vector<8x64xf32> to vector<8x64xbf16>
    %807 = vector.extract_strided_slice %4 {offsets = [11, 0], sizes = [1, 64], strides = [1, 1]} : vector<30x64xf32> to vector<1x64xf32>
    %808 = vector.broadcast %807 : vector<1x64xf32> to vector<8x64xf32>
    %809 = arith.mulf %805, %808 : vector<8x64xf32>
    %810 = vector.extract_strided_slice %809 {offsets = [0, 0], sizes = [8, 32], strides = [1, 1]} : vector<8x64xf32> to vector<8x32xf32>
    %cst_86 = arith.constant dense<0.000000e+00> : vector<8xf32>
    %811 = vector.multi_reduction <add>, %810, %cst_86 [1] : vector<8x32xf32> to vector<8xf32>
    %812 = vector.shape_cast %811 : vector<8xf32> to vector<8x1xf32>
    %813 = vector.extract_strided_slice %809 {offsets = [0, 32], sizes = [8, 32], strides = [1, 1]} : vector<8x64xf32> to vector<8x32xf32>
    %cst_87 = arith.constant dense<0.000000e+00> : vector<8xf32>
    %814 = vector.multi_reduction <add>, %813, %cst_87 [1] : vector<8x32xf32> to vector<8xf32>
    %815 = vector.shape_cast %814 : vector<8xf32> to vector<8x1xf32>
    %816 = arith.maximumf %747, %812 : vector<8x1xf32>
    %817 = arith.subf %747, %816 : vector<8x1xf32>
    %818 = math.exp %817 : vector<8x1xf32>
    %819 = arith.subf %812, %816 : vector<8x1xf32>
    %820 = math.exp %819 : vector<8x1xf32>
    %821 = arith.mulf %818, %753 : vector<8x1xf32>
    %822 = arith.addf %821, %820 : vector<8x1xf32>
    %823 = vector.broadcast %818 : vector<8x1xf32> to vector<8x32xf32>
    %824 = arith.mulf %823, %759 : vector<8x32xf32>
    %825 = vector.extract_strided_slice %805 {offsets = [0, 0], sizes = [8, 32], strides = [1, 1]} : vector<8x64xf32> to vector<8x32xf32>
    %826 = vector.broadcast %820 : vector<8x1xf32> to vector<8x32xf32>
    %827 = arith.mulf %826, %825 : vector<8x32xf32>
    %828 = arith.addf %824, %827 : vector<8x32xf32>
    %829 = arith.maximumf %760, %815 : vector<8x1xf32>
    %830 = arith.subf %760, %829 : vector<8x1xf32>
    %831 = math.exp %830 : vector<8x1xf32>
    %832 = arith.subf %815, %829 : vector<8x1xf32>
    %833 = math.exp %832 : vector<8x1xf32>
    %834 = arith.mulf %831, %766 : vector<8x1xf32>
    %835 = arith.addf %834, %833 : vector<8x1xf32>
    %836 = vector.broadcast %831 : vector<8x1xf32> to vector<8x32xf32>
    %837 = arith.mulf %836, %772 : vector<8x32xf32>
    %838 = vector.extract_strided_slice %805 {offsets = [0, 32], sizes = [8, 32], strides = [1, 1]} : vector<8x64xf32> to vector<8x32xf32>
    %839 = vector.broadcast %833 : vector<8x1xf32> to vector<8x32xf32>
    %840 = arith.mulf %839, %838 : vector<8x32xf32>
    %841 = arith.addf %837, %840 : vector<8x32xf32>
    %842 = vector.extract_strided_slice %0 {offsets = [0, 12], sizes = [8, 1], strides = [1, 1]} : vector<8x30xf32> to vector<8x1xf32>
    %843 = vector.broadcast %842 : vector<8x1xf32> to vector<8x256xf32>
    %844 = vector.broadcast %1 : vector<1x256xf32> to vector<8x256xf32>
    %845 = arith.mulf %843, %844 : vector<8x256xf32>
    %846 = vector.broadcast %2 : vector<1x256xf32> to vector<8x256xf32>
    %847 = arith.addf %845, %846 : vector<8x256xf32>
    %cst_88 = arith.constant dense<0.000000e+00> : vector<8x256xf32>
    %848 = tpu.matmul %806, %3, %cst_88 {dimension_numbers = #tpu.dot_dimension_numbers<[1], [0], [0], [1], [0, 0, 1, 1], [], []>} : vector<8x64xbf16>, vector<64x256xbf16>, vector<8x256xf32> -> vector<8x256xf32>
    %849 = arith.addf %847, %848 : vector<8x256xf32>
    %850 = vector.extract_strided_slice %849 {offsets = [0, 0], sizes = [8, 64], strides = [1, 1]} : vector<8x256xf32> to vector<8x64xf32>
    %851 = arith.negf %850 : vector<8x64xf32>
    %852 = math.exp %851 : vector<8x64xf32>
    %cst_89 = arith.constant 1.000000e+00 : f32
    %853 = vector.broadcast %cst_89 : f32 to vector<8x64xf32>
    %854 = arith.addf %853, %852 : vector<8x64xf32>
    %855 = arith.divf %853, %854 : vector<8x64xf32>
    %856 = vector.extract_strided_slice %849 {offsets = [0, 64], sizes = [8, 64], strides = [1, 1]} : vector<8x256xf32> to vector<8x64xf32>
    %857 = arith.negf %856 : vector<8x64xf32>
    %858 = math.exp %857 : vector<8x64xf32>
    %cst_90 = arith.constant 1.000000e+00 : f32
    %859 = vector.broadcast %cst_90 : f32 to vector<8x64xf32>
    %860 = arith.addf %859, %858 : vector<8x64xf32>
    %861 = arith.divf %859, %860 : vector<8x64xf32>
    %862 = vector.extract_strided_slice %849 {offsets = [0, 128], sizes = [8, 64], strides = [1, 1]} : vector<8x256xf32> to vector<8x64xf32>
    %863 = math.tanh %862 : vector<8x64xf32>
    %864 = vector.extract_strided_slice %849 {offsets = [0, 192], sizes = [8, 64], strides = [1, 1]} : vector<8x256xf32> to vector<8x64xf32>
    %865 = arith.negf %864 : vector<8x64xf32>
    %866 = math.exp %865 : vector<8x64xf32>
    %cst_91 = arith.constant 1.000000e+00 : f32
    %867 = vector.broadcast %cst_91 : f32 to vector<8x64xf32>
    %868 = arith.addf %867, %866 : vector<8x64xf32>
    %869 = arith.divf %867, %868 : vector<8x64xf32>
    %870 = arith.mulf %861, %803 : vector<8x64xf32>
    %871 = arith.mulf %855, %863 : vector<8x64xf32>
    %872 = arith.addf %870, %871 : vector<8x64xf32>
    %873 = math.tanh %872 : vector<8x64xf32>
    %874 = arith.mulf %869, %873 : vector<8x64xf32>
    %875 = arith.truncf %874 : vector<8x64xf32> to vector<8x64xbf16>
    %876 = vector.extract_strided_slice %4 {offsets = [12, 0], sizes = [1, 64], strides = [1, 1]} : vector<30x64xf32> to vector<1x64xf32>
    %877 = vector.broadcast %876 : vector<1x64xf32> to vector<8x64xf32>
    %878 = arith.mulf %874, %877 : vector<8x64xf32>
    %879 = vector.extract_strided_slice %878 {offsets = [0, 0], sizes = [8, 32], strides = [1, 1]} : vector<8x64xf32> to vector<8x32xf32>
    %cst_92 = arith.constant dense<0.000000e+00> : vector<8xf32>
    %880 = vector.multi_reduction <add>, %879, %cst_92 [1] : vector<8x32xf32> to vector<8xf32>
    %881 = vector.shape_cast %880 : vector<8xf32> to vector<8x1xf32>
    %882 = vector.extract_strided_slice %878 {offsets = [0, 32], sizes = [8, 32], strides = [1, 1]} : vector<8x64xf32> to vector<8x32xf32>
    %cst_93 = arith.constant dense<0.000000e+00> : vector<8xf32>
    %883 = vector.multi_reduction <add>, %882, %cst_93 [1] : vector<8x32xf32> to vector<8xf32>
    %884 = vector.shape_cast %883 : vector<8xf32> to vector<8x1xf32>
    %885 = arith.maximumf %816, %881 : vector<8x1xf32>
    %886 = arith.subf %816, %885 : vector<8x1xf32>
    %887 = math.exp %886 : vector<8x1xf32>
    %888 = arith.subf %881, %885 : vector<8x1xf32>
    %889 = math.exp %888 : vector<8x1xf32>
    %890 = arith.mulf %887, %822 : vector<8x1xf32>
    %891 = arith.addf %890, %889 : vector<8x1xf32>
    %892 = vector.broadcast %887 : vector<8x1xf32> to vector<8x32xf32>
    %893 = arith.mulf %892, %828 : vector<8x32xf32>
    %894 = vector.extract_strided_slice %874 {offsets = [0, 0], sizes = [8, 32], strides = [1, 1]} : vector<8x64xf32> to vector<8x32xf32>
    %895 = vector.broadcast %889 : vector<8x1xf32> to vector<8x32xf32>
    %896 = arith.mulf %895, %894 : vector<8x32xf32>
    %897 = arith.addf %893, %896 : vector<8x32xf32>
    %898 = arith.maximumf %829, %884 : vector<8x1xf32>
    %899 = arith.subf %829, %898 : vector<8x1xf32>
    %900 = math.exp %899 : vector<8x1xf32>
    %901 = arith.subf %884, %898 : vector<8x1xf32>
    %902 = math.exp %901 : vector<8x1xf32>
    %903 = arith.mulf %900, %835 : vector<8x1xf32>
    %904 = arith.addf %903, %902 : vector<8x1xf32>
    %905 = vector.broadcast %900 : vector<8x1xf32> to vector<8x32xf32>
    %906 = arith.mulf %905, %841 : vector<8x32xf32>
    %907 = vector.extract_strided_slice %874 {offsets = [0, 32], sizes = [8, 32], strides = [1, 1]} : vector<8x64xf32> to vector<8x32xf32>
    %908 = vector.broadcast %902 : vector<8x1xf32> to vector<8x32xf32>
    %909 = arith.mulf %908, %907 : vector<8x32xf32>
    %910 = arith.addf %906, %909 : vector<8x32xf32>
    %911 = vector.extract_strided_slice %0 {offsets = [0, 13], sizes = [8, 1], strides = [1, 1]} : vector<8x30xf32> to vector<8x1xf32>
    %912 = vector.broadcast %911 : vector<8x1xf32> to vector<8x256xf32>
    %913 = vector.broadcast %1 : vector<1x256xf32> to vector<8x256xf32>
    %914 = arith.mulf %912, %913 : vector<8x256xf32>
    %915 = vector.broadcast %2 : vector<1x256xf32> to vector<8x256xf32>
    %916 = arith.addf %914, %915 : vector<8x256xf32>
    %cst_94 = arith.constant dense<0.000000e+00> : vector<8x256xf32>
    %917 = tpu.matmul %875, %3, %cst_94 {dimension_numbers = #tpu.dot_dimension_numbers<[1], [0], [0], [1], [0, 0, 1, 1], [], []>} : vector<8x64xbf16>, vector<64x256xbf16>, vector<8x256xf32> -> vector<8x256xf32>
    %918 = arith.addf %916, %917 : vector<8x256xf32>
    %919 = vector.extract_strided_slice %918 {offsets = [0, 0], sizes = [8, 64], strides = [1, 1]} : vector<8x256xf32> to vector<8x64xf32>
    %920 = arith.negf %919 : vector<8x64xf32>
    %921 = math.exp %920 : vector<8x64xf32>
    %cst_95 = arith.constant 1.000000e+00 : f32
    %922 = vector.broadcast %cst_95 : f32 to vector<8x64xf32>
    %923 = arith.addf %922, %921 : vector<8x64xf32>
    %924 = arith.divf %922, %923 : vector<8x64xf32>
    %925 = vector.extract_strided_slice %918 {offsets = [0, 64], sizes = [8, 64], strides = [1, 1]} : vector<8x256xf32> to vector<8x64xf32>
    %926 = arith.negf %925 : vector<8x64xf32>
    %927 = math.exp %926 : vector<8x64xf32>
    %cst_96 = arith.constant 1.000000e+00 : f32
    %928 = vector.broadcast %cst_96 : f32 to vector<8x64xf32>
    %929 = arith.addf %928, %927 : vector<8x64xf32>
    %930 = arith.divf %928, %929 : vector<8x64xf32>
    %931 = vector.extract_strided_slice %918 {offsets = [0, 128], sizes = [8, 64], strides = [1, 1]} : vector<8x256xf32> to vector<8x64xf32>
    %932 = math.tanh %931 : vector<8x64xf32>
    %933 = vector.extract_strided_slice %918 {offsets = [0, 192], sizes = [8, 64], strides = [1, 1]} : vector<8x256xf32> to vector<8x64xf32>
    %934 = arith.negf %933 : vector<8x64xf32>
    %935 = math.exp %934 : vector<8x64xf32>
    %cst_97 = arith.constant 1.000000e+00 : f32
    %936 = vector.broadcast %cst_97 : f32 to vector<8x64xf32>
    %937 = arith.addf %936, %935 : vector<8x64xf32>
    %938 = arith.divf %936, %937 : vector<8x64xf32>
    %939 = arith.mulf %930, %872 : vector<8x64xf32>
    %940 = arith.mulf %924, %932 : vector<8x64xf32>
    %941 = arith.addf %939, %940 : vector<8x64xf32>
    %942 = math.tanh %941 : vector<8x64xf32>
    %943 = arith.mulf %938, %942 : vector<8x64xf32>
    %944 = arith.truncf %943 : vector<8x64xf32> to vector<8x64xbf16>
    %945 = vector.extract_strided_slice %4 {offsets = [13, 0], sizes = [1, 64], strides = [1, 1]} : vector<30x64xf32> to vector<1x64xf32>
    %946 = vector.broadcast %945 : vector<1x64xf32> to vector<8x64xf32>
    %947 = arith.mulf %943, %946 : vector<8x64xf32>
    %948 = vector.extract_strided_slice %947 {offsets = [0, 0], sizes = [8, 32], strides = [1, 1]} : vector<8x64xf32> to vector<8x32xf32>
    %cst_98 = arith.constant dense<0.000000e+00> : vector<8xf32>
    %949 = vector.multi_reduction <add>, %948, %cst_98 [1] : vector<8x32xf32> to vector<8xf32>
    %950 = vector.shape_cast %949 : vector<8xf32> to vector<8x1xf32>
    %951 = vector.extract_strided_slice %947 {offsets = [0, 32], sizes = [8, 32], strides = [1, 1]} : vector<8x64xf32> to vector<8x32xf32>
    %cst_99 = arith.constant dense<0.000000e+00> : vector<8xf32>
    %952 = vector.multi_reduction <add>, %951, %cst_99 [1] : vector<8x32xf32> to vector<8xf32>
    %953 = vector.shape_cast %952 : vector<8xf32> to vector<8x1xf32>
    %954 = arith.maximumf %885, %950 : vector<8x1xf32>
    %955 = arith.subf %885, %954 : vector<8x1xf32>
    %956 = math.exp %955 : vector<8x1xf32>
    %957 = arith.subf %950, %954 : vector<8x1xf32>
    %958 = math.exp %957 : vector<8x1xf32>
    %959 = arith.mulf %956, %891 : vector<8x1xf32>
    %960 = arith.addf %959, %958 : vector<8x1xf32>
    %961 = vector.broadcast %956 : vector<8x1xf32> to vector<8x32xf32>
    %962 = arith.mulf %961, %897 : vector<8x32xf32>
    %963 = vector.extract_strided_slice %943 {offsets = [0, 0], sizes = [8, 32], strides = [1, 1]} : vector<8x64xf32> to vector<8x32xf32>
    %964 = vector.broadcast %958 : vector<8x1xf32> to vector<8x32xf32>
    %965 = arith.mulf %964, %963 : vector<8x32xf32>
    %966 = arith.addf %962, %965 : vector<8x32xf32>
    %967 = arith.maximumf %898, %953 : vector<8x1xf32>
    %968 = arith.subf %898, %967 : vector<8x1xf32>
    %969 = math.exp %968 : vector<8x1xf32>
    %970 = arith.subf %953, %967 : vector<8x1xf32>
    %971 = math.exp %970 : vector<8x1xf32>
    %972 = arith.mulf %969, %904 : vector<8x1xf32>
    %973 = arith.addf %972, %971 : vector<8x1xf32>
    %974 = vector.broadcast %969 : vector<8x1xf32> to vector<8x32xf32>
    %975 = arith.mulf %974, %910 : vector<8x32xf32>
    %976 = vector.extract_strided_slice %943 {offsets = [0, 32], sizes = [8, 32], strides = [1, 1]} : vector<8x64xf32> to vector<8x32xf32>
    %977 = vector.broadcast %971 : vector<8x1xf32> to vector<8x32xf32>
    %978 = arith.mulf %977, %976 : vector<8x32xf32>
    %979 = arith.addf %975, %978 : vector<8x32xf32>
    %980 = vector.extract_strided_slice %0 {offsets = [0, 14], sizes = [8, 1], strides = [1, 1]} : vector<8x30xf32> to vector<8x1xf32>
    %981 = vector.broadcast %980 : vector<8x1xf32> to vector<8x256xf32>
    %982 = vector.broadcast %1 : vector<1x256xf32> to vector<8x256xf32>
    %983 = arith.mulf %981, %982 : vector<8x256xf32>
    %984 = vector.broadcast %2 : vector<1x256xf32> to vector<8x256xf32>
    %985 = arith.addf %983, %984 : vector<8x256xf32>
    %cst_100 = arith.constant dense<0.000000e+00> : vector<8x256xf32>
    %986 = tpu.matmul %944, %3, %cst_100 {dimension_numbers = #tpu.dot_dimension_numbers<[1], [0], [0], [1], [0, 0, 1, 1], [], []>} : vector<8x64xbf16>, vector<64x256xbf16>, vector<8x256xf32> -> vector<8x256xf32>
    %987 = arith.addf %985, %986 : vector<8x256xf32>
    %988 = vector.extract_strided_slice %987 {offsets = [0, 0], sizes = [8, 64], strides = [1, 1]} : vector<8x256xf32> to vector<8x64xf32>
    %989 = arith.negf %988 : vector<8x64xf32>
    %990 = math.exp %989 : vector<8x64xf32>
    %cst_101 = arith.constant 1.000000e+00 : f32
    %991 = vector.broadcast %cst_101 : f32 to vector<8x64xf32>
    %992 = arith.addf %991, %990 : vector<8x64xf32>
    %993 = arith.divf %991, %992 : vector<8x64xf32>
    %994 = vector.extract_strided_slice %987 {offsets = [0, 64], sizes = [8, 64], strides = [1, 1]} : vector<8x256xf32> to vector<8x64xf32>
    %995 = arith.negf %994 : vector<8x64xf32>
    %996 = math.exp %995 : vector<8x64xf32>
    %cst_102 = arith.constant 1.000000e+00 : f32
    %997 = vector.broadcast %cst_102 : f32 to vector<8x64xf32>
    %998 = arith.addf %997, %996 : vector<8x64xf32>
    %999 = arith.divf %997, %998 : vector<8x64xf32>
    %1000 = vector.extract_strided_slice %987 {offsets = [0, 128], sizes = [8, 64], strides = [1, 1]} : vector<8x256xf32> to vector<8x64xf32>
    %1001 = math.tanh %1000 : vector<8x64xf32>
    %1002 = vector.extract_strided_slice %987 {offsets = [0, 192], sizes = [8, 64], strides = [1, 1]} : vector<8x256xf32> to vector<8x64xf32>
    %1003 = arith.negf %1002 : vector<8x64xf32>
    %1004 = math.exp %1003 : vector<8x64xf32>
    %cst_103 = arith.constant 1.000000e+00 : f32
    %1005 = vector.broadcast %cst_103 : f32 to vector<8x64xf32>
    %1006 = arith.addf %1005, %1004 : vector<8x64xf32>
    %1007 = arith.divf %1005, %1006 : vector<8x64xf32>
    %1008 = arith.mulf %999, %941 : vector<8x64xf32>
    %1009 = arith.mulf %993, %1001 : vector<8x64xf32>
    %1010 = arith.addf %1008, %1009 : vector<8x64xf32>
    %1011 = math.tanh %1010 : vector<8x64xf32>
    %1012 = arith.mulf %1007, %1011 : vector<8x64xf32>
    %1013 = arith.truncf %1012 : vector<8x64xf32> to vector<8x64xbf16>
    %1014 = vector.extract_strided_slice %4 {offsets = [14, 0], sizes = [1, 64], strides = [1, 1]} : vector<30x64xf32> to vector<1x64xf32>
    %1015 = vector.broadcast %1014 : vector<1x64xf32> to vector<8x64xf32>
    %1016 = arith.mulf %1012, %1015 : vector<8x64xf32>
    %1017 = vector.extract_strided_slice %1016 {offsets = [0, 0], sizes = [8, 32], strides = [1, 1]} : vector<8x64xf32> to vector<8x32xf32>
    %cst_104 = arith.constant dense<0.000000e+00> : vector<8xf32>
    %1018 = vector.multi_reduction <add>, %1017, %cst_104 [1] : vector<8x32xf32> to vector<8xf32>
    %1019 = vector.shape_cast %1018 : vector<8xf32> to vector<8x1xf32>
    %1020 = vector.extract_strided_slice %1016 {offsets = [0, 32], sizes = [8, 32], strides = [1, 1]} : vector<8x64xf32> to vector<8x32xf32>
    %cst_105 = arith.constant dense<0.000000e+00> : vector<8xf32>
    %1021 = vector.multi_reduction <add>, %1020, %cst_105 [1] : vector<8x32xf32> to vector<8xf32>
    %1022 = vector.shape_cast %1021 : vector<8xf32> to vector<8x1xf32>
    %1023 = arith.maximumf %954, %1019 : vector<8x1xf32>
    %1024 = arith.subf %954, %1023 : vector<8x1xf32>
    %1025 = math.exp %1024 : vector<8x1xf32>
    %1026 = arith.subf %1019, %1023 : vector<8x1xf32>
    %1027 = math.exp %1026 : vector<8x1xf32>
    %1028 = arith.mulf %1025, %960 : vector<8x1xf32>
    %1029 = arith.addf %1028, %1027 : vector<8x1xf32>
    %1030 = vector.broadcast %1025 : vector<8x1xf32> to vector<8x32xf32>
    %1031 = arith.mulf %1030, %966 : vector<8x32xf32>
    %1032 = vector.extract_strided_slice %1012 {offsets = [0, 0], sizes = [8, 32], strides = [1, 1]} : vector<8x64xf32> to vector<8x32xf32>
    %1033 = vector.broadcast %1027 : vector<8x1xf32> to vector<8x32xf32>
    %1034 = arith.mulf %1033, %1032 : vector<8x32xf32>
    %1035 = arith.addf %1031, %1034 : vector<8x32xf32>
    %1036 = arith.maximumf %967, %1022 : vector<8x1xf32>
    %1037 = arith.subf %967, %1036 : vector<8x1xf32>
    %1038 = math.exp %1037 : vector<8x1xf32>
    %1039 = arith.subf %1022, %1036 : vector<8x1xf32>
    %1040 = math.exp %1039 : vector<8x1xf32>
    %1041 = arith.mulf %1038, %973 : vector<8x1xf32>
    %1042 = arith.addf %1041, %1040 : vector<8x1xf32>
    %1043 = vector.broadcast %1038 : vector<8x1xf32> to vector<8x32xf32>
    %1044 = arith.mulf %1043, %979 : vector<8x32xf32>
    %1045 = vector.extract_strided_slice %1012 {offsets = [0, 32], sizes = [8, 32], strides = [1, 1]} : vector<8x64xf32> to vector<8x32xf32>
    %1046 = vector.broadcast %1040 : vector<8x1xf32> to vector<8x32xf32>
    %1047 = arith.mulf %1046, %1045 : vector<8x32xf32>
    %1048 = arith.addf %1044, %1047 : vector<8x32xf32>
    %1049 = vector.extract_strided_slice %0 {offsets = [0, 15], sizes = [8, 1], strides = [1, 1]} : vector<8x30xf32> to vector<8x1xf32>
    %1050 = vector.broadcast %1049 : vector<8x1xf32> to vector<8x256xf32>
    %1051 = vector.broadcast %1 : vector<1x256xf32> to vector<8x256xf32>
    %1052 = arith.mulf %1050, %1051 : vector<8x256xf32>
    %1053 = vector.broadcast %2 : vector<1x256xf32> to vector<8x256xf32>
    %1054 = arith.addf %1052, %1053 : vector<8x256xf32>
    %cst_106 = arith.constant dense<0.000000e+00> : vector<8x256xf32>
    %1055 = tpu.matmul %1013, %3, %cst_106 {dimension_numbers = #tpu.dot_dimension_numbers<[1], [0], [0], [1], [0, 0, 1, 1], [], []>} : vector<8x64xbf16>, vector<64x256xbf16>, vector<8x256xf32> -> vector<8x256xf32>
    %1056 = arith.addf %1054, %1055 : vector<8x256xf32>
    %1057 = vector.extract_strided_slice %1056 {offsets = [0, 0], sizes = [8, 64], strides = [1, 1]} : vector<8x256xf32> to vector<8x64xf32>
    %1058 = arith.negf %1057 : vector<8x64xf32>
    %1059 = math.exp %1058 : vector<8x64xf32>
    %cst_107 = arith.constant 1.000000e+00 : f32
    %1060 = vector.broadcast %cst_107 : f32 to vector<8x64xf32>
    %1061 = arith.addf %1060, %1059 : vector<8x64xf32>
    %1062 = arith.divf %1060, %1061 : vector<8x64xf32>
    %1063 = vector.extract_strided_slice %1056 {offsets = [0, 64], sizes = [8, 64], strides = [1, 1]} : vector<8x256xf32> to vector<8x64xf32>
    %1064 = arith.negf %1063 : vector<8x64xf32>
    %1065 = math.exp %1064 : vector<8x64xf32>
    %cst_108 = arith.constant 1.000000e+00 : f32
    %1066 = vector.broadcast %cst_108 : f32 to vector<8x64xf32>
    %1067 = arith.addf %1066, %1065 : vector<8x64xf32>
    %1068 = arith.divf %1066, %1067 : vector<8x64xf32>
    %1069 = vector.extract_strided_slice %1056 {offsets = [0, 128], sizes = [8, 64], strides = [1, 1]} : vector<8x256xf32> to vector<8x64xf32>
    %1070 = math.tanh %1069 : vector<8x64xf32>
    %1071 = vector.extract_strided_slice %1056 {offsets = [0, 192], sizes = [8, 64], strides = [1, 1]} : vector<8x256xf32> to vector<8x64xf32>
    %1072 = arith.negf %1071 : vector<8x64xf32>
    %1073 = math.exp %1072 : vector<8x64xf32>
    %cst_109 = arith.constant 1.000000e+00 : f32
    %1074 = vector.broadcast %cst_109 : f32 to vector<8x64xf32>
    %1075 = arith.addf %1074, %1073 : vector<8x64xf32>
    %1076 = arith.divf %1074, %1075 : vector<8x64xf32>
    %1077 = arith.mulf %1068, %1010 : vector<8x64xf32>
    %1078 = arith.mulf %1062, %1070 : vector<8x64xf32>
    %1079 = arith.addf %1077, %1078 : vector<8x64xf32>
    %1080 = math.tanh %1079 : vector<8x64xf32>
    %1081 = arith.mulf %1076, %1080 : vector<8x64xf32>
    %1082 = arith.truncf %1081 : vector<8x64xf32> to vector<8x64xbf16>
    %1083 = vector.extract_strided_slice %4 {offsets = [15, 0], sizes = [1, 64], strides = [1, 1]} : vector<30x64xf32> to vector<1x64xf32>
    %1084 = vector.broadcast %1083 : vector<1x64xf32> to vector<8x64xf32>
    %1085 = arith.mulf %1081, %1084 : vector<8x64xf32>
    %1086 = vector.extract_strided_slice %1085 {offsets = [0, 0], sizes = [8, 32], strides = [1, 1]} : vector<8x64xf32> to vector<8x32xf32>
    %cst_110 = arith.constant dense<0.000000e+00> : vector<8xf32>
    %1087 = vector.multi_reduction <add>, %1086, %cst_110 [1] : vector<8x32xf32> to vector<8xf32>
    %1088 = vector.shape_cast %1087 : vector<8xf32> to vector<8x1xf32>
    %1089 = vector.extract_strided_slice %1085 {offsets = [0, 32], sizes = [8, 32], strides = [1, 1]} : vector<8x64xf32> to vector<8x32xf32>
    %cst_111 = arith.constant dense<0.000000e+00> : vector<8xf32>
    %1090 = vector.multi_reduction <add>, %1089, %cst_111 [1] : vector<8x32xf32> to vector<8xf32>
    %1091 = vector.shape_cast %1090 : vector<8xf32> to vector<8x1xf32>
    %1092 = arith.maximumf %1023, %1088 : vector<8x1xf32>
    %1093 = arith.subf %1023, %1092 : vector<8x1xf32>
    %1094 = math.exp %1093 : vector<8x1xf32>
    %1095 = arith.subf %1088, %1092 : vector<8x1xf32>
    %1096 = math.exp %1095 : vector<8x1xf32>
    %1097 = arith.mulf %1094, %1029 : vector<8x1xf32>
    %1098 = arith.addf %1097, %1096 : vector<8x1xf32>
    %1099 = vector.broadcast %1094 : vector<8x1xf32> to vector<8x32xf32>
    %1100 = arith.mulf %1099, %1035 : vector<8x32xf32>
    %1101 = vector.extract_strided_slice %1081 {offsets = [0, 0], sizes = [8, 32], strides = [1, 1]} : vector<8x64xf32> to vector<8x32xf32>
    %1102 = vector.broadcast %1096 : vector<8x1xf32> to vector<8x32xf32>
    %1103 = arith.mulf %1102, %1101 : vector<8x32xf32>
    %1104 = arith.addf %1100, %1103 : vector<8x32xf32>
    %1105 = arith.maximumf %1036, %1091 : vector<8x1xf32>
    %1106 = arith.subf %1036, %1105 : vector<8x1xf32>
    %1107 = math.exp %1106 : vector<8x1xf32>
    %1108 = arith.subf %1091, %1105 : vector<8x1xf32>
    %1109 = math.exp %1108 : vector<8x1xf32>
    %1110 = arith.mulf %1107, %1042 : vector<8x1xf32>
    %1111 = arith.addf %1110, %1109 : vector<8x1xf32>
    %1112 = vector.broadcast %1107 : vector<8x1xf32> to vector<8x32xf32>
    %1113 = arith.mulf %1112, %1048 : vector<8x32xf32>
    %1114 = vector.extract_strided_slice %1081 {offsets = [0, 32], sizes = [8, 32], strides = [1, 1]} : vector<8x64xf32> to vector<8x32xf32>
    %1115 = vector.broadcast %1109 : vector<8x1xf32> to vector<8x32xf32>
    %1116 = arith.mulf %1115, %1114 : vector<8x32xf32>
    %1117 = arith.addf %1113, %1116 : vector<8x32xf32>
    %1118 = vector.extract_strided_slice %0 {offsets = [0, 16], sizes = [8, 1], strides = [1, 1]} : vector<8x30xf32> to vector<8x1xf32>
    %1119 = vector.broadcast %1118 : vector<8x1xf32> to vector<8x256xf32>
    %1120 = vector.broadcast %1 : vector<1x256xf32> to vector<8x256xf32>
    %1121 = arith.mulf %1119, %1120 : vector<8x256xf32>
    %1122 = vector.broadcast %2 : vector<1x256xf32> to vector<8x256xf32>
    %1123 = arith.addf %1121, %1122 : vector<8x256xf32>
    %cst_112 = arith.constant dense<0.000000e+00> : vector<8x256xf32>
    %1124 = tpu.matmul %1082, %3, %cst_112 {dimension_numbers = #tpu.dot_dimension_numbers<[1], [0], [0], [1], [0, 0, 1, 1], [], []>} : vector<8x64xbf16>, vector<64x256xbf16>, vector<8x256xf32> -> vector<8x256xf32>
    %1125 = arith.addf %1123, %1124 : vector<8x256xf32>
    %1126 = vector.extract_strided_slice %1125 {offsets = [0, 0], sizes = [8, 64], strides = [1, 1]} : vector<8x256xf32> to vector<8x64xf32>
    %1127 = arith.negf %1126 : vector<8x64xf32>
    %1128 = math.exp %1127 : vector<8x64xf32>
    %cst_113 = arith.constant 1.000000e+00 : f32
    %1129 = vector.broadcast %cst_113 : f32 to vector<8x64xf32>
    %1130 = arith.addf %1129, %1128 : vector<8x64xf32>
    %1131 = arith.divf %1129, %1130 : vector<8x64xf32>
    %1132 = vector.extract_strided_slice %1125 {offsets = [0, 64], sizes = [8, 64], strides = [1, 1]} : vector<8x256xf32> to vector<8x64xf32>
    %1133 = arith.negf %1132 : vector<8x64xf32>
    %1134 = math.exp %1133 : vector<8x64xf32>
    %cst_114 = arith.constant 1.000000e+00 : f32
    %1135 = vector.broadcast %cst_114 : f32 to vector<8x64xf32>
    %1136 = arith.addf %1135, %1134 : vector<8x64xf32>
    %1137 = arith.divf %1135, %1136 : vector<8x64xf32>
    %1138 = vector.extract_strided_slice %1125 {offsets = [0, 128], sizes = [8, 64], strides = [1, 1]} : vector<8x256xf32> to vector<8x64xf32>
    %1139 = math.tanh %1138 : vector<8x64xf32>
    %1140 = vector.extract_strided_slice %1125 {offsets = [0, 192], sizes = [8, 64], strides = [1, 1]} : vector<8x256xf32> to vector<8x64xf32>
    %1141 = arith.negf %1140 : vector<8x64xf32>
    %1142 = math.exp %1141 : vector<8x64xf32>
    %cst_115 = arith.constant 1.000000e+00 : f32
    %1143 = vector.broadcast %cst_115 : f32 to vector<8x64xf32>
    %1144 = arith.addf %1143, %1142 : vector<8x64xf32>
    %1145 = arith.divf %1143, %1144 : vector<8x64xf32>
    %1146 = arith.mulf %1137, %1079 : vector<8x64xf32>
    %1147 = arith.mulf %1131, %1139 : vector<8x64xf32>
    %1148 = arith.addf %1146, %1147 : vector<8x64xf32>
    %1149 = math.tanh %1148 : vector<8x64xf32>
    %1150 = arith.mulf %1145, %1149 : vector<8x64xf32>
    %1151 = arith.truncf %1150 : vector<8x64xf32> to vector<8x64xbf16>
    %1152 = vector.extract_strided_slice %4 {offsets = [16, 0], sizes = [1, 64], strides = [1, 1]} : vector<30x64xf32> to vector<1x64xf32>
    %1153 = vector.broadcast %1152 : vector<1x64xf32> to vector<8x64xf32>
    %1154 = arith.mulf %1150, %1153 : vector<8x64xf32>
    %1155 = vector.extract_strided_slice %1154 {offsets = [0, 0], sizes = [8, 32], strides = [1, 1]} : vector<8x64xf32> to vector<8x32xf32>
    %cst_116 = arith.constant dense<0.000000e+00> : vector<8xf32>
    %1156 = vector.multi_reduction <add>, %1155, %cst_116 [1] : vector<8x32xf32> to vector<8xf32>
    %1157 = vector.shape_cast %1156 : vector<8xf32> to vector<8x1xf32>
    %1158 = vector.extract_strided_slice %1154 {offsets = [0, 32], sizes = [8, 32], strides = [1, 1]} : vector<8x64xf32> to vector<8x32xf32>
    %cst_117 = arith.constant dense<0.000000e+00> : vector<8xf32>
    %1159 = vector.multi_reduction <add>, %1158, %cst_117 [1] : vector<8x32xf32> to vector<8xf32>
    %1160 = vector.shape_cast %1159 : vector<8xf32> to vector<8x1xf32>
    %1161 = arith.maximumf %1092, %1157 : vector<8x1xf32>
    %1162 = arith.subf %1092, %1161 : vector<8x1xf32>
    %1163 = math.exp %1162 : vector<8x1xf32>
    %1164 = arith.subf %1157, %1161 : vector<8x1xf32>
    %1165 = math.exp %1164 : vector<8x1xf32>
    %1166 = arith.mulf %1163, %1098 : vector<8x1xf32>
    %1167 = arith.addf %1166, %1165 : vector<8x1xf32>
    %1168 = vector.broadcast %1163 : vector<8x1xf32> to vector<8x32xf32>
    %1169 = arith.mulf %1168, %1104 : vector<8x32xf32>
    %1170 = vector.extract_strided_slice %1150 {offsets = [0, 0], sizes = [8, 32], strides = [1, 1]} : vector<8x64xf32> to vector<8x32xf32>
    %1171 = vector.broadcast %1165 : vector<8x1xf32> to vector<8x32xf32>
    %1172 = arith.mulf %1171, %1170 : vector<8x32xf32>
    %1173 = arith.addf %1169, %1172 : vector<8x32xf32>
    %1174 = arith.maximumf %1105, %1160 : vector<8x1xf32>
    %1175 = arith.subf %1105, %1174 : vector<8x1xf32>
    %1176 = math.exp %1175 : vector<8x1xf32>
    %1177 = arith.subf %1160, %1174 : vector<8x1xf32>
    %1178 = math.exp %1177 : vector<8x1xf32>
    %1179 = arith.mulf %1176, %1111 : vector<8x1xf32>
    %1180 = arith.addf %1179, %1178 : vector<8x1xf32>
    %1181 = vector.broadcast %1176 : vector<8x1xf32> to vector<8x32xf32>
    %1182 = arith.mulf %1181, %1117 : vector<8x32xf32>
    %1183 = vector.extract_strided_slice %1150 {offsets = [0, 32], sizes = [8, 32], strides = [1, 1]} : vector<8x64xf32> to vector<8x32xf32>
    %1184 = vector.broadcast %1178 : vector<8x1xf32> to vector<8x32xf32>
    %1185 = arith.mulf %1184, %1183 : vector<8x32xf32>
    %1186 = arith.addf %1182, %1185 : vector<8x32xf32>
    %1187 = vector.extract_strided_slice %0 {offsets = [0, 17], sizes = [8, 1], strides = [1, 1]} : vector<8x30xf32> to vector<8x1xf32>
    %1188 = vector.broadcast %1187 : vector<8x1xf32> to vector<8x256xf32>
    %1189 = vector.broadcast %1 : vector<1x256xf32> to vector<8x256xf32>
    %1190 = arith.mulf %1188, %1189 : vector<8x256xf32>
    %1191 = vector.broadcast %2 : vector<1x256xf32> to vector<8x256xf32>
    %1192 = arith.addf %1190, %1191 : vector<8x256xf32>
    %cst_118 = arith.constant dense<0.000000e+00> : vector<8x256xf32>
    %1193 = tpu.matmul %1151, %3, %cst_118 {dimension_numbers = #tpu.dot_dimension_numbers<[1], [0], [0], [1], [0, 0, 1, 1], [], []>} : vector<8x64xbf16>, vector<64x256xbf16>, vector<8x256xf32> -> vector<8x256xf32>
    %1194 = arith.addf %1192, %1193 : vector<8x256xf32>
    %1195 = vector.extract_strided_slice %1194 {offsets = [0, 0], sizes = [8, 64], strides = [1, 1]} : vector<8x256xf32> to vector<8x64xf32>
    %1196 = arith.negf %1195 : vector<8x64xf32>
    %1197 = math.exp %1196 : vector<8x64xf32>
    %cst_119 = arith.constant 1.000000e+00 : f32
    %1198 = vector.broadcast %cst_119 : f32 to vector<8x64xf32>
    %1199 = arith.addf %1198, %1197 : vector<8x64xf32>
    %1200 = arith.divf %1198, %1199 : vector<8x64xf32>
    %1201 = vector.extract_strided_slice %1194 {offsets = [0, 64], sizes = [8, 64], strides = [1, 1]} : vector<8x256xf32> to vector<8x64xf32>
    %1202 = arith.negf %1201 : vector<8x64xf32>
    %1203 = math.exp %1202 : vector<8x64xf32>
    %cst_120 = arith.constant 1.000000e+00 : f32
    %1204 = vector.broadcast %cst_120 : f32 to vector<8x64xf32>
    %1205 = arith.addf %1204, %1203 : vector<8x64xf32>
    %1206 = arith.divf %1204, %1205 : vector<8x64xf32>
    %1207 = vector.extract_strided_slice %1194 {offsets = [0, 128], sizes = [8, 64], strides = [1, 1]} : vector<8x256xf32> to vector<8x64xf32>
    %1208 = math.tanh %1207 : vector<8x64xf32>
    %1209 = vector.extract_strided_slice %1194 {offsets = [0, 192], sizes = [8, 64], strides = [1, 1]} : vector<8x256xf32> to vector<8x64xf32>
    %1210 = arith.negf %1209 : vector<8x64xf32>
    %1211 = math.exp %1210 : vector<8x64xf32>
    %cst_121 = arith.constant 1.000000e+00 : f32
    %1212 = vector.broadcast %cst_121 : f32 to vector<8x64xf32>
    %1213 = arith.addf %1212, %1211 : vector<8x64xf32>
    %1214 = arith.divf %1212, %1213 : vector<8x64xf32>
    %1215 = arith.mulf %1206, %1148 : vector<8x64xf32>
    %1216 = arith.mulf %1200, %1208 : vector<8x64xf32>
    %1217 = arith.addf %1215, %1216 : vector<8x64xf32>
    %1218 = math.tanh %1217 : vector<8x64xf32>
    %1219 = arith.mulf %1214, %1218 : vector<8x64xf32>
    %1220 = arith.truncf %1219 : vector<8x64xf32> to vector<8x64xbf16>
    %1221 = vector.extract_strided_slice %4 {offsets = [17, 0], sizes = [1, 64], strides = [1, 1]} : vector<30x64xf32> to vector<1x64xf32>
    %1222 = vector.broadcast %1221 : vector<1x64xf32> to vector<8x64xf32>
    %1223 = arith.mulf %1219, %1222 : vector<8x64xf32>
    %1224 = vector.extract_strided_slice %1223 {offsets = [0, 0], sizes = [8, 32], strides = [1, 1]} : vector<8x64xf32> to vector<8x32xf32>
    %cst_122 = arith.constant dense<0.000000e+00> : vector<8xf32>
    %1225 = vector.multi_reduction <add>, %1224, %cst_122 [1] : vector<8x32xf32> to vector<8xf32>
    %1226 = vector.shape_cast %1225 : vector<8xf32> to vector<8x1xf32>
    %1227 = vector.extract_strided_slice %1223 {offsets = [0, 32], sizes = [8, 32], strides = [1, 1]} : vector<8x64xf32> to vector<8x32xf32>
    %cst_123 = arith.constant dense<0.000000e+00> : vector<8xf32>
    %1228 = vector.multi_reduction <add>, %1227, %cst_123 [1] : vector<8x32xf32> to vector<8xf32>
    %1229 = vector.shape_cast %1228 : vector<8xf32> to vector<8x1xf32>
    %1230 = arith.maximumf %1161, %1226 : vector<8x1xf32>
    %1231 = arith.subf %1161, %1230 : vector<8x1xf32>
    %1232 = math.exp %1231 : vector<8x1xf32>
    %1233 = arith.subf %1226, %1230 : vector<8x1xf32>
    %1234 = math.exp %1233 : vector<8x1xf32>
    %1235 = arith.mulf %1232, %1167 : vector<8x1xf32>
    %1236 = arith.addf %1235, %1234 : vector<8x1xf32>
    %1237 = vector.broadcast %1232 : vector<8x1xf32> to vector<8x32xf32>
    %1238 = arith.mulf %1237, %1173 : vector<8x32xf32>
    %1239 = vector.extract_strided_slice %1219 {offsets = [0, 0], sizes = [8, 32], strides = [1, 1]} : vector<8x64xf32> to vector<8x32xf32>
    %1240 = vector.broadcast %1234 : vector<8x1xf32> to vector<8x32xf32>
    %1241 = arith.mulf %1240, %1239 : vector<8x32xf32>
    %1242 = arith.addf %1238, %1241 : vector<8x32xf32>
    %1243 = arith.maximumf %1174, %1229 : vector<8x1xf32>
    %1244 = arith.subf %1174, %1243 : vector<8x1xf32>
    %1245 = math.exp %1244 : vector<8x1xf32>
    %1246 = arith.subf %1229, %1243 : vector<8x1xf32>
    %1247 = math.exp %1246 : vector<8x1xf32>
    %1248 = arith.mulf %1245, %1180 : vector<8x1xf32>
    %1249 = arith.addf %1248, %1247 : vector<8x1xf32>
    %1250 = vector.broadcast %1245 : vector<8x1xf32> to vector<8x32xf32>
    %1251 = arith.mulf %1250, %1186 : vector<8x32xf32>
    %1252 = vector.extract_strided_slice %1219 {offsets = [0, 32], sizes = [8, 32], strides = [1, 1]} : vector<8x64xf32> to vector<8x32xf32>
    %1253 = vector.broadcast %1247 : vector<8x1xf32> to vector<8x32xf32>
    %1254 = arith.mulf %1253, %1252 : vector<8x32xf32>
    %1255 = arith.addf %1251, %1254 : vector<8x32xf32>
    %1256 = vector.extract_strided_slice %0 {offsets = [0, 18], sizes = [8, 1], strides = [1, 1]} : vector<8x30xf32> to vector<8x1xf32>
    %1257 = vector.broadcast %1256 : vector<8x1xf32> to vector<8x256xf32>
    %1258 = vector.broadcast %1 : vector<1x256xf32> to vector<8x256xf32>
    %1259 = arith.mulf %1257, %1258 : vector<8x256xf32>
    %1260 = vector.broadcast %2 : vector<1x256xf32> to vector<8x256xf32>
    %1261 = arith.addf %1259, %1260 : vector<8x256xf32>
    %cst_124 = arith.constant dense<0.000000e+00> : vector<8x256xf32>
    %1262 = tpu.matmul %1220, %3, %cst_124 {dimension_numbers = #tpu.dot_dimension_numbers<[1], [0], [0], [1], [0, 0, 1, 1], [], []>} : vector<8x64xbf16>, vector<64x256xbf16>, vector<8x256xf32> -> vector<8x256xf32>
    %1263 = arith.addf %1261, %1262 : vector<8x256xf32>
    %1264 = vector.extract_strided_slice %1263 {offsets = [0, 0], sizes = [8, 64], strides = [1, 1]} : vector<8x256xf32> to vector<8x64xf32>
    %1265 = arith.negf %1264 : vector<8x64xf32>
    %1266 = math.exp %1265 : vector<8x64xf32>
    %cst_125 = arith.constant 1.000000e+00 : f32
    %1267 = vector.broadcast %cst_125 : f32 to vector<8x64xf32>
    %1268 = arith.addf %1267, %1266 : vector<8x64xf32>
    %1269 = arith.divf %1267, %1268 : vector<8x64xf32>
    %1270 = vector.extract_strided_slice %1263 {offsets = [0, 64], sizes = [8, 64], strides = [1, 1]} : vector<8x256xf32> to vector<8x64xf32>
    %1271 = arith.negf %1270 : vector<8x64xf32>
    %1272 = math.exp %1271 : vector<8x64xf32>
    %cst_126 = arith.constant 1.000000e+00 : f32
    %1273 = vector.broadcast %cst_126 : f32 to vector<8x64xf32>
    %1274 = arith.addf %1273, %1272 : vector<8x64xf32>
    %1275 = arith.divf %1273, %1274 : vector<8x64xf32>
    %1276 = vector.extract_strided_slice %1263 {offsets = [0, 128], sizes = [8, 64], strides = [1, 1]} : vector<8x256xf32> to vector<8x64xf32>
    %1277 = math.tanh %1276 : vector<8x64xf32>
    %1278 = vector.extract_strided_slice %1263 {offsets = [0, 192], sizes = [8, 64], strides = [1, 1]} : vector<8x256xf32> to vector<8x64xf32>
    %1279 = arith.negf %1278 : vector<8x64xf32>
    %1280 = math.exp %1279 : vector<8x64xf32>
    %cst_127 = arith.constant 1.000000e+00 : f32
    %1281 = vector.broadcast %cst_127 : f32 to vector<8x64xf32>
    %1282 = arith.addf %1281, %1280 : vector<8x64xf32>
    %1283 = arith.divf %1281, %1282 : vector<8x64xf32>
    %1284 = arith.mulf %1275, %1217 : vector<8x64xf32>
    %1285 = arith.mulf %1269, %1277 : vector<8x64xf32>
    %1286 = arith.addf %1284, %1285 : vector<8x64xf32>
    %1287 = math.tanh %1286 : vector<8x64xf32>
    %1288 = arith.mulf %1283, %1287 : vector<8x64xf32>
    %1289 = arith.truncf %1288 : vector<8x64xf32> to vector<8x64xbf16>
    %1290 = vector.extract_strided_slice %4 {offsets = [18, 0], sizes = [1, 64], strides = [1, 1]} : vector<30x64xf32> to vector<1x64xf32>
    %1291 = vector.broadcast %1290 : vector<1x64xf32> to vector<8x64xf32>
    %1292 = arith.mulf %1288, %1291 : vector<8x64xf32>
    %1293 = vector.extract_strided_slice %1292 {offsets = [0, 0], sizes = [8, 32], strides = [1, 1]} : vector<8x64xf32> to vector<8x32xf32>
    %cst_128 = arith.constant dense<0.000000e+00> : vector<8xf32>
    %1294 = vector.multi_reduction <add>, %1293, %cst_128 [1] : vector<8x32xf32> to vector<8xf32>
    %1295 = vector.shape_cast %1294 : vector<8xf32> to vector<8x1xf32>
    %1296 = vector.extract_strided_slice %1292 {offsets = [0, 32], sizes = [8, 32], strides = [1, 1]} : vector<8x64xf32> to vector<8x32xf32>
    %cst_129 = arith.constant dense<0.000000e+00> : vector<8xf32>
    %1297 = vector.multi_reduction <add>, %1296, %cst_129 [1] : vector<8x32xf32> to vector<8xf32>
    %1298 = vector.shape_cast %1297 : vector<8xf32> to vector<8x1xf32>
    %1299 = arith.maximumf %1230, %1295 : vector<8x1xf32>
    %1300 = arith.subf %1230, %1299 : vector<8x1xf32>
    %1301 = math.exp %1300 : vector<8x1xf32>
    %1302 = arith.subf %1295, %1299 : vector<8x1xf32>
    %1303 = math.exp %1302 : vector<8x1xf32>
    %1304 = arith.mulf %1301, %1236 : vector<8x1xf32>
    %1305 = arith.addf %1304, %1303 : vector<8x1xf32>
    %1306 = vector.broadcast %1301 : vector<8x1xf32> to vector<8x32xf32>
    %1307 = arith.mulf %1306, %1242 : vector<8x32xf32>
    %1308 = vector.extract_strided_slice %1288 {offsets = [0, 0], sizes = [8, 32], strides = [1, 1]} : vector<8x64xf32> to vector<8x32xf32>
    %1309 = vector.broadcast %1303 : vector<8x1xf32> to vector<8x32xf32>
    %1310 = arith.mulf %1309, %1308 : vector<8x32xf32>
    %1311 = arith.addf %1307, %1310 : vector<8x32xf32>
    %1312 = arith.maximumf %1243, %1298 : vector<8x1xf32>
    %1313 = arith.subf %1243, %1312 : vector<8x1xf32>
    %1314 = math.exp %1313 : vector<8x1xf32>
    %1315 = arith.subf %1298, %1312 : vector<8x1xf32>
    %1316 = math.exp %1315 : vector<8x1xf32>
    %1317 = arith.mulf %1314, %1249 : vector<8x1xf32>
    %1318 = arith.addf %1317, %1316 : vector<8x1xf32>
    %1319 = vector.broadcast %1314 : vector<8x1xf32> to vector<8x32xf32>
    %1320 = arith.mulf %1319, %1255 : vector<8x32xf32>
    %1321 = vector.extract_strided_slice %1288 {offsets = [0, 32], sizes = [8, 32], strides = [1, 1]} : vector<8x64xf32> to vector<8x32xf32>
    %1322 = vector.broadcast %1316 : vector<8x1xf32> to vector<8x32xf32>
    %1323 = arith.mulf %1322, %1321 : vector<8x32xf32>
    %1324 = arith.addf %1320, %1323 : vector<8x32xf32>
    %1325 = vector.extract_strided_slice %0 {offsets = [0, 19], sizes = [8, 1], strides = [1, 1]} : vector<8x30xf32> to vector<8x1xf32>
    %1326 = vector.broadcast %1325 : vector<8x1xf32> to vector<8x256xf32>
    %1327 = vector.broadcast %1 : vector<1x256xf32> to vector<8x256xf32>
    %1328 = arith.mulf %1326, %1327 : vector<8x256xf32>
    %1329 = vector.broadcast %2 : vector<1x256xf32> to vector<8x256xf32>
    %1330 = arith.addf %1328, %1329 : vector<8x256xf32>
    %cst_130 = arith.constant dense<0.000000e+00> : vector<8x256xf32>
    %1331 = tpu.matmul %1289, %3, %cst_130 {dimension_numbers = #tpu.dot_dimension_numbers<[1], [0], [0], [1], [0, 0, 1, 1], [], []>} : vector<8x64xbf16>, vector<64x256xbf16>, vector<8x256xf32> -> vector<8x256xf32>
    %1332 = arith.addf %1330, %1331 : vector<8x256xf32>
    %1333 = vector.extract_strided_slice %1332 {offsets = [0, 0], sizes = [8, 64], strides = [1, 1]} : vector<8x256xf32> to vector<8x64xf32>
    %1334 = arith.negf %1333 : vector<8x64xf32>
    %1335 = math.exp %1334 : vector<8x64xf32>
    %cst_131 = arith.constant 1.000000e+00 : f32
    %1336 = vector.broadcast %cst_131 : f32 to vector<8x64xf32>
    %1337 = arith.addf %1336, %1335 : vector<8x64xf32>
    %1338 = arith.divf %1336, %1337 : vector<8x64xf32>
    %1339 = vector.extract_strided_slice %1332 {offsets = [0, 64], sizes = [8, 64], strides = [1, 1]} : vector<8x256xf32> to vector<8x64xf32>
    %1340 = arith.negf %1339 : vector<8x64xf32>
    %1341 = math.exp %1340 : vector<8x64xf32>
    %cst_132 = arith.constant 1.000000e+00 : f32
    %1342 = vector.broadcast %cst_132 : f32 to vector<8x64xf32>
    %1343 = arith.addf %1342, %1341 : vector<8x64xf32>
    %1344 = arith.divf %1342, %1343 : vector<8x64xf32>
    %1345 = vector.extract_strided_slice %1332 {offsets = [0, 128], sizes = [8, 64], strides = [1, 1]} : vector<8x256xf32> to vector<8x64xf32>
    %1346 = math.tanh %1345 : vector<8x64xf32>
    %1347 = vector.extract_strided_slice %1332 {offsets = [0, 192], sizes = [8, 64], strides = [1, 1]} : vector<8x256xf32> to vector<8x64xf32>
    %1348 = arith.negf %1347 : vector<8x64xf32>
    %1349 = math.exp %1348 : vector<8x64xf32>
    %cst_133 = arith.constant 1.000000e+00 : f32
    %1350 = vector.broadcast %cst_133 : f32 to vector<8x64xf32>
    %1351 = arith.addf %1350, %1349 : vector<8x64xf32>
    %1352 = arith.divf %1350, %1351 : vector<8x64xf32>
    %1353 = arith.mulf %1344, %1286 : vector<8x64xf32>
    %1354 = arith.mulf %1338, %1346 : vector<8x64xf32>
    %1355 = arith.addf %1353, %1354 : vector<8x64xf32>
    %1356 = math.tanh %1355 : vector<8x64xf32>
    %1357 = arith.mulf %1352, %1356 : vector<8x64xf32>
    %1358 = arith.truncf %1357 : vector<8x64xf32> to vector<8x64xbf16>
    %1359 = vector.extract_strided_slice %4 {offsets = [19, 0], sizes = [1, 64], strides = [1, 1]} : vector<30x64xf32> to vector<1x64xf32>
    %1360 = vector.broadcast %1359 : vector<1x64xf32> to vector<8x64xf32>
    %1361 = arith.mulf %1357, %1360 : vector<8x64xf32>
    %1362 = vector.extract_strided_slice %1361 {offsets = [0, 0], sizes = [8, 32], strides = [1, 1]} : vector<8x64xf32> to vector<8x32xf32>
    %cst_134 = arith.constant dense<0.000000e+00> : vector<8xf32>
    %1363 = vector.multi_reduction <add>, %1362, %cst_134 [1] : vector<8x32xf32> to vector<8xf32>
    %1364 = vector.shape_cast %1363 : vector<8xf32> to vector<8x1xf32>
    %1365 = vector.extract_strided_slice %1361 {offsets = [0, 32], sizes = [8, 32], strides = [1, 1]} : vector<8x64xf32> to vector<8x32xf32>
    %cst_135 = arith.constant dense<0.000000e+00> : vector<8xf32>
    %1366 = vector.multi_reduction <add>, %1365, %cst_135 [1] : vector<8x32xf32> to vector<8xf32>
    %1367 = vector.shape_cast %1366 : vector<8xf32> to vector<8x1xf32>
    %1368 = arith.maximumf %1299, %1364 : vector<8x1xf32>
    %1369 = arith.subf %1299, %1368 : vector<8x1xf32>
    %1370 = math.exp %1369 : vector<8x1xf32>
    %1371 = arith.subf %1364, %1368 : vector<8x1xf32>
    %1372 = math.exp %1371 : vector<8x1xf32>
    %1373 = arith.mulf %1370, %1305 : vector<8x1xf32>
    %1374 = arith.addf %1373, %1372 : vector<8x1xf32>
    %1375 = vector.broadcast %1370 : vector<8x1xf32> to vector<8x32xf32>
    %1376 = arith.mulf %1375, %1311 : vector<8x32xf32>
    %1377 = vector.extract_strided_slice %1357 {offsets = [0, 0], sizes = [8, 32], strides = [1, 1]} : vector<8x64xf32> to vector<8x32xf32>
    %1378 = vector.broadcast %1372 : vector<8x1xf32> to vector<8x32xf32>
    %1379 = arith.mulf %1378, %1377 : vector<8x32xf32>
    %1380 = arith.addf %1376, %1379 : vector<8x32xf32>
    %1381 = arith.maximumf %1312, %1367 : vector<8x1xf32>
    %1382 = arith.subf %1312, %1381 : vector<8x1xf32>
    %1383 = math.exp %1382 : vector<8x1xf32>
    %1384 = arith.subf %1367, %1381 : vector<8x1xf32>
    %1385 = math.exp %1384 : vector<8x1xf32>
    %1386 = arith.mulf %1383, %1318 : vector<8x1xf32>
    %1387 = arith.addf %1386, %1385 : vector<8x1xf32>
    %1388 = vector.broadcast %1383 : vector<8x1xf32> to vector<8x32xf32>
    %1389 = arith.mulf %1388, %1324 : vector<8x32xf32>
    %1390 = vector.extract_strided_slice %1357 {offsets = [0, 32], sizes = [8, 32], strides = [1, 1]} : vector<8x64xf32> to vector<8x32xf32>
    %1391 = vector.broadcast %1385 : vector<8x1xf32> to vector<8x32xf32>
    %1392 = arith.mulf %1391, %1390 : vector<8x32xf32>
    %1393 = arith.addf %1389, %1392 : vector<8x32xf32>
    %1394 = vector.extract_strided_slice %0 {offsets = [0, 20], sizes = [8, 1], strides = [1, 1]} : vector<8x30xf32> to vector<8x1xf32>
    %1395 = vector.broadcast %1394 : vector<8x1xf32> to vector<8x256xf32>
    %1396 = vector.broadcast %1 : vector<1x256xf32> to vector<8x256xf32>
    %1397 = arith.mulf %1395, %1396 : vector<8x256xf32>
    %1398 = vector.broadcast %2 : vector<1x256xf32> to vector<8x256xf32>
    %1399 = arith.addf %1397, %1398 : vector<8x256xf32>
    %cst_136 = arith.constant dense<0.000000e+00> : vector<8x256xf32>
    %1400 = tpu.matmul %1358, %3, %cst_136 {dimension_numbers = #tpu.dot_dimension_numbers<[1], [0], [0], [1], [0, 0, 1, 1], [], []>} : vector<8x64xbf16>, vector<64x256xbf16>, vector<8x256xf32> -> vector<8x256xf32>
    %1401 = arith.addf %1399, %1400 : vector<8x256xf32>
    %1402 = vector.extract_strided_slice %1401 {offsets = [0, 0], sizes = [8, 64], strides = [1, 1]} : vector<8x256xf32> to vector<8x64xf32>
    %1403 = arith.negf %1402 : vector<8x64xf32>
    %1404 = math.exp %1403 : vector<8x64xf32>
    %cst_137 = arith.constant 1.000000e+00 : f32
    %1405 = vector.broadcast %cst_137 : f32 to vector<8x64xf32>
    %1406 = arith.addf %1405, %1404 : vector<8x64xf32>
    %1407 = arith.divf %1405, %1406 : vector<8x64xf32>
    %1408 = vector.extract_strided_slice %1401 {offsets = [0, 64], sizes = [8, 64], strides = [1, 1]} : vector<8x256xf32> to vector<8x64xf32>
    %1409 = arith.negf %1408 : vector<8x64xf32>
    %1410 = math.exp %1409 : vector<8x64xf32>
    %cst_138 = arith.constant 1.000000e+00 : f32
    %1411 = vector.broadcast %cst_138 : f32 to vector<8x64xf32>
    %1412 = arith.addf %1411, %1410 : vector<8x64xf32>
    %1413 = arith.divf %1411, %1412 : vector<8x64xf32>
    %1414 = vector.extract_strided_slice %1401 {offsets = [0, 128], sizes = [8, 64], strides = [1, 1]} : vector<8x256xf32> to vector<8x64xf32>
    %1415 = math.tanh %1414 : vector<8x64xf32>
    %1416 = vector.extract_strided_slice %1401 {offsets = [0, 192], sizes = [8, 64], strides = [1, 1]} : vector<8x256xf32> to vector<8x64xf32>
    %1417 = arith.negf %1416 : vector<8x64xf32>
    %1418 = math.exp %1417 : vector<8x64xf32>
    %cst_139 = arith.constant 1.000000e+00 : f32
    %1419 = vector.broadcast %cst_139 : f32 to vector<8x64xf32>
    %1420 = arith.addf %1419, %1418 : vector<8x64xf32>
    %1421 = arith.divf %1419, %1420 : vector<8x64xf32>
    %1422 = arith.mulf %1413, %1355 : vector<8x64xf32>
    %1423 = arith.mulf %1407, %1415 : vector<8x64xf32>
    %1424 = arith.addf %1422, %1423 : vector<8x64xf32>
    %1425 = math.tanh %1424 : vector<8x64xf32>
    %1426 = arith.mulf %1421, %1425 : vector<8x64xf32>
    %1427 = arith.truncf %1426 : vector<8x64xf32> to vector<8x64xbf16>
    %1428 = vector.extract_strided_slice %4 {offsets = [20, 0], sizes = [1, 64], strides = [1, 1]} : vector<30x64xf32> to vector<1x64xf32>
    %1429 = vector.broadcast %1428 : vector<1x64xf32> to vector<8x64xf32>
    %1430 = arith.mulf %1426, %1429 : vector<8x64xf32>
    %1431 = vector.extract_strided_slice %1430 {offsets = [0, 0], sizes = [8, 32], strides = [1, 1]} : vector<8x64xf32> to vector<8x32xf32>
    %cst_140 = arith.constant dense<0.000000e+00> : vector<8xf32>
    %1432 = vector.multi_reduction <add>, %1431, %cst_140 [1] : vector<8x32xf32> to vector<8xf32>
    %1433 = vector.shape_cast %1432 : vector<8xf32> to vector<8x1xf32>
    %1434 = vector.extract_strided_slice %1430 {offsets = [0, 32], sizes = [8, 32], strides = [1, 1]} : vector<8x64xf32> to vector<8x32xf32>
    %cst_141 = arith.constant dense<0.000000e+00> : vector<8xf32>
    %1435 = vector.multi_reduction <add>, %1434, %cst_141 [1] : vector<8x32xf32> to vector<8xf32>
    %1436 = vector.shape_cast %1435 : vector<8xf32> to vector<8x1xf32>
    %1437 = arith.maximumf %1368, %1433 : vector<8x1xf32>
    %1438 = arith.subf %1368, %1437 : vector<8x1xf32>
    %1439 = math.exp %1438 : vector<8x1xf32>
    %1440 = arith.subf %1433, %1437 : vector<8x1xf32>
    %1441 = math.exp %1440 : vector<8x1xf32>
    %1442 = arith.mulf %1439, %1374 : vector<8x1xf32>
    %1443 = arith.addf %1442, %1441 : vector<8x1xf32>
    %1444 = vector.broadcast %1439 : vector<8x1xf32> to vector<8x32xf32>
    %1445 = arith.mulf %1444, %1380 : vector<8x32xf32>
    %1446 = vector.extract_strided_slice %1426 {offsets = [0, 0], sizes = [8, 32], strides = [1, 1]} : vector<8x64xf32> to vector<8x32xf32>
    %1447 = vector.broadcast %1441 : vector<8x1xf32> to vector<8x32xf32>
    %1448 = arith.mulf %1447, %1446 : vector<8x32xf32>
    %1449 = arith.addf %1445, %1448 : vector<8x32xf32>
    %1450 = arith.maximumf %1381, %1436 : vector<8x1xf32>
    %1451 = arith.subf %1381, %1450 : vector<8x1xf32>
    %1452 = math.exp %1451 : vector<8x1xf32>
    %1453 = arith.subf %1436, %1450 : vector<8x1xf32>
    %1454 = math.exp %1453 : vector<8x1xf32>
    %1455 = arith.mulf %1452, %1387 : vector<8x1xf32>
    %1456 = arith.addf %1455, %1454 : vector<8x1xf32>
    %1457 = vector.broadcast %1452 : vector<8x1xf32> to vector<8x32xf32>
    %1458 = arith.mulf %1457, %1393 : vector<8x32xf32>
    %1459 = vector.extract_strided_slice %1426 {offsets = [0, 32], sizes = [8, 32], strides = [1, 1]} : vector<8x64xf32> to vector<8x32xf32>
    %1460 = vector.broadcast %1454 : vector<8x1xf32> to vector<8x32xf32>
    %1461 = arith.mulf %1460, %1459 : vector<8x32xf32>
    %1462 = arith.addf %1458, %1461 : vector<8x32xf32>
    %1463 = vector.extract_strided_slice %0 {offsets = [0, 21], sizes = [8, 1], strides = [1, 1]} : vector<8x30xf32> to vector<8x1xf32>
    %1464 = vector.broadcast %1463 : vector<8x1xf32> to vector<8x256xf32>
    %1465 = vector.broadcast %1 : vector<1x256xf32> to vector<8x256xf32>
    %1466 = arith.mulf %1464, %1465 : vector<8x256xf32>
    %1467 = vector.broadcast %2 : vector<1x256xf32> to vector<8x256xf32>
    %1468 = arith.addf %1466, %1467 : vector<8x256xf32>
    %cst_142 = arith.constant dense<0.000000e+00> : vector<8x256xf32>
    %1469 = tpu.matmul %1427, %3, %cst_142 {dimension_numbers = #tpu.dot_dimension_numbers<[1], [0], [0], [1], [0, 0, 1, 1], [], []>} : vector<8x64xbf16>, vector<64x256xbf16>, vector<8x256xf32> -> vector<8x256xf32>
    %1470 = arith.addf %1468, %1469 : vector<8x256xf32>
    %1471 = vector.extract_strided_slice %1470 {offsets = [0, 0], sizes = [8, 64], strides = [1, 1]} : vector<8x256xf32> to vector<8x64xf32>
    %1472 = arith.negf %1471 : vector<8x64xf32>
    %1473 = math.exp %1472 : vector<8x64xf32>
    %cst_143 = arith.constant 1.000000e+00 : f32
    %1474 = vector.broadcast %cst_143 : f32 to vector<8x64xf32>
    %1475 = arith.addf %1474, %1473 : vector<8x64xf32>
    %1476 = arith.divf %1474, %1475 : vector<8x64xf32>
    %1477 = vector.extract_strided_slice %1470 {offsets = [0, 64], sizes = [8, 64], strides = [1, 1]} : vector<8x256xf32> to vector<8x64xf32>
    %1478 = arith.negf %1477 : vector<8x64xf32>
    %1479 = math.exp %1478 : vector<8x64xf32>
    %cst_144 = arith.constant 1.000000e+00 : f32
    %1480 = vector.broadcast %cst_144 : f32 to vector<8x64xf32>
    %1481 = arith.addf %1480, %1479 : vector<8x64xf32>
    %1482 = arith.divf %1480, %1481 : vector<8x64xf32>
    %1483 = vector.extract_strided_slice %1470 {offsets = [0, 128], sizes = [8, 64], strides = [1, 1]} : vector<8x256xf32> to vector<8x64xf32>
    %1484 = math.tanh %1483 : vector<8x64xf32>
    %1485 = vector.extract_strided_slice %1470 {offsets = [0, 192], sizes = [8, 64], strides = [1, 1]} : vector<8x256xf32> to vector<8x64xf32>
    %1486 = arith.negf %1485 : vector<8x64xf32>
    %1487 = math.exp %1486 : vector<8x64xf32>
    %cst_145 = arith.constant 1.000000e+00 : f32
    %1488 = vector.broadcast %cst_145 : f32 to vector<8x64xf32>
    %1489 = arith.addf %1488, %1487 : vector<8x64xf32>
    %1490 = arith.divf %1488, %1489 : vector<8x64xf32>
    %1491 = arith.mulf %1482, %1424 : vector<8x64xf32>
    %1492 = arith.mulf %1476, %1484 : vector<8x64xf32>
    %1493 = arith.addf %1491, %1492 : vector<8x64xf32>
    %1494 = math.tanh %1493 : vector<8x64xf32>
    %1495 = arith.mulf %1490, %1494 : vector<8x64xf32>
    %1496 = arith.truncf %1495 : vector<8x64xf32> to vector<8x64xbf16>
    %1497 = vector.extract_strided_slice %4 {offsets = [21, 0], sizes = [1, 64], strides = [1, 1]} : vector<30x64xf32> to vector<1x64xf32>
    %1498 = vector.broadcast %1497 : vector<1x64xf32> to vector<8x64xf32>
    %1499 = arith.mulf %1495, %1498 : vector<8x64xf32>
    %1500 = vector.extract_strided_slice %1499 {offsets = [0, 0], sizes = [8, 32], strides = [1, 1]} : vector<8x64xf32> to vector<8x32xf32>
    %cst_146 = arith.constant dense<0.000000e+00> : vector<8xf32>
    %1501 = vector.multi_reduction <add>, %1500, %cst_146 [1] : vector<8x32xf32> to vector<8xf32>
    %1502 = vector.shape_cast %1501 : vector<8xf32> to vector<8x1xf32>
    %1503 = vector.extract_strided_slice %1499 {offsets = [0, 32], sizes = [8, 32], strides = [1, 1]} : vector<8x64xf32> to vector<8x32xf32>
    %cst_147 = arith.constant dense<0.000000e+00> : vector<8xf32>
    %1504 = vector.multi_reduction <add>, %1503, %cst_147 [1] : vector<8x32xf32> to vector<8xf32>
    %1505 = vector.shape_cast %1504 : vector<8xf32> to vector<8x1xf32>
    %1506 = arith.maximumf %1437, %1502 : vector<8x1xf32>
    %1507 = arith.subf %1437, %1506 : vector<8x1xf32>
    %1508 = math.exp %1507 : vector<8x1xf32>
    %1509 = arith.subf %1502, %1506 : vector<8x1xf32>
    %1510 = math.exp %1509 : vector<8x1xf32>
    %1511 = arith.mulf %1508, %1443 : vector<8x1xf32>
    %1512 = arith.addf %1511, %1510 : vector<8x1xf32>
    %1513 = vector.broadcast %1508 : vector<8x1xf32> to vector<8x32xf32>
    %1514 = arith.mulf %1513, %1449 : vector<8x32xf32>
    %1515 = vector.extract_strided_slice %1495 {offsets = [0, 0], sizes = [8, 32], strides = [1, 1]} : vector<8x64xf32> to vector<8x32xf32>
    %1516 = vector.broadcast %1510 : vector<8x1xf32> to vector<8x32xf32>
    %1517 = arith.mulf %1516, %1515 : vector<8x32xf32>
    %1518 = arith.addf %1514, %1517 : vector<8x32xf32>
    %1519 = arith.maximumf %1450, %1505 : vector<8x1xf32>
    %1520 = arith.subf %1450, %1519 : vector<8x1xf32>
    %1521 = math.exp %1520 : vector<8x1xf32>
    %1522 = arith.subf %1505, %1519 : vector<8x1xf32>
    %1523 = math.exp %1522 : vector<8x1xf32>
    %1524 = arith.mulf %1521, %1456 : vector<8x1xf32>
    %1525 = arith.addf %1524, %1523 : vector<8x1xf32>
    %1526 = vector.broadcast %1521 : vector<8x1xf32> to vector<8x32xf32>
    %1527 = arith.mulf %1526, %1462 : vector<8x32xf32>
    %1528 = vector.extract_strided_slice %1495 {offsets = [0, 32], sizes = [8, 32], strides = [1, 1]} : vector<8x64xf32> to vector<8x32xf32>
    %1529 = vector.broadcast %1523 : vector<8x1xf32> to vector<8x32xf32>
    %1530 = arith.mulf %1529, %1528 : vector<8x32xf32>
    %1531 = arith.addf %1527, %1530 : vector<8x32xf32>
    %1532 = vector.extract_strided_slice %0 {offsets = [0, 22], sizes = [8, 1], strides = [1, 1]} : vector<8x30xf32> to vector<8x1xf32>
    %1533 = vector.broadcast %1532 : vector<8x1xf32> to vector<8x256xf32>
    %1534 = vector.broadcast %1 : vector<1x256xf32> to vector<8x256xf32>
    %1535 = arith.mulf %1533, %1534 : vector<8x256xf32>
    %1536 = vector.broadcast %2 : vector<1x256xf32> to vector<8x256xf32>
    %1537 = arith.addf %1535, %1536 : vector<8x256xf32>
    %cst_148 = arith.constant dense<0.000000e+00> : vector<8x256xf32>
    %1538 = tpu.matmul %1496, %3, %cst_148 {dimension_numbers = #tpu.dot_dimension_numbers<[1], [0], [0], [1], [0, 0, 1, 1], [], []>} : vector<8x64xbf16>, vector<64x256xbf16>, vector<8x256xf32> -> vector<8x256xf32>
    %1539 = arith.addf %1537, %1538 : vector<8x256xf32>
    %1540 = vector.extract_strided_slice %1539 {offsets = [0, 0], sizes = [8, 64], strides = [1, 1]} : vector<8x256xf32> to vector<8x64xf32>
    %1541 = arith.negf %1540 : vector<8x64xf32>
    %1542 = math.exp %1541 : vector<8x64xf32>
    %cst_149 = arith.constant 1.000000e+00 : f32
    %1543 = vector.broadcast %cst_149 : f32 to vector<8x64xf32>
    %1544 = arith.addf %1543, %1542 : vector<8x64xf32>
    %1545 = arith.divf %1543, %1544 : vector<8x64xf32>
    %1546 = vector.extract_strided_slice %1539 {offsets = [0, 64], sizes = [8, 64], strides = [1, 1]} : vector<8x256xf32> to vector<8x64xf32>
    %1547 = arith.negf %1546 : vector<8x64xf32>
    %1548 = math.exp %1547 : vector<8x64xf32>
    %cst_150 = arith.constant 1.000000e+00 : f32
    %1549 = vector.broadcast %cst_150 : f32 to vector<8x64xf32>
    %1550 = arith.addf %1549, %1548 : vector<8x64xf32>
    %1551 = arith.divf %1549, %1550 : vector<8x64xf32>
    %1552 = vector.extract_strided_slice %1539 {offsets = [0, 128], sizes = [8, 64], strides = [1, 1]} : vector<8x256xf32> to vector<8x64xf32>
    %1553 = math.tanh %1552 : vector<8x64xf32>
    %1554 = vector.extract_strided_slice %1539 {offsets = [0, 192], sizes = [8, 64], strides = [1, 1]} : vector<8x256xf32> to vector<8x64xf32>
    %1555 = arith.negf %1554 : vector<8x64xf32>
    %1556 = math.exp %1555 : vector<8x64xf32>
    %cst_151 = arith.constant 1.000000e+00 : f32
    %1557 = vector.broadcast %cst_151 : f32 to vector<8x64xf32>
    %1558 = arith.addf %1557, %1556 : vector<8x64xf32>
    %1559 = arith.divf %1557, %1558 : vector<8x64xf32>
    %1560 = arith.mulf %1551, %1493 : vector<8x64xf32>
    %1561 = arith.mulf %1545, %1553 : vector<8x64xf32>
    %1562 = arith.addf %1560, %1561 : vector<8x64xf32>
    %1563 = math.tanh %1562 : vector<8x64xf32>
    %1564 = arith.mulf %1559, %1563 : vector<8x64xf32>
    %1565 = arith.truncf %1564 : vector<8x64xf32> to vector<8x64xbf16>
    %1566 = vector.extract_strided_slice %4 {offsets = [22, 0], sizes = [1, 64], strides = [1, 1]} : vector<30x64xf32> to vector<1x64xf32>
    %1567 = vector.broadcast %1566 : vector<1x64xf32> to vector<8x64xf32>
    %1568 = arith.mulf %1564, %1567 : vector<8x64xf32>
    %1569 = vector.extract_strided_slice %1568 {offsets = [0, 0], sizes = [8, 32], strides = [1, 1]} : vector<8x64xf32> to vector<8x32xf32>
    %cst_152 = arith.constant dense<0.000000e+00> : vector<8xf32>
    %1570 = vector.multi_reduction <add>, %1569, %cst_152 [1] : vector<8x32xf32> to vector<8xf32>
    %1571 = vector.shape_cast %1570 : vector<8xf32> to vector<8x1xf32>
    %1572 = vector.extract_strided_slice %1568 {offsets = [0, 32], sizes = [8, 32], strides = [1, 1]} : vector<8x64xf32> to vector<8x32xf32>
    %cst_153 = arith.constant dense<0.000000e+00> : vector<8xf32>
    %1573 = vector.multi_reduction <add>, %1572, %cst_153 [1] : vector<8x32xf32> to vector<8xf32>
    %1574 = vector.shape_cast %1573 : vector<8xf32> to vector<8x1xf32>
    %1575 = arith.maximumf %1506, %1571 : vector<8x1xf32>
    %1576 = arith.subf %1506, %1575 : vector<8x1xf32>
    %1577 = math.exp %1576 : vector<8x1xf32>
    %1578 = arith.subf %1571, %1575 : vector<8x1xf32>
    %1579 = math.exp %1578 : vector<8x1xf32>
    %1580 = arith.mulf %1577, %1512 : vector<8x1xf32>
    %1581 = arith.addf %1580, %1579 : vector<8x1xf32>
    %1582 = vector.broadcast %1577 : vector<8x1xf32> to vector<8x32xf32>
    %1583 = arith.mulf %1582, %1518 : vector<8x32xf32>
    %1584 = vector.extract_strided_slice %1564 {offsets = [0, 0], sizes = [8, 32], strides = [1, 1]} : vector<8x64xf32> to vector<8x32xf32>
    %1585 = vector.broadcast %1579 : vector<8x1xf32> to vector<8x32xf32>
    %1586 = arith.mulf %1585, %1584 : vector<8x32xf32>
    %1587 = arith.addf %1583, %1586 : vector<8x32xf32>
    %1588 = arith.maximumf %1519, %1574 : vector<8x1xf32>
    %1589 = arith.subf %1519, %1588 : vector<8x1xf32>
    %1590 = math.exp %1589 : vector<8x1xf32>
    %1591 = arith.subf %1574, %1588 : vector<8x1xf32>
    %1592 = math.exp %1591 : vector<8x1xf32>
    %1593 = arith.mulf %1590, %1525 : vector<8x1xf32>
    %1594 = arith.addf %1593, %1592 : vector<8x1xf32>
    %1595 = vector.broadcast %1590 : vector<8x1xf32> to vector<8x32xf32>
    %1596 = arith.mulf %1595, %1531 : vector<8x32xf32>
    %1597 = vector.extract_strided_slice %1564 {offsets = [0, 32], sizes = [8, 32], strides = [1, 1]} : vector<8x64xf32> to vector<8x32xf32>
    %1598 = vector.broadcast %1592 : vector<8x1xf32> to vector<8x32xf32>
    %1599 = arith.mulf %1598, %1597 : vector<8x32xf32>
    %1600 = arith.addf %1596, %1599 : vector<8x32xf32>
    %1601 = vector.extract_strided_slice %0 {offsets = [0, 23], sizes = [8, 1], strides = [1, 1]} : vector<8x30xf32> to vector<8x1xf32>
    %1602 = vector.broadcast %1601 : vector<8x1xf32> to vector<8x256xf32>
    %1603 = vector.broadcast %1 : vector<1x256xf32> to vector<8x256xf32>
    %1604 = arith.mulf %1602, %1603 : vector<8x256xf32>
    %1605 = vector.broadcast %2 : vector<1x256xf32> to vector<8x256xf32>
    %1606 = arith.addf %1604, %1605 : vector<8x256xf32>
    %cst_154 = arith.constant dense<0.000000e+00> : vector<8x256xf32>
    %1607 = tpu.matmul %1565, %3, %cst_154 {dimension_numbers = #tpu.dot_dimension_numbers<[1], [0], [0], [1], [0, 0, 1, 1], [], []>} : vector<8x64xbf16>, vector<64x256xbf16>, vector<8x256xf32> -> vector<8x256xf32>
    %1608 = arith.addf %1606, %1607 : vector<8x256xf32>
    %1609 = vector.extract_strided_slice %1608 {offsets = [0, 0], sizes = [8, 64], strides = [1, 1]} : vector<8x256xf32> to vector<8x64xf32>
    %1610 = arith.negf %1609 : vector<8x64xf32>
    %1611 = math.exp %1610 : vector<8x64xf32>
    %cst_155 = arith.constant 1.000000e+00 : f32
    %1612 = vector.broadcast %cst_155 : f32 to vector<8x64xf32>
    %1613 = arith.addf %1612, %1611 : vector<8x64xf32>
    %1614 = arith.divf %1612, %1613 : vector<8x64xf32>
    %1615 = vector.extract_strided_slice %1608 {offsets = [0, 64], sizes = [8, 64], strides = [1, 1]} : vector<8x256xf32> to vector<8x64xf32>
    %1616 = arith.negf %1615 : vector<8x64xf32>
    %1617 = math.exp %1616 : vector<8x64xf32>
    %cst_156 = arith.constant 1.000000e+00 : f32
    %1618 = vector.broadcast %cst_156 : f32 to vector<8x64xf32>
    %1619 = arith.addf %1618, %1617 : vector<8x64xf32>
    %1620 = arith.divf %1618, %1619 : vector<8x64xf32>
    %1621 = vector.extract_strided_slice %1608 {offsets = [0, 128], sizes = [8, 64], strides = [1, 1]} : vector<8x256xf32> to vector<8x64xf32>
    %1622 = math.tanh %1621 : vector<8x64xf32>
    %1623 = vector.extract_strided_slice %1608 {offsets = [0, 192], sizes = [8, 64], strides = [1, 1]} : vector<8x256xf32> to vector<8x64xf32>
    %1624 = arith.negf %1623 : vector<8x64xf32>
    %1625 = math.exp %1624 : vector<8x64xf32>
    %cst_157 = arith.constant 1.000000e+00 : f32
    %1626 = vector.broadcast %cst_157 : f32 to vector<8x64xf32>
    %1627 = arith.addf %1626, %1625 : vector<8x64xf32>
    %1628 = arith.divf %1626, %1627 : vector<8x64xf32>
    %1629 = arith.mulf %1620, %1562 : vector<8x64xf32>
    %1630 = arith.mulf %1614, %1622 : vector<8x64xf32>
    %1631 = arith.addf %1629, %1630 : vector<8x64xf32>
    %1632 = math.tanh %1631 : vector<8x64xf32>
    %1633 = arith.mulf %1628, %1632 : vector<8x64xf32>
    %1634 = arith.truncf %1633 : vector<8x64xf32> to vector<8x64xbf16>
    %1635 = vector.extract_strided_slice %4 {offsets = [23, 0], sizes = [1, 64], strides = [1, 1]} : vector<30x64xf32> to vector<1x64xf32>
    %1636 = vector.broadcast %1635 : vector<1x64xf32> to vector<8x64xf32>
    %1637 = arith.mulf %1633, %1636 : vector<8x64xf32>
    %1638 = vector.extract_strided_slice %1637 {offsets = [0, 0], sizes = [8, 32], strides = [1, 1]} : vector<8x64xf32> to vector<8x32xf32>
    %cst_158 = arith.constant dense<0.000000e+00> : vector<8xf32>
    %1639 = vector.multi_reduction <add>, %1638, %cst_158 [1] : vector<8x32xf32> to vector<8xf32>
    %1640 = vector.shape_cast %1639 : vector<8xf32> to vector<8x1xf32>
    %1641 = vector.extract_strided_slice %1637 {offsets = [0, 32], sizes = [8, 32], strides = [1, 1]} : vector<8x64xf32> to vector<8x32xf32>
    %cst_159 = arith.constant dense<0.000000e+00> : vector<8xf32>
    %1642 = vector.multi_reduction <add>, %1641, %cst_159 [1] : vector<8x32xf32> to vector<8xf32>
    %1643 = vector.shape_cast %1642 : vector<8xf32> to vector<8x1xf32>
    %1644 = arith.maximumf %1575, %1640 : vector<8x1xf32>
    %1645 = arith.subf %1575, %1644 : vector<8x1xf32>
    %1646 = math.exp %1645 : vector<8x1xf32>
    %1647 = arith.subf %1640, %1644 : vector<8x1xf32>
    %1648 = math.exp %1647 : vector<8x1xf32>
    %1649 = arith.mulf %1646, %1581 : vector<8x1xf32>
    %1650 = arith.addf %1649, %1648 : vector<8x1xf32>
    %1651 = vector.broadcast %1646 : vector<8x1xf32> to vector<8x32xf32>
    %1652 = arith.mulf %1651, %1587 : vector<8x32xf32>
    %1653 = vector.extract_strided_slice %1633 {offsets = [0, 0], sizes = [8, 32], strides = [1, 1]} : vector<8x64xf32> to vector<8x32xf32>
    %1654 = vector.broadcast %1648 : vector<8x1xf32> to vector<8x32xf32>
    %1655 = arith.mulf %1654, %1653 : vector<8x32xf32>
    %1656 = arith.addf %1652, %1655 : vector<8x32xf32>
    %1657 = arith.maximumf %1588, %1643 : vector<8x1xf32>
    %1658 = arith.subf %1588, %1657 : vector<8x1xf32>
    %1659 = math.exp %1658 : vector<8x1xf32>
    %1660 = arith.subf %1643, %1657 : vector<8x1xf32>
    %1661 = math.exp %1660 : vector<8x1xf32>
    %1662 = arith.mulf %1659, %1594 : vector<8x1xf32>
    %1663 = arith.addf %1662, %1661 : vector<8x1xf32>
    %1664 = vector.broadcast %1659 : vector<8x1xf32> to vector<8x32xf32>
    %1665 = arith.mulf %1664, %1600 : vector<8x32xf32>
    %1666 = vector.extract_strided_slice %1633 {offsets = [0, 32], sizes = [8, 32], strides = [1, 1]} : vector<8x64xf32> to vector<8x32xf32>
    %1667 = vector.broadcast %1661 : vector<8x1xf32> to vector<8x32xf32>
    %1668 = arith.mulf %1667, %1666 : vector<8x32xf32>
    %1669 = arith.addf %1665, %1668 : vector<8x32xf32>
    %1670 = vector.extract_strided_slice %0 {offsets = [0, 24], sizes = [8, 1], strides = [1, 1]} : vector<8x30xf32> to vector<8x1xf32>
    %1671 = vector.broadcast %1670 : vector<8x1xf32> to vector<8x256xf32>
    %1672 = vector.broadcast %1 : vector<1x256xf32> to vector<8x256xf32>
    %1673 = arith.mulf %1671, %1672 : vector<8x256xf32>
    %1674 = vector.broadcast %2 : vector<1x256xf32> to vector<8x256xf32>
    %1675 = arith.addf %1673, %1674 : vector<8x256xf32>
    %cst_160 = arith.constant dense<0.000000e+00> : vector<8x256xf32>
    %1676 = tpu.matmul %1634, %3, %cst_160 {dimension_numbers = #tpu.dot_dimension_numbers<[1], [0], [0], [1], [0, 0, 1, 1], [], []>} : vector<8x64xbf16>, vector<64x256xbf16>, vector<8x256xf32> -> vector<8x256xf32>
    %1677 = arith.addf %1675, %1676 : vector<8x256xf32>
    %1678 = vector.extract_strided_slice %1677 {offsets = [0, 0], sizes = [8, 64], strides = [1, 1]} : vector<8x256xf32> to vector<8x64xf32>
    %1679 = arith.negf %1678 : vector<8x64xf32>
    %1680 = math.exp %1679 : vector<8x64xf32>
    %cst_161 = arith.constant 1.000000e+00 : f32
    %1681 = vector.broadcast %cst_161 : f32 to vector<8x64xf32>
    %1682 = arith.addf %1681, %1680 : vector<8x64xf32>
    %1683 = arith.divf %1681, %1682 : vector<8x64xf32>
    %1684 = vector.extract_strided_slice %1677 {offsets = [0, 64], sizes = [8, 64], strides = [1, 1]} : vector<8x256xf32> to vector<8x64xf32>
    %1685 = arith.negf %1684 : vector<8x64xf32>
    %1686 = math.exp %1685 : vector<8x64xf32>
    %cst_162 = arith.constant 1.000000e+00 : f32
    %1687 = vector.broadcast %cst_162 : f32 to vector<8x64xf32>
    %1688 = arith.addf %1687, %1686 : vector<8x64xf32>
    %1689 = arith.divf %1687, %1688 : vector<8x64xf32>
    %1690 = vector.extract_strided_slice %1677 {offsets = [0, 128], sizes = [8, 64], strides = [1, 1]} : vector<8x256xf32> to vector<8x64xf32>
    %1691 = math.tanh %1690 : vector<8x64xf32>
    %1692 = vector.extract_strided_slice %1677 {offsets = [0, 192], sizes = [8, 64], strides = [1, 1]} : vector<8x256xf32> to vector<8x64xf32>
    %1693 = arith.negf %1692 : vector<8x64xf32>
    %1694 = math.exp %1693 : vector<8x64xf32>
    %cst_163 = arith.constant 1.000000e+00 : f32
    %1695 = vector.broadcast %cst_163 : f32 to vector<8x64xf32>
    %1696 = arith.addf %1695, %1694 : vector<8x64xf32>
    %1697 = arith.divf %1695, %1696 : vector<8x64xf32>
    %1698 = arith.mulf %1689, %1631 : vector<8x64xf32>
    %1699 = arith.mulf %1683, %1691 : vector<8x64xf32>
    %1700 = arith.addf %1698, %1699 : vector<8x64xf32>
    %1701 = math.tanh %1700 : vector<8x64xf32>
    %1702 = arith.mulf %1697, %1701 : vector<8x64xf32>
    %1703 = arith.truncf %1702 : vector<8x64xf32> to vector<8x64xbf16>
    %1704 = vector.extract_strided_slice %4 {offsets = [24, 0], sizes = [1, 64], strides = [1, 1]} : vector<30x64xf32> to vector<1x64xf32>
    %1705 = vector.broadcast %1704 : vector<1x64xf32> to vector<8x64xf32>
    %1706 = arith.mulf %1702, %1705 : vector<8x64xf32>
    %1707 = vector.extract_strided_slice %1706 {offsets = [0, 0], sizes = [8, 32], strides = [1, 1]} : vector<8x64xf32> to vector<8x32xf32>
    %cst_164 = arith.constant dense<0.000000e+00> : vector<8xf32>
    %1708 = vector.multi_reduction <add>, %1707, %cst_164 [1] : vector<8x32xf32> to vector<8xf32>
    %1709 = vector.shape_cast %1708 : vector<8xf32> to vector<8x1xf32>
    %1710 = vector.extract_strided_slice %1706 {offsets = [0, 32], sizes = [8, 32], strides = [1, 1]} : vector<8x64xf32> to vector<8x32xf32>
    %cst_165 = arith.constant dense<0.000000e+00> : vector<8xf32>
    %1711 = vector.multi_reduction <add>, %1710, %cst_165 [1] : vector<8x32xf32> to vector<8xf32>
    %1712 = vector.shape_cast %1711 : vector<8xf32> to vector<8x1xf32>
    %1713 = arith.maximumf %1644, %1709 : vector<8x1xf32>
    %1714 = arith.subf %1644, %1713 : vector<8x1xf32>
    %1715 = math.exp %1714 : vector<8x1xf32>
    %1716 = arith.subf %1709, %1713 : vector<8x1xf32>
    %1717 = math.exp %1716 : vector<8x1xf32>
    %1718 = arith.mulf %1715, %1650 : vector<8x1xf32>
    %1719 = arith.addf %1718, %1717 : vector<8x1xf32>
    %1720 = vector.broadcast %1715 : vector<8x1xf32> to vector<8x32xf32>
    %1721 = arith.mulf %1720, %1656 : vector<8x32xf32>
    %1722 = vector.extract_strided_slice %1702 {offsets = [0, 0], sizes = [8, 32], strides = [1, 1]} : vector<8x64xf32> to vector<8x32xf32>
    %1723 = vector.broadcast %1717 : vector<8x1xf32> to vector<8x32xf32>
    %1724 = arith.mulf %1723, %1722 : vector<8x32xf32>
    %1725 = arith.addf %1721, %1724 : vector<8x32xf32>
    %1726 = arith.maximumf %1657, %1712 : vector<8x1xf32>
    %1727 = arith.subf %1657, %1726 : vector<8x1xf32>
    %1728 = math.exp %1727 : vector<8x1xf32>
    %1729 = arith.subf %1712, %1726 : vector<8x1xf32>
    %1730 = math.exp %1729 : vector<8x1xf32>
    %1731 = arith.mulf %1728, %1663 : vector<8x1xf32>
    %1732 = arith.addf %1731, %1730 : vector<8x1xf32>
    %1733 = vector.broadcast %1728 : vector<8x1xf32> to vector<8x32xf32>
    %1734 = arith.mulf %1733, %1669 : vector<8x32xf32>
    %1735 = vector.extract_strided_slice %1702 {offsets = [0, 32], sizes = [8, 32], strides = [1, 1]} : vector<8x64xf32> to vector<8x32xf32>
    %1736 = vector.broadcast %1730 : vector<8x1xf32> to vector<8x32xf32>
    %1737 = arith.mulf %1736, %1735 : vector<8x32xf32>
    %1738 = arith.addf %1734, %1737 : vector<8x32xf32>
    %1739 = vector.extract_strided_slice %0 {offsets = [0, 25], sizes = [8, 1], strides = [1, 1]} : vector<8x30xf32> to vector<8x1xf32>
    %1740 = vector.broadcast %1739 : vector<8x1xf32> to vector<8x256xf32>
    %1741 = vector.broadcast %1 : vector<1x256xf32> to vector<8x256xf32>
    %1742 = arith.mulf %1740, %1741 : vector<8x256xf32>
    %1743 = vector.broadcast %2 : vector<1x256xf32> to vector<8x256xf32>
    %1744 = arith.addf %1742, %1743 : vector<8x256xf32>
    %cst_166 = arith.constant dense<0.000000e+00> : vector<8x256xf32>
    %1745 = tpu.matmul %1703, %3, %cst_166 {dimension_numbers = #tpu.dot_dimension_numbers<[1], [0], [0], [1], [0, 0, 1, 1], [], []>} : vector<8x64xbf16>, vector<64x256xbf16>, vector<8x256xf32> -> vector<8x256xf32>
    %1746 = arith.addf %1744, %1745 : vector<8x256xf32>
    %1747 = vector.extract_strided_slice %1746 {offsets = [0, 0], sizes = [8, 64], strides = [1, 1]} : vector<8x256xf32> to vector<8x64xf32>
    %1748 = arith.negf %1747 : vector<8x64xf32>
    %1749 = math.exp %1748 : vector<8x64xf32>
    %cst_167 = arith.constant 1.000000e+00 : f32
    %1750 = vector.broadcast %cst_167 : f32 to vector<8x64xf32>
    %1751 = arith.addf %1750, %1749 : vector<8x64xf32>
    %1752 = arith.divf %1750, %1751 : vector<8x64xf32>
    %1753 = vector.extract_strided_slice %1746 {offsets = [0, 64], sizes = [8, 64], strides = [1, 1]} : vector<8x256xf32> to vector<8x64xf32>
    %1754 = arith.negf %1753 : vector<8x64xf32>
    %1755 = math.exp %1754 : vector<8x64xf32>
    %cst_168 = arith.constant 1.000000e+00 : f32
    %1756 = vector.broadcast %cst_168 : f32 to vector<8x64xf32>
    %1757 = arith.addf %1756, %1755 : vector<8x64xf32>
    %1758 = arith.divf %1756, %1757 : vector<8x64xf32>
    %1759 = vector.extract_strided_slice %1746 {offsets = [0, 128], sizes = [8, 64], strides = [1, 1]} : vector<8x256xf32> to vector<8x64xf32>
    %1760 = math.tanh %1759 : vector<8x64xf32>
    %1761 = vector.extract_strided_slice %1746 {offsets = [0, 192], sizes = [8, 64], strides = [1, 1]} : vector<8x256xf32> to vector<8x64xf32>
    %1762 = arith.negf %1761 : vector<8x64xf32>
    %1763 = math.exp %1762 : vector<8x64xf32>
    %cst_169 = arith.constant 1.000000e+00 : f32
    %1764 = vector.broadcast %cst_169 : f32 to vector<8x64xf32>
    %1765 = arith.addf %1764, %1763 : vector<8x64xf32>
    %1766 = arith.divf %1764, %1765 : vector<8x64xf32>
    %1767 = arith.mulf %1758, %1700 : vector<8x64xf32>
    %1768 = arith.mulf %1752, %1760 : vector<8x64xf32>
    %1769 = arith.addf %1767, %1768 : vector<8x64xf32>
    %1770 = math.tanh %1769 : vector<8x64xf32>
    %1771 = arith.mulf %1766, %1770 : vector<8x64xf32>
    %1772 = arith.truncf %1771 : vector<8x64xf32> to vector<8x64xbf16>
    %1773 = vector.extract_strided_slice %4 {offsets = [25, 0], sizes = [1, 64], strides = [1, 1]} : vector<30x64xf32> to vector<1x64xf32>
    %1774 = vector.broadcast %1773 : vector<1x64xf32> to vector<8x64xf32>
    %1775 = arith.mulf %1771, %1774 : vector<8x64xf32>
    %1776 = vector.extract_strided_slice %1775 {offsets = [0, 0], sizes = [8, 32], strides = [1, 1]} : vector<8x64xf32> to vector<8x32xf32>
    %cst_170 = arith.constant dense<0.000000e+00> : vector<8xf32>
    %1777 = vector.multi_reduction <add>, %1776, %cst_170 [1] : vector<8x32xf32> to vector<8xf32>
    %1778 = vector.shape_cast %1777 : vector<8xf32> to vector<8x1xf32>
    %1779 = vector.extract_strided_slice %1775 {offsets = [0, 32], sizes = [8, 32], strides = [1, 1]} : vector<8x64xf32> to vector<8x32xf32>
    %cst_171 = arith.constant dense<0.000000e+00> : vector<8xf32>
    %1780 = vector.multi_reduction <add>, %1779, %cst_171 [1] : vector<8x32xf32> to vector<8xf32>
    %1781 = vector.shape_cast %1780 : vector<8xf32> to vector<8x1xf32>
    %1782 = arith.maximumf %1713, %1778 : vector<8x1xf32>
    %1783 = arith.subf %1713, %1782 : vector<8x1xf32>
    %1784 = math.exp %1783 : vector<8x1xf32>
    %1785 = arith.subf %1778, %1782 : vector<8x1xf32>
    %1786 = math.exp %1785 : vector<8x1xf32>
    %1787 = arith.mulf %1784, %1719 : vector<8x1xf32>
    %1788 = arith.addf %1787, %1786 : vector<8x1xf32>
    %1789 = vector.broadcast %1784 : vector<8x1xf32> to vector<8x32xf32>
    %1790 = arith.mulf %1789, %1725 : vector<8x32xf32>
    %1791 = vector.extract_strided_slice %1771 {offsets = [0, 0], sizes = [8, 32], strides = [1, 1]} : vector<8x64xf32> to vector<8x32xf32>
    %1792 = vector.broadcast %1786 : vector<8x1xf32> to vector<8x32xf32>
    %1793 = arith.mulf %1792, %1791 : vector<8x32xf32>
    %1794 = arith.addf %1790, %1793 : vector<8x32xf32>
    %1795 = arith.maximumf %1726, %1781 : vector<8x1xf32>
    %1796 = arith.subf %1726, %1795 : vector<8x1xf32>
    %1797 = math.exp %1796 : vector<8x1xf32>
    %1798 = arith.subf %1781, %1795 : vector<8x1xf32>
    %1799 = math.exp %1798 : vector<8x1xf32>
    %1800 = arith.mulf %1797, %1732 : vector<8x1xf32>
    %1801 = arith.addf %1800, %1799 : vector<8x1xf32>
    %1802 = vector.broadcast %1797 : vector<8x1xf32> to vector<8x32xf32>
    %1803 = arith.mulf %1802, %1738 : vector<8x32xf32>
    %1804 = vector.extract_strided_slice %1771 {offsets = [0, 32], sizes = [8, 32], strides = [1, 1]} : vector<8x64xf32> to vector<8x32xf32>
    %1805 = vector.broadcast %1799 : vector<8x1xf32> to vector<8x32xf32>
    %1806 = arith.mulf %1805, %1804 : vector<8x32xf32>
    %1807 = arith.addf %1803, %1806 : vector<8x32xf32>
    %1808 = vector.extract_strided_slice %0 {offsets = [0, 26], sizes = [8, 1], strides = [1, 1]} : vector<8x30xf32> to vector<8x1xf32>
    %1809 = vector.broadcast %1808 : vector<8x1xf32> to vector<8x256xf32>
    %1810 = vector.broadcast %1 : vector<1x256xf32> to vector<8x256xf32>
    %1811 = arith.mulf %1809, %1810 : vector<8x256xf32>
    %1812 = vector.broadcast %2 : vector<1x256xf32> to vector<8x256xf32>
    %1813 = arith.addf %1811, %1812 : vector<8x256xf32>
    %cst_172 = arith.constant dense<0.000000e+00> : vector<8x256xf32>
    %1814 = tpu.matmul %1772, %3, %cst_172 {dimension_numbers = #tpu.dot_dimension_numbers<[1], [0], [0], [1], [0, 0, 1, 1], [], []>} : vector<8x64xbf16>, vector<64x256xbf16>, vector<8x256xf32> -> vector<8x256xf32>
    %1815 = arith.addf %1813, %1814 : vector<8x256xf32>
    %1816 = vector.extract_strided_slice %1815 {offsets = [0, 0], sizes = [8, 64], strides = [1, 1]} : vector<8x256xf32> to vector<8x64xf32>
    %1817 = arith.negf %1816 : vector<8x64xf32>
    %1818 = math.exp %1817 : vector<8x64xf32>
    %cst_173 = arith.constant 1.000000e+00 : f32
    %1819 = vector.broadcast %cst_173 : f32 to vector<8x64xf32>
    %1820 = arith.addf %1819, %1818 : vector<8x64xf32>
    %1821 = arith.divf %1819, %1820 : vector<8x64xf32>
    %1822 = vector.extract_strided_slice %1815 {offsets = [0, 64], sizes = [8, 64], strides = [1, 1]} : vector<8x256xf32> to vector<8x64xf32>
    %1823 = arith.negf %1822 : vector<8x64xf32>
    %1824 = math.exp %1823 : vector<8x64xf32>
    %cst_174 = arith.constant 1.000000e+00 : f32
    %1825 = vector.broadcast %cst_174 : f32 to vector<8x64xf32>
    %1826 = arith.addf %1825, %1824 : vector<8x64xf32>
    %1827 = arith.divf %1825, %1826 : vector<8x64xf32>
    %1828 = vector.extract_strided_slice %1815 {offsets = [0, 128], sizes = [8, 64], strides = [1, 1]} : vector<8x256xf32> to vector<8x64xf32>
    %1829 = math.tanh %1828 : vector<8x64xf32>
    %1830 = vector.extract_strided_slice %1815 {offsets = [0, 192], sizes = [8, 64], strides = [1, 1]} : vector<8x256xf32> to vector<8x64xf32>
    %1831 = arith.negf %1830 : vector<8x64xf32>
    %1832 = math.exp %1831 : vector<8x64xf32>
    %cst_175 = arith.constant 1.000000e+00 : f32
    %1833 = vector.broadcast %cst_175 : f32 to vector<8x64xf32>
    %1834 = arith.addf %1833, %1832 : vector<8x64xf32>
    %1835 = arith.divf %1833, %1834 : vector<8x64xf32>
    %1836 = arith.mulf %1827, %1769 : vector<8x64xf32>
    %1837 = arith.mulf %1821, %1829 : vector<8x64xf32>
    %1838 = arith.addf %1836, %1837 : vector<8x64xf32>
    %1839 = math.tanh %1838 : vector<8x64xf32>
    %1840 = arith.mulf %1835, %1839 : vector<8x64xf32>
    %1841 = arith.truncf %1840 : vector<8x64xf32> to vector<8x64xbf16>
    %1842 = vector.extract_strided_slice %4 {offsets = [26, 0], sizes = [1, 64], strides = [1, 1]} : vector<30x64xf32> to vector<1x64xf32>
    %1843 = vector.broadcast %1842 : vector<1x64xf32> to vector<8x64xf32>
    %1844 = arith.mulf %1840, %1843 : vector<8x64xf32>
    %1845 = vector.extract_strided_slice %1844 {offsets = [0, 0], sizes = [8, 32], strides = [1, 1]} : vector<8x64xf32> to vector<8x32xf32>
    %cst_176 = arith.constant dense<0.000000e+00> : vector<8xf32>
    %1846 = vector.multi_reduction <add>, %1845, %cst_176 [1] : vector<8x32xf32> to vector<8xf32>
    %1847 = vector.shape_cast %1846 : vector<8xf32> to vector<8x1xf32>
    %1848 = vector.extract_strided_slice %1844 {offsets = [0, 32], sizes = [8, 32], strides = [1, 1]} : vector<8x64xf32> to vector<8x32xf32>
    %cst_177 = arith.constant dense<0.000000e+00> : vector<8xf32>
    %1849 = vector.multi_reduction <add>, %1848, %cst_177 [1] : vector<8x32xf32> to vector<8xf32>
    %1850 = vector.shape_cast %1849 : vector<8xf32> to vector<8x1xf32>
    %1851 = arith.maximumf %1782, %1847 : vector<8x1xf32>
    %1852 = arith.subf %1782, %1851 : vector<8x1xf32>
    %1853 = math.exp %1852 : vector<8x1xf32>
    %1854 = arith.subf %1847, %1851 : vector<8x1xf32>
    %1855 = math.exp %1854 : vector<8x1xf32>
    %1856 = arith.mulf %1853, %1788 : vector<8x1xf32>
    %1857 = arith.addf %1856, %1855 : vector<8x1xf32>
    %1858 = vector.broadcast %1853 : vector<8x1xf32> to vector<8x32xf32>
    %1859 = arith.mulf %1858, %1794 : vector<8x32xf32>
    %1860 = vector.extract_strided_slice %1840 {offsets = [0, 0], sizes = [8, 32], strides = [1, 1]} : vector<8x64xf32> to vector<8x32xf32>
    %1861 = vector.broadcast %1855 : vector<8x1xf32> to vector<8x32xf32>
    %1862 = arith.mulf %1861, %1860 : vector<8x32xf32>
    %1863 = arith.addf %1859, %1862 : vector<8x32xf32>
    %1864 = arith.maximumf %1795, %1850 : vector<8x1xf32>
    %1865 = arith.subf %1795, %1864 : vector<8x1xf32>
    %1866 = math.exp %1865 : vector<8x1xf32>
    %1867 = arith.subf %1850, %1864 : vector<8x1xf32>
    %1868 = math.exp %1867 : vector<8x1xf32>
    %1869 = arith.mulf %1866, %1801 : vector<8x1xf32>
    %1870 = arith.addf %1869, %1868 : vector<8x1xf32>
    %1871 = vector.broadcast %1866 : vector<8x1xf32> to vector<8x32xf32>
    %1872 = arith.mulf %1871, %1807 : vector<8x32xf32>
    %1873 = vector.extract_strided_slice %1840 {offsets = [0, 32], sizes = [8, 32], strides = [1, 1]} : vector<8x64xf32> to vector<8x32xf32>
    %1874 = vector.broadcast %1868 : vector<8x1xf32> to vector<8x32xf32>
    %1875 = arith.mulf %1874, %1873 : vector<8x32xf32>
    %1876 = arith.addf %1872, %1875 : vector<8x32xf32>
    %1877 = vector.extract_strided_slice %0 {offsets = [0, 27], sizes = [8, 1], strides = [1, 1]} : vector<8x30xf32> to vector<8x1xf32>
    %1878 = vector.broadcast %1877 : vector<8x1xf32> to vector<8x256xf32>
    %1879 = vector.broadcast %1 : vector<1x256xf32> to vector<8x256xf32>
    %1880 = arith.mulf %1878, %1879 : vector<8x256xf32>
    %1881 = vector.broadcast %2 : vector<1x256xf32> to vector<8x256xf32>
    %1882 = arith.addf %1880, %1881 : vector<8x256xf32>
    %cst_178 = arith.constant dense<0.000000e+00> : vector<8x256xf32>
    %1883 = tpu.matmul %1841, %3, %cst_178 {dimension_numbers = #tpu.dot_dimension_numbers<[1], [0], [0], [1], [0, 0, 1, 1], [], []>} : vector<8x64xbf16>, vector<64x256xbf16>, vector<8x256xf32> -> vector<8x256xf32>
    %1884 = arith.addf %1882, %1883 : vector<8x256xf32>
    %1885 = vector.extract_strided_slice %1884 {offsets = [0, 0], sizes = [8, 64], strides = [1, 1]} : vector<8x256xf32> to vector<8x64xf32>
    %1886 = arith.negf %1885 : vector<8x64xf32>
    %1887 = math.exp %1886 : vector<8x64xf32>
    %cst_179 = arith.constant 1.000000e+00 : f32
    %1888 = vector.broadcast %cst_179 : f32 to vector<8x64xf32>
    %1889 = arith.addf %1888, %1887 : vector<8x64xf32>
    %1890 = arith.divf %1888, %1889 : vector<8x64xf32>
    %1891 = vector.extract_strided_slice %1884 {offsets = [0, 64], sizes = [8, 64], strides = [1, 1]} : vector<8x256xf32> to vector<8x64xf32>
    %1892 = arith.negf %1891 : vector<8x64xf32>
    %1893 = math.exp %1892 : vector<8x64xf32>
    %cst_180 = arith.constant 1.000000e+00 : f32
    %1894 = vector.broadcast %cst_180 : f32 to vector<8x64xf32>
    %1895 = arith.addf %1894, %1893 : vector<8x64xf32>
    %1896 = arith.divf %1894, %1895 : vector<8x64xf32>
    %1897 = vector.extract_strided_slice %1884 {offsets = [0, 128], sizes = [8, 64], strides = [1, 1]} : vector<8x256xf32> to vector<8x64xf32>
    %1898 = math.tanh %1897 : vector<8x64xf32>
    %1899 = vector.extract_strided_slice %1884 {offsets = [0, 192], sizes = [8, 64], strides = [1, 1]} : vector<8x256xf32> to vector<8x64xf32>
    %1900 = arith.negf %1899 : vector<8x64xf32>
    %1901 = math.exp %1900 : vector<8x64xf32>
    %cst_181 = arith.constant 1.000000e+00 : f32
    %1902 = vector.broadcast %cst_181 : f32 to vector<8x64xf32>
    %1903 = arith.addf %1902, %1901 : vector<8x64xf32>
    %1904 = arith.divf %1902, %1903 : vector<8x64xf32>
    %1905 = arith.mulf %1896, %1838 : vector<8x64xf32>
    %1906 = arith.mulf %1890, %1898 : vector<8x64xf32>
    %1907 = arith.addf %1905, %1906 : vector<8x64xf32>
    %1908 = math.tanh %1907 : vector<8x64xf32>
    %1909 = arith.mulf %1904, %1908 : vector<8x64xf32>
    %1910 = arith.truncf %1909 : vector<8x64xf32> to vector<8x64xbf16>
    %1911 = vector.extract_strided_slice %4 {offsets = [27, 0], sizes = [1, 64], strides = [1, 1]} : vector<30x64xf32> to vector<1x64xf32>
    %1912 = vector.broadcast %1911 : vector<1x64xf32> to vector<8x64xf32>
    %1913 = arith.mulf %1909, %1912 : vector<8x64xf32>
    %1914 = vector.extract_strided_slice %1913 {offsets = [0, 0], sizes = [8, 32], strides = [1, 1]} : vector<8x64xf32> to vector<8x32xf32>
    %cst_182 = arith.constant dense<0.000000e+00> : vector<8xf32>
    %1915 = vector.multi_reduction <add>, %1914, %cst_182 [1] : vector<8x32xf32> to vector<8xf32>
    %1916 = vector.shape_cast %1915 : vector<8xf32> to vector<8x1xf32>
    %1917 = vector.extract_strided_slice %1913 {offsets = [0, 32], sizes = [8, 32], strides = [1, 1]} : vector<8x64xf32> to vector<8x32xf32>
    %cst_183 = arith.constant dense<0.000000e+00> : vector<8xf32>
    %1918 = vector.multi_reduction <add>, %1917, %cst_183 [1] : vector<8x32xf32> to vector<8xf32>
    %1919 = vector.shape_cast %1918 : vector<8xf32> to vector<8x1xf32>
    %1920 = arith.maximumf %1851, %1916 : vector<8x1xf32>
    %1921 = arith.subf %1851, %1920 : vector<8x1xf32>
    %1922 = math.exp %1921 : vector<8x1xf32>
    %1923 = arith.subf %1916, %1920 : vector<8x1xf32>
    %1924 = math.exp %1923 : vector<8x1xf32>
    %1925 = arith.mulf %1922, %1857 : vector<8x1xf32>
    %1926 = arith.addf %1925, %1924 : vector<8x1xf32>
    %1927 = vector.broadcast %1922 : vector<8x1xf32> to vector<8x32xf32>
    %1928 = arith.mulf %1927, %1863 : vector<8x32xf32>
    %1929 = vector.extract_strided_slice %1909 {offsets = [0, 0], sizes = [8, 32], strides = [1, 1]} : vector<8x64xf32> to vector<8x32xf32>
    %1930 = vector.broadcast %1924 : vector<8x1xf32> to vector<8x32xf32>
    %1931 = arith.mulf %1930, %1929 : vector<8x32xf32>
    %1932 = arith.addf %1928, %1931 : vector<8x32xf32>
    %1933 = arith.maximumf %1864, %1919 : vector<8x1xf32>
    %1934 = arith.subf %1864, %1933 : vector<8x1xf32>
    %1935 = math.exp %1934 : vector<8x1xf32>
    %1936 = arith.subf %1919, %1933 : vector<8x1xf32>
    %1937 = math.exp %1936 : vector<8x1xf32>
    %1938 = arith.mulf %1935, %1870 : vector<8x1xf32>
    %1939 = arith.addf %1938, %1937 : vector<8x1xf32>
    %1940 = vector.broadcast %1935 : vector<8x1xf32> to vector<8x32xf32>
    %1941 = arith.mulf %1940, %1876 : vector<8x32xf32>
    %1942 = vector.extract_strided_slice %1909 {offsets = [0, 32], sizes = [8, 32], strides = [1, 1]} : vector<8x64xf32> to vector<8x32xf32>
    %1943 = vector.broadcast %1937 : vector<8x1xf32> to vector<8x32xf32>
    %1944 = arith.mulf %1943, %1942 : vector<8x32xf32>
    %1945 = arith.addf %1941, %1944 : vector<8x32xf32>
    %1946 = vector.extract_strided_slice %0 {offsets = [0, 28], sizes = [8, 1], strides = [1, 1]} : vector<8x30xf32> to vector<8x1xf32>
    %1947 = vector.broadcast %1946 : vector<8x1xf32> to vector<8x256xf32>
    %1948 = vector.broadcast %1 : vector<1x256xf32> to vector<8x256xf32>
    %1949 = arith.mulf %1947, %1948 : vector<8x256xf32>
    %1950 = vector.broadcast %2 : vector<1x256xf32> to vector<8x256xf32>
    %1951 = arith.addf %1949, %1950 : vector<8x256xf32>
    %cst_184 = arith.constant dense<0.000000e+00> : vector<8x256xf32>
    %1952 = tpu.matmul %1910, %3, %cst_184 {dimension_numbers = #tpu.dot_dimension_numbers<[1], [0], [0], [1], [0, 0, 1, 1], [], []>} : vector<8x64xbf16>, vector<64x256xbf16>, vector<8x256xf32> -> vector<8x256xf32>
    %1953 = arith.addf %1951, %1952 : vector<8x256xf32>
    %1954 = vector.extract_strided_slice %1953 {offsets = [0, 0], sizes = [8, 64], strides = [1, 1]} : vector<8x256xf32> to vector<8x64xf32>
    %1955 = arith.negf %1954 : vector<8x64xf32>
    %1956 = math.exp %1955 : vector<8x64xf32>
    %cst_185 = arith.constant 1.000000e+00 : f32
    %1957 = vector.broadcast %cst_185 : f32 to vector<8x64xf32>
    %1958 = arith.addf %1957, %1956 : vector<8x64xf32>
    %1959 = arith.divf %1957, %1958 : vector<8x64xf32>
    %1960 = vector.extract_strided_slice %1953 {offsets = [0, 64], sizes = [8, 64], strides = [1, 1]} : vector<8x256xf32> to vector<8x64xf32>
    %1961 = arith.negf %1960 : vector<8x64xf32>
    %1962 = math.exp %1961 : vector<8x64xf32>
    %cst_186 = arith.constant 1.000000e+00 : f32
    %1963 = vector.broadcast %cst_186 : f32 to vector<8x64xf32>
    %1964 = arith.addf %1963, %1962 : vector<8x64xf32>
    %1965 = arith.divf %1963, %1964 : vector<8x64xf32>
    %1966 = vector.extract_strided_slice %1953 {offsets = [0, 128], sizes = [8, 64], strides = [1, 1]} : vector<8x256xf32> to vector<8x64xf32>
    %1967 = math.tanh %1966 : vector<8x64xf32>
    %1968 = vector.extract_strided_slice %1953 {offsets = [0, 192], sizes = [8, 64], strides = [1, 1]} : vector<8x256xf32> to vector<8x64xf32>
    %1969 = arith.negf %1968 : vector<8x64xf32>
    %1970 = math.exp %1969 : vector<8x64xf32>
    %cst_187 = arith.constant 1.000000e+00 : f32
    %1971 = vector.broadcast %cst_187 : f32 to vector<8x64xf32>
    %1972 = arith.addf %1971, %1970 : vector<8x64xf32>
    %1973 = arith.divf %1971, %1972 : vector<8x64xf32>
    %1974 = arith.mulf %1965, %1907 : vector<8x64xf32>
    %1975 = arith.mulf %1959, %1967 : vector<8x64xf32>
    %1976 = arith.addf %1974, %1975 : vector<8x64xf32>
    %1977 = math.tanh %1976 : vector<8x64xf32>
    %1978 = arith.mulf %1973, %1977 : vector<8x64xf32>
    %1979 = arith.truncf %1978 : vector<8x64xf32> to vector<8x64xbf16>
    %1980 = vector.extract_strided_slice %4 {offsets = [28, 0], sizes = [1, 64], strides = [1, 1]} : vector<30x64xf32> to vector<1x64xf32>
    %1981 = vector.broadcast %1980 : vector<1x64xf32> to vector<8x64xf32>
    %1982 = arith.mulf %1978, %1981 : vector<8x64xf32>
    %1983 = vector.extract_strided_slice %1982 {offsets = [0, 0], sizes = [8, 32], strides = [1, 1]} : vector<8x64xf32> to vector<8x32xf32>
    %cst_188 = arith.constant dense<0.000000e+00> : vector<8xf32>
    %1984 = vector.multi_reduction <add>, %1983, %cst_188 [1] : vector<8x32xf32> to vector<8xf32>
    %1985 = vector.shape_cast %1984 : vector<8xf32> to vector<8x1xf32>
    %1986 = vector.extract_strided_slice %1982 {offsets = [0, 32], sizes = [8, 32], strides = [1, 1]} : vector<8x64xf32> to vector<8x32xf32>
    %cst_189 = arith.constant dense<0.000000e+00> : vector<8xf32>
    %1987 = vector.multi_reduction <add>, %1986, %cst_189 [1] : vector<8x32xf32> to vector<8xf32>
    %1988 = vector.shape_cast %1987 : vector<8xf32> to vector<8x1xf32>
    %1989 = arith.maximumf %1920, %1985 : vector<8x1xf32>
    %1990 = arith.subf %1920, %1989 : vector<8x1xf32>
    %1991 = math.exp %1990 : vector<8x1xf32>
    %1992 = arith.subf %1985, %1989 : vector<8x1xf32>
    %1993 = math.exp %1992 : vector<8x1xf32>
    %1994 = arith.mulf %1991, %1926 : vector<8x1xf32>
    %1995 = arith.addf %1994, %1993 : vector<8x1xf32>
    %1996 = vector.broadcast %1991 : vector<8x1xf32> to vector<8x32xf32>
    %1997 = arith.mulf %1996, %1932 : vector<8x32xf32>
    %1998 = vector.extract_strided_slice %1978 {offsets = [0, 0], sizes = [8, 32], strides = [1, 1]} : vector<8x64xf32> to vector<8x32xf32>
    %1999 = vector.broadcast %1993 : vector<8x1xf32> to vector<8x32xf32>
    %2000 = arith.mulf %1999, %1998 : vector<8x32xf32>
    %2001 = arith.addf %1997, %2000 : vector<8x32xf32>
    %2002 = arith.maximumf %1933, %1988 : vector<8x1xf32>
    %2003 = arith.subf %1933, %2002 : vector<8x1xf32>
    %2004 = math.exp %2003 : vector<8x1xf32>
    %2005 = arith.subf %1988, %2002 : vector<8x1xf32>
    %2006 = math.exp %2005 : vector<8x1xf32>
    %2007 = arith.mulf %2004, %1939 : vector<8x1xf32>
    %2008 = arith.addf %2007, %2006 : vector<8x1xf32>
    %2009 = vector.broadcast %2004 : vector<8x1xf32> to vector<8x32xf32>
    %2010 = arith.mulf %2009, %1945 : vector<8x32xf32>
    %2011 = vector.extract_strided_slice %1978 {offsets = [0, 32], sizes = [8, 32], strides = [1, 1]} : vector<8x64xf32> to vector<8x32xf32>
    %2012 = vector.broadcast %2006 : vector<8x1xf32> to vector<8x32xf32>
    %2013 = arith.mulf %2012, %2011 : vector<8x32xf32>
    %2014 = arith.addf %2010, %2013 : vector<8x32xf32>
    %2015 = vector.extract_strided_slice %0 {offsets = [0, 29], sizes = [8, 1], strides = [1, 1]} : vector<8x30xf32> to vector<8x1xf32>
    %2016 = vector.broadcast %2015 : vector<8x1xf32> to vector<8x256xf32>
    %2017 = vector.broadcast %1 : vector<1x256xf32> to vector<8x256xf32>
    %2018 = arith.mulf %2016, %2017 : vector<8x256xf32>
    %2019 = vector.broadcast %2 : vector<1x256xf32> to vector<8x256xf32>
    %2020 = arith.addf %2018, %2019 : vector<8x256xf32>
    %cst_190 = arith.constant dense<0.000000e+00> : vector<8x256xf32>
    %2021 = tpu.matmul %1979, %3, %cst_190 {dimension_numbers = #tpu.dot_dimension_numbers<[1], [0], [0], [1], [0, 0, 1, 1], [], []>} : vector<8x64xbf16>, vector<64x256xbf16>, vector<8x256xf32> -> vector<8x256xf32>
    %2022 = arith.addf %2020, %2021 : vector<8x256xf32>
    %2023 = vector.extract_strided_slice %2022 {offsets = [0, 0], sizes = [8, 64], strides = [1, 1]} : vector<8x256xf32> to vector<8x64xf32>
    %2024 = arith.negf %2023 : vector<8x64xf32>
    %2025 = math.exp %2024 : vector<8x64xf32>
    %cst_191 = arith.constant 1.000000e+00 : f32
    %2026 = vector.broadcast %cst_191 : f32 to vector<8x64xf32>
    %2027 = arith.addf %2026, %2025 : vector<8x64xf32>
    %2028 = arith.divf %2026, %2027 : vector<8x64xf32>
    %2029 = vector.extract_strided_slice %2022 {offsets = [0, 64], sizes = [8, 64], strides = [1, 1]} : vector<8x256xf32> to vector<8x64xf32>
    %2030 = arith.negf %2029 : vector<8x64xf32>
    %2031 = math.exp %2030 : vector<8x64xf32>
    %cst_192 = arith.constant 1.000000e+00 : f32
    %2032 = vector.broadcast %cst_192 : f32 to vector<8x64xf32>
    %2033 = arith.addf %2032, %2031 : vector<8x64xf32>
    %2034 = arith.divf %2032, %2033 : vector<8x64xf32>
    %2035 = vector.extract_strided_slice %2022 {offsets = [0, 128], sizes = [8, 64], strides = [1, 1]} : vector<8x256xf32> to vector<8x64xf32>
    %2036 = math.tanh %2035 : vector<8x64xf32>
    %2037 = vector.extract_strided_slice %2022 {offsets = [0, 192], sizes = [8, 64], strides = [1, 1]} : vector<8x256xf32> to vector<8x64xf32>
    %2038 = arith.negf %2037 : vector<8x64xf32>
    %2039 = math.exp %2038 : vector<8x64xf32>
    %cst_193 = arith.constant 1.000000e+00 : f32
    %2040 = vector.broadcast %cst_193 : f32 to vector<8x64xf32>
    %2041 = arith.addf %2040, %2039 : vector<8x64xf32>
    %2042 = arith.divf %2040, %2041 : vector<8x64xf32>
    %2043 = arith.mulf %2034, %1976 : vector<8x64xf32>
    %2044 = arith.mulf %2028, %2036 : vector<8x64xf32>
    %2045 = arith.addf %2043, %2044 : vector<8x64xf32>
    %2046 = math.tanh %2045 : vector<8x64xf32>
    %2047 = arith.mulf %2042, %2046 : vector<8x64xf32>
    %2048 = vector.extract_strided_slice %4 {offsets = [29, 0], sizes = [1, 64], strides = [1, 1]} : vector<30x64xf32> to vector<1x64xf32>
    %2049 = vector.broadcast %2048 : vector<1x64xf32> to vector<8x64xf32>
    %2050 = arith.mulf %2047, %2049 : vector<8x64xf32>
    %2051 = vector.extract_strided_slice %2050 {offsets = [0, 0], sizes = [8, 32], strides = [1, 1]} : vector<8x64xf32> to vector<8x32xf32>
    %cst_194 = arith.constant dense<0.000000e+00> : vector<8xf32>
    %2052 = vector.multi_reduction <add>, %2051, %cst_194 [1] : vector<8x32xf32> to vector<8xf32>
    %2053 = vector.shape_cast %2052 : vector<8xf32> to vector<8x1xf32>
    %2054 = vector.extract_strided_slice %2050 {offsets = [0, 32], sizes = [8, 32], strides = [1, 1]} : vector<8x64xf32> to vector<8x32xf32>
    %cst_195 = arith.constant dense<0.000000e+00> : vector<8xf32>
    %2055 = vector.multi_reduction <add>, %2054, %cst_195 [1] : vector<8x32xf32> to vector<8xf32>
    %2056 = vector.shape_cast %2055 : vector<8xf32> to vector<8x1xf32>
    %2057 = arith.maximumf %1989, %2053 : vector<8x1xf32>
    %2058 = arith.subf %1989, %2057 : vector<8x1xf32>
    %2059 = math.exp %2058 : vector<8x1xf32>
    %2060 = arith.subf %2053, %2057 : vector<8x1xf32>
    %2061 = math.exp %2060 : vector<8x1xf32>
    %2062 = arith.mulf %2059, %1995 : vector<8x1xf32>
    %2063 = arith.addf %2062, %2061 : vector<8x1xf32>
    %2064 = vector.broadcast %2059 : vector<8x1xf32> to vector<8x32xf32>
    %2065 = arith.mulf %2064, %2001 : vector<8x32xf32>
    %2066 = vector.extract_strided_slice %2047 {offsets = [0, 0], sizes = [8, 32], strides = [1, 1]} : vector<8x64xf32> to vector<8x32xf32>
    %2067 = vector.broadcast %2061 : vector<8x1xf32> to vector<8x32xf32>
    %2068 = arith.mulf %2067, %2066 : vector<8x32xf32>
    %2069 = arith.addf %2065, %2068 : vector<8x32xf32>
    %2070 = arith.maximumf %2002, %2056 : vector<8x1xf32>
    %2071 = arith.subf %2002, %2070 : vector<8x1xf32>
    %2072 = math.exp %2071 : vector<8x1xf32>
    %2073 = arith.subf %2056, %2070 : vector<8x1xf32>
    %2074 = math.exp %2073 : vector<8x1xf32>
    %2075 = arith.mulf %2072, %2008 : vector<8x1xf32>
    %2076 = arith.addf %2075, %2074 : vector<8x1xf32>
    %2077 = vector.broadcast %2072 : vector<8x1xf32> to vector<8x32xf32>
    %2078 = arith.mulf %2077, %2014 : vector<8x32xf32>
    %2079 = vector.extract_strided_slice %2047 {offsets = [0, 32], sizes = [8, 32], strides = [1, 1]} : vector<8x64xf32> to vector<8x32xf32>
    %2080 = vector.broadcast %2074 : vector<8x1xf32> to vector<8x32xf32>
    %2081 = arith.mulf %2080, %2079 : vector<8x32xf32>
    %2082 = arith.addf %2078, %2081 : vector<8x32xf32>
    %2083 = vector.broadcast %2063 : vector<8x1xf32> to vector<8x32xf32>
    %2084 = arith.divf %2069, %2083 : vector<8x32xf32>
    %2085 = vector.broadcast %2076 : vector<8x1xf32> to vector<8x32xf32>
    %2086 = arith.divf %2082, %2085 : vector<8x32xf32>
    %c0_196 = arith.constant 0 : index
    %c0_197 = arith.constant 0 : index
    %2087 = vector.load %arg6[%c0_196, %c0_197] : memref<32x32xf32, #tpu.memory_space<vmem>>, vector<32x32xf32>
    %cst_198 = arith.constant dense<0.000000e+00> : vector<8x32xf32>
    %2088 = tpu.matmul %2084, %2087, %cst_198 {dimension_numbers = #tpu.dot_dimension_numbers<[1], [0], [0], [1], [0, 0, 1, 1], [], []>} : vector<8x32xf32>, vector<32x32xf32>, vector<8x32xf32> -> vector<8x32xf32>
    %c0_199 = arith.constant 0 : index
    %c0_200 = arith.constant 0 : index
    %2089 = vector.load %arg7[%c0_199, %c0_200] : memref<1x32xf32, #tpu.memory_space<vmem>>, vector<1x32xf32>
    %2090 = vector.broadcast %2089 : vector<1x32xf32> to vector<8x32xf32>
    %2091 = arith.addf %2088, %2090 : vector<8x32xf32>
    %cst_201 = arith.constant 0.000000e+00 : f32
    %2092 = vector.broadcast %cst_201 : f32 to vector<8x32xf32>
    %2093 = arith.maximumf %2091, %2092 : vector<8x32xf32>
    %c0_202 = arith.constant 0 : index
    %c0_203 = arith.constant 0 : index
    %2094 = vector.load %arg10[%c0_202, %c0_203] : memref<8x32xf32, #tpu.memory_space<vmem>>, vector<8x32xf32>
    tpu.vector_store %arg10[%c0_202, %c0_203], %2093 {strides = array<i32>} : memref<8x32xf32, #tpu.memory_space<vmem>>, vector<8x32xf32>,
    %c0_204 = arith.constant 0 : index
    %c0_205 = arith.constant 0 : index
    %2095 = vector.load %arg8[%c0_204, %c0_205] : memref<32x32xf32, #tpu.memory_space<vmem>>, vector<32x32xf32>
    %cst_206 = arith.constant dense<0.000000e+00> : vector<8x32xf32>
    %2096 = tpu.matmul %2086, %2095, %cst_206 {dimension_numbers = #tpu.dot_dimension_numbers<[1], [0], [0], [1], [0, 0, 1, 1], [], []>} : vector<8x32xf32>, vector<32x32xf32>, vector<8x32xf32> -> vector<8x32xf32>
    %c0_207 = arith.constant 0 : index
    %c0_208 = arith.constant 0 : index
    %2097 = vector.load %arg9[%c0_207, %c0_208] : memref<1x32xf32, #tpu.memory_space<vmem>>, vector<1x32xf32>
    %2098 = vector.broadcast %2097 : vector<1x32xf32> to vector<8x32xf32>
    %2099 = arith.addf %2096, %2098 : vector<8x32xf32>
    %cst_209 = arith.constant 0.000000e+00 : f32
    %2100 = vector.broadcast %cst_209 : f32 to vector<8x32xf32>
    %2101 = arith.maximumf %2099, %2100 : vector<8x32xf32>
    %c0_210 = arith.constant 0 : index
    %c0_211 = arith.constant 0 : index
    %2102 = vector.load %arg11[%c0_210, %c0_211] : memref<8x32xf32, #tpu.memory_space<vmem>>, vector<8x32xf32>
    tpu.vector_store %arg11[%c0_210, %c0_211], %2101 {strides = array<i32>} : memref<8x32xf32, #tpu.memory_space<vmem>>, vector<8x32xf32>,
    return
  }
  func.func @transform_0(%arg0: i32) -> (i32, i32) {
    %c0_i32 = arith.constant 0 : i32
    %c0_i32_0 = arith.constant 0 : i32
    return %arg0, %c0_i32 : i32, i32
  }
  func.func @transform_1(%arg0: i32) -> (i32, i32) {
    %c0_i32 = arith.constant 0 : i32
    %c0_i32_0 = arith.constant 0 : i32
    %c0_i32_1 = arith.constant 0 : i32
    return %c0_i32, %c0_i32_0 : i32, i32
  }
  func.func @transform_2(%arg0: i32) -> (i32, i32) {
    %c0_i32 = arith.constant 0 : i32
    %c0_i32_0 = arith.constant 0 : i32
    %c0_i32_1 = arith.constant 0 : i32
    return %c0_i32, %c0_i32_0 : i32, i32
  }
  func.func @transform_3(%arg0: i32) -> (i32, i32) {
    %c0_i32 = arith.constant 0 : i32
    %c0_i32_0 = arith.constant 0 : i32
    %c0_i32_1 = arith.constant 0 : i32
    return %c0_i32, %c0_i32_0 : i32, i32
  }
  func.func @transform_4(%arg0: i32) -> (i32, i32) {
    %c0_i32 = arith.constant 0 : i32
    %c0_i32_0 = arith.constant 0 : i32
    %c0_i32_1 = arith.constant 0 : i32
    return %c0_i32, %c0_i32_0 : i32, i32
  }
  func.func @transform_5(%arg0: i32) -> (i32, i32) {
    %c0_i32 = arith.constant 0 : i32
    %c0_i32_0 = arith.constant 0 : i32
    %c0_i32_1 = arith.constant 0 : i32
    return %c0_i32, %c0_i32_0 : i32, i32
  }
  func.func @transform_6(%arg0: i32) -> (i32, i32) {
    %c0_i32 = arith.constant 0 : i32
    %c0_i32_0 = arith.constant 0 : i32
    %c0_i32_1 = arith.constant 0 : i32
    return %c0_i32, %c0_i32_0 : i32, i32
  }
  func.func @transform_7(%arg0: i32) -> (i32, i32) {
    %c0_i32 = arith.constant 0 : i32
    %c0_i32_0 = arith.constant 0 : i32
    %c0_i32_1 = arith.constant 0 : i32
    return %c0_i32, %c0_i32_0 : i32, i32
  }
  func.func @transform_8(%arg0: i32) -> (i32, i32) {
    %c0_i32 = arith.constant 0 : i32
    %c0_i32_0 = arith.constant 0 : i32
    %c0_i32_1 = arith.constant 0 : i32
    return %c0_i32, %c0_i32_0 : i32, i32
  }
  func.func @transform_9(%arg0: i32) -> (i32, i32) {
    %c0_i32 = arith.constant 0 : i32
    %c0_i32_0 = arith.constant 0 : i32
    return %arg0, %c0_i32 : i32, i32
  }
  func.func @transform_10(%arg0: i32) -> (i32, i32) {
    %c0_i32 = arith.constant 0 : i32
    %c0_i32_0 = arith.constant 0 : i32
    return %arg0, %c0_i32 : i32, i32
  }
}

</mosaic_0001>

<llo_original>
// kernel: trendspot2_forward.3
$region0: #{trendspot2_forward.3}
  #allocation0 [shape = 'u32[]', space=smem, size = 0x4, offset = 0x4, fixed_abs, tag = 'smem constant byte address 0x4 - core index']
  #allocation1 [shape = 'u32[144,128]{1,0:T(1,128)}', space=vmem, size = 0x12000, scoped, tag = 'internal scratch']
  #allocation2 [shape = 'f32[1,1]{1,0:T(1,128)S(1)}', space=vmem, size = 0x200, scoped, tag = 'scoped memory for trendspot2_forward.3']
  %s0 = inlined_call_operand.vmem [shape: f32[8,32], index: 0, kind: input, shape index: {}]
  %s1 = inlined_call_operand.vmem [shape: f32[8,32], index: 1, kind: input, shape index: {}]
  %s2 = inlined_call_operand.vmem [shape: f32[8,8], index: 2, kind: input, shape index: {}]
  %s3 = inlined_call_operand.vmem [shape: f32[8,8], index: 3, kind: input, shape index: {}]
  %s4 = inlined_call_operand.vmem [shape: f32[8,32], index: 4, kind: input, shape index: {}]
  %s5 = inlined_call_operand.vmem [shape: f32[32,32], index: 5, kind: input, shape index: {}]
  %s6 = inlined_call_operand.vmem [shape: f32[1,32], index: 6, kind: input, shape index: {}]
  %s7 = inlined_call_operand.vmem [shape: f32[32,32], index: 7, kind: input, shape index: {}]
  %s8 = inlined_call_operand.vmem [shape: f32[1,32], index: 8, kind: input, shape index: {}]
  %s9 = inlined_call_operand.vmem [shape: f32[1,32], index: 9, kind: input, shape index: {}]
  %s10 = inlined_call_operand.vmem [shape: f32[1,32], index: 10, kind: input, shape index: {}]
  %s11 = inlined_call_operand.<no memory space> [shape: f32[1,1], index: 11, kind: input, shape index: {}]
  %s12 = inlined_call_operand.vmem [shape: f32[8,1], index: 12, kind: output, shape index: {}]
  %s13 = sld [smem:[#allocation0]]
  $region58: #{trendspot2_forward.3} parent=0
    _
  %s15 = ssub.s32 1, %s13
  %s16 = scalar_select 0, %s15, %s13
  %v17 = vstv %s11
  %18 = vst [vmem:[#allocation2] sm:$0x1] %v17
  // Predicated region
  $region2: #{trendspot2_forward.3} parent=0 // pred_check
    _
  $region3: #{trendspot2_forward.3} parent=0 // pred_check_branch
    %20 = sbr.rel (0) target = $region5
  $region4: #{trendspot2_forward.3} parent=0 // pred_region
    _
  $region5: #{trendspot2_forward.3} parent=0 // pred_fallthru
    _
  // Predicated region
  $region6: #{trendspot2_forward.3} parent=0 // pred_check
    _
  $region7: #{trendspot2_forward.3} parent=0 // pred_check_branch
    %22 = sbr.rel (0) target = $region9
  $region8: #{trendspot2_forward.3} parent=0 // pred_region
    _
  $region9: #{trendspot2_forward.3} parent=0 // pred_fallthru
    _
  // Predicated region
  $region10: #{trendspot2_forward.3} parent=0 // pred_check
    _
  $region11: #{trendspot2_forward.3} parent=0 // pred_check_branch
    %24 = sbr.rel (0) target = $region13
  $region12: #{trendspot2_forward.3} parent=0 // pred_region
    _
  $region13: #{trendspot2_forward.3} parent=0 // pred_fallthru
    _
  // Predicated region
  $region14: #{trendspot2_forward.3} parent=0 // pred_check
    _
  $region15: #{trendspot2_forward.3} parent=0 // pred_check_branch
    %26 = sbr.rel (0) target = $region17
  $region16: #{trendspot2_forward.3} parent=0 // pred_region
    _
  $region17: #{trendspot2_forward.3} parent=0 // pred_fallthru
    _
  // Predicated region
  $region18: #{trendspot2_forward.3} parent=0 // pred_check
    _
  $region19: #{trendspot2_forward.3} parent=0 // pred_check_branch
    %28 = sbr.rel (0) target = $region21
  $region20: #{trendspot2_forward.3} parent=0 // pred_region
    _
  $region21: #{trendspot2_forward.3} parent=0 // pred_fallthru
    _
  // Predicated region
  $region22: #{trendspot2_forward.3} parent=0 // pred_check
    _
  $region23: #{trendspot2_forward.3} parent=0 // pred_check_branch
    %30 = sbr.rel (0) target = $region25
  $region24: #{trendspot2_forward.3} parent=0 // pred_region
    _
  $region25: #{trendspot2_forward.3} parent=0 // pred_fallthru
    _
  // Predicated region
  $region26: #{trendspot2_forward.3} parent=0 // pred_check
    _
  $region27: #{trendspot2_forward.3} parent=0 // pred_check_branch
    %32 = sbr.rel (0) target = $region29
  $region28: #{trendspot2_forward.3} parent=0 // pred_region
    _
  $region29: #{trendspot2_forward.3} parent=0 // pred_fallthru
    _
  // Predicated region
  $region30: #{trendspot2_forward.3} parent=0 // pred_check
    _
  $region31: #{trendspot2_forward.3} parent=0 // pred_check_branch
    %34 = sbr.rel (0) target = $region33
  $region32: #{trendspot2_forward.3} parent=0 // pred_region
    _
  $region33: #{trendspot2_forward.3} parent=0 // pred_fallthru
    _
  // Predicated region
  $region34: #{trendspot2_forward.3} parent=0 // pred_check
    _
  $region35: #{trendspot2_forward.3} parent=0 // pred_check_branch
    %36 = sbr.rel (0) target = $region37
  $region36: #{trendspot2_forward.3} parent=0 // pred_region
    _
  $region37: #{trendspot2_forward.3} parent=0 // pred_fallthru
    _
  // Predicated region
  $region38: #{trendspot2_forward.3} parent=0 // pred_check
    _
  $region39: #{trendspot2_forward.3} parent=0 // pred_check_branch
    %38 = sbr.rel (0) target = $region41
  $region40: #{trendspot2_forward.3} parent=0 // pred_region
    _
  $region41: #{trendspot2_forward.3} parent=0 // pred_fallthru
    _
  // Predicated region
  $region42: #{trendspot2_forward.3} parent=0 // pred_check
    _
  $region43: #{trendspot2_forward.3} parent=0 // pred_check_branch
    %40 = sbr.rel (0) target = $region45
  $region44: #{trendspot2_forward.3} parent=0 // pred_region
    _
  $region45: #{trendspot2_forward.3} parent=0 // pred_fallthru
    _
  // Predicated region
  $region46: #{trendspot2_forward.3} parent=0 // pred_check
    _
  $region47: #{trendspot2_forward.3} parent=0 // pred_check_branch
    %42 = sbr.rel (0) target = $region49
  $region48: #{trendspot2_forward.3} parent=0 // pred_region
    _
  $region49: #{trendspot2_forward.3} parent=0 // pred_fallthru
    _
  %v43 = vld [vmem:[%s1] sm:$0xff]
  %v44 = vld [vmem:[%s2] sm:$0xff]
  %v45 = vld [vmem:[%s5] sm:$0xff]
  %v46 = vld [vmem:[%s5 + $0x8] sm:$0xff]
  %v47 = vld [vmem:[%s5 + $0x10] sm:$0xff]
  %v48 = vld [vmem:[%s5 + $0x18] sm:$0xff]
  %vm49 = vcmask 261120
  %v51 = vsel %vm49, %v43, 0
  %53 = vmatprep.subr.mxu0 0.0
  %54 = vmatpush1.msra.mxu0 0.0
  %55 = vmatprep.subr.mxu0 0.0
  %56 = vmatpush1.msra.mxu0 0.0
  %57 = vmatprep.subr.mxu0 0.0
  %58 = vmatpush1.msra.mxu0 0.0
  %59 = vmatprep.subr.mxu0 0.0
  %60 = vmatpush1.msra.mxu0 0.0
  %61 = vmatprep.subr.mxu0 0.0
  %62 = vmatpush1.msra.mxu0 0.0
  %63 = vmatprep.subr.mxu0 0.0
  %64 = vmatpush1.msra.mxu0 0.0
  %65 = vmatprep.subr.mxu0 0.0
  %66 = vmatpush1.msra.mxu0 0.0
  %67 = vmatprep.subr.mxu0 0.0
  %68 = vmatpush1.msra.mxu0 0.0
  %69 = vmatprep.subr.mxu0 0.0
  %70 = vmatpush1.msra.mxu0 0.0
  %71 = vmatprep.subr.mxu0 0.0
  %72 = vmatpush1.msra.mxu0 0.0
  %73 = vmatprep.subr.mxu0 0.0
  %74 = vmatpush1.msra.mxu0 0.0
  %75 = vmatprep.subr.mxu0 0.0
  %76 = vmatpush1.msra.mxu0 0.0
  %77 = vmatprep.subr.mxu0 0.0
  %78 = vmatpush1.msra.mxu0 %v48
  %79 = vmatprep.subr.mxu0 0.0
  %80 = vmatpush1.msra.mxu0 %v47
  %81 = vmatprep.subr.mxu0 0.0
  %82 = vmatpush1.msra.mxu0 %v46
  %83 = vmatprep.subr.mxu0 0.0
  %84 = vmatpush1.msra.mxu0 %v45
  %85 = vmatprep.subr.mxu0 0.0
  %86 = vmatpush2.msra.mxu0 0.0
  %87 = vmatprep.subr.mxu0 0.0
  %88 = vmatpush2.msra.mxu0 0.0
  %89 = vmatprep.subr.mxu0 0.0
  %90 = vmatpush2.msra.mxu0 0.0
  %91 = vmatprep.subr.mxu0 0.0
  %92 = vmatpush2.msra.mxu0 0.0
  %93 = vmatprep.subr.mxu0 0.0
  %94 = vmatpush2.msra.mxu0 0.0
  %95 = vmatprep.subr.mxu0 0.0
  %96 = vmatpush2.msra.mxu0 0.0
  %97 = vmatprep.subr.mxu0 0.0
  %98 = vmatpush2.msra.mxu0 0.0
  %99 = vmatprep.subr.mxu0 0.0
  %100 = vmatpush2.msra.mxu0 0.0
  %101 = vmatprep.subr.mxu0 0.0
  %102 = vmatpush2.msra.mxu0 0.0
  %103 = vmatprep.subr.mxu0 0.0
  %104 = vmatpush2.msra.mxu0 0.0
  %105 = vmatprep.subr.mxu0 0.0
  %106 = vmatpush2.msra.mxu0 0.0
  %107 = vmatprep.subr.mxu0 0.0
  %108 = vmatpush2.msra.mxu0 0.0
  %109 = vmatprep.subr.mxu0 0.0
  %110 = vmatpush2.msra.mxu0 0.0
  %111 = vmatprep.subr.mxu0 0.0
  %112 = vmatpush2.msra.mxu0 0.0
  %113 = vmatprep.subr.mxu0 0.0
  %114 = vmatpush2.msra.mxu0 0.0
  %115 = vmatprep.subr.mxu0 0.0
  %116 = vmatpush2.msra.mxu0 0.0
  %117 = vmatprep.mubr.f32.mxu0 0.0
  %118 = vmatmul.mubr.f32.gmra.mxu0 %v51
  %v119 = vpop.f32.mrf.mxu0
  %v120 = vadd.f32 0.0, %v119
  %v121 = vpop.f32.mrf.mxu0
  %122 = vdwg.mxu0
  %v123 = vld [vmem:[%s6] sm:$0x1]
  %v125 = vlaneseq
  %v126 = vshrl.u32 %v125, 7
  %v127 = vsub.s32 0, %v126
  %v128 = vrot.slane %v123, %v127
  %vm130 = vcmask 64512
  %v132 = vsel %vm130, %v44, 0
  %134 = vmatprep.subr.mxu0 0.0
  %135 = vmatpush1.msra.mxu0 0.0
  %136 = vmatprep.subr.mxu0 0.0
  %137 = vmatpush1.msra.mxu0 0.0
  %138 = vmatprep.subr.mxu0 0.0
  %139 = vmatpush1.msra.mxu0 0.0
  %140 = vmatprep.subr.mxu0 0.0
  %141 = vmatpush1.msra.mxu0 0.0
  %142 = vmatprep.subr.mxu0 0.0
  %143 = vmatpush1.msra.mxu0 0.0
  %144 = vmatprep.subr.mxu0 0.0
  %145 = vmatpush1.msra.mxu0 0.0
  %146 = vmatprep.subr.mxu0 0.0
  %147 = vmatpush1.msra.mxu0 0.0
  %148 = vmatprep.subr.mxu0 0.0
  %149 = vmatpush1.msra.mxu0 0.0
  %150 = vmatprep.subr.mxu0 0.0
  %151 = vmatpush1.msra.mxu0 0.0
  %152 = vmatprep.subr.mxu0 0.0
  %153 = vmatpush1.msra.mxu0 0.0
  %154 = vmatprep.subr.mxu0 0.0
  %155 = vmatpush1.msra.mxu0 0.0
  %156 = vmatprep.subr.mxu0 0.0
  %157 = vmatpush1.msra.mxu0 0.0
  %158 = vmatprep.subr.mxu0 0.0
  %159 = vmatpush1.msra.mxu0 0.0
  %160 = vmatprep.subr.mxu0 0.0
  %161 = vmatpush1.msra.mxu0 0.0
  %162 = vmatprep.subr.mxu0 0.0
  %163 = vmatpush1.msra.mxu0 0.0
  %164 = vmatprep.subr.mxu0 0.0
  %165 = vmatpush1.msra.mxu0 %v120
  %166 = vmatprep.subr.mxu0 0.0
  %167 = vmatpush2.msra.mxu0 0.0
  %168 = vmatprep.subr.mxu0 0.0
  %169 = vmatpush2.msra.mxu0 0.0
  %170 = vmatprep.subr.mxu0 0.0
  %171 = vmatpush2.msra.mxu0 0.0
  %172 = vmatprep.subr.mxu0 0.0
  %173 = vmatpush2.msra.mxu0 0.0
  %174 = vmatprep.subr.mxu0 0.0
  %175 = vmatpush2.msra.mxu0 0.0
  %176 = vmatprep.subr.mxu0 0.0
  %177 = vmatpush2.msra.mxu0 0.0
  %178 = vmatprep.subr.mxu0 0.0
  %179 = vmatpush2.msra.mxu0 0.0
  %180 = vmatprep.subr.mxu0 0.0
  %181 = vmatpush2.msra.mxu0 0.0
  %182 = vmatprep.subr.mxu0 0.0
  %183 = vmatpush2.msra.mxu0 0.0
  %184 = vmatprep.subr.mxu0 0.0
  %185 = vmatpush2.msra.mxu0 0.0
  %186 = vmatprep.subr.mxu0 0.0
  %187 = vmatpush2.msra.mxu0 0.0
  %188 = vmatprep.subr.mxu0 0.0
  %189 = vmatpush2.msra.mxu0 0.0
  %190 = vmatprep.subr.mxu0 0.0
  %191 = vmatpush2.msra.mxu0 0.0
  %192 = vmatprep.subr.mxu0 0.0
  %193 = vmatpush2.msra.mxu0 0.0
  %194 = vmatprep.subr.mxu0 0.0
  %195 = vmatpush2.msra.mxu0 0.0
  %196 = vmatprep.subr.mxu0 0.0
  %197 = vmatpush2.msra.mxu0 0.0
  %198 = vmatprep.mubr.f32.mxu0 0.0
  %199 = vmatmul.mubr.f32.gmra.mxu0 %v132
  %v200 = vpop.f32.mrf.mxu0
  %v201 = vadd.f32 %v128, %v200
  %v202 = vpop.f32.mrf.mxu0
  %203 = vdwg.mxu0
  %v204 = vld [vmem:[%s4] sm:$0xff]
  %v205 = vmul.f32 %v201, %v204
  %v206 = vld [vmem:[%s3] sm:$0xff]
  %v207 = vld [vmem:[%s7] sm:$0xff]
  %v208 = vld [vmem:[%s7 + $0x8] sm:$0xff]
  %v209 = vld [vmem:[%s7 + $0x10] sm:$0xff]
  %v210 = vld [vmem:[%s7 + $0x18] sm:$0xff]
  %v212 = vsel %vm49, %v205, 0
  %214 = vmatprep.subr.mxu0 0.0
  %215 = vmatpush1.msra.mxu0 0.0
  %216 = vmatprep.subr.mxu0 0.0
  %217 = vmatpush1.msra.mxu0 0.0
  %218 = vmatprep.subr.mxu0 0.0
  %219 = vmatpush1.msra.mxu0 0.0
  %220 = vmatprep.subr.mxu0 0.0
  %221 = vmatpush1.msra.mxu0 0.0
  %222 = vmatprep.subr.mxu0 0.0
  %223 = vmatpush1.msra.mxu0 0.0
  %224 = vmatprep.subr.mxu0 0.0
  %225 = vmatpush1.msra.mxu0 0.0
  %226 = vmatprep.subr.mxu0 0.0
  %227 = vmatpush1.msra.mxu0 0.0
  %228 = vmatprep.subr.mxu0 0.0
  %229 = vmatpush1.msra.mxu0 0.0
  %230 = vmatprep.subr.mxu0 0.0
  %231 = vmatpush1.msra.mxu0 0.0
  %232 = vmatprep.subr.mxu0 0.0
  %233 = vmatpush1.msra.mxu0 0.0
  %234 = vmatprep.subr.mxu0 0.0
  %235 = vmatpush1.msra.mxu0 0.0
  %236 = vmatprep.subr.mxu0 0.0
  %237 = vmatpush1.msra.mxu0 0.0
  %238 = vmatprep.subr.mxu0 0.0
  %239 = vmatpush1.msra.mxu0 %v210
  %240 = vmatprep.subr.mxu0 0.0
  %241 = vmatpush1.msra.mxu0 %v209
  %242 = vmatprep.subr.mxu0 0.0
  %243 = vmatpush1.msra.mxu0 %v208
  %244 = vmatprep.subr.mxu0 0.0
  %245 = vmatpush1.msra.mxu0 %v207
  %246 = vmatprep.subr.mxu0 0.0
  %247 = vmatpush2.msra.mxu0 0.0
  %248 = vmatprep.subr.mxu0 0.0
  %249 = vmatpush2.msra.mxu0 0.0
  %250 = vmatprep.subr.mxu0 0.0
  %251 = vmatpush2.msra.mxu0 0.0
  %252 = vmatprep.subr.mxu0 0.0
  %253 = vmatpush2.msra.mxu0 0.0
  %254 = vmatprep.subr.mxu0 0.0
  %255 = vmatpush2.msra.mxu0 0.0
  %256 = vmatprep.subr.mxu0 0.0
  %257 = vmatpush2.msra.mxu0 0.0
  %258 = vmatprep.subr.mxu0 0.0
  %259 = vmatpush2.msra.mxu0 0.0
  %260 = vmatprep.subr.mxu0 0.0
  %261 = vmatpush2.msra.mxu0 0.0
  %262 = vmatprep.subr.mxu0 0.0
  %263 = vmatpush2.msra.mxu0 0.0
  %264 = vmatprep.subr.mxu0 0.0
  %265 = vmatpush2.msra.mxu0 0.0
  %266 = vmatprep.subr.mxu0 0.0
  %267 = vmatpush2.msra.mxu0 0.0
  %268 = vmatprep.subr.mxu0 0.0
  %269 = vmatpush2.msra.mxu0 0.0
  %270 = vmatprep.subr.mxu0 0.0
  %271 = vmatpush2.msra.mxu0 0.0
  %272 = vmatprep.subr.mxu0 0.0
  %273 = vmatpush2.msra.mxu0 0.0
  %274 = vmatprep.subr.mxu0 0.0
  %275 = vmatpush2.msra.mxu0 0.0
  %276 = vmatprep.subr.mxu0 0.0
  %277 = vmatpush2.msra.mxu0 0.0
  %278 = vmatprep.mubr.f32.mxu0 0.0
  %279 = vmatmul.mubr.f32.gmra.mxu0 %v212
  %v280 = vpop.f32.mrf.mxu0
  %v281 = vadd.f32 0.0, %v280
  %v282 = vpop.f32.mrf.mxu0
  %283 = vdwg.mxu0
  %v284 = vld [vmem:[%s8] sm:$0x1]
  %v286 = vlaneseq
  %v287 = vshrl.u32 %v286, 7
  %v288 = vsub.s32 0, %v287
  %v289 = vrot.slane %v284, %v288
  %v292 = vsel %vm130, %v206, 0
  %294 = vmatprep.subr.mxu0 0.0
  %295 = vmatpush1.msra.mxu0 0.0
  %296 = vmatprep.subr.mxu0 0.0
  %297 = vmatpush1.msra.mxu0 0.0
  %298 = vmatprep.subr.mxu0 0.0
  %299 = vmatpush1.msra.mxu0 0.0
  %300 = vmatprep.subr.mxu0 0.0
  %301 = vmatpush1.msra.mxu0 0.0
  %302 = vmatprep.subr.mxu0 0.0
  %303 = vmatpush1.msra.mxu0 0.0
  %304 = vmatprep.subr.mxu0 0.0
  %305 = vmatpush1.msra.mxu0 0.0
  %306 = vmatprep.subr.mxu0 0.0
  %307 = vmatpush1.msra.mxu0 0.0
  %308 = vmatprep.subr.mxu0 0.0
  %309 = vmatpush1.msra.mxu0 0.0
  %310 = vmatprep.subr.mxu0 0.0
  %311 = vmatpush1.msra.mxu0 0.0
  %312 = vmatprep.subr.mxu0 0.0
  %313 = vmatpush1.msra.mxu0 0.0
  %314 = vmatprep.subr.mxu0 0.0
  %315 = vmatpush1.msra.mxu0 0.0
  %316 = vmatprep.subr.mxu0 0.0
  %317 = vmatpush1.msra.mxu0 0.0
  %318 = vmatprep.subr.mxu0 0.0
  %319 = vmatpush1.msra.mxu0 0.0
  %320 = vmatprep.subr.mxu0 0.0
  %321 = vmatpush1.msra.mxu0 0.0
  %322 = vmatprep.subr.mxu0 0.0
  %323 = vmatpush1.msra.mxu0 0.0
  %324 = vmatprep.subr.mxu0 0.0
  %325 = vmatpush1.msra.mxu0 %v281
  %326 = vmatprep.subr.mxu0 0.0
  %327 = vmatpush2.msra.mxu0 0.0
  %328 = vmatprep.subr.mxu0 0.0
  %329 = vmatpush2.msra.mxu0 0.0
  %330 = vmatprep.subr.mxu0 0.0
  %331 = vmatpush2.msra.mxu0 0.0
  %332 = vmatprep.subr.mxu0 0.0
  %333 = vmatpush2.msra.mxu0 0.0
  %334 = vmatprep.subr.mxu0 0.0
  %335 = vmatpush2.msra.mxu0 0.0
  %336 = vmatprep.subr.mxu0 0.0
  %337 = vmatpush2.msra.mxu0 0.0
  %338 = vmatprep.subr.mxu0 0.0
  %339 = vmatpush2.msra.mxu0 0.0
  %340 = vmatprep.subr.mxu0 0.0
  %341 = vmatpush2.msra.mxu0 0.0
  %342 = vmatprep.subr.mxu0 0.0
  %343 = vmatpush2.msra.mxu0 0.0
  %344 = vmatprep.subr.mxu0 0.0
  %345 = vmatpush2.msra.mxu0 0.0
  %346 = vmatprep.subr.mxu0 0.0
  %347 = vmatpush2.msra.mxu0 0.0
  %348 = vmatprep.subr.mxu0 0.0
  %349 = vmatpush2.msra.mxu0 0.0
  %350 = vmatprep.subr.mxu0 0.0
  %351 = vmatpush2.msra.mxu0 0.0
  %352 = vmatprep.subr.mxu0 0.0
  %353 = vmatpush2.msra.mxu0 0.0
  %354 = vmatprep.subr.mxu0 0.0
  %355 = vmatpush2.msra.mxu0 0.0
  %356 = vmatprep.subr.mxu0 0.0
  %357 = vmatpush2.msra.mxu0 0.0
  %358 = vmatprep.mubr.f32.mxu0 0.0
  %359 = vmatmul.mubr.f32.gmra.mxu0 %v292
  %v360 = vpop.f32.mrf.mxu0
  %v361 = vadd.f32 %v289, %v360
  %v362 = vpop.f32.mrf.mxu0
  %363 = vdwg.mxu0
  %v364 = vld [vmem:[%s0] sm:$0xff]
  %v365 = vld [vmem:[%s9] sm:$0x1]
  %v367 = vlaneseq
  %v368 = vshrl.u32 %v367, 7
  %v369 = vsub.s32 0, %v368
  %v370 = vrot.slane %v365, %v369
  %v372 = vmul.f32 %v364, %v370
  %v373 = vsel %vm49, %v372, 0.0
  %374 = vadd.xlane.f32.xlu0 %v373
  %v375 = vpop.xlane.xlu0 %374
  %v376 = vld [vmem:[%s10] sm:$0x1]
  %v378 = vlaneseq
  %v379 = vshrl.u32 %v378, 7
  %v380 = vsub.s32 0, %v379
  %v381 = vrot.slane %v376, %v380
  %v383 = vmul.f32 %v361, %v381
  %v384 = vsel %vm49, %v383, 0.0
  %385 = vadd.xlane.f32.xlu0 %v384
  %v386 = vpop.xlane.xlu0 %385
  %v387 = vadd.f32 %v375, %v386
  %v388 = vld [vmem:[#allocation2] sm:$0x1]
  %v390 = vlaneseq
  %v391 = vshrl.u32 %v390, 7
  %v392 = vsub.s32 0, %v391
  %v393 = vrot.slane %v388, %v392
  %v395 = vadd.f32 %v387, %v393
  %v396 = vmax.f32 %v395, 0.0
  %vm397 = vcmask 7168
  %398 = vst.msk [vmem:[%s12] sm:$0xff] %vm397, %v396
  // Predicated region
  $region50: #{trendspot2_forward.3} parent=0 // pred_check
    _
  $region51: #{trendspot2_forward.3} parent=0 // pred_check_branch
    %400 = sbr.rel (0) target = $region53
  $region52: #{trendspot2_forward.3} parent=0 // pred_region
    _
  $region53: #{trendspot2_forward.3} parent=0 // pred_fallthru
    _
  // Predicated region
  $region54: #{trendspot2_forward.3} parent=0 // pred_check
    _
  $region55: #{trendspot2_forward.3} parent=0 // pred_check_branch
    %402 = sbr.rel (0) target = $region57
  $region56: #{trendspot2_forward.3} parent=0 // pred_region
    _
  $region57: #{trendspot2_forward.3} parent=0 // pred_fallthru
    _

// kernel: trendspot2_forward.2
$region0: #{trendspot2_forward.2}
  #allocation0 [shape = 'u32[]', space=smem, size = 0x4, offset = 0x4, fixed_abs, tag = 'smem constant byte address 0x4 - core index']
  #allocation1 [shape = 'u32[144,128]{1,0:T(1,128)}', space=vmem, size = 0x12000, scoped, tag = 'internal scratch']
  %s0 = inlined_call_operand.vmem [shape: f32[8,30], index: 0, kind: input, shape index: {}]
  %s1 = inlined_call_operand.vmem [shape: f32[1,256], index: 1, kind: input, shape index: {}]
  %s2 = inlined_call_operand.vmem [shape: bf16[64,256], index: 2, kind: input, shape index: {}]
  %s3 = inlined_call_operand.vmem [shape: f32[1,256], index: 3, kind: input, shape index: {}]
  %s4 = inlined_call_operand.vmem [shape: f32[30,64], index: 4, kind: input, shape index: {}]
  %s5 = inlined_call_operand.vmem [shape: f32[32,32], index: 5, kind: input, shape index: {}]
  %s6 = inlined_call_operand.vmem [shape: f32[1,32], index: 6, kind: input, shape index: {}]
  %s7 = inlined_call_operand.vmem [shape: f32[32,32], index: 7, kind: input, shape index: {}]
  %s8 = inlined_call_operand.vmem [shape: f32[1,32], index: 8, kind: input, shape index: {}]
  %s9 = inlined_call_operand.vmem [shape: f32[8,32], index: 9, kind: output, shape index: {0}]
  %s10 = inlined_call_operand.vmem [shape: f32[8,32], index: 10, kind: output, shape index: {1}]
  %11 = xla_tuple %s9, %s10
  %s12 = sld [smem:[#allocation0]]
  $region54: #{trendspot2_forward.2} parent=0
    _
  %s14 = ssub.s32 1, %s12
  %s15 = scalar_select 0, %s14, %s12
  // Predicated region
  $region2: #{trendspot2_forward.2} parent=0 // pred_check
    _
  $region3: #{trendspot2_forward.2} parent=0 // pred_check_branch
    %17 = sbr.rel (0) target = $region5
  $region4: #{trendspot2_forward.2} parent=0 // pred_region
    _
  $region5: #{trendspot2_forward.2} parent=0 // pred_fallthru
    _
  // Predicated region
  $region6: #{trendspot2_forward.2} parent=0 // pred_check
    _
  $region7: #{trendspot2_forward.2} parent=0 // pred_check_branch
    %19 = sbr.rel (0) target = $region9
  $region8: #{trendspot2_forward.2} parent=0 // pred_region
    _
  $region9: #{trendspot2_forward.2} parent=0 // pred_fallthru
    _
  // Predicated region
  $region10: #{trendspot2_forward.2} parent=0 // pred_check
    _
  $region11: #{trendspot2_forward.2} parent=0 // pred_check_branch
    %21 = sbr.rel (0) target = $region13
  $region12: #{trendspot2_forward.2} parent=0 // pred_region
    _
  $region13: #{trendspot2_forward.2} parent=0 // pred_fallthru
    _
  // Predicated region
  $region14: #{trendspot2_forward.2} parent=0 // pred_check
    _
  $region15: #{trendspot2_forward.2} parent=0 // pred_check_branch
    %23 = sbr.rel (0) target = $region17
  $region16: #{trendspot2_forward.2} parent=0 // pred_region
    _
  $region17: #{trendspot2_forward.2} parent=0 // pred_fallthru
    _
  // Predicated region
  $region18: #{trendspot2_forward.2} parent=0 // pred_check
    _
  $region19: #{trendspot2_forward.2} parent=0 // pred_check_branch
    %25 = sbr.rel (0) target = $region21
  $region20: #{trendspot2_forward.2} parent=0 // pred_region
    _
  $region21: #{trendspot2_forward.2} parent=0 // pred_fallthru
    _
  // Predicated region
  $region22: #{trendspot2_forward.2} parent=0 // pred_check
    _
  $region23: #{trendspot2_forward.2} parent=0 // pred_check_branch
    %27 = sbr.rel (0) target = $region25
  $region24: #{trendspot2_forward.2} parent=0 // pred_region
    _
  $region25: #{trendspot2_forward.2} parent=0 // pred_fallthru
    _
  // Predicated region
  $region26: #{trendspot2_forward.2} parent=0 // pred_check
    _
  $region27: #{trendspot2_forward.2} parent=0 // pred_check_branch
    %29 = sbr.rel (0) target = $region29
  $region28: #{trendspot2_forward.2} parent=0 // pred_region
    _
  $region29: #{trendspot2_forward.2} parent=0 // pred_fallthru
    _
  // Predicated region
  $region30: #{trendspot2_forward.2} parent=0 // pred_check
    _
  $region31: #{trendspot2_forward.2} parent=0 // pred_check_branch
    %31 = sbr.rel (0) target = $region33
  $region32: #{trendspot2_forward.2} parent=0 // pred_region
    _
  $region33: #{trendspot2_forward.2} parent=0 // pred_fallthru
    _
  // Predicated region
  $region34: #{trendspot2_forward.2} parent=0 // pred_check
    _
  $region35: #{trendspot2_forward.2} parent=0 // pred_check_branch
    %33 = sbr.rel (0) target = $region37
  $region36: #{trendspot2_forward.2} parent=0 // pred_region
    _
  $region37: #{trendspot2_forward.2} parent=0 // pred_fallthru
    _
  %v35 = vld [vmem:[%s0] sm:$0xff]
  %v36 = vld [vmem:[%s1] sm:$0x3]
  %v37 = vld [vmem:[%s3] sm:$0x3]
  %v38 = vld [vmem:[%s2] sm:$0xff]
  %v39 = vld [vmem:[%s2 + $0x8] sm:$0xff]
  %v40 = vld [vmem:[%s2 + $0x10] sm:$0xff]
  %v41 = vld [vmem:[%s2 + $0x18] sm:$0xff]
  %v42 = vld [vmem:[%s2 + $0x20] sm:$0xff]
  %v43 = vld [vmem:[%s2 + $0x28] sm:$0xff]
  %v44 = vld [vmem:[%s2 + $0x30] sm:$0xff]
  %v45 = vld [vmem:[%s2 + $0x38] sm:$0xff]
  %v46 = vld [vmem:[%s4] sm:$0xff]
  %v47 = vld [vmem:[%s4 + $0x8] sm:$0xff]
  %v48 = vld [vmem:[%s4 + $0x10] sm:$0xff]
  %v49 = vld [vmem:[%s4 + $0x18] sm:$0x3f]
  %51 = vset.pattern.permute.xlu0 0
  %52 = vperm.xlu0 %51, %v35
  %v53 = vpop.permute.xlu0 %52
  %v56 = vlaneseq
  %v57 = vshrl.u32 %v56, 7
  %v58 = vsub.s32 0, %v57
  %v59 = vrot.slane %v36, %v58
  %v60 = vlaneseq
  %v61 = vshrl.u32 %v60, 7
  %v62 = vsub.s32 1, %v61
  %v63 = vrot.slane %v36, %v62
  %v66 = vmul.f32 %v53, %v59
  %v67 = vmul.f32 %v53, %v63
  %v69 = vlaneseq
  %v70 = vshrl.u32 %v69, 7
  %v71 = vsub.s32 0, %v70
  %v72 = vrot.slane %v37, %v71
  %v73 = vlaneseq
  %v74 = vshrl.u32 %v73, 7
  %v75 = vsub.s32 1, %v74
  %v76 = vrot.slane %v37, %v75
  %v79 = vadd.f32 %v66, %v72
  %v80 = vadd.f32 %v67, %v76
  %v89 = vunpack.c.l.b16 %v38
  %v90 = vunpack.c.h.b16 %v38
  %v91 = vunpack.c.l.b16 %v39
  %v92 = vunpack.c.h.b16 %v39
  %v93 = vunpack.c.l.b16 %v40
  %v94 = vunpack.c.h.b16 %v40
  %v95 = vunpack.c.l.b16 %v41
  %v96 = vunpack.c.h.b16 %v41
  %v97 = vunpack.c.l.b16 %v42
  %v98 = vunpack.c.h.b16 %v42
  %v99 = vunpack.c.l.b16 %v43
  %v100 = vunpack.c.h.b16 %v43
  %v101 = vunpack.c.l.b16 %v44
  %v102 = vunpack.c.h.b16 %v44
  %v103 = vunpack.c.l.b16 %v45
  %v104 = vunpack.c.h.b16 %v45
  %v105 = vpack.c.b16 %v91, %v89
  %v106 = vpack.c.b16 %v92, %v90
  %v107 = vpack.c.b16 %v95, %v93
  %v108 = vpack.c.b16 %v96, %v94
  %v109 = vpack.c.b16 %v99, %v97
  %v110 = vpack.c.b16 %v100, %v98
  %v111 = vpack.c.b16 %v103, %v101
  %v112 = vpack.c.b16 %v104, %v102
  %vm121 = vcmask 523264
  %v123 = vsel %vm121, 0, 0
  %125 = vmatprep.subr.bf16.mxu0 0
  %126 = vmatpush1.bf16.msra.mxu0 0
  %127 = vmatprep.subr.bf16.mxu0 0
  %128 = vmatpush1.bf16.msra.mxu0 0
  %129 = vmatprep.subr.bf16.mxu0 0
  %130 = vmatpush1.bf16.msra.mxu0 0
  %131 = vmatprep.subr.bf16.mxu0 0
  %132 = vmatpush1.bf16.msra.mxu0 0
  %133 = vmatprep.subr.bf16.mxu0 %v112
  %134 = vmatpush1.bf16.msra.mxu0 %v111
  %135 = vmatprep.subr.bf16.mxu0 %v110
  %136 = vmatpush1.bf16.msra.mxu0 %v109
  %137 = vmatprep.subr.bf16.mxu0 %v108
  %138 = vmatpush1.bf16.msra.mxu0 %v107
  %139 = vmatprep.subr.bf16.mxu0 %v106
  %140 = vmatpush1.bf16.msra.mxu0 %v105
  %141 = vmatprep.subr.bf16.mxu0 0
  %142 = vmatpush2.bf16.msra.mxu0 0
  %143 = vmatprep.subr.bf16.mxu0 0
  %144 = vmatpush2.bf16.msra.mxu0 0
  %145 = vmatprep.subr.bf16.mxu0 0
  %146 = vmatpush2.bf16.msra.mxu0 0
  %147 = vmatprep.subr.bf16.mxu0 0
  %148 = vmatpush2.bf16.msra.mxu0 0
  %149 = vmatprep.subr.bf16.mxu0 0
  %150 = vmatpush2.bf16.msra.mxu0 0
  %151 = vmatprep.subr.bf16.mxu0 0
  %152 = vmatpush2.bf16.msra.mxu0 0
  %153 = vmatprep.subr.bf16.mxu0 0
  %154 = vmatpush2.bf16.msra.mxu0 0
  %155 = vmatprep.subr.bf16.mxu0 0
  %156 = vmatpush2.bf16.msra.mxu0 0
  %157 = vmatprep.mubr.bf16.mxu0 0
  %158 = vmatmul.mubr.bf16.gmra.mxu0 %v123
  %v159 = vpop.f32.mrf.mxu0
  %v160 = vadd.f32 0.0, %v159
  %v161 = vpop.f32.mrf.mxu0
  %v162 = vadd.f32 0.0, %v161
  %v163 = vpop.f32.mrf.mxu0
  %v164 = vpop.f32.mrf.mxu0
  %165 = vdwg.mxu0
  %v166 = vadd.f32 %v79, %v160
  %v167 = vadd.f32 %v80, %v162
  %v168 = vxor.u32 %v166, 2147483648
  %v169 = vmul.f32 %v168, 1.442695
  %v170 = vpow.pop %v169
  %v171 = vadd.f32 %v170, 1.0
  %v172 = vrcp.pop %v171
  %v173 = vmul.f32 1.0, %v172
  %v174 = vtanh.pop %v167
  %v175 = vxor.u32 %v167, 2147483648
  %v176 = vmul.f32 %v175, 1.442695
  %v177 = vpow.pop %v176
  %v178 = vadd.f32 %v177, 1.0
  %v179 = vrcp.pop %v178
  %v180 = vmul.f32 1.0, %v179
  %v181 = vmul.f32 %v173, 0.0
  %v182 = vmul.f32 %v173, %v174
  %184 = vrot.lane.b32.xlu0 %v182, 64
  %v185 = vpop.permute.xlu0 %184
  %v187 = vadd.f32 %v181, %v185
  %v188 = vtanh.pop %v187
  %v189 = vmul.f32 %v180, %v188
  %v190 = vpack.c.bf16 %v189, %v189
  %v191 = vlaneseq
  %v192 = vshrl.u32 %v191, 7
  %v193 = vsub.s32 0, %v192
  %v194 = vrot.slane %v46, %v193
  %196 = vrot.lane.b32.xlu0 %v194, 64
  %v197 = vpop.permute.xlu0 %196
  %v199 = vmul.f32 %v189, %v197
  %201 = vrot.lane.b32.xlu0 %v199, 64
  %v202 = vpop.permute.xlu0 %201
  %vm204 = vcmask 261120
  %v205 = vsel %vm204, %v202, 0.0
  %206 = vadd.xlane.f32.xlu0 %v205
  %v207 = vpop.xlane.xlu0 %206
  %208 = vrot.lane.b32.xlu0 %v199, 32
  %v209 = vpop.permute.xlu0 %208
  %v211 = vsel %vm204, %v209, 0.0
  %212 = vadd.xlane.f32.xlu0 %v211
  %v213 = vpop.xlane.xlu0 %212
  %v214 = vsub.f32 -inf, %v207
  %v215 = vmul.f32 %v214, 1.442695
  %v216 = vpow.pop %v215
  %v217 = vsub.f32 %v207, %v207
  %v218 = vmul.f32 %v217, 1.442695
  %v219 = vpow.pop %v218
  %v220 = vmul.f32 %v216, 0.0
  %v221 = vadd.f32 %v220, %v219
  %v222 = vmul.f32 %v219, %v189
  %v223 = vadd.f32 %v220, %v222
  %v224 = vsub.f32 -inf, %v213
  %v225 = vmul.f32 %v224, 1.442695
  %v226 = vpow.pop %v225
  %v227 = vsub.f32 %v213, %v213
  %v228 = vmul.f32 %v227, 1.442695
  %v229 = vpow.pop %v228
  %v230 = vmul.f32 %v226, 0.0
  %v231 = vadd.f32 %v230, %v229
  %v232 = vmul.f32 %v229, %v189
  %v233 = vadd.f32 %v230, %v232
  %234 = vset.pattern.permute.xlu0 1
  %235 = vperm.xlu0 %234, %v35
  %v236 = vpop.permute.xlu0 %235
  %v238 = vmul.f32 %v236, %v59
  %v239 = vmul.f32 %v236, %v63
  %v240 = vadd.f32 %v238, %v72
  %v241 = vadd.f32 %v239, %v76
  %243 = vrot.lane.b32.xlu0 %v190, 64
  %v244 = vpop.permute.xlu0 %243
  %v246 = vsel %vm121, %v244, 0
  %248 = vmatprep.subr.bf16.mxu0 0
  %249 = vmatpush1.bf16.msra.mxu0 0
  %250 = vmatprep.subr.bf16.mxu0 0
  %251 = vmatpush1.bf16.msra.mxu0 0
  %252 = vmatprep.subr.bf16.mxu0 0
  %253 = vmatpush1.bf16.msra.mxu0 0
  %254 = vmatprep.subr.bf16.mxu0 0
  %255 = vmatpush1.bf16.msra.mxu0 0
  %256 = vmatprep.subr.bf16.mxu0 %v112
  %257 = vmatpush1.bf16.msra.mxu0 %v111
  %258 = vmatprep.subr.bf16.mxu0 %v110
  %259 = vmatpush1.bf16.msra.mxu0 %v109
  %260 = vmatprep.subr.bf16.mxu0 %v108
  %261 = vmatpush1.bf16.msra.mxu0 %v107
  %262 = vmatprep.subr.bf16.mxu0 %v106
  %263 = vmatpush1.bf16.msra.mxu0 %v105
  %264 = vmatprep.subr.bf16.mxu0 0
  %265 = vmatpush2.bf16.msra.mxu0 0
  %266 = vmatprep.subr.bf16.mxu0 0
  %267 = vmatpush2.bf16.msra.mxu0 0
  %268 = vmatprep.subr.bf16.mxu0 0
  %269 = vmatpush2.bf16.msra.mxu0 0
  %270 = vmatprep.subr.bf16.mxu0 0
  %271 = vmatpush2.bf16.msra.mxu0 0
  %272 = vmatprep.subr.bf16.mxu0 0
  %273 = vmatpush2.bf16.msra.mxu0 0
  %274 = vmatprep.subr.bf16.mxu0 0
  %275 = vmatpush2.bf16.msra.mxu0 0
  %276 = vmatprep.subr.bf16.mxu0 0
  %277 = vmatpush2.bf16.msra.mxu0 0
  %278 = vmatprep.subr.bf16.mxu0 0
  %279 = vmatpush2.bf16.msra.mxu0 0
  %280 = vmatprep.mubr.bf16.mxu0 0
  %281 = vmatmul.mubr.bf16.gmra.mxu0 %v246
  %v282 = vpop.f32.mrf.mxu0
  %v283 = vadd.f32 0.0, %v282
  %v284 = vpop.f32.mrf.mxu0
  %v285 = vadd.f32 0.0, %v284
  %v286 = vpop.f32.mrf.mxu0
  %v287 = vpop.f32.mrf.mxu0
  %288 = vdwg.mxu0
  %v289 = vadd.f32 %v240, %v283
  %v290 = vadd.f32 %v241, %v285
  %v291 = vxor.u32 %v289, 2147483648
  %v292 = vmul.f32 %v291, 1.442695
  %v293 = vpow.pop %v292
  %v294 = vadd.f32 %v293, 1.0
  %v295 = vrcp.pop %v294
  %v296 = vmul.f32 1.0, %v295
  %v297 = vtanh.pop %v290
  %v298 = vxor.u32 %v290, 2147483648
  %v299 = vmul.f32 %v298, 1.442695
  %v300 = vpow.pop %v299
  %v301 = vadd.f32 %v300, 1.0
  %v302 = vrcp.pop %v301
  %v303 = vmul.f32 1.0, %v302
  %v304 = vmul.f32 %v296, %v187
  %v305 = vmul.f32 %v296, %v297
  %307 = vrot.lane.b32.xlu0 %v305, 64
  %v308 = vpop.permute.xlu0 %307
  %v310 = vadd.f32 %v304, %v308
  %v311 = vtanh.pop %v310
  %v312 = vmul.f32 %v303, %v311
  %v313 = vpack.c.bf16 %v312, %v312
  %v314 = vlaneseq
  %v315 = vshrl.u32 %v314, 7
  %v316 = vsub.s32 1, %v315
  %v317 = vrot.slane %v46, %v316
  %319 = vrot.lane.b32.xlu0 %v317, 64
  %v320 = vpop.permute.xlu0 %319
  %v322 = vmul.f32 %v312, %v320
  %324 = vrot.lane.b32.xlu0 %v322, 64
  %v325 = vpop.permute.xlu0 %324
  %v327 = vsel %vm204, %v325, 0.0
  %328 = vadd.xlane.f32.xlu0 %v327
  %v329 = vpop.xlane.xlu0 %328
  %330 = vrot.lane.b32.xlu0 %v322, 32
  %v331 = vpop.permute.xlu0 %330
  %v333 = vsel %vm204, %v331, 0.0
  %334 = vadd.xlane.f32.xlu0 %v333
  %v335 = vpop.xlane.xlu0 %334
  %v336 = vmax.f32 %v207, %v329
  %v337 = vsub.f32 %v207, %v336
  %v338 = vmul.f32 %v337, 1.442695
  %v339 = vpow.pop %v338
  %v340 = vsub.f32 %v329, %v336
  %v341 = vmul.f32 %v340, 1.442695
  %v342 = vpow.pop %v341
  %v343 = vmul.f32 %v339, %v221
  %v344 = vadd.f32 %v343, %v342
  %v345 = vmul.f32 %v339, %v223
  %v346 = vmul.f32 %v342, %v312
  %v347 = vadd.f32 %v345, %v346
  %v348 = vmax.f32 %v213, %v335
  %v349 = vsub.f32 %v213, %v348
  %v350 = vmul.f32 %v349, 1.442695
  %v351 = vpow.pop %v350
  %v352 = vsub.f32 %v335, %v348
  %v353 = vmul.f32 %v352, 1.442695
  %v354 = vpow.pop %v353
  %v355 = vmul.f32 %v351, %v231
  %v356 = vadd.f32 %v355, %v354
  %v357 = vmul.f32 %v351, %v233
  %v358 = vmul.f32 %v354, %v312
  %v359 = vadd.f32 %v357, %v358
  %360 = vset.pattern.permute.xlu0 2
  %361 = vperm.xlu0 %360, %v35
  %v362 = vpop.permute.xlu0 %361
  %v364 = vmul.f32 %v362, %v59
  %v365 = vmul.f32 %v362, %v63
  %v366 = vadd.f32 %v364, %v72
  %v367 = vadd.f32 %v365, %v76
  %369 = vrot.lane.b32.xlu0 %v313, 64
  %v370 = vpop.permute.xlu0 %369
  %v372 = vsel %vm121, %v370, 0
  %374 = vmatprep.subr.bf16.mxu0 0
  %375 = vmatpush1.bf16.msra.mxu0 0
  %376 = vmatprep.subr.bf16.mxu0 0
  %377 = vmatpush1.bf16.msra.mxu0 0
  %378 = vmatprep.subr.bf16.mxu0 0
  %379 = vmatpush1.bf16.msra.mxu0 0
  %380 = vmatprep.subr.bf16.mxu0 0
  %381 = vmatpush1.bf16.msra.mxu0 0
  %382 = vmatprep.subr.bf16.mxu0 %v112
  %383 = vmatpush1.bf16.msra.mxu0 %v111
  %384 = vmatprep.subr.bf16.mxu0 %v110
  %385 = vmatpush1.bf16.msra.mxu0 %v109
  %386 = vmatprep.subr.bf16.mxu0 %v108
  %387 = vmatpush1.bf16.msra.mxu0 %v107
  %388 = vmatprep.subr.bf16.mxu0 %v106
  %389 = vmatpush1.bf16.msra.mxu0 %v105
  %390 = vmatprep.subr.bf16.mxu0 0
  %391 = vmatpush2.bf16.msra.mxu0 0
  %392 = vmatprep.subr.bf16.mxu0 0
  %393 = vmatpush2.bf16.msra.mxu0 0
  %394 = vmatprep.subr.bf16.mxu0 0
  %395 = vmatpush2.bf16.msra.mxu0 0
  %396 = vmatprep.subr.bf16.mxu0 0
  %397 = vmatpush2.bf16.msra.mxu0 0
  %398 = vmatprep.subr.bf16.mxu0 0
  %399 = vmatpush2.bf16.msra.mxu0 0
  %400 = vmatprep.subr.bf16.mxu0 0
  %401 = vmatpush2.bf16.msra.mxu0 0
  %402 = vmatprep.subr.bf16.mxu0 0
  %403 = vmatpush2.bf16.msra.mxu0 0
  %404 = vmatprep.subr.bf16.mxu0 0
  %405 = vmatpush2.bf16.msra.mxu0 0
  %406 = vmatprep.mubr.bf16.mxu0 0
  %407 = vmatmul.mubr.bf16.gmra.mxu0 %v372
  %v408 = vpop.f32.mrf.mxu0
  %v409 = vadd.f32 0.0, %v408
  %v410 = vpop.f32.mrf.mxu0
  %v411 = vadd.f32 0.0, %v410
  %v412 = vpop.f32.mrf.mxu0
  %v413 = vpop.f32.mrf.mxu0
  %414 = vdwg.mxu0
  %v415 = vadd.f32 %v366, %v409
  %v416 = vadd.f32 %v367, %v411
  %v417 = vxor.u32 %v415, 2147483648
  %v418 = vmul.f32 %v417, 1.442695
  %v419 = vpow.pop %v418
  %v420 = vadd.f32 %v419, 1.0
  %v421 = vrcp.pop %v420
  %v422 = vmul.f32 1.0, %v421
  %v423 = vtanh.pop %v416
  %v424 = vxor.u32 %v416, 2147483648
  %v425 = vmul.f32 %v424, 1.442695
  %v426 = vpow.pop %v425
  %v427 = vadd.f32 %v426, 1.0
  %v428 = vrcp.pop %v427
  %v429 = vmul.f32 1.0, %v428
  %v430 = vmul.f32 %v422, %v310
  %v431 = vmul.f32 %v422, %v423
  %433 = vrot.lane.b32.xlu0 %v431, 64
  %v434 = vpop.permute.xlu0 %433
  %v436 = vadd.f32 %v430, %v434
  %v437 = vtanh.pop %v436
  %v438 = vmul.f32 %v429, %v437
  %v439 = vpack.c.bf16 %v438, %v438
  %v440 = vlaneseq
  %v441 = vshrl.u32 %v440, 7
  %v442 = vsub.s32 2, %v441
  %v443 = vrot.slane %v46, %v442
  %445 = vrot.lane.b32.xlu0 %v443, 64
  %v446 = vpop.permute.xlu0 %445
  %v448 = vmul.f32 %v438, %v446
  %450 = vrot.lane.b32.xlu0 %v448, 64
  %v451 = vpop.permute.xlu0 %450
  %v453 = vsel %vm204, %v451, 0.0
  %454 = vadd.xlane.f32.xlu0 %v453
  %v455 = vpop.xlane.xlu0 %454
  %456 = vrot.lane.b32.xlu0 %v448, 32
  %v457 = vpop.permute.xlu0 %456
  %v459 = vsel %vm204, %v457, 0.0
  %460 = vadd.xlane.f32.xlu0 %v459
  %v461 = vpop.xlane.xlu0 %460
  %v462 = vmax.f32 %v336, %v455
  %v463 = vsub.f32 %v336, %v462
  %v464 = vmul.f32 %v463, 1.442695
  %v465 = vpow.pop %v464
  %v466 = vsub.f32 %v455, %v462
  %v467 = vmul.f32 %v466, 1.442695
  %v468 = vpow.pop %v467
  %v469 = vmul.f32 %v465, %v344
  %v470 = vadd.f32 %v469, %v468
  %v471 = vmul.f32 %v465, %v347
  %v472 = vmul.f32 %v468, %v438
  %v473 = vadd.f32 %v471, %v472
  %v474 = vmax.f32 %v348, %v461
  %v475 = vsub.f32 %v348, %v474
  %v476 = vmul.f32 %v475, 1.442695
  %v477 = vpow.pop %v476
  %v478 = vsub.f32 %v461, %v474
  %v479 = vmul.f32 %v478, 1.442695
  %v480 = vpow.pop %v479
  %v481 = vmul.f32 %v477, %v356
  %v482 = vadd.f32 %v481, %v480
  %v483 = vmul.f32 %v477, %v359
  %v484 = vmul.f32 %v480, %v438
  %v485 = vadd.f32 %v483, %v484
  %486 = vset.pattern.permute.xlu0 3
  %487 = vperm.xlu0 %486, %v35
  %v488 = vpop.permute.xlu0 %487
  %v490 = vmul.f32 %v488, %v59
  %v491 = vmul.f32 %v488, %v63
  %v492 = vadd.f32 %v490, %v72
  %v493 = vadd.f32 %v491, %v76
  %495 = vrot.lane.b32.xlu0 %v439, 64
  %v496 = vpop.permute.xlu0 %495
  %v498 = vsel %vm121, %v496, 0
  %500 = vmatprep.subr.bf16.mxu0 0
  %501 = vmatpush1.bf16.msra.mxu0 0
  %502 = vmatprep.subr.bf16.mxu0 0
  %503 = vmatpush1.bf16.msra.mxu0 0
  %504 = vmatprep.subr.bf16.mxu0 0
  %505 = vmatpush1.bf16.msra.mxu0 0
  %506 = vmatprep.subr.bf16.mxu0 0
  %507 = vmatpush1.bf16.msra.mxu0 0
  %508 = vmatprep.subr.bf16.mxu0 %v112
  %509 = vmatpush1.bf16.msra.mxu0 %v111
  %510 = vmatprep.subr.bf16.mxu0 %v110
  %511 = vmatpush1.bf16.msra.mxu0 %v109
  %512 = vmatprep.subr.bf16.mxu0 %v108
  %513 = vmatpush1.bf16.msra.mxu0 %v107
  %514 = vmatprep.subr.bf16.mxu0 %v106
  %515 = vmatpush1.bf16.msra.mxu0 %v105
  %516 = vmatprep.subr.bf16.mxu0 0
  %517 = vmatpush2.bf16.msra.mxu0 0
  %518 = vmatprep.subr.bf16.mxu0 0
  %519 = vmatpush2.bf16.msra.mxu0 0
  %520 = vmatprep.subr.bf16.mxu0 0
  %521 = vmatpush2.bf16.msra.mxu0 0
  %522 = vmatprep.subr.bf16.mxu0 0
  %523 = vmatpush2.bf16.msra.mxu0 0
  %524 = vmatprep.subr.bf16.mxu0 0
  %525 = vmatpush2.bf16.msra.mxu0 0
  %526 = vmatprep.subr.bf16.mxu0 0
  %527 = vmatpush2.bf16.msra.mxu0 0
  %528 = vmatprep.subr.bf16.mxu0 0
  %529 = vmatpush2.bf16.msra.mxu0 0
  %530 = vmatprep.subr.bf16.mxu0 0
  %531 = vmatpush2.bf16.msra.mxu0 0
  %532 = vmatprep.mubr.bf16.mxu0 0
  %533 = vmatmul.mubr.bf16.gmra.mxu0 %v498
  %v534 = vpop.f32.mrf.mxu0
  %v535 = vadd.f32 0.0, %v534
  %v536 = vpop.f32.mrf.mxu0
  %v537 = vadd.f32 0.0, %v536
  %v538 = vpop.f32.mrf.mxu0
  %v539 = vpop.f32.mrf.mxu0
  %540 = vdwg.mxu0
  %v541 = vadd.f32 %v492, %v535
  %v542 = vadd.f32 %v493, %v537
  %v543 = vxor.u32 %v541, 2147483648
  %v544 = vmul.f32 %v543, 1.442695
  %v545 = vpow.pop %v544
  %v546 = vadd.f32 %v545, 1.0
  %v547 = vrcp.pop %v546
  %v548 = vmul.f32 1.0, %v547
  %v549 = vtanh.pop %v542
  %v550 = vxor.u32 %v542, 2147483648
  %v551 = vmul.f32 %v550, 1.442695
  %v552 = vpow.pop %v551
  %v553 = vadd.f32 %v552, 1.0
  %v554 = vrcp.pop %v553
  %v555 = vmul.f32 1.0, %v554
  %v556 = vmul.f32 %v548, %v436
  %v557 = vmul.f32 %v548, %v549
  %559 = vrot.lane.b32.xlu0 %v557, 64
  %v560 = vpop.permute.xlu0 %559
  %v562 = vadd.f32 %v556, %v560
  %v563 = vtanh.pop %v562
  %v564 = vmul.f32 %v555, %v563
  %v565 = vpack.c.bf16 %v564, %v564
  %v566 = vlaneseq
  %v567 = vshrl.u32 %v566, 7
  %v568 = vsub.s32 3, %v567
  %v569 = vrot.slane %v46, %v568
  %571 = vrot.lane.b32.xlu0 %v569, 64
  %v572 = vpop.permute.xlu0 %571
  %v574 = vmul.f32 %v564, %v572
  %576 = vrot.lane.b32.xlu0 %v574, 64
  %v577 = vpop.permute.xlu0 %576
  %v579 = vsel %vm204, %v577, 0.0
  %580 = vadd.xlane.f32.xlu0 %v579
  %v581 = vpop.xlane.xlu0 %580
  %582 = vrot.lane.b32.xlu0 %v574, 32
  %v583 = vpop.permute.xlu0 %582
  %v585 = vsel %vm204, %v583, 0.0
  %586 = vadd.xlane.f32.xlu0 %v585
  %v587 = vpop.xlane.xlu0 %586
  %v588 = vmax.f32 %v462, %v581
  %v589 = vsub.f32 %v462, %v588
  %v590 = vmul.f32 %v589, 1.442695
  %v591 = vpow.pop %v590
  %v592 = vsub.f32 %v581, %v588
  %v593 = vmul.f32 %v592, 1.442695
  %v594 = vpow.pop %v593
  %v595 = vmul.f32 %v591, %v470
  %v596 = vadd.f32 %v595, %v594
  %v597 = vmul.f32 %v591, %v473
  %v598 = vmul.f32 %v594, %v564
  %v599 = vadd.f32 %v597, %v598
  %v600 = vmax.f32 %v474, %v587
  %v601 = vsub.f32 %v474, %v600
  %v602 = vmul.f32 %v601, 1.442695
  %v603 = vpow.pop %v602
  %v604 = vsub.f32 %v587, %v600
  %v605 = vmul.f32 %v604, 1.442695
  %v606 = vpow.pop %v605
  %v607 = vmul.f32 %v603, %v482
  %v608 = vadd.f32 %v607, %v606
  %v609 = vmul.f32 %v603, %v485
  %v610 = vmul.f32 %v606, %v564
  %v611 = vadd.f32 %v609, %v610
  %612 = vset.pattern.permute.xlu0 4
  %613 = vperm.xlu0 %612, %v35
  %v614 = vpop.permute.xlu0 %613
  %v616 = vmul.f32 %v614, %v59
  %v617 = vmul.f32 %v614, %v63
  %v618 = vadd.f32 %v616, %v72
  %v619 = vadd.f32 %v617, %v76
  %621 = vrot.lane.b32.xlu0 %v565, 64
  %v622 = vpop.permute.xlu0 %621
  %v624 = vsel %vm121, %v622, 0
  %626 = vmatprep.subr.bf16.mxu0 0
  %627 = vmatpush1.bf16.msra.mxu0 0
  %628 = vmatprep.subr.bf16.mxu0 0
  %629 = vmatpush1.bf16.msra.mxu0 0
  %630 = vmatprep.subr.bf16.mxu0 0
  %631 = vmatpush1.bf16.msra.mxu0 0
  %632 = vmatprep.subr.bf16.mxu0 0
  %633 = vmatpush1.bf16.msra.mxu0 0
  %634 = vmatprep.subr.bf16.mxu0 %v112
  %635 = vmatpush1.bf16.msra.mxu0 %v111
  %636 = vmatprep.subr.bf16.mxu0 %v110
  %637 = vmatpush1.bf16.msra.mxu0 %v109
  %638 = vmatprep.subr.bf16.mxu0 %v108
  %639 = vmatpush1.bf16.msra.mxu0 %v107
  %640 = vmatprep.subr.bf16.mxu0 %v106
  %641 = vmatpush1.bf16.msra.mxu0 %v105
  %642 = vmatprep.subr.bf16.mxu0 0
  %643 = vmatpush2.bf16.msra.mxu0 0
  %644 = vmatprep.subr.bf16.mxu0 0
  %645 = vmatpush2.bf16.msra.mxu0 0
  %646 = vmatprep.subr.bf16.mxu0 0
  %647 = vmatpush2.bf16.msra.mxu0 0
  %648 = vmatprep.subr.bf16.mxu0 0
  %649 = vmatpush2.bf16.msra.mxu0 0
  %650 = vmatprep.subr.bf16.mxu0 0
  %651 = vmatpush2.bf16.msra.mxu0 0
  %652 = vmatprep.subr.bf16.mxu0 0
  %653 = vmatpush2.bf16.msra.mxu0 0
  %654 = vmatprep.subr.bf16.mxu0 0
  %655 = vmatpush2.bf16.msra.mxu0 0
  %656 = vmatprep.subr.bf16.mxu0 0
  %657 = vmatpush2.bf16.msra.mxu0 0
  %658 = vmatprep.mubr.bf16.mxu0 0
  %659 = vmatmul.mubr.bf16.gmra.mxu0 %v624
  %v660 = vpop.f32.mrf.mxu0
  %v661 = vadd.f32 0.0, %v660
  %v662 = vpop.f32.mrf.mxu0
  %v663 = vadd.f32 0.0, %v662
  %v664 = vpop.f32.mrf.mxu0
  %v665 = vpop.f32.mrf.mxu0
  %666 = vdwg.mxu0
  %v667 = vadd.f32 %v618, %v661
  %v668 = vadd.f32 %v619, %v663
  %v669 = vxor.u32 %v667, 2147483648
  %v670 = vmul.f32 %v669, 1.442695
  %v671 = vpow.pop %v670
  %v672 = vadd.f32 %v671, 1.0
  %v673 = vrcp.pop %v672
  %v674 = vmul.f32 1.0, %v673
  %v675 = vtanh.pop %v668
  %v676 = vxor.u32 %v668, 2147483648
  %v677 = vmul.f32 %v676, 1.442695
  %v678 = vpow.pop %v677
  %v679 = vadd.f32 %v678, 1.0
  %v680 = vrcp.pop %v679
  %v681 = vmul.f32 1.0, %v680
  %v682 = vmul.f32 %v674, %v562
  %v683 = vmul.f32 %v674, %v675
  %685 = vrot.lane.b32.xlu0 %v683, 64
  %v686 = vpop.permute.xlu0 %685
  %v688 = vadd.f32 %v682, %v686
  %v689 = vtanh.pop %v688
  %v690 = vmul.f32 %v681, %v689
  %v691 = vpack.c.bf16 %v690, %v690
  %v692 = vlaneseq
  %v693 = vshrl.u32 %v692, 7
  %v694 = vsub.s32 4, %v693
  %v695 = vrot.slane %v46, %v694
  %697 = vrot.lane.b32.xlu0 %v695, 64
  %v698 = vpop.permute.xlu0 %697
  %v700 = vmul.f32 %v690, %v698
  %702 = vrot.lane.b32.xlu0 %v700, 64
  %v703 = vpop.permute.xlu0 %702
  %v705 = vsel %vm204, %v703, 0.0
  %706 = vadd.xlane.f32.xlu0 %v705
  %v707 = vpop.xlane.xlu0 %706
  %708 = vrot.lane.b32.xlu0 %v700, 32
  %v709 = vpop.permute.xlu0 %708
  %v711 = vsel %vm204, %v709, 0.0
  %712 = vadd.xlane.f32.xlu0 %v711
  %v713 = vpop.xlane.xlu0 %712
  %v714 = vmax.f32 %v588, %v707
  %v715 = vsub.f32 %v588, %v714
  %v716 = vmul.f32 %v715, 1.442695
  %v717 = vpow.pop %v716
  %v718 = vsub.f32 %v707, %v714
  %v719 = vmul.f32 %v718, 1.442695
  %v720 = vpow.pop %v719
  %v721 = vmul.f32 %v717, %v596
  %v722 = vadd.f32 %v721, %v720
  %v723 = vmul.f32 %v717, %v599
  %v724 = vmul.f32 %v720, %v690
  %v725 = vadd.f32 %v723, %v724
  %v726 = vmax.f32 %v600, %v713
  %v727 = vsub.f32 %v600, %v726
  %v728 = vmul.f32 %v727, 1.442695
  %v729 = vpow.pop %v728
  %v730 = vsub.f32 %v713, %v726
  %v731 = vmul.f32 %v730, 1.442695
  %v732 = vpow.pop %v731
  %v733 = vmul.f32 %v729, %v608
  %v734 = vadd.f32 %v733, %v732
  %v735 = vmul.f32 %v729, %v611
  %v736 = vmul.f32 %v732, %v690
  %v737 = vadd.f32 %v735, %v736
  %738 = vset.pattern.permute.xlu0 5
  %739 = vperm.xlu0 %738, %v35
  %v740 = vpop.permute.xlu0 %739
  %v742 = vmul.f32 %v740, %v59
  %v743 = vmul.f32 %v740, %v63
  %v744 = vadd.f32 %v742, %v72
  %v745 = vadd.f32 %v743, %v76
  %747 = vrot.lane.b32.xlu0 %v691, 64
  %v748 = vpop.permute.xlu0 %747
  %v750 = vsel %vm121, %v748, 0
  %752 = vmatprep.subr.bf16.mxu0 0
  %753 = vmatpush1.bf16.msra.mxu0 0
  %754 = vmatprep.subr.bf16.mxu0 0
  %755 = vmatpush1.bf16.msra.mxu0 0
  %756 = vmatprep.subr.bf16.mxu0 0
  %757 = vmatpush1.bf16.msra.mxu0 0
  %758 = vmatprep.subr.bf16.mxu0 0
  %759 = vmatpush1.bf16.msra.mxu0 0
  %760 = vmatprep.subr.bf16.mxu0 %v112
  %761 = vmatpush1.bf16.msra.mxu0 %v111
  %762 = vmatprep.subr.bf16.mxu0 %v110
  %763 = vmatpush1.bf16.msra.mxu0 %v109
  %764 = vmatprep.subr.bf16.mxu0 %v108
  %765 = vmatpush1.bf16.msra.mxu0 %v107
  %766 = vmatprep.subr.bf16.mxu0 %v106
  %767 = vmatpush1.bf16.msra.mxu0 %v105
  %768 = vmatprep.subr.bf16.mxu0 0
  %769 = vmatpush2.bf16.msra.mxu0 0
  %770 = vmatprep.subr.bf16.mxu0 0
  %771 = vmatpush2.bf16.msra.mxu0 0
  %772 = vmatprep.subr.bf16.mxu0 0
  %773 = vmatpush2.bf16.msra.mxu0 0
  %774 = vmatprep.subr.bf16.mxu0 0
  %775 = vmatpush2.bf16.msra.mxu0 0
  %776 = vmatprep.subr.bf16.mxu0 0
  %777 = vmatpush2.bf16.msra.mxu0 0
  %778 = vmatprep.subr.bf16.mxu0 0
  %779 = vmatpush2.bf16.msra.mxu0 0
  %780 = vmatprep.subr.bf16.mxu0 0
  %781 = vmatpush2.bf16.msra.mxu0 0
  %782 = vmatprep.subr.bf16.mxu0 0
  %783 = vmatpush2.bf16.msra.mxu0 0
  %784 = vmatprep.mubr.bf16.mxu0 0
  %785 = vmatmul.mubr.bf16.gmra.mxu0 %v750
  %v786 = vpop.f32.mrf.mxu0
  %v787 = vadd.f32 0.0, %v786
  %v788 = vpop.f32.mrf.mxu0
  %v789 = vadd.f32 0.0, %v788
  %v790 = vpop.f32.mrf.mxu0
  %v791 = vpop.f32.mrf.mxu0
  %792 = vdwg.mxu0
  %v793 = vadd.f32 %v744, %v787
  %v794 = vadd.f32 %v745, %v789
  %v795 = vxor.u32 %v793, 2147483648
  %v796 = vmul.f32 %v795, 1.442695
  %v797 = vpow.pop %v796
  %v798 = vadd.f32 %v797, 1.0
  %v799 = vrcp.pop %v798
  %v800 = vmul.f32 1.0, %v799
  %v801 = vtanh.pop %v794
  %v802 = vxor.u32 %v794, 2147483648
  %v803 = vmul.f32 %v802, 1.442695
  %v804 = vpow.pop %v803
  %v805 = vadd.f32 %v804, 1.0
  %v806 = vrcp.pop %v805
  %v807 = vmul.f32 1.0, %v806
  %v808 = vmul.f32 %v800, %v688
  %v809 = vmul.f32 %v800, %v801
  %811 = vrot.lane.b32.xlu0 %v809, 64
  %v812 = vpop.permute.xlu0 %811
  %v814 = vadd.f32 %v808, %v812
  %v815 = vtanh.pop %v814
  %v816 = vmul.f32 %v807, %v815
  %v817 = vpack.c.bf16 %v816, %v816
  %v818 = vlaneseq
  %v819 = vshrl.u32 %v818, 7
  %v820 = vsub.s32 5, %v819
  %v821 = vrot.slane %v46, %v820
  %823 = vrot.lane.b32.xlu0 %v821, 64
  %v824 = vpop.permute.xlu0 %823
  %v826 = vmul.f32 %v816, %v824
  %828 = vrot.lane.b32.xlu0 %v826, 64
  %v829 = vpop.permute.xlu0 %828
  %v831 = vsel %vm204, %v829, 0.0
  %832 = vadd.xlane.f32.xlu0 %v831
  %v833 = vpop.xlane.xlu0 %832
  %834 = vrot.lane.b32.xlu0 %v826, 32
  %v835 = vpop.permute.xlu0 %834
  %v837 = vsel %vm204, %v835, 0.0
  %838 = vadd.xlane.f32.xlu0 %v837
  %v839 = vpop.xlane.xlu0 %838
  %v840 = vmax.f32 %v714, %v833
  %v841 = vsub.f32 %v714, %v840
  %v842 = vmul.f32 %v841, 1.442695
  %v843 = vpow.pop %v842
  %v844 = vsub.f32 %v833, %v840
  %v845 = vmul.f32 %v844, 1.442695
  %v846 = vpow.pop %v845
  %v847 = vmul.f32 %v843, %v722
  %v848 = vadd.f32 %v847, %v846
  %v849 = vmul.f32 %v843, %v725
  %v850 = vmul.f32 %v846, %v816
  %v851 = vadd.f32 %v849, %v850
  %v852 = vmax.f32 %v726, %v839
  %v853 = vsub.f32 %v726, %v852
  %v854 = vmul.f32 %v853, 1.442695
  %v855 = vpow.pop %v854
  %v856 = vsub.f32 %v839, %v852
  %v857 = vmul.f32 %v856, 1.442695
  %v858 = vpow.pop %v857
  %v859 = vmul.f32 %v855, %v734
  %v860 = vadd.f32 %v859, %v858
  %v861 = vmul.f32 %v855, %v737
  %v862 = vmul.f32 %v858, %v816
  %v863 = vadd.f32 %v861, %v862
  %864 = vset.pattern.permute.xlu0 6
  %865 = vperm.xlu0 %864, %v35
  %v866 = vpop.permute.xlu0 %865
  %v868 = vmul.f32 %v866, %v59
  %v869 = vmul.f32 %v866, %v63
  %v870 = vadd.f32 %v868, %v72
  %v871 = vadd.f32 %v869, %v76
  %873 = vrot.lane.b32.xlu0 %v817, 64
  %v874 = vpop.permute.xlu0 %873
  %v876 = vsel %vm121, %v874, 0
  %878 = vmatprep.subr.bf16.mxu0 0
  %879 = vmatpush1.bf16.msra.mxu0 0
  %880 = vmatprep.subr.bf16.mxu0 0
  %881 = vmatpush1.bf16.msra.mxu0 0
  %882 = vmatprep.subr.bf16.mxu0 0
  %883 = vmatpush1.bf16.msra.mxu0 0
  %884 = vmatprep.subr.bf16.mxu0 0
  %885 = vmatpush1.bf16.msra.mxu0 0
  %886 = vmatprep.subr.bf16.mxu0 %v112
  %887 = vmatpush1.bf16.msra.mxu0 %v111
  %888 = vmatprep.subr.bf16.mxu0 %v110
  %889 = vmatpush1.bf16.msra.mxu0 %v109
  %890 = vmatprep.subr.bf16.mxu0 %v108
  %891 = vmatpush1.bf16.msra.mxu0 %v107
  %892 = vmatprep.subr.bf16.mxu0 %v106
  %893 = vmatpush1.bf16.msra.mxu0 %v105
  %894 = vmatprep.subr.bf16.mxu0 0
  %895 = vmatpush2.bf16.msra.mxu0 0
  %896 = vmatprep.subr.bf16.mxu0 0
  %897 = vmatpush2.bf16.msra.mxu0 0
  %898 = vmatprep.subr.bf16.mxu0 0
  %899 = vmatpush2.bf16.msra.mxu0 0
  %900 = vmatprep.subr.bf16.mxu0 0
  %901 = vmatpush2.bf16.msra.mxu0 0
  %902 = vmatprep.subr.bf16.mxu0 0
  %903 = vmatpush2.bf16.msra.mxu0 0
  %904 = vmatprep.subr.bf16.mxu0 0
  %905 = vmatpush2.bf16.msra.mxu0 0
  %906 = vmatprep.subr.bf16.mxu0 0
  %907 = vmatpush2.bf16.msra.mxu0 0
  %908 = vmatprep.subr.bf16.mxu0 0
  %909 = vmatpush2.bf16.msra.mxu0 0
  %910 = vmatprep.mubr.bf16.mxu0 0
  %911 = vmatmul.mubr.bf16.gmra.mxu0 %v876
  %v912 = vpop.f32.mrf.mxu0
  %v913 = vadd.f32 0.0, %v912
  %v914 = vpop.f32.mrf.mxu0
  %v915 = vadd.f32 0.0, %v914
  %v916 = vpop.f32.mrf.mxu0
  %v917 = vpop.f32.mrf.mxu0
  %918 = vdwg.mxu0
  %v919 = vadd.f32 %v870, %v913
  %v920 = vadd.f32 %v871, %v915
  %v921 = vxor.u32 %v919, 2147483648
  %v922 = vmul.f32 %v921, 1.442695
  %v923 = vpow.pop %v922
  %v924 = vadd.f32 %v923, 1.0
  %v925 = vrcp.pop %v924
  %v926 = vmul.f32 1.0, %v925
  %v927 = vtanh.pop %v920
  %v928 = vxor.u32 %v920, 2147483648
  %v929 = vmul.f32 %v928, 1.442695
  %v930 = vpow.pop %v929
  %v931 = vadd.f32 %v930, 1.0
  %v932 = vrcp.pop %v931
  %v933 = vmul.f32 1.0, %v932
  %v934 = vmul.f32 %v926, %v814
  %v935 = vmul.f32 %v926, %v927
  %937 = vrot.lane.b32.xlu0 %v935, 64
  %v938 = vpop.permute.xlu0 %937
  %v940 = vadd.f32 %v934, %v938
  %v941 = vtanh.pop %v940
  %v942 = vmul.f32 %v933, %v941
  %v943 = vpack.c.bf16 %v942, %v942
  %v944 = vlaneseq
  %v945 = vshrl.u32 %v944, 7
  %v946 = vsub.s32 6, %v945
  %v947 = vrot.slane %v46, %v946
  %949 = vrot.lane.b32.xlu0 %v947, 64
  %v950 = vpop.permute.xlu0 %949
  %v952 = vmul.f32 %v942, %v950
  %954 = vrot.lane.b32.xlu0 %v952, 64
  %v955 = vpop.permute.xlu0 %954
  %v957 = vsel %vm204, %v955, 0.0
  %958 = vadd.xlane.f32.xlu0 %v957
  %v959 = vpop.xlane.xlu0 %958
  %960 = vrot.lane.b32.xlu0 %v952, 32
  %v961 = vpop.permute.xlu0 %960
  %v963 = vsel %vm204, %v961, 0.0
  %964 = vadd.xlane.f32.xlu0 %v963
  %v965 = vpop.xlane.xlu0 %964
  %v966 = vmax.f32 %v840, %v959
  %v967 = vsub.f32 %v840, %v966
  %v968 = vmul.f32 %v967, 1.442695
  %v969 = vpow.pop %v968
  %v970 = vsub.f32 %v959, %v966
  %v971 = vmul.f32 %v970, 1.442695
  %v972 = vpow.pop %v971
  %v973 = vmul.f32 %v969, %v848
  %v974 = vadd.f32 %v973, %v972
  %v975 = vmul.f32 %v969, %v851
  %v976 = vmul.f32 %v972, %v942
  %v977 = vadd.f32 %v975, %v976
  %v978 = vmax.f32 %v852, %v965
  %v979 = vsub.f32 %v852, %v978
  %v980 = vmul.f32 %v979, 1.442695
  %v981 = vpow.pop %v980
  %v982 = vsub.f32 %v965, %v978
  %v983 = vmul.f32 %v982, 1.442695
  %v984 = vpow.pop %v983
  %v985 = vmul.f32 %v981, %v860
  %v986 = vadd.f32 %v985, %v984
  %v987 = vmul.f32 %v981, %v863
  %v988 = vmul.f32 %v984, %v942
  %v989 = vadd.f32 %v987, %v988
  %990 = vset.pattern.permute.xlu0 7
  %991 = vperm.xlu0 %990, %v35
  %v992 = vpop.permute.xlu0 %991
  %v994 = vmul.f32 %v992, %v59
  %v995 = vmul.f32 %v992, %v63
  %v996 = vadd.f32 %v994, %v72
  %v997 = vadd.f32 %v995, %v76
  %999 = vrot.lane.b32.xlu0 %v943, 64
  %v1000 = vpop.permute.xlu0 %999
  %v1002 = vsel %vm121, %v1000, 0
  %1004 = vmatprep.subr.bf16.mxu0 0
  %1005 = vmatpush1.bf16.msra.mxu0 0
  %1006 = vmatprep.subr.bf16.mxu0 0
  %1007 = vmatpush1.bf16.msra.mxu0 0
  %1008 = vmatprep.subr.bf16.mxu0 0
  %1009 = vmatpush1.bf16.msra.mxu0 0
  %1010 = vmatprep.subr.bf16.mxu0 0
  %1011 = vmatpush1.bf16.msra.mxu0 0
  %1012 = vmatprep.subr.bf16.mxu0 %v112
  %1013 = vmatpush1.bf16.msra.mxu0 %v111
  %1014 = vmatprep.subr.bf16.mxu0 %v110
  %1015 = vmatpush1.bf16.msra.mxu0 %v109
  %1016 = vmatprep.subr.bf16.mxu0 %v108
  %1017 = vmatpush1.bf16.msra.mxu0 %v107
  %1018 = vmatprep.subr.bf16.mxu0 %v106
  %1019 = vmatpush1.bf16.msra.mxu0 %v105
  %1020 = vmatprep.subr.bf16.mxu0 0
  %1021 = vmatpush2.bf16.msra.mxu0 0
  %1022 = vmatprep.subr.bf16.mxu0 0
  %1023 = vmatpush2.bf16.msra.mxu0 0
  %1024 = vmatprep.subr.bf16.mxu0 0
  %1025 = vmatpush2.bf16.msra.mxu0 0
  %1026 = vmatprep.subr.bf16.mxu0 0
  %1027 = vmatpush2.bf16.msra.mxu0 0
  %1028 = vmatprep.subr.bf16.mxu0 0
  %1029 = vmatpush2.bf16.msra.mxu0 0
  %1030 = vmatprep.subr.bf16.mxu0 0
  %1031 = vmatpush2.bf16.msra.mxu0 0
  %1032 = vmatprep.subr.bf16.mxu0 0
  %1033 = vmatpush2.bf16.msra.mxu0 0
  %1034 = vmatprep.subr.bf16.mxu0 0
  %1035 = vmatpush2.bf16.msra.mxu0 0
  %1036 = vmatprep.mubr.bf16.mxu0 0
  %1037 = vmatmul.mubr.bf16.gmra.mxu0 %v1002
  %v1038 = vpop.f32.mrf.mxu0
  %v1039 = vadd.f32 0.0, %v1038
  %v1040 = vpop.f32.mrf.mxu0
  %v1041 = vadd.f32 0.0, %v1040
  %v1042 = vpop.f32.mrf.mxu0
  %v1043 = vpop.f32.mrf.mxu0
  %1044 = vdwg.mxu0
  %v1045 = vadd.f32 %v996, %v1039
  %v1046 = vadd.f32 %v997, %v1041
  %v1047 = vxor.u32 %v1045, 2147483648
  %v1048 = vmul.f32 %v1047, 1.442695
  %v1049 = vpow.pop %v1048
  %v1050 = vadd.f32 %v1049, 1.0
  %v1051 = vrcp.pop %v1050
  %v1052 = vmul.f32 1.0, %v1051
  %v1053 = vtanh.pop %v1046
  %v1054 = vxor.u32 %v1046, 2147483648
  %v1055 = vmul.f32 %v1054, 1.442695
  %v1056 = vpow.pop %v1055
  %v1057 = vadd.f32 %v1056, 1.0
  %v1058 = vrcp.pop %v1057
  %v1059 = vmul.f32 1.0, %v1058
  %v1060 = vmul.f32 %v1052, %v940
  %v1061 = vmul.f32 %v1052, %v1053
  %1063 = vrot.lane.b32.xlu0 %v1061, 64
  %v1064 = vpop.permute.xlu0 %1063
  %v1066 = vadd.f32 %v1060, %v1064
  %v1067 = vtanh.pop %v1066
  %v1068 = vmul.f32 %v1059, %v1067
  %v1069 = vpack.c.bf16 %v1068, %v1068
  %v1070 = vlaneseq
  %v1071 = vshrl.u32 %v1070, 7
  %v1072 = vsub.s32 7, %v1071
  %v1073 = vrot.slane %v46, %v1072
  %1075 = vrot.lane.b32.xlu0 %v1073, 64
  %v1076 = vpop.permute.xlu0 %1075
  %v1078 = vmul.f32 %v1068, %v1076
  %1080 = vrot.lane.b32.xlu0 %v1078, 64
  %v1081 = vpop.permute.xlu0 %1080
  %v1083 = vsel %vm204, %v1081, 0.0
  %1084 = vadd.xlane.f32.xlu0 %v1083
  %v1085 = vpop.xlane.xlu0 %1084
  %1086 = vrot.lane.b32.xlu0 %v1078, 32
  %v1087 = vpop.permute.xlu0 %1086
  %v1089 = vsel %vm204, %v1087, 0.0
  %1090 = vadd.xlane.f32.xlu0 %v1089
  %v1091 = vpop.xlane.xlu0 %1090
  %v1092 = vmax.f32 %v966, %v1085
  %v1093 = vsub.f32 %v966, %v1092
  %v1094 = vmul.f32 %v1093, 1.442695
  %v1095 = vpow.pop %v1094
  %v1096 = vsub.f32 %v1085, %v1092
  %v1097 = vmul.f32 %v1096, 1.442695
  %v1098 = vpow.pop %v1097
  %v1099 = vmul.f32 %v1095, %v974
  %v1100 = vadd.f32 %v1099, %v1098
  %v1101 = vmul.f32 %v1095, %v977
  %v1102 = vmul.f32 %v1098, %v1068
  %v1103 = vadd.f32 %v1101, %v1102
  %v1104 = vmax.f32 %v978, %v1091
  %v1105 = vsub.f32 %v978, %v1104
  %v1106 = vmul.f32 %v1105, 1.442695
  %v1107 = vpow.pop %v1106
  %v1108 = vsub.f32 %v1091, %v1104
  %v1109 = vmul.f32 %v1108, 1.442695
  %v1110 = vpow.pop %v1109
  %v1111 = vmul.f32 %v1107, %v986
  %v1112 = vadd.f32 %v1111, %v1110
  %v1113 = vmul.f32 %v1107, %v989
  %v1114 = vmul.f32 %v1110, %v1068
  %v1115 = vadd.f32 %v1113, %v1114
  %1116 = vset.pattern.permute.xlu0 8
  %1117 = vperm.xlu0 %1116, %v35
  %v1118 = vpop.permute.xlu0 %1117
  %v1120 = vmul.f32 %v1118, %v59
  %v1121 = vmul.f32 %v1118, %v63
  %v1122 = vadd.f32 %v1120, %v72
  %v1123 = vadd.f32 %v1121, %v76
  %1125 = vrot.lane.b32.xlu0 %v1069, 64
  %v1126 = vpop.permute.xlu0 %1125
  %v1128 = vsel %vm121, %v1126, 0
  %1130 = vmatprep.subr.bf16.mxu0 0
  %1131 = vmatpush1.bf16.msra.mxu0 0
  %1132 = vmatprep.subr.bf16.mxu0 0
  %1133 = vmatpush1.bf16.msra.mxu0 0
  %1134 = vmatprep.subr.bf16.mxu0 0
  %1135 = vmatpush1.bf16.msra.mxu0 0
  %1136 = vmatprep.subr.bf16.mxu0 0
  %1137 = vmatpush1.bf16.msra.mxu0 0
  %1138 = vmatprep.subr.bf16.mxu0 %v112
  %1139 = vmatpush1.bf16.msra.mxu0 %v111
  %1140 = vmatprep.subr.bf16.mxu0 %v110
  %1141 = vmatpush1.bf16.msra.mxu0 %v109
  %1142 = vmatprep.subr.bf16.mxu0 %v108
  %1143 = vmatpush1.bf16.msra.mxu0 %v107
  %1144 = vmatprep.subr.bf16.mxu0 %v106
  %1145 = vmatpush1.bf16.msra.mxu0 %v105
  %1146 = vmatprep.subr.bf16.mxu0 0
  %1147 = vmatpush2.bf16.msra.mxu0 0
  %1148 = vmatprep.subr.bf16.mxu0 0
  %1149 = vmatpush2.bf16.msra.mxu0 0
  %1150 = vmatprep.subr.bf16.mxu0 0
  %1151 = vmatpush2.bf16.msra.mxu0 0
  %1152 = vmatprep.subr.bf16.mxu0 0
  %1153 = vmatpush2.bf16.msra.mxu0 0
  %1154 = vmatprep.subr.bf16.mxu0 0
  %1155 = vmatpush2.bf16.msra.mxu0 0
  %1156 = vmatprep.subr.bf16.mxu0 0
  %1157 = vmatpush2.bf16.msra.mxu0 0
  %1158 = vmatprep.subr.bf16.mxu0 0
  %1159 = vmatpush2.bf16.msra.mxu0 0
  %1160 = vmatprep.subr.bf16.mxu0 0
  %1161 = vmatpush2.bf16.msra.mxu0 0
  %1162 = vmatprep.mubr.bf16.mxu0 0
  %1163 = vmatmul.mubr.bf16.gmra.mxu0 %v1128
  %v1164 = vpop.f32.mrf.mxu0
  %v1165 = vadd.f32 0.0, %v1164
  %v1166 = vpop.f32.mrf.mxu0
  %v1167 = vadd.f32 0.0, %v1166
  %v1168 = vpop.f32.mrf.mxu0
  %v1169 = vpop.f32.mrf.mxu0
  %1170 = vdwg.mxu0
  %v1171 = vadd.f32 %v1122, %v1165
  %v1172 = vadd.f32 %v1123, %v1167
  %v1173 = vxor.u32 %v1171, 2147483648
  %v1174 = vmul.f32 %v1173, 1.442695
  %v1175 = vpow.pop %v1174
  %v1176 = vadd.f32 %v1175, 1.0
  %v1177 = vrcp.pop %v1176
  %v1178 = vmul.f32 1.0, %v1177
  %v1179 = vtanh.pop %v1172
  %v1180 = vxor.u32 %v1172, 2147483648
  %v1181 = vmul.f32 %v1180, 1.442695
  %v1182 = vpow.pop %v1181
  %v1183 = vadd.f32 %v1182, 1.0
  %v1184 = vrcp.pop %v1183
  %v1185 = vmul.f32 1.0, %v1184
  %v1186 = vmul.f32 %v1178, %v1066
  %v1187 = vmul.f32 %v1178, %v1179
  %1189 = vrot.lane.b32.xlu0 %v1187, 64
  %v1190 = vpop.permute.xlu0 %1189
  %v1192 = vadd.f32 %v1186, %v1190
  %v1193 = vtanh.pop %v1192
  %v1194 = vmul.f32 %v1185, %v1193
  %v1195 = vpack.c.bf16 %v1194, %v1194
  %v1196 = vlaneseq
  %v1197 = vshrl.u32 %v1196, 7
  %v1198 = vsub.s32 0, %v1197
  %v1199 = vrot.slane %v47, %v1198
  %1201 = vrot.lane.b32.xlu0 %v1199, 64
  %v1202 = vpop.permute.xlu0 %1201
  %v1204 = vmul.f32 %v1194, %v1202
  %1206 = vrot.lane.b32.xlu0 %v1204, 64
  %v1207 = vpop.permute.xlu0 %1206
  %v1209 = vsel %vm204, %v1207, 0.0
  %1210 = vadd.xlane.f32.xlu0 %v1209
  %v1211 = vpop.xlane.xlu0 %1210
  %1212 = vrot.lane.b32.xlu0 %v1204, 32
  %v1213 = vpop.permute.xlu0 %1212
  %v1215 = vsel %vm204, %v1213, 0.0
  %1216 = vadd.xlane.f32.xlu0 %v1215
  %v1217 = vpop.xlane.xlu0 %1216
  %v1218 = vmax.f32 %v1092, %v1211
  %v1219 = vsub.f32 %v1092, %v1218
  %v1220 = vmul.f32 %v1219, 1.442695
  %v1221 = vpow.pop %v1220
  %v1222 = vsub.f32 %v1211, %v1218
  %v1223 = vmul.f32 %v1222, 1.442695
  %v1224 = vpow.pop %v1223
  %v1225 = vmul.f32 %v1221, %v1100
  %v1226 = vadd.f32 %v1225, %v1224
  %v1227 = vmul.f32 %v1221, %v1103
  %v1228 = vmul.f32 %v1224, %v1194
  %v1229 = vadd.f32 %v1227, %v1228
  %v1230 = vmax.f32 %v1104, %v1217
  %v1231 = vsub.f32 %v1104, %v1230
  %v1232 = vmul.f32 %v1231, 1.442695
  %v1233 = vpow.pop %v1232
  %v1234 = vsub.f32 %v1217, %v1230
  %v1235 = vmul.f32 %v1234, 1.442695
  %v1236 = vpow.pop %v1235
  %v1237 = vmul.f32 %v1233, %v1112
  %v1238 = vadd.f32 %v1237, %v1236
  %v1239 = vmul.f32 %v1233, %v1115
  %v1240 = vmul.f32 %v1236, %v1194
  %v1241 = vadd.f32 %v1239, %v1240
  %1242 = vset.pattern.permute.xlu0 9
  %1243 = vperm.xlu0 %1242, %v35
  %v1244 = vpop.permute.xlu0 %1243
  %v1246 = vmul.f32 %v1244, %v59
  %v1247 = vmul.f32 %v1244, %v63
  %v1248 = vadd.f32 %v1246, %v72
  %v1249 = vadd.f32 %v1247, %v76
  %1251 = vrot.lane.b32.xlu0 %v1195, 64
  %v1252 = vpop.permute.xlu0 %1251
  %v1254 = vsel %vm121, %v1252, 0
  %1256 = vmatprep.subr.bf16.mxu0 0
  %1257 = vmatpush1.bf16.msra.mxu0 0
  %1258 = vmatprep.subr.bf16.mxu0 0
  %1259 = vmatpush1.bf16.msra.mxu0 0
  %1260 = vmatprep.subr.bf16.mxu0 0
  %1261 = vmatpush1.bf16.msra.mxu0 0
  %1262 = vmatprep.subr.bf16.mxu0 0
  %1263 = vmatpush1.bf16.msra.mxu0 0
  %1264 = vmatprep.subr.bf16.mxu0 %v112
  %1265 = vmatpush1.bf16.msra.mxu0 %v111
  %1266 = vmatprep.subr.bf16.mxu0 %v110
  %1267 = vmatpush1.bf16.msra.mxu0 %v109
  %1268 = vmatprep.subr.bf16.mxu0 %v108
  %1269 = vmatpush1.bf16.msra.mxu0 %v107
  %1270 = vmatprep.subr.bf16.mxu0 %v106
  %1271 = vmatpush1.bf16.msra.mxu0 %v105
  %1272 = vmatprep.subr.bf16.mxu0 0
  %1273 = vmatpush2.bf16.msra.mxu0 0
  %1274 = vmatprep.subr.bf16.mxu0 0
  %1275 = vmatpush2.bf16.msra.mxu0 0
  %1276 = vmatprep.subr.bf16.mxu0 0
  %1277 = vmatpush2.bf16.msra.mxu0 0
  %1278 = vmatprep.subr.bf16.mxu0 0
  %1279 = vmatpush2.bf16.msra.mxu0 0
  %1280 = vmatprep.subr.bf16.mxu0 0
  %1281 = vmatpush2.bf16.msra.mxu0 0
  %1282 = vmatprep.subr.bf16.mxu0 0
  %1283 = vmatpush2.bf16.msra.mxu0 0
  %1284 = vmatprep.subr.bf16.mxu0 0
  %1285 = vmatpush2.bf16.msra.mxu0 0
  %1286 = vmatprep.subr.bf16.mxu0 0
  %1287 = vmatpush2.bf16.msra.mxu0 0
  %1288 = vmatprep.mubr.bf16.mxu0 0
  %1289 = vmatmul.mubr.bf16.gmra.mxu0 %v1254
  %v1290 = vpop.f32.mrf.mxu0
  %v1291 = vadd.f32 0.0, %v1290
  %v1292 = vpop.f32.mrf.mxu0
  %v1293 = vadd.f32 0.0, %v1292
  %v1294 = vpop.f32.mrf.mxu0
  %v1295 = vpop.f32.mrf.mxu0
  %1296 = vdwg.mxu0
  %v1297 = vadd.f32 %v1248, %v1291
  %v1298 = vadd.f32 %v1249, %v1293
  %v1299 = vxor.u32 %v1297, 2147483648
  %v1300 = vmul.f32 %v1299, 1.442695
  %v1301 = vpow.pop %v1300
  %v1302 = vadd.f32 %v1301, 1.0
  %v1303 = vrcp.pop %v1302
  %v1304 = vmul.f32 1.0, %v1303
  %v1305 = vtanh.pop %v1298
  %v1306 = vxor.u32 %v1298, 2147483648
  %v1307 = vmul.f32 %v1306, 1.442695
  %v1308 = vpow.pop %v1307
  %v1309 = vadd.f32 %v1308, 1.0
  %v1310 = vrcp.pop %v1309
  %v1311 = vmul.f32 1.0, %v1310
  %v1312 = vmul.f32 %v1304, %v1192
  %v1313 = vmul.f32 %v1304, %v1305
  %1315 = vrot.lane.b32.xlu0 %v1313, 64
  %v1316 = vpop.permute.xlu0 %1315
  %v1318 = vadd.f32 %v1312, %v1316
  %v1319 = vtanh.pop %v1318
  %v1320 = vmul.f32 %v1311, %v1319
  %v1321 = vpack.c.bf16 %v1320, %v1320
  %v1322 = vlaneseq
  %v1323 = vshrl.u32 %v1322, 7
  %v1324 = vsub.s32 1, %v1323
  %v1325 = vrot.slane %v47, %v1324
  %1327 = vrot.lane.b32.xlu0 %v1325, 64
  %v1328 = vpop.permute.xlu0 %1327
  %v1330 = vmul.f32 %v1320, %v1328
  %1332 = vrot.lane.b32.xlu0 %v1330, 64
  %v1333 = vpop.permute.xlu0 %1332
  %v1335 = vsel %vm204, %v1333, 0.0
  %1336 = vadd.xlane.f32.xlu0 %v1335
  %v1337 = vpop.xlane.xlu0 %1336
  %1338 = vrot.lane.b32.xlu0 %v1330, 32
  %v1339 = vpop.permute.xlu0 %1338
  %v1341 = vsel %vm204, %v1339, 0.0
  %1342 = vadd.xlane.f32.xlu0 %v1341
  %v1343 = vpop.xlane.xlu0 %1342
  %v1344 = vmax.f32 %v1218, %v1337
  %v1345 = vsub.f32 %v1218, %v1344
  %v1346 = vmul.f32 %v1345, 1.442695
  %v1347 = vpow.pop %v1346
  %v1348 = vsub.f32 %v1337, %v1344
  %v1349 = vmul.f32 %v1348, 1.442695
  %v1350 = vpow.pop %v1349
  %v1351 = vmul.f32 %v1347, %v1226
  %v1352 = vadd.f32 %v1351, %v1350
  %v1353 = vmul.f32 %v1347, %v1229
  %v1354 = vmul.f32 %v1350, %v1320
  %v1355 = vadd.f32 %v1353, %v1354
  %v1356 = vmax.f32 %v1230, %v1343
  %v1357 = vsub.f32 %v1230, %v1356
  %v1358 = vmul.f32 %v1357, 1.442695
  %v1359 = vpow.pop %v1358
  %v1360 = vsub.f32 %v1343, %v1356
  %v1361 = vmul.f32 %v1360, 1.442695
  %v1362 = vpow.pop %v1361
  %v1363 = vmul.f32 %v1359, %v1238
  %v1364 = vadd.f32 %v1363, %v1362
  %v1365 = vmul.f32 %v1359, %v1241
  %v1366 = vmul.f32 %v1362, %v1320
  %v1367 = vadd.f32 %v1365, %v1366
  %1368 = vset.pattern.permute.xlu0 10
  %1369 = vperm.xlu0 %1368, %v35
  %v1370 = vpop.permute.xlu0 %1369
  %v1372 = vmul.f32 %v1370, %v59
  %v1373 = vmul.f32 %v1370, %v63
  %v1374 = vadd.f32 %v1372, %v72
  %v1375 = vadd.f32 %v1373, %v76
  %1377 = vrot.lane.b32.xlu0 %v1321, 64
  %v1378 = vpop.permute.xlu0 %1377
  %v1380 = vsel %vm121, %v1378, 0
  %1382 = vmatprep.subr.bf16.mxu0 0
  %1383 = vmatpush1.bf16.msra.mxu0 0
  %1384 = vmatprep.subr.bf16.mxu0 0
  %1385 = vmatpush1.bf16.msra.mxu0 0
  %1386 = vmatprep.subr.bf16.mxu0 0
  %1387 = vmatpush1.bf16.msra.mxu0 0
  %1388 = vmatprep.subr.bf16.mxu0 0
  %1389 = vmatpush1.bf16.msra.mxu0 0
  %1390 = vmatprep.subr.bf16.mxu0 %v112
  %1391 = vmatpush1.bf16.msra.mxu0 %v111
  %1392 = vmatprep.subr.bf16.mxu0 %v110
  %1393 = vmatpush1.bf16.msra.mxu0 %v109
  %1394 = vmatprep.subr.bf16.mxu0 %v108
  %1395 = vmatpush1.bf16.msra.mxu0 %v107
  %1396 = vmatprep.subr.bf16.mxu0 %v106
  %1397 = vmatpush1.bf16.msra.mxu0 %v105
  %1398 = vmatprep.subr.bf16.mxu0 0
  %1399 = vmatpush2.bf16.msra.mxu0 0
  %1400 = vmatprep.subr.bf16.mxu0 0
  %1401 = vmatpush2.bf16.msra.mxu0 0
  %1402 = vmatprep.subr.bf16.mxu0 0
  %1403 = vmatpush2.bf16.msra.mxu0 0
  %1404 = vmatprep.subr.bf16.mxu0 0
  %1405 = vmatpush2.bf16.msra.mxu0 0
  %1406 = vmatprep.subr.bf16.mxu0 0
  %1407 = vmatpush2.bf16.msra.mxu0 0
  %1408 = vmatprep.subr.bf16.mxu0 0
  %1409 = vmatpush2.bf16.msra.mxu0 0
  %1410 = vmatprep.subr.bf16.mxu0 0
  %1411 = vmatpush2.bf16.msra.mxu0 0
  %1412 = vmatprep.subr.bf16.mxu0 0
  %1413 = vmatpush2.bf16.msra.mxu0 0
  %1414 = vmatprep.mubr.bf16.mxu0 0
  %1415 = vmatmul.mubr.bf16.gmra.mxu0 %v1380
  %v1416 = vpop.f32.mrf.mxu0
  %v1417 = vadd.f32 0.0, %v1416
  %v1418 = vpop.f32.mrf.mxu0
  %v1419 = vadd.f32 0.0, %v1418
  %v1420 = vpop.f32.mrf.mxu0
  %v1421 = vpop.f32.mrf.mxu0
  %1422 = vdwg.mxu0
  %v1423 = vadd.f32 %v1374, %v1417
  %v1424 = vadd.f32 %v1375, %v1419
  %v1425 = vxor.u32 %v1423, 2147483648
  %v1426 = vmul.f32 %v1425, 1.442695
  %v1427 = vpow.pop %v1426
  %v1428 = vadd.f32 %v1427, 1.0
  %v1429 = vrcp.pop %v1428
  %v1430 = vmul.f32 1.0, %v1429
  %v1431 = vtanh.pop %v1424
  %v1432 = vxor.u32 %v1424, 2147483648
  %v1433 = vmul.f32 %v1432, 1.442695
  %v1434 = vpow.pop %v1433
  %v1435 = vadd.f32 %v1434, 1.0
  %v1436 = vrcp.pop %v1435
  %v1437 = vmul.f32 1.0, %v1436
  %v1438 = vmul.f32 %v1430, %v1318
  %v1439 = vmul.f32 %v1430, %v1431
  %1441 = vrot.lane.b32.xlu0 %v1439, 64
  %v1442 = vpop.permute.xlu0 %1441
  %v1444 = vadd.f32 %v1438, %v1442
  %v1445 = vtanh.pop %v1444
  %v1446 = vmul.f32 %v1437, %v1445
  %v1447 = vpack.c.bf16 %v1446, %v1446
  %v1448 = vlaneseq
  %v1449 = vshrl.u32 %v1448, 7
  %v1450 = vsub.s32 2, %v1449
  %v1451 = vrot.slane %v47, %v1450
  %1453 = vrot.lane.b32.xlu0 %v1451, 64
  %v1454 = vpop.permute.xlu0 %1453
  %v1456 = vmul.f32 %v1446, %v1454
  %1458 = vrot.lane.b32.xlu0 %v1456, 64
  %v1459 = vpop.permute.xlu0 %1458
  %v1461 = vsel %vm204, %v1459, 0.0
  %1462 = vadd.xlane.f32.xlu0 %v1461
  %v1463 = vpop.xlane.xlu0 %1462
  %1464 = vrot.lane.b32.xlu0 %v1456, 32
  %v1465 = vpop.permute.xlu0 %1464
  %v1467 = vsel %vm204, %v1465, 0.0
  %1468 = vadd.xlane.f32.xlu0 %v1467
  %v1469 = vpop.xlane.xlu0 %1468
  %v1470 = vmax.f32 %v1344, %v1463
  %v1471 = vsub.f32 %v1344, %v1470
  %v1472 = vmul.f32 %v1471, 1.442695
  %v1473 = vpow.pop %v1472
  %v1474 = vsub.f32 %v1463, %v1470
  %v1475 = vmul.f32 %v1474, 1.442695
  %v1476 = vpow.pop %v1475
  %v1477 = vmul.f32 %v1473, %v1352
  %v1478 = vadd.f32 %v1477, %v1476
  %v1479 = vmul.f32 %v1473, %v1355
  %v1480 = vmul.f32 %v1476, %v1446
  %v1481 = vadd.f32 %v1479, %v1480
  %v1482 = vmax.f32 %v1356, %v1469
  %v1483 = vsub.f32 %v1356, %v1482
  %v1484 = vmul.f32 %v1483, 1.442695
  %v1485 = vpow.pop %v1484
  %v1486 = vsub.f32 %v1469, %v1482
  %v1487 = vmul.f32 %v1486, 1.442695
  %v1488 = vpow.pop %v1487
  %v1489 = vmul.f32 %v1485, %v1364
  %v1490 = vadd.f32 %v1489, %v1488
  %v1491 = vmul.f32 %v1485, %v1367
  %v1492 = vmul.f32 %v1488, %v1446
  %v1493 = vadd.f32 %v1491, %v1492
  %1494 = vset.pattern.permute.xlu0 11
  %1495 = vperm.xlu0 %1494, %v35
  %v1496 = vpop.permute.xlu0 %1495
  %v1498 = vmul.f32 %v1496, %v59
  %v1499 = vmul.f32 %v1496, %v63
  %v1500 = vadd.f32 %v1498, %v72
  %v1501 = vadd.f32 %v1499, %v76
  %1503 = vrot.lane.b32.xlu0 %v1447, 64
  %v1504 = vpop.permute.xlu0 %1503
  %v1506 = vsel %vm121, %v1504, 0
  %1508 = vmatprep.subr.bf16.mxu0 0
  %1509 = vmatpush1.bf16.msra.mxu0 0
  %1510 = vmatprep.subr.bf16.mxu0 0
  %1511 = vmatpush1.bf16.msra.mxu0 0
  %1512 = vmatprep.subr.bf16.mxu0 0
  %1513 = vmatpush1.bf16.msra.mxu0 0
  %1514 = vmatprep.subr.bf16.mxu0 0
  %1515 = vmatpush1.bf16.msra.mxu0 0
  %1516 = vmatprep.subr.bf16.mxu0 %v112
  %1517 = vmatpush1.bf16.msra.mxu0 %v111
  %1518 = vmatprep.subr.bf16.mxu0 %v110
  %1519 = vmatpush1.bf16.msra.mxu0 %v109
  %1520 = vmatprep.subr.bf16.mxu0 %v108
  %1521 = vmatpush1.bf16.msra.mxu0 %v107
  %1522 = vmatprep.subr.bf16.mxu0 %v106
  %1523 = vmatpush1.bf16.msra.mxu0 %v105
  %1524 = vmatprep.subr.bf16.mxu0 0
  %1525 = vmatpush2.bf16.msra.mxu0 0
  %1526 = vmatprep.subr.bf16.mxu0 0
  %1527 = vmatpush2.bf16.msra.mxu0 0
  %1528 = vmatprep.subr.bf16.mxu0 0
  %1529 = vmatpush2.bf16.msra.mxu0 0
  %1530 = vmatprep.subr.bf16.mxu0 0
  %1531 = vmatpush2.bf16.msra.mxu0 0
  %1532 = vmatprep.subr.bf16.mxu0 0
  %1533 = vmatpush2.bf16.msra.mxu0 0
  %1534 = vmatprep.subr.bf16.mxu0 0
  %1535 = vmatpush2.bf16.msra.mxu0 0
  %1536 = vmatprep.subr.bf16.mxu0 0
  %1537 = vmatpush2.bf16.msra.mxu0 0
  %1538 = vmatprep.subr.bf16.mxu0 0
  %1539 = vmatpush2.bf16.msra.mxu0 0
  %1540 = vmatprep.mubr.bf16.mxu0 0
  %1541 = vmatmul.mubr.bf16.gmra.mxu0 %v1506
  %v1542 = vpop.f32.mrf.mxu0
  %v1543 = vadd.f32 0.0, %v1542
  %v1544 = vpop.f32.mrf.mxu0
  %v1545 = vadd.f32 0.0, %v1544
  %v1546 = vpop.f32.mrf.mxu0
  %v1547 = vpop.f32.mrf.mxu0
  %1548 = vdwg.mxu0
  %v1549 = vadd.f32 %v1500, %v1543
  %v1550 = vadd.f32 %v1501, %v1545
  %v1551 = vxor.u32 %v1549, 2147483648
  %v1552 = vmul.f32 %v1551, 1.442695
  %v1553 = vpow.pop %v1552
  %v1554 = vadd.f32 %v1553, 1.0
  %v1555 = vrcp.pop %v1554
  %v1556 = vmul.f32 1.0, %v1555
  %v1557 = vtanh.pop %v1550
  %v1558 = vxor.u32 %v1550, 2147483648
  %v1559 = vmul.f32 %v1558, 1.442695
  %v1560 = vpow.pop %v1559
  %v1561 = vadd.f32 %v1560, 1.0
  %v1562 = vrcp.pop %v1561
  %v1563 = vmul.f32 1.0, %v1562
  %v1564 = vmul.f32 %v1556, %v1444
  %v1565 = vmul.f32 %v1556, %v1557
  %1567 = vrot.lane.b32.xlu0 %v1565, 64
  %v1568 = vpop.permute.xlu0 %1567
  %v1570 = vadd.f32 %v1564, %v1568
  %v1571 = vtanh.pop %v1570
  %v1572 = vmul.f32 %v1563, %v1571
  %v1573 = vpack.c.bf16 %v1572, %v1572
  %v1574 = vlaneseq
  %v1575 = vshrl.u32 %v1574, 7
  %v1576 = vsub.s32 3, %v1575
  %v1577 = vrot.slane %v47, %v1576
  %1579 = vrot.lane.b32.xlu0 %v1577, 64
  %v1580 = vpop.permute.xlu0 %1579
  %v1582 = vmul.f32 %v1572, %v1580
  %1584 = vrot.lane.b32.xlu0 %v1582, 64
  %v1585 = vpop.permute.xlu0 %1584
  %v1587 = vsel %vm204, %v1585, 0.0
  %1588 = vadd.xlane.f32.xlu0 %v1587
  %v1589 = vpop.xlane.xlu0 %1588
  %1590 = vrot.lane.b32.xlu0 %v1582, 32
  %v1591 = vpop.permute.xlu0 %1590
  %v1593 = vsel %vm204, %v1591, 0.0
  %1594 = vadd.xlane.f32.xlu0 %v1593
  %v1595 = vpop.xlane.xlu0 %1594
  %v1596 = vmax.f32 %v1470, %v1589
  %v1597 = vsub.f32 %v1470, %v1596
  %v1598 = vmul.f32 %v1597, 1.442695
  %v1599 = vpow.pop %v1598
  %v1600 = vsub.f32 %v1589, %v1596
  %v1601 = vmul.f32 %v1600, 1.442695
  %v1602 = vpow.pop %v1601
  %v1603 = vmul.f32 %v1599, %v1478
  %v1604 = vadd.f32 %v1603, %v1602
  %v1605 = vmul.f32 %v1599, %v1481
  %v1606 = vmul.f32 %v1602, %v1572
  %v1607 = vadd.f32 %v1605, %v1606
  %v1608 = vmax.f32 %v1482, %v1595
  %v1609 = vsub.f32 %v1482, %v1608
  %v1610 = vmul.f32 %v1609, 1.442695
  %v1611 = vpow.pop %v1610
  %v1612 = vsub.f32 %v1595, %v1608
  %v1613 = vmul.f32 %v1612, 1.442695
  %v1614 = vpow.pop %v1613
  %v1615 = vmul.f32 %v1611, %v1490
  %v1616 = vadd.f32 %v1615, %v1614
  %v1617 = vmul.f32 %v1611, %v1493
  %v1618 = vmul.f32 %v1614, %v1572
  %v1619 = vadd.f32 %v1617, %v1618
  %1620 = vset.pattern.permute.xlu0 12
  %1621 = vperm.xlu0 %1620, %v35
  %v1622 = vpop.permute.xlu0 %1621
  %v1624 = vmul.f32 %v1622, %v59
  %v1625 = vmul.f32 %v1622, %v63
  %v1626 = vadd.f32 %v1624, %v72
  %v1627 = vadd.f32 %v1625, %v76
  %1629 = vrot.lane.b32.xlu0 %v1573, 64
  %v1630 = vpop.permute.xlu0 %1629
  %v1632 = vsel %vm121, %v1630, 0
  %1634 = vmatprep.subr.bf16.mxu0 0
  %1635 = vmatpush1.bf16.msra.mxu0 0
  %1636 = vmatprep.subr.bf16.mxu0 0
  %1637 = vmatpush1.bf16.msra.mxu0 0
  %1638 = vmatprep.subr.bf16.mxu0 0
  %1639 = vmatpush1.bf16.msra.mxu0 0
  %1640 = vmatprep.subr.bf16.mxu0 0
  %1641 = vmatpush1.bf16.msra.mxu0 0
  %1642 = vmatprep.subr.bf16.mxu0 %v112
  %1643 = vmatpush1.bf16.msra.mxu0 %v111
  %1644 = vmatprep.subr.bf16.mxu0 %v110
  %1645 = vmatpush1.bf16.msra.mxu0 %v109
  %1646 = vmatprep.subr.bf16.mxu0 %v108
  %1647 = vmatpush1.bf16.msra.mxu0 %v107
  %1648 = vmatprep.subr.bf16.mxu0 %v106
  %1649 = vmatpush1.bf16.msra.mxu0 %v105
  %1650 = vmatprep.subr.bf16.mxu0 0
  %1651 = vmatpush2.bf16.msra.mxu0 0
  %1652 = vmatprep.subr.bf16.mxu0 0
  %1653 = vmatpush2.bf16.msra.mxu0 0
  %1654 = vmatprep.subr.bf16.mxu0 0
  %1655 = vmatpush2.bf16.msra.mxu0 0
  %1656 = vmatprep.subr.bf16.mxu0 0
  %1657 = vmatpush2.bf16.msra.mxu0 0
  %1658 = vmatprep.subr.bf16.mxu0 0
  %1659 = vmatpush2.bf16.msra.mxu0 0
  %1660 = vmatprep.subr.bf16.mxu0 0
  %1661 = vmatpush2.bf16.msra.mxu0 0
  %1662 = vmatprep.subr.bf16.mxu0 0
  %1663 = vmatpush2.bf16.msra.mxu0 0
  %1664 = vmatprep.subr.bf16.mxu0 0
  %1665 = vmatpush2.bf16.msra.mxu0 0
  %1666 = vmatprep.mubr.bf16.mxu0 0
  %1667 = vmatmul.mubr.bf16.gmra.mxu0 %v1632
  %v1668 = vpop.f32.mrf.mxu0
  %v1669 = vadd.f32 0.0, %v1668
  %v1670 = vpop.f32.mrf.mxu0
  %v1671 = vadd.f32 0.0, %v1670
  %v1672 = vpop.f32.mrf.mxu0
  %v1673 = vpop.f32.mrf.mxu0
  %1674 = vdwg.mxu0
  %v1675 = vadd.f32 %v1626, %v1669
  %v1676 = vadd.f32 %v1627, %v1671
  %v1677 = vxor.u32 %v1675, 2147483648
  %v1678 = vmul.f32 %v1677, 1.442695
  %v1679 = vpow.pop %v1678
  %v1680 = vadd.f32 %v1679, 1.0
  %v1681 = vrcp.pop %v1680
  %v1682 = vmul.f32 1.0, %v1681
  %v1683 = vtanh.pop %v1676
  %v1684 = vxor.u32 %v1676, 2147483648
  %v1685 = vmul.f32 %v1684, 1.442695
  %v1686 = vpow.pop %v1685
  %v1687 = vadd.f32 %v1686, 1.0
  %v1688 = vrcp.pop %v1687
  %v1689 = vmul.f32 1.0, %v1688
  %v1690 = vmul.f32 %v1682, %v1570
  %v1691 = vmul.f32 %v1682, %v1683
  %1693 = vrot.lane.b32.xlu0 %v1691, 64
  %v1694 = vpop.permute.xlu0 %1693
  %v1696 = vadd.f32 %v1690, %v1694
  %v1697 = vtanh.pop %v1696
  %v1698 = vmul.f32 %v1689, %v1697
  %v1699 = vpack.c.bf16 %v1698, %v1698
  %v1700 = vlaneseq
  %v1701 = vshrl.u32 %v1700, 7
  %v1702 = vsub.s32 4, %v1701
  %v1703 = vrot.slane %v47, %v1702
  %1705 = vrot.lane.b32.xlu0 %v1703, 64
  %v1706 = vpop.permute.xlu0 %1705
  %v1708 = vmul.f32 %v1698, %v1706
  %1710 = vrot.lane.b32.xlu0 %v1708, 64
  %v1711 = vpop.permute.xlu0 %1710
  %v1713 = vsel %vm204, %v1711, 0.0
  %1714 = vadd.xlane.f32.xlu0 %v1713
  %v1715 = vpop.xlane.xlu0 %1714
  %1716 = vrot.lane.b32.xlu0 %v1708, 32
  %v1717 = vpop.permute.xlu0 %1716
  %v1719 = vsel %vm204, %v1717, 0.0
  %1720 = vadd.xlane.f32.xlu0 %v1719
  %v1721 = vpop.xlane.xlu0 %1720
  %v1722 = vmax.f32 %v1596, %v1715
  %v1723 = vsub.f32 %v1596, %v1722
  %v1724 = vmul.f32 %v1723, 1.442695
  %v1725 = vpow.pop %v1724
  %v1726 = vsub.f32 %v1715, %v1722
  %v1727 = vmul.f32 %v1726, 1.442695
  %v1728 = vpow.pop %v1727
  %v1729 = vmul.f32 %v1725, %v1604
  %v1730 = vadd.f32 %v1729, %v1728
  %v1731 = vmul.f32 %v1725, %v1607
  %v1732 = vmul.f32 %v1728, %v1698
  %v1733 = vadd.f32 %v1731, %v1732
  %v1734 = vmax.f32 %v1608, %v1721
  %v1735 = vsub.f32 %v1608, %v1734
  %v1736 = vmul.f32 %v1735, 1.442695
  %v1737 = vpow.pop %v1736
  %v1738 = vsub.f32 %v1721, %v1734
  %v1739 = vmul.f32 %v1738, 1.442695
  %v1740 = vpow.pop %v1739
  %v1741 = vmul.f32 %v1737, %v1616
  %v1742 = vadd.f32 %v1741, %v1740
  %v1743 = vmul.f32 %v1737, %v1619
  %v1744 = vmul.f32 %v1740, %v1698
  %v1745 = vadd.f32 %v1743, %v1744
  %1746 = vset.pattern.permute.xlu0 13
  %1747 = vperm.xlu0 %1746, %v35
  %v1748 = vpop.permute.xlu0 %1747
  %v1750 = vmul.f32 %v1748, %v59
  %v1751 = vmul.f32 %v1748, %v63
  %v1752 = vadd.f32 %v1750, %v72
  %v1753 = vadd.f32 %v1751, %v76
  %1755 = vrot.lane.b32.xlu0 %v1699, 64
  %v1756 = vpop.permute.xlu0 %1755
  %v1758 = vsel %vm121, %v1756, 0
  %1760 = vmatprep.subr.bf16.mxu0 0
  %1761 = vmatpush1.bf16.msra.mxu0 0
  %1762 = vmatprep.subr.bf16.mxu0 0
  %1763 = vmatpush1.bf16.msra.mxu0 0
  %1764 = vmatprep.subr.bf16.mxu0 0
  %1765 = vmatpush1.bf16.msra.mxu0 0
  %1766 = vmatprep.subr.bf16.mxu0 0
  %1767 = vmatpush1.bf16.msra.mxu0 0
  %1768 = vmatprep.subr.bf16.mxu0 %v112
  %1769 = vmatpush1.bf16.msra.mxu0 %v111
  %1770 = vmatprep.subr.bf16.mxu0 %v110
  %1771 = vmatpush1.bf16.msra.mxu0 %v109
  %1772 = vmatprep.subr.bf16.mxu0 %v108
  %1773 = vmatpush1.bf16.msra.mxu0 %v107
  %1774 = vmatprep.subr.bf16.mxu0 %v106
  %1775 = vmatpush1.bf16.msra.mxu0 %v105
  %1776 = vmatprep.subr.bf16.mxu0 0
  %1777 = vmatpush2.bf16.msra.mxu0 0
  %1778 = vmatprep.subr.bf16.mxu0 0
  %1779 = vmatpush2.bf16.msra.mxu0 0
  %1780 = vmatprep.subr.bf16.mxu0 0
  %1781 = vmatpush2.bf16.msra.mxu0 0
  %1782 = vmatprep.subr.bf16.mxu0 0
  %1783 = vmatpush2.bf16.msra.mxu0 0
  %1784 = vmatprep.subr.bf16.mxu0 0
  %1785 = vmatpush2.bf16.msra.mxu0 0
  %1786 = vmatprep.subr.bf16.mxu0 0
  %1787 = vmatpush2.bf16.msra.mxu0 0
  %1788 = vmatprep.subr.bf16.mxu0 0
  %1789 = vmatpush2.bf16.msra.mxu0 0
  %1790 = vmatprep.subr.bf16.mxu0 0
  %1791 = vmatpush2.bf16.msra.mxu0 0
  %1792 = vmatprep.mubr.bf16.mxu0 0
  %1793 = vmatmul.mubr.bf16.gmra.mxu0 %v1758
  %v1794 = vpop.f32.mrf.mxu0
  %v1795 = vadd.f32 0.0, %v1794
  %v1796 = vpop.f32.mrf.mxu0
  %v1797 = vadd.f32 0.0, %v1796
  %v1798 = vpop.f32.mrf.mxu0
  %v1799 = vpop.f32.mrf.mxu0
  %1800 = vdwg.mxu0
  %v1801 = vadd.f32 %v1752, %v1795
  %v1802 = vadd.f32 %v1753, %v1797
  %v1803 = vxor.u32 %v1801, 2147483648
  %v1804 = vmul.f32 %v1803, 1.442695
  %v1805 = vpow.pop %v1804
  %v1806 = vadd.f32 %v1805, 1.0
  %v1807 = vrcp.pop %v1806
  %v1808 = vmul.f32 1.0, %v1807
  %v1809 = vtanh.pop %v1802
  %v1810 = vxor.u32 %v1802, 2147483648
  %v1811 = vmul.f32 %v1810, 1.442695
  %v1812 = vpow.pop %v1811
  %v1813 = vadd.f32 %v1812, 1.0
  %v1814 = vrcp.pop %v1813
  %v1815 = vmul.f32 1.0, %v1814
  %v1816 = vmul.f32 %v1808, %v1696
  %v1817 = vmul.f32 %v1808, %v1809
  %1819 = vrot.lane.b32.xlu0 %v1817, 64
  %v1820 = vpop.permute.xlu0 %1819
  %v1822 = vadd.f32 %v1816, %v1820
  %v1823 = vtanh.pop %v1822
  %v1824 = vmul.f32 %v1815, %v1823
  %v1825 = vpack.c.bf16 %v1824, %v1824
  %v1826 = vlaneseq
  %v1827 = vshrl.u32 %v1826, 7
  %v1828 = vsub.s32 5, %v1827
  %v1829 = vrot.slane %v47, %v1828
  %1831 = vrot.lane.b32.xlu0 %v1829, 64
  %v1832 = vpop.permute.xlu0 %1831
  %v1834 = vmul.f32 %v1824, %v1832
  %1836 = vrot.lane.b32.xlu0 %v1834, 64
  %v1837 = vpop.permute.xlu0 %1836
  %v1839 = vsel %vm204, %v1837, 0.0
  %1840 = vadd.xlane.f32.xlu0 %v1839
  %v1841 = vpop.xlane.xlu0 %1840
  %1842 = vrot.lane.b32.xlu0 %v1834, 32
  %v1843 = vpop.permute.xlu0 %1842
  %v1845 = vsel %vm204, %v1843, 0.0
  %1846 = vadd.xlane.f32.xlu0 %v1845
  %v1847 = vpop.xlane.xlu0 %1846
  %v1848 = vmax.f32 %v1722, %v1841
  %v1849 = vsub.f32 %v1722, %v1848
  %v1850 = vmul.f32 %v1849, 1.442695
  %v1851 = vpow.pop %v1850
  %v1852 = vsub.f32 %v1841, %v1848
  %v1853 = vmul.f32 %v1852, 1.442695
  %v1854 = vpow.pop %v1853
  %v1855 = vmul.f32 %v1851, %v1730
  %v1856 = vadd.f32 %v1855, %v1854
  %v1857 = vmul.f32 %v1851, %v1733
  %v1858 = vmul.f32 %v1854, %v1824
  %v1859 = vadd.f32 %v1857, %v1858
  %v1860 = vmax.f32 %v1734, %v1847
  %v1861 = vsub.f32 %v1734, %v1860
  %v1862 = vmul.f32 %v1861, 1.442695
  %v1863 = vpow.pop %v1862
  %v1864 = vsub.f32 %v1847, %v1860
  %v1865 = vmul.f32 %v1864, 1.442695
  %v1866 = vpow.pop %v1865
  %v1867 = vmul.f32 %v1863, %v1742
  %v1868 = vadd.f32 %v1867, %v1866
  %v1869 = vmul.f32 %v1863, %v1745
  %v1870 = vmul.f32 %v1866, %v1824
  %v1871 = vadd.f32 %v1869, %v1870
  %1872 = vset.pattern.permute.xlu0 14
  %1873 = vperm.xlu0 %1872, %v35
  %v1874 = vpop.permute.xlu0 %1873
  %v1876 = vmul.f32 %v1874, %v59
  %v1877 = vmul.f32 %v1874, %v63
  %v1878 = vadd.f32 %v1876, %v72
  %v1879 = vadd.f32 %v1877, %v76
  %1881 = vrot.lane.b32.xlu0 %v1825, 64
  %v1882 = vpop.permute.xlu0 %1881
  %v1884 = vsel %vm121, %v1882, 0
  %1886 = vmatprep.subr.bf16.mxu0 0
  %1887 = vmatpush1.bf16.msra.mxu0 0
  %1888 = vmatprep.subr.bf16.mxu0 0
  %1889 = vmatpush1.bf16.msra.mxu0 0
  %1890 = vmatprep.subr.bf16.mxu0 0
  %1891 = vmatpush1.bf16.msra.mxu0 0
  %1892 = vmatprep.subr.bf16.mxu0 0
  %1893 = vmatpush1.bf16.msra.mxu0 0
  %1894 = vmatprep.subr.bf16.mxu0 %v112
  %1895 = vmatpush1.bf16.msra.mxu0 %v111
  %1896 = vmatprep.subr.bf16.mxu0 %v110
  %1897 = vmatpush1.bf16.msra.mxu0 %v109
  %1898 = vmatprep.subr.bf16.mxu0 %v108
  %1899 = vmatpush1.bf16.msra.mxu0 %v107
  %1900 = vmatprep.subr.bf16.mxu0 %v106
  %1901 = vmatpush1.bf16.msra.mxu0 %v105
  %1902 = vmatprep.subr.bf16.mxu0 0
  %1903 = vmatpush2.bf16.msra.mxu0 0
  %1904 = vmatprep.subr.bf16.mxu0 0
  %1905 = vmatpush2.bf16.msra.mxu0 0
  %1906 = vmatprep.subr.bf16.mxu0 0
  %1907 = vmatpush2.bf16.msra.mxu0 0
  %1908 = vmatprep.subr.bf16.mxu0 0
  %1909 = vmatpush2.bf16.msra.mxu0 0
  %1910 = vmatprep.subr.bf16.mxu0 0
  %1911 = vmatpush2.bf16.msra.mxu0 0
  %1912 = vmatprep.subr.bf16.mxu0 0
  %1913 = vmatpush2.bf16.msra.mxu0 0
  %1914 = vmatprep.subr.bf16.mxu0 0
  %1915 = vmatpush2.bf16.msra.mxu0 0
  %1916 = vmatprep.subr.bf16.mxu0 0
  %1917 = vmatpush2.bf16.msra.mxu0 0
  %1918 = vmatprep.mubr.bf16.mxu0 0
  %1919 = vmatmul.mubr.bf16.gmra.mxu0 %v1884
  %v1920 = vpop.f32.mrf.mxu0
  %v1921 = vadd.f32 0.0, %v1920
  %v1922 = vpop.f32.mrf.mxu0
  %v1923 = vadd.f32 0.0, %v1922
  %v1924 = vpop.f32.mrf.mxu0
  %v1925 = vpop.f32.mrf.mxu0
  %1926 = vdwg.mxu0
  %v1927 = vadd.f32 %v1878, %v1921
  %v1928 = vadd.f32 %v1879, %v1923
  %v1929 = vxor.u32 %v1927, 2147483648
  %v1930 = vmul.f32 %v1929, 1.442695
  %v1931 = vpow.pop %v1930
  %v1932 = vadd.f32 %v1931, 1.0
  %v1933 = vrcp.pop %v1932
  %v1934 = vmul.f32 1.0, %v1933
  %v1935 = vtanh.pop %v1928
  %v1936 = vxor.u32 %v1928, 2147483648
  %v1937 = vmul.f32 %v1936, 1.442695
  %v1938 = vpow.pop %v1937
  %v1939 = vadd.f32 %v1938, 1.0
  %v1940 = vrcp.pop %v1939
  %v1941 = vmul.f32 1.0, %v1940
  %v1942 = vmul.f32 %v1934, %v1822
  %v1943 = vmul.f32 %v1934, %v1935
  %1945 = vrot.lane.b32.xlu0 %v1943, 64
  %v1946 = vpop.permute.xlu0 %1945
  %v1948 = vadd.f32 %v1942, %v1946
  %v1949 = vtanh.pop %v1948
  %v1950 = vmul.f32 %v1941, %v1949
  %v1951 = vpack.c.bf16 %v1950, %v1950
  %v1952 = vlaneseq
  %v1953 = vshrl.u32 %v1952, 7
  %v1954 = vsub.s32 6, %v1953
  %v1955 = vrot.slane %v47, %v1954
  %1957 = vrot.lane.b32.xlu0 %v1955, 64
  %v1958 = vpop.permute.xlu0 %1957
  %v1960 = vmul.f32 %v1950, %v1958
  %1962 = vrot.lane.b32.xlu0 %v1960, 64
  %v1963 = vpop.permute.xlu0 %1962
  %v1965 = vsel %vm204, %v1963, 0.0
  %1966 = vadd.xlane.f32.xlu0 %v1965
  %v1967 = vpop.xlane.xlu0 %1966
  %1968 = vrot.lane.b32.xlu0 %v1960, 32
  %v1969 = vpop.permute.xlu0 %1968
  %v1971 = vsel %vm204, %v1969, 0.0
  %1972 = vadd.xlane.f32.xlu0 %v1971
  %v1973 = vpop.xlane.xlu0 %1972
  %v1974 = vmax.f32 %v1848, %v1967
  %v1975 = vsub.f32 %v1848, %v1974
  %v1976 = vmul.f32 %v1975, 1.442695
  %v1977 = vpow.pop %v1976
  %v1978 = vsub.f32 %v1967, %v1974
  %v1979 = vmul.f32 %v1978, 1.442695
  %v1980 = vpow.pop %v1979
  %v1981 = vmul.f32 %v1977, %v1856
  %v1982 = vadd.f32 %v1981, %v1980
  %v1983 = vmul.f32 %v1977, %v1859
  %v1984 = vmul.f32 %v1980, %v1950
  %v1985 = vadd.f32 %v1983, %v1984
  %v1986 = vmax.f32 %v1860, %v1973
  %v1987 = vsub.f32 %v1860, %v1986
  %v1988 = vmul.f32 %v1987, 1.442695
  %v1989 = vpow.pop %v1988
  %v1990 = vsub.f32 %v1973, %v1986
  %v1991 = vmul.f32 %v1990, 1.442695
  %v1992 = vpow.pop %v1991
  %v1993 = vmul.f32 %v1989, %v1868
  %v1994 = vadd.f32 %v1993, %v1992
  %v1995 = vmul.f32 %v1989, %v1871
  %v1996 = vmul.f32 %v1992, %v1950
  %v1997 = vadd.f32 %v1995, %v1996
  %1998 = vset.pattern.permute.xlu0 15
  %1999 = vperm.xlu0 %1998, %v35
  %v2000 = vpop.permute.xlu0 %1999
  %v2002 = vmul.f32 %v2000, %v59
  %v2003 = vmul.f32 %v2000, %v63
  %v2004 = vadd.f32 %v2002, %v72
  %v2005 = vadd.f32 %v2003, %v76
  %2007 = vrot.lane.b32.xlu0 %v1951, 64
  %v2008 = vpop.permute.xlu0 %2007
  %v2010 = vsel %vm121, %v2008, 0
  %2012 = vmatprep.subr.bf16.mxu0 0
  %2013 = vmatpush1.bf16.msra.mxu0 0
  %2014 = vmatprep.subr.bf16.mxu0 0
  %2015 = vmatpush1.bf16.msra.mxu0 0
  %2016 = vmatprep.subr.bf16.mxu0 0
  %2017 = vmatpush1.bf16.msra.mxu0 0
  %2018 = vmatprep.subr.bf16.mxu0 0
  %2019 = vmatpush1.bf16.msra.mxu0 0
  %2020 = vmatprep.subr.bf16.mxu0 %v112
  %2021 = vmatpush1.bf16.msra.mxu0 %v111
  %2022 = vmatprep.subr.bf16.mxu0 %v110
  %2023 = vmatpush1.bf16.msra.mxu0 %v109
  %2024 = vmatprep.subr.bf16.mxu0 %v108
  %2025 = vmatpush1.bf16.msra.mxu0 %v107
  %2026 = vmatprep.subr.bf16.mxu0 %v106
  %2027 = vmatpush1.bf16.msra.mxu0 %v105
  %2028 = vmatprep.subr.bf16.mxu0 0
  %2029 = vmatpush2.bf16.msra.mxu0 0
  %2030 = vmatprep.subr.bf16.mxu0 0
  %2031 = vmatpush2.bf16.msra.mxu0 0
  %2032 = vmatprep.subr.bf16.mxu0 0
  %2033 = vmatpush2.bf16.msra.mxu0 0
  %2034 = vmatprep.subr.bf16.mxu0 0
  %2035 = vmatpush2.bf16.msra.mxu0 0
  %2036 = vmatprep.subr.bf16.mxu0 0
  %2037 = vmatpush2.bf16.msra.mxu0 0
  %2038 = vmatprep.subr.bf16.mxu0 0
  %2039 = vmatpush2.bf16.msra.mxu0 0
  %2040 = vmatprep.subr.bf16.mxu0 0
  %2041 = vmatpush2.bf16.msra.mxu0 0
  %2042 = vmatprep.subr.bf16.mxu0 0
  %2043 = vmatpush2.bf16.msra.mxu0 0
  %2044 = vmatprep.mubr.bf16.mxu0 0
  %2045 = vmatmul.mubr.bf16.gmra.mxu0 %v2010
  %v2046 = vpop.f32.mrf.mxu0
  %v2047 = vadd.f32 0.0, %v2046
  %v2048 = vpop.f32.mrf.mxu0
  %v2049 = vadd.f32 0.0, %v2048
  %v2050 = vpop.f32.mrf.mxu0
  %v2051 = vpop.f32.mrf.mxu0
  %2052 = vdwg.mxu0
  %v2053 = vadd.f32 %v2004, %v2047
  %v2054 = vadd.f32 %v2005, %v2049
  %v2055 = vxor.u32 %v2053, 2147483648
  %v2056 = vmul.f32 %v2055, 1.442695
  %v2057 = vpow.pop %v2056
  %v2058 = vadd.f32 %v2057, 1.0
  %v2059 = vrcp.pop %v2058
  %v2060 = vmul.f32 1.0, %v2059
  %v2061 = vtanh.pop %v2054
  %v2062 = vxor.u32 %v2054, 2147483648
  %v2063 = vmul.f32 %v2062, 1.442695
  %v2064 = vpow.pop %v2063
  %v2065 = vadd.f32 %v2064, 1.0
  %v2066 = vrcp.pop %v2065
  %v2067 = vmul.f32 1.0, %v2066
  %v2068 = vmul.f32 %v2060, %v1948
  %v2069 = vmul.f32 %v2060, %v2061
  %2071 = vrot.lane.b32.xlu0 %v2069, 64
  %v2072 = vpop.permute.xlu0 %2071
  %v2074 = vadd.f32 %v2068, %v2072
  %v2075 = vtanh.pop %v2074
  %v2076 = vmul.f32 %v2067, %v2075
  %v2077 = vpack.c.bf16 %v2076, %v2076
  %v2078 = vlaneseq
  %v2079 = vshrl.u32 %v2078, 7
  %v2080 = vsub.s32 7, %v2079
  %v2081 = vrot.slane %v47, %v2080
  %2083 = vrot.lane.b32.xlu0 %v2081, 64
  %v2084 = vpop.permute.xlu0 %2083
  %v2086 = vmul.f32 %v2076, %v2084
  %2088 = vrot.lane.b32.xlu0 %v2086, 64
  %v2089 = vpop.permute.xlu0 %2088
  %v2091 = vsel %vm204, %v2089, 0.0
  %2092 = vadd.xlane.f32.xlu0 %v2091
  %v2093 = vpop.xlane.xlu0 %2092
  %2094 = vrot.lane.b32.xlu0 %v2086, 32
  %v2095 = vpop.permute.xlu0 %2094
  %v2097 = vsel %vm204, %v2095, 0.0
  %2098 = vadd.xlane.f32.xlu0 %v2097
  %v2099 = vpop.xlane.xlu0 %2098
  %v2100 = vmax.f32 %v1974, %v2093
  %v2101 = vsub.f32 %v1974, %v2100
  %v2102 = vmul.f32 %v2101, 1.442695
  %v2103 = vpow.pop %v2102
  %v2104 = vsub.f32 %v2093, %v2100
  %v2105 = vmul.f32 %v2104, 1.442695
  %v2106 = vpow.pop %v2105
  %v2107 = vmul.f32 %v2103, %v1982
  %v2108 = vadd.f32 %v2107, %v2106
  %v2109 = vmul.f32 %v2103, %v1985
  %v2110 = vmul.f32 %v2106, %v2076
  %v2111 = vadd.f32 %v2109, %v2110
  %v2112 = vmax.f32 %v1986, %v2099
  %v2113 = vsub.f32 %v1986, %v2112
  %v2114 = vmul.f32 %v2113, 1.442695
  %v2115 = vpow.pop %v2114
  %v2116 = vsub.f32 %v2099, %v2112
  %v2117 = vmul.f32 %v2116, 1.442695
  %v2118 = vpow.pop %v2117
  %v2119 = vmul.f32 %v2115, %v1994
  %v2120 = vadd.f32 %v2119, %v2118
  %v2121 = vmul.f32 %v2115, %v1997
  %v2122 = vmul.f32 %v2118, %v2076
  %v2123 = vadd.f32 %v2121, %v2122
  %2124 = vset.pattern.permute.xlu0 16
  %2125 = vperm.xlu0 %2124, %v35
  %v2126 = vpop.permute.xlu0 %2125
  %v2128 = vmul.f32 %v2126, %v59
  %v2129 = vmul.f32 %v2126, %v63
  %v2130 = vadd.f32 %v2128, %v72
  %v2131 = vadd.f32 %v2129, %v76
  %2133 = vrot.lane.b32.xlu0 %v2077, 64
  %v2134 = vpop.permute.xlu0 %2133
  %v2136 = vsel %vm121, %v2134, 0
  %2138 = vmatprep.subr.bf16.mxu0 0
  %2139 = vmatpush1.bf16.msra.mxu0 0
  %2140 = vmatprep.subr.bf16.mxu0 0
  %2141 = vmatpush1.bf16.msra.mxu0 0
  %2142 = vmatprep.subr.bf16.mxu0 0
  %2143 = vmatpush1.bf16.msra.mxu0 0
  %2144 = vmatprep.subr.bf16.mxu0 0
  %2145 = vmatpush1.bf16.msra.mxu0 0
  %2146 = vmatprep.subr.bf16.mxu0 %v112
  %2147 = vmatpush1.bf16.msra.mxu0 %v111
  %2148 = vmatprep.subr.bf16.mxu0 %v110
  %2149 = vmatpush1.bf16.msra.mxu0 %v109
  %2150 = vmatprep.subr.bf16.mxu0 %v108
  %2151 = vmatpush1.bf16.msra.mxu0 %v107
  %2152 = vmatprep.subr.bf16.mxu0 %v106
  %2153 = vmatpush1.bf16.msra.mxu0 %v105
  %2154 = vmatprep.subr.bf16.mxu0 0
  %2155 = vmatpush2.bf16.msra.mxu0 0
  %2156 = vmatprep.subr.bf16.mxu0 0
  %2157 = vmatpush2.bf16.msra.mxu0 0
  %2158 = vmatprep.subr.bf16.mxu0 0
  %2159 = vmatpush2.bf16.msra.mxu0 0
  %2160 = vmatprep.subr.bf16.mxu0 0
  %2161 = vmatpush2.bf16.msra.mxu0 0
  %2162 = vmatprep.subr.bf16.mxu0 0
  %2163 = vmatpush2.bf16.msra.mxu0 0
  %2164 = vmatprep.subr.bf16.mxu0 0
  %2165 = vmatpush2.bf16.msra.mxu0 0
  %2166 = vmatprep.subr.bf16.mxu0 0
  %2167 = vmatpush2.bf16.msra.mxu0 0
  %2168 = vmatprep.subr.bf16.mxu0 0
  %2169 = vmatpush2.bf16.msra.mxu0 0
  %2170 = vmatprep.mubr.bf16.mxu0 0
  %2171 = vmatmul.mubr.bf16.gmra.mxu0 %v2136
  %v2172 = vpop.f32.mrf.mxu0
  %v2173 = vadd.f32 0.0, %v2172
  %v2174 = vpop.f32.mrf.mxu0
  %v2175 = vadd.f32 0.0, %v2174
  %v2176 = vpop.f32.mrf.mxu0
  %v2177 = vpop.f32.mrf.mxu0
  %2178 = vdwg.mxu0
  %v2179 = vadd.f32 %v2130, %v2173
  %v2180 = vadd.f32 %v2131, %v2175
  %v2181 = vxor.u32 %v2179, 2147483648
  %v2182 = vmul.f32 %v2181, 1.442695
  %v2183 = vpow.pop %v2182
  %v2184 = vadd.f32 %v2183, 1.0
  %v2185 = vrcp.pop %v2184
  %v2186 = vmul.f32 1.0, %v2185
  %v2187 = vtanh.pop %v2180
  %v2188 = vxor.u32 %v2180, 2147483648
  %v2189 = vmul.f32 %v2188, 1.442695
  %v2190 = vpow.pop %v2189
  %v2191 = vadd.f32 %v2190, 1.0
  %v2192 = vrcp.pop %v2191
  %v2193 = vmul.f32 1.0, %v2192
  %v2194 = vmul.f32 %v2186, %v2074
  %v2195 = vmul.f32 %v2186, %v2187
  %2197 = vrot.lane.b32.xlu0 %v2195, 64
  %v2198 = vpop.permute.xlu0 %2197
  %v2200 = vadd.f32 %v2194, %v2198
  %v2201 = vtanh.pop %v2200
  %v2202 = vmul.f32 %v2193, %v2201
  %v2203 = vpack.c.bf16 %v2202, %v2202
  %v2204 = vlaneseq
  %v2205 = vshrl.u32 %v2204, 7
  %v2206 = vsub.s32 0, %v2205
  %v2207 = vrot.slane %v48, %v2206
  %2209 = vrot.lane.b32.xlu0 %v2207, 64
  %v2210 = vpop.permute.xlu0 %2209
  %v2212 = vmul.f32 %v2202, %v2210
  %2214 = vrot.lane.b32.xlu0 %v2212, 64
  %v2215 = vpop.permute.xlu0 %2214
  %v2217 = vsel %vm204, %v2215, 0.0
  %2218 = vadd.xlane.f32.xlu0 %v2217
  %v2219 = vpop.xlane.xlu0 %2218
  %2220 = vrot.lane.b32.xlu0 %v2212, 32
  %v2221 = vpop.permute.xlu0 %2220
  %v2223 = vsel %vm204, %v2221, 0.0
  %2224 = vadd.xlane.f32.xlu0 %v2223
  %v2225 = vpop.xlane.xlu0 %2224
  %v2226 = vmax.f32 %v2100, %v2219
  %v2227 = vsub.f32 %v2100, %v2226
  %v2228 = vmul.f32 %v2227, 1.442695
  %v2229 = vpow.pop %v2228
  %v2230 = vsub.f32 %v2219, %v2226
  %v2231 = vmul.f32 %v2230, 1.442695
  %v2232 = vpow.pop %v2231
  %v2233 = vmul.f32 %v2229, %v2108
  %v2234 = vadd.f32 %v2233, %v2232
  %v2235 = vmul.f32 %v2229, %v2111
  %v2236 = vmul.f32 %v2232, %v2202
  %v2237 = vadd.f32 %v2235, %v2236
  %v2238 = vmax.f32 %v2112, %v2225
  %v2239 = vsub.f32 %v2112, %v2238
  %v2240 = vmul.f32 %v2239, 1.442695
  %v2241 = vpow.pop %v2240
  %v2242 = vsub.f32 %v2225, %v2238
  %v2243 = vmul.f32 %v2242, 1.442695
  %v2244 = vpow.pop %v2243
  %v2245 = vmul.f32 %v2241, %v2120
  %v2246 = vadd.f32 %v2245, %v2244
  %v2247 = vmul.f32 %v2241, %v2123
  %v2248 = vmul.f32 %v2244, %v2202
  %v2249 = vadd.f32 %v2247, %v2248
  %2250 = vset.pattern.permute.xlu0 17
  %2251 = vperm.xlu0 %2250, %v35
  %v2252 = vpop.permute.xlu0 %2251
  %v2254 = vmul.f32 %v2252, %v59
  %v2255 = vmul.f32 %v2252, %v63
  %v2256 = vadd.f32 %v2254, %v72
  %v2257 = vadd.f32 %v2255, %v76
  %2259 = vrot.lane.b32.xlu0 %v2203, 64
  %v2260 = vpop.permute.xlu0 %2259
  %v2262 = vsel %vm121, %v2260, 0
  %2264 = vmatprep.subr.bf16.mxu0 0
  %2265 = vmatpush1.bf16.msra.mxu0 0
  %2266 = vmatprep.subr.bf16.mxu0 0
  %2267 = vmatpush1.bf16.msra.mxu0 0
  %2268 = vmatprep.subr.bf16.mxu0 0
  %2269 = vmatpush1.bf16.msra.mxu0 0
  %2270 = vmatprep.subr.bf16.mxu0 0
  %2271 = vmatpush1.bf16.msra.mxu0 0
  %2272 = vmatprep.subr.bf16.mxu0 %v112
  %2273 = vmatpush1.bf16.msra.mxu0 %v111
  %2274 = vmatprep.subr.bf16.mxu0 %v110
  %2275 = vmatpush1.bf16.msra.mxu0 %v109
  %2276 = vmatprep.subr.bf16.mxu0 %v108
  %2277 = vmatpush1.bf16.msra.mxu0 %v107
  %2278 = vmatprep.subr.bf16.mxu0 %v106
  %2279 = vmatpush1.bf16.msra.mxu0 %v105
  %2280 = vmatprep.subr.bf16.mxu0 0
  %2281 = vmatpush2.bf16.msra.mxu0 0
  %2282 = vmatprep.subr.bf16.mxu0 0
  %2283 = vmatpush2.bf16.msra.mxu0 0
  %2284 = vmatprep.subr.bf16.mxu0 0
  %2285 = vmatpush2.bf16.msra.mxu0 0
  %2286 = vmatprep.subr.bf16.mxu0 0
  %2287 = vmatpush2.bf16.msra.mxu0 0
  %2288 = vmatprep.subr.bf16.mxu0 0
  %2289 = vmatpush2.bf16.msra.mxu0 0
  %2290 = vmatprep.subr.bf16.mxu0 0
  %2291 = vmatpush2.bf16.msra.mxu0 0
  %2292 = vmatprep.subr.bf16.mxu0 0
  %2293 = vmatpush2.bf16.msra.mxu0 0
  %2294 = vmatprep.subr.bf16.mxu0 0
  %2295 = vmatpush2.bf16.msra.mxu0 0
  %2296 = vmatprep.mubr.bf16.mxu0 0
  %2297 = vmatmul.mubr.bf16.gmra.mxu0 %v2262
  %v2298 = vpop.f32.mrf.mxu0
  %v2299 = vadd.f32 0.0, %v2298
  %v2300 = vpop.f32.mrf.mxu0
  %v2301 = vadd.f32 0.0, %v2300
  %v2302 = vpop.f32.mrf.mxu0
  %v2303 = vpop.f32.mrf.mxu0
  %2304 = vdwg.mxu0
  %v2305 = vadd.f32 %v2256, %v2299
  %v2306 = vadd.f32 %v2257, %v2301
  %v2307 = vxor.u32 %v2305, 2147483648
  %v2308 = vmul.f32 %v2307, 1.442695
  %v2309 = vpow.pop %v2308
  %v2310 = vadd.f32 %v2309, 1.0
  %v2311 = vrcp.pop %v2310
  %v2312 = vmul.f32 1.0, %v2311
  %v2313 = vtanh.pop %v2306
  %v2314 = vxor.u32 %v2306, 2147483648
  %v2315 = vmul.f32 %v2314, 1.442695
  %v2316 = vpow.pop %v2315
  %v2317 = vadd.f32 %v2316, 1.0
  %v2318 = vrcp.pop %v2317
  %v2319 = vmul.f32 1.0, %v2318
  %v2320 = vmul.f32 %v2312, %v2200
  %v2321 = vmul.f32 %v2312, %v2313
  %2323 = vrot.lane.b32.xlu0 %v2321, 64
  %v2324 = vpop.permute.xlu0 %2323
  %v2326 = vadd.f32 %v2320, %v2324
  %v2327 = vtanh.pop %v2326
  %v2328 = vmul.f32 %v2319, %v2327
  %v2329 = vpack.c.bf16 %v2328, %v2328
  %v2330 = vlaneseq
  %v2331 = vshrl.u32 %v2330, 7
  %v2332 = vsub.s32 1, %v2331
  %v2333 = vrot.slane %v48, %v2332
  %2335 = vrot.lane.b32.xlu0 %v2333, 64
  %v2336 = vpop.permute.xlu0 %2335
  %v2338 = vmul.f32 %v2328, %v2336
  %2340 = vrot.lane.b32.xlu0 %v2338, 64
  %v2341 = vpop.permute.xlu0 %2340
  %v2343 = vsel %vm204, %v2341, 0.0
  %2344 = vadd.xlane.f32.xlu0 %v2343
  %v2345 = vpop.xlane.xlu0 %2344
  %2346 = vrot.lane.b32.xlu0 %v2338, 32
  %v2347 = vpop.permute.xlu0 %2346
  %v2349 = vsel %vm204, %v2347, 0.0
  %2350 = vadd.xlane.f32.xlu0 %v2349
  %v2351 = vpop.xlane.xlu0 %2350
  %v2352 = vmax.f32 %v2226, %v2345
  %v2353 = vsub.f32 %v2226, %v2352
  %v2354 = vmul.f32 %v2353, 1.442695
  %v2355 = vpow.pop %v2354
  %v2356 = vsub.f32 %v2345, %v2352
  %v2357 = vmul.f32 %v2356, 1.442695
  %v2358 = vpow.pop %v2357
  %v2359 = vmul.f32 %v2355, %v2234
  %v2360 = vadd.f32 %v2359, %v2358
  %v2361 = vmul.f32 %v2355, %v2237
  %v2362 = vmul.f32 %v2358, %v2328
  %v2363 = vadd.f32 %v2361, %v2362
  %v2364 = vmax.f32 %v2238, %v2351
  %v2365 = vsub.f32 %v2238, %v2364
  %v2366 = vmul.f32 %v2365, 1.442695
  %v2367 = vpow.pop %v2366
  %v2368 = vsub.f32 %v2351, %v2364
  %v2369 = vmul.f32 %v2368, 1.442695
  %v2370 = vpow.pop %v2369
  %v2371 = vmul.f32 %v2367, %v2246
  %v2372 = vadd.f32 %v2371, %v2370
  %v2373 = vmul.f32 %v2367, %v2249
  %v2374 = vmul.f32 %v2370, %v2328
  %v2375 = vadd.f32 %v2373, %v2374
  %2376 = vset.pattern.permute.xlu0 18
  %2377 = vperm.xlu0 %2376, %v35
  %v2378 = vpop.permute.xlu0 %2377
  %v2380 = vmul.f32 %v2378, %v59
  %v2381 = vmul.f32 %v2378, %v63
  %v2382 = vadd.f32 %v2380, %v72
  %v2383 = vadd.f32 %v2381, %v76
  %2385 = vrot.lane.b32.xlu0 %v2329, 64
  %v2386 = vpop.permute.xlu0 %2385
  %v2388 = vsel %vm121, %v2386, 0
  %2390 = vmatprep.subr.bf16.mxu0 0
  %2391 = vmatpush1.bf16.msra.mxu0 0
  %2392 = vmatprep.subr.bf16.mxu0 0
  %2393 = vmatpush1.bf16.msra.mxu0 0
  %2394 = vmatprep.subr.bf16.mxu0 0
  %2395 = vmatpush1.bf16.msra.mxu0 0
  %2396 = vmatprep.subr.bf16.mxu0 0
  %2397 = vmatpush1.bf16.msra.mxu0 0
  %2398 = vmatprep.subr.bf16.mxu0 %v112
  %2399 = vmatpush1.bf16.msra.mxu0 %v111
  %2400 = vmatprep.subr.bf16.mxu0 %v110
  %2401 = vmatpush1.bf16.msra.mxu0 %v109
  %2402 = vmatprep.subr.bf16.mxu0 %v108
  %2403 = vmatpush1.bf16.msra.mxu0 %v107
  %2404 = vmatprep.subr.bf16.mxu0 %v106
  %2405 = vmatpush1.bf16.msra.mxu0 %v105
  %2406 = vmatprep.subr.bf16.mxu0 0
  %2407 = vmatpush2.bf16.msra.mxu0 0
  %2408 = vmatprep.subr.bf16.mxu0 0
  %2409 = vmatpush2.bf16.msra.mxu0 0
  %2410 = vmatprep.subr.bf16.mxu0 0
  %2411 = vmatpush2.bf16.msra.mxu0 0
  %2412 = vmatprep.subr.bf16.mxu0 0
  %2413 = vmatpush2.bf16.msra.mxu0 0
  %2414 = vmatprep.subr.bf16.mxu0 0
  %2415 = vmatpush2.bf16.msra.mxu0 0
  %2416 = vmatprep.subr.bf16.mxu0 0
  %2417 = vmatpush2.bf16.msra.mxu0 0
  %2418 = vmatprep.subr.bf16.mxu0 0
  %2419 = vmatpush2.bf16.msra.mxu0 0
  %2420 = vmatprep.subr.bf16.mxu0 0
  %2421 = vmatpush2.bf16.msra.mxu0 0
  %2422 = vmatprep.mubr.bf16.mxu0 0
  %2423 = vmatmul.mubr.bf16.gmra.mxu0 %v2388
  %v2424 = vpop.f32.mrf.mxu0
  %v2425 = vadd.f32 0.0, %v2424
  %v2426 = vpop.f32.mrf.mxu0
  %v2427 = vadd.f32 0.0, %v2426
  %v2428 = vpop.f32.mrf.mxu0
  %v2429 = vpop.f32.mrf.mxu0
  %2430 = vdwg.mxu0
  %v2431 = vadd.f32 %v2382, %v2425
  %v2432 = vadd.f32 %v2383, %v2427
  %v2433 = vxor.u32 %v2431, 2147483648
  %v2434 = vmul.f32 %v2433, 1.442695
  %v2435 = vpow.pop %v2434
  %v2436 = vadd.f32 %v2435, 1.0
  %v2437 = vrcp.pop %v2436
  %v2438 = vmul.f32 1.0, %v2437
  %v2439 = vtanh.pop %v2432
  %v2440 = vxor.u32 %v2432, 2147483648
  %v2441 = vmul.f32 %v2440, 1.442695
  %v2442 = vpow.pop %v2441
  %v2443 = vadd.f32 %v2442, 1.0
  %v2444 = vrcp.pop %v2443
  %v2445 = vmul.f32 1.0, %v2444
  %v2446 = vmul.f32 %v2438, %v2326
  %v2447 = vmul.f32 %v2438, %v2439
  %2449 = vrot.lane.b32.xlu0 %v2447, 64
  %v2450 = vpop.permute.xlu0 %2449
  %v2452 = vadd.f32 %v2446, %v2450
  %v2453 = vtanh.pop %v2452
  %v2454 = vmul.f32 %v2445, %v2453
  %v2455 = vpack.c.bf16 %v2454, %v2454
  %v2456 = vlaneseq
  %v2457 = vshrl.u32 %v2456, 7
  %v2458 = vsub.s32 2, %v2457
  %v2459 = vrot.slane %v48, %v2458
  %2461 = vrot.lane.b32.xlu0 %v2459, 64
  %v2462 = vpop.permute.xlu0 %2461
  %v2464 = vmul.f32 %v2454, %v2462
  %2466 = vrot.lane.b32.xlu0 %v2464, 64
  %v2467 = vpop.permute.xlu0 %2466
  %v2469 = vsel %vm204, %v2467, 0.0
  %2470 = vadd.xlane.f32.xlu0 %v2469
  %v2471 = vpop.xlane.xlu0 %2470
  %2472 = vrot.lane.b32.xlu0 %v2464, 32
  %v2473 = vpop.permute.xlu0 %2472
  %v2475 = vsel %vm204, %v2473, 0.0
  %2476 = vadd.xlane.f32.xlu0 %v2475
  %v2477 = vpop.xlane.xlu0 %2476
  %v2478 = vmax.f32 %v2352, %v2471
  %v2479 = vsub.f32 %v2352, %v2478
  %v2480 = vmul.f32 %v2479, 1.442695
  %v2481 = vpow.pop %v2480
  %v2482 = vsub.f32 %v2471, %v2478
  %v2483 = vmul.f32 %v2482, 1.442695
  %v2484 = vpow.pop %v2483
  %v2485 = vmul.f32 %v2481, %v2360
  %v2486 = vadd.f32 %v2485, %v2484
  %v2487 = vmul.f32 %v2481, %v2363
  %v2488 = vmul.f32 %v2484, %v2454
  %v2489 = vadd.f32 %v2487, %v2488
  %v2490 = vmax.f32 %v2364, %v2477
  %v2491 = vsub.f32 %v2364, %v2490
  %v2492 = vmul.f32 %v2491, 1.442695
  %v2493 = vpow.pop %v2492
  %v2494 = vsub.f32 %v2477, %v2490
  %v2495 = vmul.f32 %v2494, 1.442695
  %v2496 = vpow.pop %v2495
  %v2497 = vmul.f32 %v2493, %v2372
  %v2498 = vadd.f32 %v2497, %v2496
  %v2499 = vmul.f32 %v2493, %v2375
  %v2500 = vmul.f32 %v2496, %v2454
  %v2501 = vadd.f32 %v2499, %v2500
  %2502 = vset.pattern.permute.xlu0 19
  %2503 = vperm.xlu0 %2502, %v35
  %v2504 = vpop.permute.xlu0 %2503
  %v2506 = vmul.f32 %v2504, %v59
  %v2507 = vmul.f32 %v2504, %v63
  %v2508 = vadd.f32 %v2506, %v72
  %v2509 = vadd.f32 %v2507, %v76
  %2511 = vrot.lane.b32.xlu0 %v2455, 64
  %v2512 = vpop.permute.xlu0 %2511
  %v2514 = vsel %vm121, %v2512, 0
  %2516 = vmatprep.subr.bf16.mxu0 0
  %2517 = vmatpush1.bf16.msra.mxu0 0
  %2518 = vmatprep.subr.bf16.mxu0 0
  %2519 = vmatpush1.bf16.msra.mxu0 0
  %2520 = vmatprep.subr.bf16.mxu0 0
  %2521 = vmatpush1.bf16.msra.mxu0 0
  %2522 = vmatprep.subr.bf16.mxu0 0
  %2523 = vmatpush1.bf16.msra.mxu0 0
  %2524 = vmatprep.subr.bf16.mxu0 %v112
  %2525 = vmatpush1.bf16.msra.mxu0 %v111
  %2526 = vmatprep.subr.bf16.mxu0 %v110
  %2527 = vmatpush1.bf16.msra.mxu0 %v109
  %2528 = vmatprep.subr.bf16.mxu0 %v108
  %2529 = vmatpush1.bf16.msra.mxu0 %v107
  %2530 = vmatprep.subr.bf16.mxu0 %v106
  %2531 = vmatpush1.bf16.msra.mxu0 %v105
  %2532 = vmatprep.subr.bf16.mxu0 0
  %2533 = vmatpush2.bf16.msra.mxu0 0
  %2534 = vmatprep.subr.bf16.mxu0 0
  %2535 = vmatpush2.bf16.msra.mxu0 0
  %2536 = vmatprep.subr.bf16.mxu0 0
  %2537 = vmatpush2.bf16.msra.mxu0 0
  %2538 = vmatprep.subr.bf16.mxu0 0
  %2539 = vmatpush2.bf16.msra.mxu0 0
  %2540 = vmatprep.subr.bf16.mxu0 0
  %2541 = vmatpush2.bf16.msra.mxu0 0
  %2542 = vmatprep.subr.bf16.mxu0 0
  %2543 = vmatpush2.bf16.msra.mxu0 0
  %2544 = vmatprep.subr.bf16.mxu0 0
  %2545 = vmatpush2.bf16.msra.mxu0 0
  %2546 = vmatprep.subr.bf16.mxu0 0
  %2547 = vmatpush2.bf16.msra.mxu0 0
  %2548 = vmatprep.mubr.bf16.mxu0 0
  %2549 = vmatmul.mubr.bf16.gmra.mxu0 %v2514
  %v2550 = vpop.f32.mrf.mxu0
  %v2551 = vadd.f32 0.0, %v2550
  %v2552 = vpop.f32.mrf.mxu0
  %v2553 = vadd.f32 0.0, %v2552
  %v2554 = vpop.f32.mrf.mxu0
  %v2555 = vpop.f32.mrf.mxu0
  %2556 = vdwg.mxu0
  %v2557 = vadd.f32 %v2508, %v2551
  %v2558 = vadd.f32 %v2509, %v2553
  %v2559 = vxor.u32 %v2557, 2147483648
  %v2560 = vmul.f32 %v2559, 1.442695
  %v2561 = vpow.pop %v2560
  %v2562 = vadd.f32 %v2561, 1.0
  %v2563 = vrcp.pop %v2562
  %v2564 = vmul.f32 1.0, %v2563
  %v2565 = vtanh.pop %v2558
  %v2566 = vxor.u32 %v2558, 2147483648
  %v2567 = vmul.f32 %v2566, 1.442695
  %v2568 = vpow.pop %v2567
  %v2569 = vadd.f32 %v2568, 1.0
  %v2570 = vrcp.pop %v2569
  %v2571 = vmul.f32 1.0, %v2570
  %v2572 = vmul.f32 %v2564, %v2452
  %v2573 = vmul.f32 %v2564, %v2565
  %2575 = vrot.lane.b32.xlu0 %v2573, 64
  %v2576 = vpop.permute.xlu0 %2575
  %v2578 = vadd.f32 %v2572, %v2576
  %v2579 = vtanh.pop %v2578
  %v2580 = vmul.f32 %v2571, %v2579
  %v2581 = vpack.c.bf16 %v2580, %v2580
  %v2582 = vlaneseq
  %v2583 = vshrl.u32 %v2582, 7
  %v2584 = vsub.s32 3, %v2583
  %v2585 = vrot.slane %v48, %v2584
  %2587 = vrot.lane.b32.xlu0 %v2585, 64
  %v2588 = vpop.permute.xlu0 %2587
  %v2590 = vmul.f32 %v2580, %v2588
  %2592 = vrot.lane.b32.xlu0 %v2590, 64
  %v2593 = vpop.permute.xlu0 %2592
  %v2595 = vsel %vm204, %v2593, 0.0
  %2596 = vadd.xlane.f32.xlu0 %v2595
  %v2597 = vpop.xlane.xlu0 %2596
  %2598 = vrot.lane.b32.xlu0 %v2590, 32
  %v2599 = vpop.permute.xlu0 %2598
  %v2601 = vsel %vm204, %v2599, 0.0
  %2602 = vadd.xlane.f32.xlu0 %v2601
  %v2603 = vpop.xlane.xlu0 %2602
  %v2604 = vmax.f32 %v2478, %v2597
  %v2605 = vsub.f32 %v2478, %v2604
  %v2606 = vmul.f32 %v2605, 1.442695
  %v2607 = vpow.pop %v2606
  %v2608 = vsub.f32 %v2597, %v2604
  %v2609 = vmul.f32 %v2608, 1.442695
  %v2610 = vpow.pop %v2609
  %v2611 = vmul.f32 %v2607, %v2486
  %v2612 = vadd.f32 %v2611, %v2610
  %v2613 = vmul.f32 %v2607, %v2489
  %v2614 = vmul.f32 %v2610, %v2580
  %v2615 = vadd.f32 %v2613, %v2614
  %v2616 = vmax.f32 %v2490, %v2603
  %v2617 = vsub.f32 %v2490, %v2616
  %v2618 = vmul.f32 %v2617, 1.442695
  %v2619 = vpow.pop %v2618
  %v2620 = vsub.f32 %v2603, %v2616
  %v2621 = vmul.f32 %v2620, 1.442695
  %v2622 = vpow.pop %v2621
  %v2623 = vmul.f32 %v2619, %v2498
  %v2624 = vadd.f32 %v2623, %v2622
  %v2625 = vmul.f32 %v2619, %v2501
  %v2626 = vmul.f32 %v2622, %v2580
  %v2627 = vadd.f32 %v2625, %v2626
  %2628 = vset.pattern.permute.xlu0 20
  %2629 = vperm.xlu0 %2628, %v35
  %v2630 = vpop.permute.xlu0 %2629
  %v2632 = vmul.f32 %v2630, %v59
  %v2633 = vmul.f32 %v2630, %v63
  %v2634 = vadd.f32 %v2632, %v72
  %v2635 = vadd.f32 %v2633, %v76
  %2637 = vrot.lane.b32.xlu0 %v2581, 64
  %v2638 = vpop.permute.xlu0 %2637
  %v2640 = vsel %vm121, %v2638, 0
  %2642 = vmatprep.subr.bf16.mxu0 0
  %2643 = vmatpush1.bf16.msra.mxu0 0
  %2644 = vmatprep.subr.bf16.mxu0 0
  %2645 = vmatpush1.bf16.msra.mxu0 0
  %2646 = vmatprep.subr.bf16.mxu0 0
  %2647 = vmatpush1.bf16.msra.mxu0 0
  %2648 = vmatprep.subr.bf16.mxu0 0
  %2649 = vmatpush1.bf16.msra.mxu0 0
  %2650 = vmatprep.subr.bf16.mxu0 %v112
  %2651 = vmatpush1.bf16.msra.mxu0 %v111
  %2652 = vmatprep.subr.bf16.mxu0 %v110
  %2653 = vmatpush1.bf16.msra.mxu0 %v109
  %2654 = vmatprep.subr.bf16.mxu0 %v108
  %2655 = vmatpush1.bf16.msra.mxu0 %v107
  %2656 = vmatprep.subr.bf16.mxu0 %v106
  %2657 = vmatpush1.bf16.msra.mxu0 %v105
  %2658 = vmatprep.subr.bf16.mxu0 0
  %2659 = vmatpush2.bf16.msra.mxu0 0
  %2660 = vmatprep.subr.bf16.mxu0 0
  %2661 = vmatpush2.bf16.msra.mxu0 0
  %2662 = vmatprep.subr.bf16.mxu0 0
  %2663 = vmatpush2.bf16.msra.mxu0 0
  %2664 = vmatprep.subr.bf16.mxu0 0
  %2665 = vmatpush2.bf16.msra.mxu0 0
  %2666 = vmatprep.subr.bf16.mxu0 0
  %2667 = vmatpush2.bf16.msra.mxu0 0
  %2668 = vmatprep.subr.bf16.mxu0 0
  %2669 = vmatpush2.bf16.msra.mxu0 0
  %2670 = vmatprep.subr.bf16.mxu0 0
  %2671 = vmatpush2.bf16.msra.mxu0 0
  %2672 = vmatprep.subr.bf16.mxu0 0
  %2673 = vmatpush2.bf16.msra.mxu0 0
  %2674 = vmatprep.mubr.bf16.mxu0 0
  %2675 = vmatmul.mubr.bf16.gmra.mxu0 %v2640
  %v2676 = vpop.f32.mrf.mxu0
  %v2677 = vadd.f32 0.0, %v2676
  %v2678 = vpop.f32.mrf.mxu0
  %v2679 = vadd.f32 0.0, %v2678
  %v2680 = vpop.f32.mrf.mxu0
  %v2681 = vpop.f32.mrf.mxu0
  %2682 = vdwg.mxu0
  %v2683 = vadd.f32 %v2634, %v2677
  %v2684 = vadd.f32 %v2635, %v2679
  %v2685 = vxor.u32 %v2683, 2147483648
  %v2686 = vmul.f32 %v2685, 1.442695
  %v2687 = vpow.pop %v2686
  %v2688 = vadd.f32 %v2687, 1.0
  %v2689 = vrcp.pop %v2688
  %v2690 = vmul.f32 1.0, %v2689
  %v2691 = vtanh.pop %v2684
  %v2692 = vxor.u32 %v2684, 2147483648
  %v2693 = vmul.f32 %v2692, 1.442695
  %v2694 = vpow.pop %v2693
  %v2695 = vadd.f32 %v2694, 1.0
  %v2696 = vrcp.pop %v2695
  %v2697 = vmul.f32 1.0, %v2696
  %v2698 = vmul.f32 %v2690, %v2578
  %v2699 = vmul.f32 %v2690, %v2691
  %2701 = vrot.lane.b32.xlu0 %v2699, 64
  %v2702 = vpop.permute.xlu0 %2701
  %v2704 = vadd.f32 %v2698, %v2702
  %v2705 = vtanh.pop %v2704
  %v2706 = vmul.f32 %v2697, %v2705
  %v2707 = vpack.c.bf16 %v2706, %v2706
  %v2708 = vlaneseq
  %v2709 = vshrl.u32 %v2708, 7
  %v2710 = vsub.s32 4, %v2709
  %v2711 = vrot.slane %v48, %v2710
  %2713 = vrot.lane.b32.xlu0 %v2711, 64
  %v2714 = vpop.permute.xlu0 %2713
  %v2716 = vmul.f32 %v2706, %v2714
  %2718 = vrot.lane.b32.xlu0 %v2716, 64
  %v2719 = vpop.permute.xlu0 %2718
  %v2721 = vsel %vm204, %v2719, 0.0
  %2722 = vadd.xlane.f32.xlu0 %v2721
  %v2723 = vpop.xlane.xlu0 %2722
  %2724 = vrot.lane.b32.xlu0 %v2716, 32
  %v2725 = vpop.permute.xlu0 %2724
  %v2727 = vsel %vm204, %v2725, 0.0
  %2728 = vadd.xlane.f32.xlu0 %v2727
  %v2729 = vpop.xlane.xlu0 %2728
  %v2730 = vmax.f32 %v2604, %v2723
  %v2731 = vsub.f32 %v2604, %v2730
  %v2732 = vmul.f32 %v2731, 1.442695
  %v2733 = vpow.pop %v2732
  %v2734 = vsub.f32 %v2723, %v2730
  %v2735 = vmul.f32 %v2734, 1.442695
  %v2736 = vpow.pop %v2735
  %v2737 = vmul.f32 %v2733, %v2612
  %v2738 = vadd.f32 %v2737, %v2736
  %v2739 = vmul.f32 %v2733, %v2615
  %v2740 = vmul.f32 %v2736, %v2706
  %v2741 = vadd.f32 %v2739, %v2740
  %v2742 = vmax.f32 %v2616, %v2729
  %v2743 = vsub.f32 %v2616, %v2742
  %v2744 = vmul.f32 %v2743, 1.442695
  %v2745 = vpow.pop %v2744
  %v2746 = vsub.f32 %v2729, %v2742
  %v2747 = vmul.f32 %v2746, 1.442695
  %v2748 = vpow.pop %v2747
  %v2749 = vmul.f32 %v2745, %v2624
  %v2750 = vadd.f32 %v2749, %v2748
  %v2751 = vmul.f32 %v2745, %v2627
  %v2752 = vmul.f32 %v2748, %v2706
  %v2753 = vadd.f32 %v2751, %v2752
  %2754 = vset.pattern.permute.xlu0 21
  %2755 = vperm.xlu0 %2754, %v35
  %v2756 = vpop.permute.xlu0 %2755
  %v2758 = vmul.f32 %v2756, %v59
  %v2759 = vmul.f32 %v2756, %v63
  %v2760 = vadd.f32 %v2758, %v72
  %v2761 = vadd.f32 %v2759, %v76
  %2763 = vrot.lane.b32.xlu0 %v2707, 64
  %v2764 = vpop.permute.xlu0 %2763
  %v2766 = vsel %vm121, %v2764, 0
  %2768 = vmatprep.subr.bf16.mxu0 0
  %2769 = vmatpush1.bf16.msra.mxu0 0
  %2770 = vmatprep.subr.bf16.mxu0 0
  %2771 = vmatpush1.bf16.msra.mxu0 0
  %2772 = vmatprep.subr.bf16.mxu0 0
  %2773 = vmatpush1.bf16.msra.mxu0 0
  %2774 = vmatprep.subr.bf16.mxu0 0
  %2775 = vmatpush1.bf16.msra.mxu0 0
  %2776 = vmatprep.subr.bf16.mxu0 %v112
  %2777 = vmatpush1.bf16.msra.mxu0 %v111
  %2778 = vmatprep.subr.bf16.mxu0 %v110
  %2779 = vmatpush1.bf16.msra.mxu0 %v109
  %2780 = vmatprep.subr.bf16.mxu0 %v108
  %2781 = vmatpush1.bf16.msra.mxu0 %v107
  %2782 = vmatprep.subr.bf16.mxu0 %v106
  %2783 = vmatpush1.bf16.msra.mxu0 %v105
  %2784 = vmatprep.subr.bf16.mxu0 0
  %2785 = vmatpush2.bf16.msra.mxu0 0
  %2786 = vmatprep.subr.bf16.mxu0 0
  %2787 = vmatpush2.bf16.msra.mxu0 0
  %2788 = vmatprep.subr.bf16.mxu0 0
  %2789 = vmatpush2.bf16.msra.mxu0 0
  %2790 = vmatprep.subr.bf16.mxu0 0
  %2791 = vmatpush2.bf16.msra.mxu0 0
  %2792 = vmatprep.subr.bf16.mxu0 0
  %2793 = vmatpush2.bf16.msra.mxu0 0
  %2794 = vmatprep.subr.bf16.mxu0 0
  %2795 = vmatpush2.bf16.msra.mxu0 0
  %2796 = vmatprep.subr.bf16.mxu0 0
  %2797 = vmatpush2.bf16.msra.mxu0 0
  %2798 = vmatprep.subr.bf16.mxu0 0
  %2799 = vmatpush2.bf16.msra.mxu0 0
  %2800 = vmatprep.mubr.bf16.mxu0 0
  %2801 = vmatmul.mubr.bf16.gmra.mxu0 %v2766
  %v2802 = vpop.f32.mrf.mxu0
  %v2803 = vadd.f32 0.0, %v2802
  %v2804 = vpop.f32.mrf.mxu0
  %v2805 = vadd.f32 0.0, %v2804
  %v2806 = vpop.f32.mrf.mxu0
  %v2807 = vpop.f32.mrf.mxu0
  %2808 = vdwg.mxu0
  %v2809 = vadd.f32 %v2760, %v2803
  %v2810 = vadd.f32 %v2761, %v2805
  %v2811 = vxor.u32 %v2809, 2147483648
  %v2812 = vmul.f32 %v2811, 1.442695
  %v2813 = vpow.pop %v2812
  %v2814 = vadd.f32 %v2813, 1.0
  %v2815 = vrcp.pop %v2814
  %v2816 = vmul.f32 1.0, %v2815
  %v2817 = vtanh.pop %v2810
  %v2818 = vxor.u32 %v2810, 2147483648
  %v2819 = vmul.f32 %v2818, 1.442695
  %v2820 = vpow.pop %v2819
  %v2821 = vadd.f32 %v2820, 1.0
  %v2822 = vrcp.pop %v2821
  %v2823 = vmul.f32 1.0, %v2822
  %v2824 = vmul.f32 %v2816, %v2704
  %v2825 = vmul.f32 %v2816, %v2817
  %2827 = vrot.lane.b32.xlu0 %v2825, 64
  %v2828 = vpop.permute.xlu0 %2827
  %v2830 = vadd.f32 %v2824, %v2828
  %v2831 = vtanh.pop %v2830
  %v2832 = vmul.f32 %v2823, %v2831
  %v2833 = vpack.c.bf16 %v2832, %v2832
  %v2834 = vlaneseq
  %v2835 = vshrl.u32 %v2834, 7
  %v2836 = vsub.s32 5, %v2835
  %v2837 = vrot.slane %v48, %v2836
  %2839 = vrot.lane.b32.xlu0 %v2837, 64
  %v2840 = vpop.permute.xlu0 %2839
  %v2842 = vmul.f32 %v2832, %v2840
  %2844 = vrot.lane.b32.xlu0 %v2842, 64
  %v2845 = vpop.permute.xlu0 %2844
  %v2847 = vsel %vm204, %v2845, 0.0
  %2848 = vadd.xlane.f32.xlu0 %v2847
  %v2849 = vpop.xlane.xlu0 %2848
  %2850 = vrot.lane.b32.xlu0 %v2842, 32
  %v2851 = vpop.permute.xlu0 %2850
  %v2853 = vsel %vm204, %v2851, 0.0
  %2854 = vadd.xlane.f32.xlu0 %v2853
  %v2855 = vpop.xlane.xlu0 %2854
  %v2856 = vmax.f32 %v2730, %v2849
  %v2857 = vsub.f32 %v2730, %v2856
  %v2858 = vmul.f32 %v2857, 1.442695
  %v2859 = vpow.pop %v2858
  %v2860 = vsub.f32 %v2849, %v2856
  %v2861 = vmul.f32 %v2860, 1.442695
  %v2862 = vpow.pop %v2861
  %v2863 = vmul.f32 %v2859, %v2738
  %v2864 = vadd.f32 %v2863, %v2862
  %v2865 = vmul.f32 %v2859, %v2741
  %v2866 = vmul.f32 %v2862, %v2832
  %v2867 = vadd.f32 %v2865, %v2866
  %v2868 = vmax.f32 %v2742, %v2855
  %v2869 = vsub.f32 %v2742, %v2868
  %v2870 = vmul.f32 %v2869, 1.442695
  %v2871 = vpow.pop %v2870
  %v2872 = vsub.f32 %v2855, %v2868
  %v2873 = vmul.f32 %v2872, 1.442695
  %v2874 = vpow.pop %v2873
  %v2875 = vmul.f32 %v2871, %v2750
  %v2876 = vadd.f32 %v2875, %v2874
  %v2877 = vmul.f32 %v2871, %v2753
  %v2878 = vmul.f32 %v2874, %v2832
  %v2879 = vadd.f32 %v2877, %v2878
  %2880 = vset.pattern.permute.xlu0 22
  %2881 = vperm.xlu0 %2880, %v35
  %v2882 = vpop.permute.xlu0 %2881
  %v2884 = vmul.f32 %v2882, %v59
  %v2885 = vmul.f32 %v2882, %v63
  %v2886 = vadd.f32 %v2884, %v72
  %v2887 = vadd.f32 %v2885, %v76
  %2889 = vrot.lane.b32.xlu0 %v2833, 64
  %v2890 = vpop.permute.xlu0 %2889
  %v2892 = vsel %vm121, %v2890, 0
  %2894 = vmatprep.subr.bf16.mxu0 0
  %2895 = vmatpush1.bf16.msra.mxu0 0
  %2896 = vmatprep.subr.bf16.mxu0 0
  %2897 = vmatpush1.bf16.msra.mxu0 0
  %2898 = vmatprep.subr.bf16.mxu0 0
  %2899 = vmatpush1.bf16.msra.mxu0 0
  %2900 = vmatprep.subr.bf16.mxu0 0
  %2901 = vmatpush1.bf16.msra.mxu0 0
  %2902 = vmatprep.subr.bf16.mxu0 %v112
  %2903 = vmatpush1.bf16.msra.mxu0 %v111
  %2904 = vmatprep.subr.bf16.mxu0 %v110
  %2905 = vmatpush1.bf16.msra.mxu0 %v109
  %2906 = vmatprep.subr.bf16.mxu0 %v108
  %2907 = vmatpush1.bf16.msra.mxu0 %v107
  %2908 = vmatprep.subr.bf16.mxu0 %v106
  %2909 = vmatpush1.bf16.msra.mxu0 %v105
  %2910 = vmatprep.subr.bf16.mxu0 0
  %2911 = vmatpush2.bf16.msra.mxu0 0
  %2912 = vmatprep.subr.bf16.mxu0 0
  %2913 = vmatpush2.bf16.msra.mxu0 0
  %2914 = vmatprep.subr.bf16.mxu0 0
  %2915 = vmatpush2.bf16.msra.mxu0 0
  %2916 = vmatprep.subr.bf16.mxu0 0
  %2917 = vmatpush2.bf16.msra.mxu0 0
  %2918 = vmatprep.subr.bf16.mxu0 0
  %2919 = vmatpush2.bf16.msra.mxu0 0
  %2920 = vmatprep.subr.bf16.mxu0 0
  %2921 = vmatpush2.bf16.msra.mxu0 0
  %2922 = vmatprep.subr.bf16.mxu0 0
  %2923 = vmatpush2.bf16.msra.mxu0 0
  %2924 = vmatprep.subr.bf16.mxu0 0
  %2925 = vmatpush2.bf16.msra.mxu0 0
  %2926 = vmatprep.mubr.bf16.mxu0 0
  %2927 = vmatmul.mubr.bf16.gmra.mxu0 %v2892
  %v2928 = vpop.f32.mrf.mxu0
  %v2929 = vadd.f32 0.0, %v2928
  %v2930 = vpop.f32.mrf.mxu0
  %v2931 = vadd.f32 0.0, %v2930
  %v2932 = vpop.f32.mrf.mxu0
  %v2933 = vpop.f32.mrf.mxu0
  %2934 = vdwg.mxu0
  %v2935 = vadd.f32 %v2886, %v2929
  %v2936 = vadd.f32 %v2887, %v2931
  %v2937 = vxor.u32 %v2935, 2147483648
  %v2938 = vmul.f32 %v2937, 1.442695
  %v2939 = vpow.pop %v2938
  %v2940 = vadd.f32 %v2939, 1.0
  %v2941 = vrcp.pop %v2940
  %v2942 = vmul.f32 1.0, %v2941
  %v2943 = vtanh.pop %v2936
  %v2944 = vxor.u32 %v2936, 2147483648
  %v2945 = vmul.f32 %v2944, 1.442695
  %v2946 = vpow.pop %v2945
  %v2947 = vadd.f32 %v2946, 1.0
  %v2948 = vrcp.pop %v2947
  %v2949 = vmul.f32 1.0, %v2948
  %v2950 = vmul.f32 %v2942, %v2830
  %v2951 = vmul.f32 %v2942, %v2943
  %2953 = vrot.lane.b32.xlu0 %v2951, 64
  %v2954 = vpop.permute.xlu0 %2953
  %v2956 = vadd.f32 %v2950, %v2954
  %v2957 = vtanh.pop %v2956
  %v2958 = vmul.f32 %v2949, %v2957
  %v2959 = vpack.c.bf16 %v2958, %v2958
  %v2960 = vlaneseq
  %v2961 = vshrl.u32 %v2960, 7
  %v2962 = vsub.s32 6, %v2961
  %v2963 = vrot.slane %v48, %v2962
  %2965 = vrot.lane.b32.xlu0 %v2963, 64
  %v2966 = vpop.permute.xlu0 %2965
  %v2968 = vmul.f32 %v2958, %v2966
  %2970 = vrot.lane.b32.xlu0 %v2968, 64
  %v2971 = vpop.permute.xlu0 %2970
  %v2973 = vsel %vm204, %v2971, 0.0
  %2974 = vadd.xlane.f32.xlu0 %v2973
  %v2975 = vpop.xlane.xlu0 %2974
  %2976 = vrot.lane.b32.xlu0 %v2968, 32
  %v2977 = vpop.permute.xlu0 %2976
  %v2979 = vsel %vm204, %v2977, 0.0
  %2980 = vadd.xlane.f32.xlu0 %v2979
  %v2981 = vpop.xlane.xlu0 %2980
  %v2982 = vmax.f32 %v2856, %v2975
  %v2983 = vsub.f32 %v2856, %v2982
  %v2984 = vmul.f32 %v2983, 1.442695
  %v2985 = vpow.pop %v2984
  %v2986 = vsub.f32 %v2975, %v2982
  %v2987 = vmul.f32 %v2986, 1.442695
  %v2988 = vpow.pop %v2987
  %v2989 = vmul.f32 %v2985, %v2864
  %v2990 = vadd.f32 %v2989, %v2988
  %v2991 = vmul.f32 %v2985, %v2867
  %v2992 = vmul.f32 %v2988, %v2958
  %v2993 = vadd.f32 %v2991, %v2992
  %v2994 = vmax.f32 %v2868, %v2981
  %v2995 = vsub.f32 %v2868, %v2994
  %v2996 = vmul.f32 %v2995, 1.442695
  %v2997 = vpow.pop %v2996
  %v2998 = vsub.f32 %v2981, %v2994
  %v2999 = vmul.f32 %v2998, 1.442695
  %v3000 = vpow.pop %v2999
  %v3001 = vmul.f32 %v2997, %v2876
  %v3002 = vadd.f32 %v3001, %v3000
  %v3003 = vmul.f32 %v2997, %v2879
  %v3004 = vmul.f32 %v3000, %v2958
  %v3005 = vadd.f32 %v3003, %v3004
  %3006 = vset.pattern.permute.xlu0 23
  %3007 = vperm.xlu0 %3006, %v35
  %v3008 = vpop.permute.xlu0 %3007
  %v3010 = vmul.f32 %v3008, %v59
  %v3011 = vmul.f32 %v3008, %v63
  %v3012 = vadd.f32 %v3010, %v72
  %v3013 = vadd.f32 %v3011, %v76
  %3015 = vrot.lane.b32.xlu0 %v2959, 64
  %v3016 = vpop.permute.xlu0 %3015
  %v3018 = vsel %vm121, %v3016, 0
  %3020 = vmatprep.subr.bf16.mxu0 0
  %3021 = vmatpush1.bf16.msra.mxu0 0
  %3022 = vmatprep.subr.bf16.mxu0 0
  %3023 = vmatpush1.bf16.msra.mxu0 0
  %3024 = vmatprep.subr.bf16.mxu0 0
  %3025 = vmatpush1.bf16.msra.mxu0 0
  %3026 = vmatprep.subr.bf16.mxu0 0
  %3027 = vmatpush1.bf16.msra.mxu0 0
  %3028 = vmatprep.subr.bf16.mxu0 %v112
  %3029 = vmatpush1.bf16.msra.mxu0 %v111
  %3030 = vmatprep.subr.bf16.mxu0 %v110
  %3031 = vmatpush1.bf16.msra.mxu0 %v109
  %3032 = vmatprep.subr.bf16.mxu0 %v108
  %3033 = vmatpush1.bf16.msra.mxu0 %v107
  %3034 = vmatprep.subr.bf16.mxu0 %v106
  %3035 = vmatpush1.bf16.msra.mxu0 %v105
  %3036 = vmatprep.subr.bf16.mxu0 0
  %3037 = vmatpush2.bf16.msra.mxu0 0
  %3038 = vmatprep.subr.bf16.mxu0 0
  %3039 = vmatpush2.bf16.msra.mxu0 0
  %3040 = vmatprep.subr.bf16.mxu0 0
  %3041 = vmatpush2.bf16.msra.mxu0 0
  %3042 = vmatprep.subr.bf16.mxu0 0
  %3043 = vmatpush2.bf16.msra.mxu0 0
  %3044 = vmatprep.subr.bf16.mxu0 0
  %3045 = vmatpush2.bf16.msra.mxu0 0
  %3046 = vmatprep.subr.bf16.mxu0 0
  %3047 = vmatpush2.bf16.msra.mxu0 0
  %3048 = vmatprep.subr.bf16.mxu0 0
  %3049 = vmatpush2.bf16.msra.mxu0 0
  %3050 = vmatprep.subr.bf16.mxu0 0
  %3051 = vmatpush2.bf16.msra.mxu0 0
  %3052 = vmatprep.mubr.bf16.mxu0 0
  %3053 = vmatmul.mubr.bf16.gmra.mxu0 %v3018
  %v3054 = vpop.f32.mrf.mxu0
  %v3055 = vadd.f32 0.0, %v3054
  %v3056 = vpop.f32.mrf.mxu0
  %v3057 = vadd.f32 0.0, %v3056
  %v3058 = vpop.f32.mrf.mxu0
  %v3059 = vpop.f32.mrf.mxu0
  %3060 = vdwg.mxu0
  %v3061 = vadd.f32 %v3012, %v3055
  %v3062 = vadd.f32 %v3013, %v3057
  %v3063 = vxor.u32 %v3061, 2147483648
  %v3064 = vmul.f32 %v3063, 1.442695
  %v3065 = vpow.pop %v3064
  %v3066 = vadd.f32 %v3065, 1.0
  %v3067 = vrcp.pop %v3066
  %v3068 = vmul.f32 1.0, %v3067
  %v3069 = vtanh.pop %v3062
  %v3070 = vxor.u32 %v3062, 2147483648
  %v3071 = vmul.f32 %v3070, 1.442695
  %v3072 = vpow.pop %v3071
  %v3073 = vadd.f32 %v3072, 1.0
  %v3074 = vrcp.pop %v3073
  %v3075 = vmul.f32 1.0, %v3074
  %v3076 = vmul.f32 %v3068, %v2956
  %v3077 = vmul.f32 %v3068, %v3069
  %3079 = vrot.lane.b32.xlu0 %v3077, 64
  %v3080 = vpop.permute.xlu0 %3079
  %v3082 = vadd.f32 %v3076, %v3080
  %v3083 = vtanh.pop %v3082
  %v3084 = vmul.f32 %v3075, %v3083
  %v3085 = vpack.c.bf16 %v3084, %v3084
  %v3086 = vlaneseq
  %v3087 = vshrl.u32 %v3086, 7
  %v3088 = vsub.s32 7, %v3087
  %v3089 = vrot.slane %v48, %v3088
  %3091 = vrot.lane.b32.xlu0 %v3089, 64
  %v3092 = vpop.permute.xlu0 %3091
  %v3094 = vmul.f32 %v3084, %v3092
  %3096 = vrot.lane.b32.xlu0 %v3094, 64
  %v3097 = vpop.permute.xlu0 %3096
  %v3099 = vsel %vm204, %v3097, 0.0
  %3100 = vadd.xlane.f32.xlu0 %v3099
  %v3101 = vpop.xlane.xlu0 %3100
  %3102 = vrot.lane.b32.xlu0 %v3094, 32
  %v3103 = vpop.permute.xlu0 %3102
  %v3105 = vsel %vm204, %v3103, 0.0
  %3106 = vadd.xlane.f32.xlu0 %v3105
  %v3107 = vpop.xlane.xlu0 %3106
  %v3108 = vmax.f32 %v2982, %v3101
  %v3109 = vsub.f32 %v2982, %v3108
  %v3110 = vmul.f32 %v3109, 1.442695
  %v3111 = vpow.pop %v3110
  %v3112 = vsub.f32 %v3101, %v3108
  %v3113 = vmul.f32 %v3112, 1.442695
  %v3114 = vpow.pop %v3113
  %v3115 = vmul.f32 %v3111, %v2990
  %v3116 = vadd.f32 %v3115, %v3114
  %v3117 = vmul.f32 %v3111, %v2993
  %v3118 = vmul.f32 %v3114, %v3084
  %v3119 = vadd.f32 %v3117, %v3118
  %v3120 = vmax.f32 %v2994, %v3107
  %v3121 = vsub.f32 %v2994, %v3120
  %v3122 = vmul.f32 %v3121, 1.442695
  %v3123 = vpow.pop %v3122
  %v3124 = vsub.f32 %v3107, %v3120
  %v3125 = vmul.f32 %v3124, 1.442695
  %v3126 = vpow.pop %v3125
  %v3127 = vmul.f32 %v3123, %v3002
  %v3128 = vadd.f32 %v3127, %v3126
  %v3129 = vmul.f32 %v3123, %v3005
  %v3130 = vmul.f32 %v3126, %v3084
  %v3131 = vadd.f32 %v3129, %v3130
  %3132 = vset.pattern.permute.xlu0 24
  %3133 = vperm.xlu0 %3132, %v35
  %v3134 = vpop.permute.xlu0 %3133
  %v3136 = vmul.f32 %v3134, %v59
  %v3137 = vmul.f32 %v3134, %v63
  %v3138 = vadd.f32 %v3136, %v72
  %v3139 = vadd.f32 %v3137, %v76
  %3141 = vrot.lane.b32.xlu0 %v3085, 64
  %v3142 = vpop.permute.xlu0 %3141
  %v3144 = vsel %vm121, %v3142, 0
  %3146 = vmatprep.subr.bf16.mxu0 0
  %3147 = vmatpush1.bf16.msra.mxu0 0
  %3148 = vmatprep.subr.bf16.mxu0 0
  %3149 = vmatpush1.bf16.msra.mxu0 0
  %3150 = vmatprep.subr.bf16.mxu0 0
  %3151 = vmatpush1.bf16.msra.mxu0 0
  %3152 = vmatprep.subr.bf16.mxu0 0
  %3153 = vmatpush1.bf16.msra.mxu0 0
  %3154 = vmatprep.subr.bf16.mxu0 %v112
  %3155 = vmatpush1.bf16.msra.mxu0 %v111
  %3156 = vmatprep.subr.bf16.mxu0 %v110
  %3157 = vmatpush1.bf16.msra.mxu0 %v109
  %3158 = vmatprep.subr.bf16.mxu0 %v108
  %3159 = vmatpush1.bf16.msra.mxu0 %v107
  %3160 = vmatprep.subr.bf16.mxu0 %v106
  %3161 = vmatpush1.bf16.msra.mxu0 %v105
  %3162 = vmatprep.subr.bf16.mxu0 0
  %3163 = vmatpush2.bf16.msra.mxu0 0
  %3164 = vmatprep.subr.bf16.mxu0 0
  %3165 = vmatpush2.bf16.msra.mxu0 0
  %3166 = vmatprep.subr.bf16.mxu0 0
  %3167 = vmatpush2.bf16.msra.mxu0 0
  %3168 = vmatprep.subr.bf16.mxu0 0
  %3169 = vmatpush2.bf16.msra.mxu0 0
  %3170 = vmatprep.subr.bf16.mxu0 0
  %3171 = vmatpush2.bf16.msra.mxu0 0
  %3172 = vmatprep.subr.bf16.mxu0 0
  %3173 = vmatpush2.bf16.msra.mxu0 0
  %3174 = vmatprep.subr.bf16.mxu0 0
  %3175 = vmatpush2.bf16.msra.mxu0 0
  %3176 = vmatprep.subr.bf16.mxu0 0
  %3177 = vmatpush2.bf16.msra.mxu0 0
  %3178 = vmatprep.mubr.bf16.mxu0 0
  %3179 = vmatmul.mubr.bf16.gmra.mxu0 %v3144
  %v3180 = vpop.f32.mrf.mxu0
  %v3181 = vadd.f32 0.0, %v3180
  %v3182 = vpop.f32.mrf.mxu0
  %v3183 = vadd.f32 0.0, %v3182
  %v3184 = vpop.f32.mrf.mxu0
  %v3185 = vpop.f32.mrf.mxu0
  %3186 = vdwg.mxu0
  %v3187 = vadd.f32 %v3138, %v3181
  %v3188 = vadd.f32 %v3139, %v3183
  %v3189 = vxor.u32 %v3187, 2147483648
  %v3190 = vmul.f32 %v3189, 1.442695
  %v3191 = vpow.pop %v3190
  %v3192 = vadd.f32 %v3191, 1.0
  %v3193 = vrcp.pop %v3192
  %v3194 = vmul.f32 1.0, %v3193
  %v3195 = vtanh.pop %v3188
  %v3196 = vxor.u32 %v3188, 2147483648
  %v3197 = vmul.f32 %v3196, 1.442695
  %v3198 = vpow.pop %v3197
  %v3199 = vadd.f32 %v3198, 1.0
  %v3200 = vrcp.pop %v3199
  %v3201 = vmul.f32 1.0, %v3200
  %v3202 = vmul.f32 %v3194, %v3082
  %v3203 = vmul.f32 %v3194, %v3195
  %3205 = vrot.lane.b32.xlu0 %v3203, 64
  %v3206 = vpop.permute.xlu0 %3205
  %v3208 = vadd.f32 %v3202, %v3206
  %v3209 = vtanh.pop %v3208
  %v3210 = vmul.f32 %v3201, %v3209
  %v3211 = vpack.c.bf16 %v3210, %v3210
  %v3212 = vlaneseq
  %v3213 = vshrl.u32 %v3212, 7
  %v3214 = vsub.s32 0, %v3213
  %v3215 = vrot.slane %v49, %v3214
  %3217 = vrot.lane.b32.xlu0 %v3215, 64
  %v3218 = vpop.permute.xlu0 %3217
  %v3220 = vmul.f32 %v3210, %v3218
  %3222 = vrot.lane.b32.xlu0 %v3220, 64
  %v3223 = vpop.permute.xlu0 %3222
  %v3225 = vsel %vm204, %v3223, 0.0
  %3226 = vadd.xlane.f32.xlu0 %v3225
  %v3227 = vpop.xlane.xlu0 %3226
  %3228 = vrot.lane.b32.xlu0 %v3220, 32
  %v3229 = vpop.permute.xlu0 %3228
  %v3231 = vsel %vm204, %v3229, 0.0
  %3232 = vadd.xlane.f32.xlu0 %v3231
  %v3233 = vpop.xlane.xlu0 %3232
  %v3234 = vmax.f32 %v3108, %v3227
  %v3235 = vsub.f32 %v3108, %v3234
  %v3236 = vmul.f32 %v3235, 1.442695
  %v3237 = vpow.pop %v3236
  %v3238 = vsub.f32 %v3227, %v3234
  %v3239 = vmul.f32 %v3238, 1.442695
  %v3240 = vpow.pop %v3239
  %v3241 = vmul.f32 %v3237, %v3116
  %v3242 = vadd.f32 %v3241, %v3240
  %v3243 = vmul.f32 %v3237, %v3119
  %v3244 = vmul.f32 %v3240, %v3210
  %v3245 = vadd.f32 %v3243, %v3244
  %v3246 = vmax.f32 %v3120, %v3233
  %v3247 = vsub.f32 %v3120, %v3246
  %v3248 = vmul.f32 %v3247, 1.442695
  %v3249 = vpow.pop %v3248
  %v3250 = vsub.f32 %v3233, %v3246
  %v3251 = vmul.f32 %v3250, 1.442695
  %v3252 = vpow.pop %v3251
  %v3253 = vmul.f32 %v3249, %v3128
  %v3254 = vadd.f32 %v3253, %v3252
  %v3255 = vmul.f32 %v3249, %v3131
  %v3256 = vmul.f32 %v3252, %v3210
  %v3257 = vadd.f32 %v3255, %v3256
  %3258 = vset.pattern.permute.xlu0 25
  %3259 = vperm.xlu0 %3258, %v35
  %v3260 = vpop.permute.xlu0 %3259
  %v3262 = vmul.f32 %v3260, %v59
  %v3263 = vmul.f32 %v3260, %v63
  %v3264 = vadd.f32 %v3262, %v72
  %v3265 = vadd.f32 %v3263, %v76
  %3267 = vrot.lane.b32.xlu0 %v3211, 64
  %v3268 = vpop.permute.xlu0 %3267
  %v3270 = vsel %vm121, %v3268, 0
  %3272 = vmatprep.subr.bf16.mxu0 0
  %3273 = vmatpush1.bf16.msra.mxu0 0
  %3274 = vmatprep.subr.bf16.mxu0 0
  %3275 = vmatpush1.bf16.msra.mxu0 0
  %3276 = vmatprep.subr.bf16.mxu0 0
  %3277 = vmatpush1.bf16.msra.mxu0 0
  %3278 = vmatprep.subr.bf16.mxu0 0
  %3279 = vmatpush1.bf16.msra.mxu0 0
  %3280 = vmatprep.subr.bf16.mxu0 %v112
  %3281 = vmatpush1.bf16.msra.mxu0 %v111
  %3282 = vmatprep.subr.bf16.mxu0 %v110
  %3283 = vmatpush1.bf16.msra.mxu0 %v109
  %3284 = vmatprep.subr.bf16.mxu0 %v108
  %3285 = vmatpush1.bf16.msra.mxu0 %v107
  %3286 = vmatprep.subr.bf16.mxu0 %v106
  %3287 = vmatpush1.bf16.msra.mxu0 %v105
  %3288 = vmatprep.subr.bf16.mxu0 0
  %3289 = vmatpush2.bf16.msra.mxu0 0
  %3290 = vmatprep.subr.bf16.mxu0 0
  %3291 = vmatpush2.bf16.msra.mxu0 0
  %3292 = vmatprep.subr.bf16.mxu0 0
  %3293 = vmatpush2.bf16.msra.mxu0 0
  %3294 = vmatprep.subr.bf16.mxu0 0
  %3295 = vmatpush2.bf16.msra.mxu0 0
  %3296 = vmatprep.subr.bf16.mxu0 0
  %3297 = vmatpush2.bf16.msra.mxu0 0
  %3298 = vmatprep.subr.bf16.mxu0 0
  %3299 = vmatpush2.bf16.msra.mxu0 0
  %3300 = vmatprep.subr.bf16.mxu0 0
  %3301 = vmatpush2.bf16.msra.mxu0 0
  %3302 = vmatprep.subr.bf16.mxu0 0
  %3303 = vmatpush2.bf16.msra.mxu0 0
  %3304 = vmatprep.mubr.bf16.mxu0 0
  %3305 = vmatmul.mubr.bf16.gmra.mxu0 %v3270
  %v3306 = vpop.f32.mrf.mxu0
  %v3307 = vadd.f32 0.0, %v3306
  %v3308 = vpop.f32.mrf.mxu0
  %v3309 = vadd.f32 0.0, %v3308
  %v3310 = vpop.f32.mrf.mxu0
  %v3311 = vpop.f32.mrf.mxu0
  %3312 = vdwg.mxu0
  %v3313 = vadd.f32 %v3264, %v3307
  %v3314 = vadd.f32 %v3265, %v3309
  %v3315 = vxor.u32 %v3313, 2147483648
  %v3316 = vmul.f32 %v3315, 1.442695
  %v3317 = vpow.pop %v3316
  %v3318 = vadd.f32 %v3317, 1.0
  %v3319 = vrcp.pop %v3318
  %v3320 = vmul.f32 1.0, %v3319
  %v3321 = vtanh.pop %v3314
  %v3322 = vxor.u32 %v3314, 2147483648
  %v3323 = vmul.f32 %v3322, 1.442695
  %v3324 = vpow.pop %v3323
  %v3325 = vadd.f32 %v3324, 1.0
  %v3326 = vrcp.pop %v3325
  %v3327 = vmul.f32 1.0, %v3326
  %v3328 = vmul.f32 %v3320, %v3208
  %v3329 = vmul.f32 %v3320, %v3321
  %3331 = vrot.lane.b32.xlu0 %v3329, 64
  %v3332 = vpop.permute.xlu0 %3331
  %v3334 = vadd.f32 %v3328, %v3332
  %v3335 = vtanh.pop %v3334
  %v3336 = vmul.f32 %v3327, %v3335
  %v3337 = vpack.c.bf16 %v3336, %v3336
  %v3338 = vlaneseq
  %v3339 = vshrl.u32 %v3338, 7
  %v3340 = vsub.s32 1, %v3339
  %v3341 = vrot.slane %v49, %v3340
  %3343 = vrot.lane.b32.xlu0 %v3341, 64
  %v3344 = vpop.permute.xlu0 %3343
  %v3346 = vmul.f32 %v3336, %v3344
  %3348 = vrot.lane.b32.xlu0 %v3346, 64
  %v3349 = vpop.permute.xlu0 %3348
  %v3351 = vsel %vm204, %v3349, 0.0
  %3352 = vadd.xlane.f32.xlu0 %v3351
  %v3353 = vpop.xlane.xlu0 %3352
  %3354 = vrot.lane.b32.xlu0 %v3346, 32
  %v3355 = vpop.permute.xlu0 %3354
  %v3357 = vsel %vm204, %v3355, 0.0
  %3358 = vadd.xlane.f32.xlu0 %v3357
  %v3359 = vpop.xlane.xlu0 %3358
  %v3360 = vmax.f32 %v3234, %v3353
  %v3361 = vsub.f32 %v3234, %v3360
  %v3362 = vmul.f32 %v3361, 1.442695
  %v3363 = vpow.pop %v3362
  %v3364 = vsub.f32 %v3353, %v3360
  %v3365 = vmul.f32 %v3364, 1.442695
  %v3366 = vpow.pop %v3365
  %v3367 = vmul.f32 %v3363, %v3242
  %v3368 = vadd.f32 %v3367, %v3366
  %v3369 = vmul.f32 %v3363, %v3245
  %v3370 = vmul.f32 %v3366, %v3336
  %v3371 = vadd.f32 %v3369, %v3370
  %v3372 = vmax.f32 %v3246, %v3359
  %v3373 = vsub.f32 %v3246, %v3372
  %v3374 = vmul.f32 %v3373, 1.442695
  %v3375 = vpow.pop %v3374
  %v3376 = vsub.f32 %v3359, %v3372
  %v3377 = vmul.f32 %v3376, 1.442695
  %v3378 = vpow.pop %v3377
  %v3379 = vmul.f32 %v3375, %v3254
  %v3380 = vadd.f32 %v3379, %v3378
  %v3381 = vmul.f32 %v3375, %v3257
  %v3382 = vmul.f32 %v3378, %v3336
  %v3383 = vadd.f32 %v3381, %v3382
  %3384 = vset.pattern.permute.xlu0 26
  %3385 = vperm.xlu0 %3384, %v35
  %v3386 = vpop.permute.xlu0 %3385
  %v3388 = vmul.f32 %v3386, %v59
  %v3389 = vmul.f32 %v3386, %v63
  %v3390 = vadd.f32 %v3388, %v72
  %v3391 = vadd.f32 %v3389, %v76
  %3393 = vrot.lane.b32.xlu0 %v3337, 64
  %v3394 = vpop.permute.xlu0 %3393
  %v3396 = vsel %vm121, %v3394, 0
  %3398 = vmatprep.subr.bf16.mxu0 0
  %3399 = vmatpush1.bf16.msra.mxu0 0
  %3400 = vmatprep.subr.bf16.mxu0 0
  %3401 = vmatpush1.bf16.msra.mxu0 0
  %3402 = vmatprep.subr.bf16.mxu0 0
  %3403 = vmatpush1.bf16.msra.mxu0 0
  %3404 = vmatprep.subr.bf16.mxu0 0
  %3405 = vmatpush1.bf16.msra.mxu0 0
  %3406 = vmatprep.subr.bf16.mxu0 %v112
  %3407 = vmatpush1.bf16.msra.mxu0 %v111
  %3408 = vmatprep.subr.bf16.mxu0 %v110
  %3409 = vmatpush1.bf16.msra.mxu0 %v109
  %3410 = vmatprep.subr.bf16.mxu0 %v108
  %3411 = vmatpush1.bf16.msra.mxu0 %v107
  %3412 = vmatprep.subr.bf16.mxu0 %v106
  %3413 = vmatpush1.bf16.msra.mxu0 %v105
  %3414 = vmatprep.subr.bf16.mxu0 0
  %3415 = vmatpush2.bf16.msra.mxu0 0
  %3416 = vmatprep.subr.bf16.mxu0 0
  %3417 = vmatpush2.bf16.msra.mxu0 0
  %3418 = vmatprep.subr.bf16.mxu0 0
  %3419 = vmatpush2.bf16.msra.mxu0 0
  %3420 = vmatprep.subr.bf16.mxu0 0
  %3421 = vmatpush2.bf16.msra.mxu0 0
  %3422 = vmatprep.subr.bf16.mxu0 0
  %3423 = vmatpush2.bf16.msra.mxu0 0
  %3424 = vmatprep.subr.bf16.mxu0 0
  %3425 = vmatpush2.bf16.msra.mxu0 0
  %3426 = vmatprep.subr.bf16.mxu0 0
  %3427 = vmatpush2.bf16.msra.mxu0 0
  %3428 = vmatprep.subr.bf16.mxu0 0
  %3429 = vmatpush2.bf16.msra.mxu0 0
  %3430 = vmatprep.mubr.bf16.mxu0 0
  %3431 = vmatmul.mubr.bf16.gmra.mxu0 %v3396
  %v3432 = vpop.f32.mrf.mxu0
  %v3433 = vadd.f32 0.0, %v3432
  %v3434 = vpop.f32.mrf.mxu0
  %v3435 = vadd.f32 0.0, %v3434
  %v3436 = vpop.f32.mrf.mxu0
  %v3437 = vpop.f32.mrf.mxu0
  %3438 = vdwg.mxu0
  %v3439 = vadd.f32 %v3390, %v3433
  %v3440 = vadd.f32 %v3391, %v3435
  %v3441 = vxor.u32 %v3439, 2147483648
  %v3442 = vmul.f32 %v3441, 1.442695
  %v3443 = vpow.pop %v3442
  %v3444 = vadd.f32 %v3443, 1.0
  %v3445 = vrcp.pop %v3444
  %v3446 = vmul.f32 1.0, %v3445
  %v3447 = vtanh.pop %v3440
  %v3448 = vxor.u32 %v3440, 2147483648
  %v3449 = vmul.f32 %v3448, 1.442695
  %v3450 = vpow.pop %v3449
  %v3451 = vadd.f32 %v3450, 1.0
  %v3452 = vrcp.pop %v3451
  %v3453 = vmul.f32 1.0, %v3452
  %v3454 = vmul.f32 %v3446, %v3334
  %v3455 = vmul.f32 %v3446, %v3447
  %3457 = vrot.lane.b32.xlu0 %v3455, 64
  %v3458 = vpop.permute.xlu0 %3457
  %v3460 = vadd.f32 %v3454, %v3458
  %v3461 = vtanh.pop %v3460
  %v3462 = vmul.f32 %v3453, %v3461
  %v3463 = vpack.c.bf16 %v3462, %v3462
  %v3464 = vlaneseq
  %v3465 = vshrl.u32 %v3464, 7
  %v3466 = vsub.s32 2, %v3465
  %v3467 = vrot.slane %v49, %v3466
  %3469 = vrot.lane.b32.xlu0 %v3467, 64
  %v3470 = vpop.permute.xlu0 %3469
  %v3472 = vmul.f32 %v3462, %v3470
  %3474 = vrot.lane.b32.xlu0 %v3472, 64
  %v3475 = vpop.permute.xlu0 %3474
  %v3477 = vsel %vm204, %v3475, 0.0
  %3478 = vadd.xlane.f32.xlu0 %v3477
  %v3479 = vpop.xlane.xlu0 %3478
  %3480 = vrot.lane.b32.xlu0 %v3472, 32
  %v3481 = vpop.permute.xlu0 %3480
  %v3483 = vsel %vm204, %v3481, 0.0
  %3484 = vadd.xlane.f32.xlu0 %v3483
  %v3485 = vpop.xlane.xlu0 %3484
  %v3486 = vmax.f32 %v3360, %v3479
  %v3487 = vsub.f32 %v3360, %v3486
  %v3488 = vmul.f32 %v3487, 1.442695
  %v3489 = vpow.pop %v3488
  %v3490 = vsub.f32 %v3479, %v3486
  %v3491 = vmul.f32 %v3490, 1.442695
  %v3492 = vpow.pop %v3491
  %v3493 = vmul.f32 %v3489, %v3368
  %v3494 = vadd.f32 %v3493, %v3492
  %v3495 = vmul.f32 %v3489, %v3371
  %v3496 = vmul.f32 %v3492, %v3462
  %v3497 = vadd.f32 %v3495, %v3496
  %v3498 = vmax.f32 %v3372, %v3485
  %v3499 = vsub.f32 %v3372, %v3498
  %v3500 = vmul.f32 %v3499, 1.442695
  %v3501 = vpow.pop %v3500
  %v3502 = vsub.f32 %v3485, %v3498
  %v3503 = vmul.f32 %v3502, 1.442695
  %v3504 = vpow.pop %v3503
  %v3505 = vmul.f32 %v3501, %v3380
  %v3506 = vadd.f32 %v3505, %v3504
  %v3507 = vmul.f32 %v3501, %v3383
  %v3508 = vmul.f32 %v3504, %v3462
  %v3509 = vadd.f32 %v3507, %v3508
  %3510 = vset.pattern.permute.xlu0 27
  %3511 = vperm.xlu0 %3510, %v35
  %v3512 = vpop.permute.xlu0 %3511
  %v3514 = vmul.f32 %v3512, %v59
  %v3515 = vmul.f32 %v3512, %v63
  %v3516 = vadd.f32 %v3514, %v72
  %v3517 = vadd.f32 %v3515, %v76
  %3519 = vrot.lane.b32.xlu0 %v3463, 64
  %v3520 = vpop.permute.xlu0 %3519
  %v3522 = vsel %vm121, %v3520, 0
  %3524 = vmatprep.subr.bf16.mxu0 0
  %3525 = vmatpush1.bf16.msra.mxu0 0
  %3526 = vmatprep.subr.bf16.mxu0 0
  %3527 = vmatpush1.bf16.msra.mxu0 0
  %3528 = vmatprep.subr.bf16.mxu0 0
  %3529 = vmatpush1.bf16.msra.mxu0 0
  %3530 = vmatprep.subr.bf16.mxu0 0
  %3531 = vmatpush1.bf16.msra.mxu0 0
  %3532 = vmatprep.subr.bf16.mxu0 %v112
  %3533 = vmatpush1.bf16.msra.mxu0 %v111
  %3534 = vmatprep.subr.bf16.mxu0 %v110
  %3535 = vmatpush1.bf16.msra.mxu0 %v109
  %3536 = vmatprep.subr.bf16.mxu0 %v108
  %3537 = vmatpush1.bf16.msra.mxu0 %v107
  %3538 = vmatprep.subr.bf16.mxu0 %v106
  %3539 = vmatpush1.bf16.msra.mxu0 %v105
  %3540 = vmatprep.subr.bf16.mxu0 0
  %3541 = vmatpush2.bf16.msra.mxu0 0
  %3542 = vmatprep.subr.bf16.mxu0 0
  %3543 = vmatpush2.bf16.msra.mxu0 0
  %3544 = vmatprep.subr.bf16.mxu0 0
  %3545 = vmatpush2.bf16.msra.mxu0 0
  %3546 = vmatprep.subr.bf16.mxu0 0
  %3547 = vmatpush2.bf16.msra.mxu0 0
  %3548 = vmatprep.subr.bf16.mxu0 0
  %3549 = vmatpush2.bf16.msra.mxu0 0
  %3550 = vmatprep.subr.bf16.mxu0 0
  %3551 = vmatpush2.bf16.msra.mxu0 0
  %3552 = vmatprep.subr.bf16.mxu0 0
  %3553 = vmatpush2.bf16.msra.mxu0 0
  %3554 = vmatprep.subr.bf16.mxu0 0
  %3555 = vmatpush2.bf16.msra.mxu0 0
  %3556 = vmatprep.mubr.bf16.mxu0 0
  %3557 = vmatmul.mubr.bf16.gmra.mxu0 %v3522
  %v3558 = vpop.f32.mrf.mxu0
  %v3559 = vadd.f32 0.0, %v3558
  %v3560 = vpop.f32.mrf.mxu0
  %v3561 = vadd.f32 0.0, %v3560
  %v3562 = vpop.f32.mrf.mxu0
  %v3563 = vpop.f32.mrf.mxu0
  %3564 = vdwg.mxu0
  %v3565 = vadd.f32 %v3516, %v3559
  %v3566 = vadd.f32 %v3517, %v3561
  %v3567 = vxor.u32 %v3565, 2147483648
  %v3568 = vmul.f32 %v3567, 1.442695
  %v3569 = vpow.pop %v3568
  %v3570 = vadd.f32 %v3569, 1.0
  %v3571 = vrcp.pop %v3570
  %v3572 = vmul.f32 1.0, %v3571
  %v3573 = vtanh.pop %v3566
  %v3574 = vxor.u32 %v3566, 2147483648
  %v3575 = vmul.f32 %v3574, 1.442695
  %v3576 = vpow.pop %v3575
  %v3577 = vadd.f32 %v3576, 1.0
  %v3578 = vrcp.pop %v3577
  %v3579 = vmul.f32 1.0, %v3578
  %v3580 = vmul.f32 %v3572, %v3460
  %v3581 = vmul.f32 %v3572, %v3573
  %3583 = vrot.lane.b32.xlu0 %v3581, 64
  %v3584 = vpop.permute.xlu0 %3583
  %v3586 = vadd.f32 %v3580, %v3584
  %v3587 = vtanh.pop %v3586
  %v3588 = vmul.f32 %v3579, %v3587
  %v3589 = vpack.c.bf16 %v3588, %v3588
  %v3590 = vlaneseq
  %v3591 = vshrl.u32 %v3590, 7
  %v3592 = vsub.s32 3, %v3591
  %v3593 = vrot.slane %v49, %v3592
  %3595 = vrot.lane.b32.xlu0 %v3593, 64
  %v3596 = vpop.permute.xlu0 %3595
  %v3598 = vmul.f32 %v3588, %v3596
  %3600 = vrot.lane.b32.xlu0 %v3598, 64
  %v3601 = vpop.permute.xlu0 %3600
  %v3603 = vsel %vm204, %v3601, 0.0
  %3604 = vadd.xlane.f32.xlu0 %v3603
  %v3605 = vpop.xlane.xlu0 %3604
  %3606 = vrot.lane.b32.xlu0 %v3598, 32
  %v3607 = vpop.permute.xlu0 %3606
  %v3609 = vsel %vm204, %v3607, 0.0
  %3610 = vadd.xlane.f32.xlu0 %v3609
  %v3611 = vpop.xlane.xlu0 %3610
  %v3612 = vmax.f32 %v3486, %v3605
  %v3613 = vsub.f32 %v3486, %v3612
  %v3614 = vmul.f32 %v3613, 1.442695
  %v3615 = vpow.pop %v3614
  %v3616 = vsub.f32 %v3605, %v3612
  %v3617 = vmul.f32 %v3616, 1.442695
  %v3618 = vpow.pop %v3617
  %v3619 = vmul.f32 %v3615, %v3494
  %v3620 = vadd.f32 %v3619, %v3618
  %v3621 = vmul.f32 %v3615, %v3497
  %v3622 = vmul.f32 %v3618, %v3588
  %v3623 = vadd.f32 %v3621, %v3622
  %v3624 = vmax.f32 %v3498, %v3611
  %v3625 = vsub.f32 %v3498, %v3624
  %v3626 = vmul.f32 %v3625, 1.442695
  %v3627 = vpow.pop %v3626
  %v3628 = vsub.f32 %v3611, %v3624
  %v3629 = vmul.f32 %v3628, 1.442695
  %v3630 = vpow.pop %v3629
  %v3631 = vmul.f32 %v3627, %v3506
  %v3632 = vadd.f32 %v3631, %v3630
  %v3633 = vmul.f32 %v3627, %v3509
  %v3634 = vmul.f32 %v3630, %v3588
  %v3635 = vadd.f32 %v3633, %v3634
  %3636 = vset.pattern.permute.xlu0 28
  %3637 = vperm.xlu0 %3636, %v35
  %v3638 = vpop.permute.xlu0 %3637
  %v3640 = vmul.f32 %v3638, %v59
  %v3641 = vmul.f32 %v3638, %v63
  %v3642 = vadd.f32 %v3640, %v72
  %v3643 = vadd.f32 %v3641, %v76
  %3645 = vrot.lane.b32.xlu0 %v3589, 64
  %v3646 = vpop.permute.xlu0 %3645
  %v3648 = vsel %vm121, %v3646, 0
  %3650 = vmatprep.subr.bf16.mxu0 0
  %3651 = vmatpush1.bf16.msra.mxu0 0
  %3652 = vmatprep.subr.bf16.mxu0 0
  %3653 = vmatpush1.bf16.msra.mxu0 0
  %3654 = vmatprep.subr.bf16.mxu0 0
  %3655 = vmatpush1.bf16.msra.mxu0 0
  %3656 = vmatprep.subr.bf16.mxu0 0
  %3657 = vmatpush1.bf16.msra.mxu0 0
  %3658 = vmatprep.subr.bf16.mxu0 %v112
  %3659 = vmatpush1.bf16.msra.mxu0 %v111
  %3660 = vmatprep.subr.bf16.mxu0 %v110
  %3661 = vmatpush1.bf16.msra.mxu0 %v109
  %3662 = vmatprep.subr.bf16.mxu0 %v108
  %3663 = vmatpush1.bf16.msra.mxu0 %v107
  %3664 = vmatprep.subr.bf16.mxu0 %v106
  %3665 = vmatpush1.bf16.msra.mxu0 %v105
  %3666 = vmatprep.subr.bf16.mxu0 0
  %3667 = vmatpush2.bf16.msra.mxu0 0
  %3668 = vmatprep.subr.bf16.mxu0 0
  %3669 = vmatpush2.bf16.msra.mxu0 0
  %3670 = vmatprep.subr.bf16.mxu0 0
  %3671 = vmatpush2.bf16.msra.mxu0 0
  %3672 = vmatprep.subr.bf16.mxu0 0
  %3673 = vmatpush2.bf16.msra.mxu0 0
  %3674 = vmatprep.subr.bf16.mxu0 0
  %3675 = vmatpush2.bf16.msra.mxu0 0
  %3676 = vmatprep.subr.bf16.mxu0 0
  %3677 = vmatpush2.bf16.msra.mxu0 0
  %3678 = vmatprep.subr.bf16.mxu0 0
  %3679 = vmatpush2.bf16.msra.mxu0 0
  %3680 = vmatprep.subr.bf16.mxu0 0
  %3681 = vmatpush2.bf16.msra.mxu0 0
  %3682 = vmatprep.mubr.bf16.mxu0 0
  %3683 = vmatmul.mubr.bf16.gmra.mxu0 %v3648
  %v3684 = vpop.f32.mrf.mxu0
  %v3685 = vadd.f32 0.0, %v3684
  %v3686 = vpop.f32.mrf.mxu0
  %v3687 = vadd.f32 0.0, %v3686
  %v3688 = vpop.f32.mrf.mxu0
  %v3689 = vpop.f32.mrf.mxu0
  %3690 = vdwg.mxu0
  %v3691 = vadd.f32 %v3642, %v3685
  %v3692 = vadd.f32 %v3643, %v3687
  %v3693 = vxor.u32 %v3691, 2147483648
  %v3694 = vmul.f32 %v3693, 1.442695
  %v3695 = vpow.pop %v3694
  %v3696 = vadd.f32 %v3695, 1.0
  %v3697 = vrcp.pop %v3696
  %v3698 = vmul.f32 1.0, %v3697
  %v3699 = vtanh.pop %v3692
  %v3700 = vxor.u32 %v3692, 2147483648
  %v3701 = vmul.f32 %v3700, 1.442695
  %v3702 = vpow.pop %v3701
  %v3703 = vadd.f32 %v3702, 1.0
  %v3704 = vrcp.pop %v3703
  %v3705 = vmul.f32 1.0, %v3704
  %v3706 = vmul.f32 %v3698, %v3586
  %v3707 = vmul.f32 %v3698, %v3699
  %3709 = vrot.lane.b32.xlu0 %v3707, 64
  %v3710 = vpop.permute.xlu0 %3709
  %v3712 = vadd.f32 %v3706, %v3710
  %v3713 = vtanh.pop %v3712
  %v3714 = vmul.f32 %v3705, %v3713
  %v3715 = vpack.c.bf16 %v3714, %v3714
  %v3716 = vlaneseq
  %v3717 = vshrl.u32 %v3716, 7
  %v3718 = vsub.s32 4, %v3717
  %v3719 = vrot.slane %v49, %v3718
  %3721 = vrot.lane.b32.xlu0 %v3719, 64
  %v3722 = vpop.permute.xlu0 %3721
  %v3724 = vmul.f32 %v3714, %v3722
  %3726 = vrot.lane.b32.xlu0 %v3724, 64
  %v3727 = vpop.permute.xlu0 %3726
  %v3729 = vsel %vm204, %v3727, 0.0
  %3730 = vadd.xlane.f32.xlu0 %v3729
  %v3731 = vpop.xlane.xlu0 %3730
  %3732 = vrot.lane.b32.xlu0 %v3724, 32
  %v3733 = vpop.permute.xlu0 %3732
  %v3735 = vsel %vm204, %v3733, 0.0
  %3736 = vadd.xlane.f32.xlu0 %v3735
  %v3737 = vpop.xlane.xlu0 %3736
  %v3738 = vmax.f32 %v3612, %v3731
  %v3739 = vsub.f32 %v3612, %v3738
  %v3740 = vmul.f32 %v3739, 1.442695
  %v3741 = vpow.pop %v3740
  %v3742 = vsub.f32 %v3731, %v3738
  %v3743 = vmul.f32 %v3742, 1.442695
  %v3744 = vpow.pop %v3743
  %v3745 = vmul.f32 %v3741, %v3620
  %v3746 = vadd.f32 %v3745, %v3744
  %v3747 = vmul.f32 %v3741, %v3623
  %v3748 = vmul.f32 %v3744, %v3714
  %v3749 = vadd.f32 %v3747, %v3748
  %v3750 = vmax.f32 %v3624, %v3737
  %v3751 = vsub.f32 %v3624, %v3750
  %v3752 = vmul.f32 %v3751, 1.442695
  %v3753 = vpow.pop %v3752
  %v3754 = vsub.f32 %v3737, %v3750
  %v3755 = vmul.f32 %v3754, 1.442695
  %v3756 = vpow.pop %v3755
  %v3757 = vmul.f32 %v3753, %v3632
  %v3758 = vadd.f32 %v3757, %v3756
  %v3759 = vmul.f32 %v3753, %v3635
  %v3760 = vmul.f32 %v3756, %v3714
  %v3761 = vadd.f32 %v3759, %v3760
  %3762 = vset.pattern.permute.xlu0 29
  %3763 = vperm.xlu0 %3762, %v35
  %v3764 = vpop.permute.xlu0 %3763
  %v3766 = vmul.f32 %v3764, %v59
  %v3767 = vmul.f32 %v3764, %v63
  %v3768 = vadd.f32 %v3766, %v72
  %v3769 = vadd.f32 %v3767, %v76
  %3771 = vrot.lane.b32.xlu0 %v3715, 64
  %v3772 = vpop.permute.xlu0 %3771
  %v3774 = vsel %vm121, %v3772, 0
  %3776 = vmatprep.subr.bf16.mxu0 0
  %3777 = vmatpush1.bf16.msra.mxu0 0
  %3778 = vmatprep.subr.bf16.mxu0 0
  %3779 = vmatpush1.bf16.msra.mxu0 0
  %3780 = vmatprep.subr.bf16.mxu0 0
  %3781 = vmatpush1.bf16.msra.mxu0 0
  %3782 = vmatprep.subr.bf16.mxu0 0
  %3783 = vmatpush1.bf16.msra.mxu0 0
  %3784 = vmatprep.subr.bf16.mxu0 %v112
  %3785 = vmatpush1.bf16.msra.mxu0 %v111
  %3786 = vmatprep.subr.bf16.mxu0 %v110
  %3787 = vmatpush1.bf16.msra.mxu0 %v109
  %3788 = vmatprep.subr.bf16.mxu0 %v108
  %3789 = vmatpush1.bf16.msra.mxu0 %v107
  %3790 = vmatprep.subr.bf16.mxu0 %v106
  %3791 = vmatpush1.bf16.msra.mxu0 %v105
  %3792 = vmatprep.subr.bf16.mxu0 0
  %3793 = vmatpush2.bf16.msra.mxu0 0
  %3794 = vmatprep.subr.bf16.mxu0 0
  %3795 = vmatpush2.bf16.msra.mxu0 0
  %3796 = vmatprep.subr.bf16.mxu0 0
  %3797 = vmatpush2.bf16.msra.mxu0 0
  %3798 = vmatprep.subr.bf16.mxu0 0
  %3799 = vmatpush2.bf16.msra.mxu0 0
  %3800 = vmatprep.subr.bf16.mxu0 0
  %3801 = vmatpush2.bf16.msra.mxu0 0
  %3802 = vmatprep.subr.bf16.mxu0 0
  %3803 = vmatpush2.bf16.msra.mxu0 0
  %3804 = vmatprep.subr.bf16.mxu0 0
  %3805 = vmatpush2.bf16.msra.mxu0 0
  %3806 = vmatprep.subr.bf16.mxu0 0
  %3807 = vmatpush2.bf16.msra.mxu0 0
  %3808 = vmatprep.mubr.bf16.mxu0 0
  %3809 = vmatmul.mubr.bf16.gmra.mxu0 %v3774
  %v3810 = vpop.f32.mrf.mxu0
  %v3811 = vadd.f32 0.0, %v3810
  %v3812 = vpop.f32.mrf.mxu0
  %v3813 = vadd.f32 0.0, %v3812
  %v3814 = vpop.f32.mrf.mxu0
  %v3815 = vpop.f32.mrf.mxu0
  %3816 = vdwg.mxu0
  %v3817 = vadd.f32 %v3768, %v3811
  %v3818 = vadd.f32 %v3769, %v3813
  %v3819 = vxor.u32 %v3817, 2147483648
  %v3820 = vmul.f32 %v3819, 1.442695
  %v3821 = vpow.pop %v3820
  %v3822 = vadd.f32 %v3821, 1.0
  %v3823 = vrcp.pop %v3822
  %v3824 = vmul.f32 1.0, %v3823
  %v3825 = vtanh.pop %v3818
  %v3826 = vxor.u32 %v3818, 2147483648
  %v3827 = vmul.f32 %v3826, 1.442695
  %v3828 = vpow.pop %v3827
  %v3829 = vadd.f32 %v3828, 1.0
  %v3830 = vrcp.pop %v3829
  %v3831 = vmul.f32 1.0, %v3830
  %v3832 = vmul.f32 %v3824, %v3712
  %v3833 = vmul.f32 %v3824, %v3825
  %3835 = vrot.lane.b32.xlu0 %v3833, 64
  %v3836 = vpop.permute.xlu0 %3835
  %v3838 = vadd.f32 %v3832, %v3836
  %v3839 = vtanh.pop %v3838
  %v3840 = vmul.f32 %v3831, %v3839
  %v3841 = vlaneseq
  %v3842 = vshrl.u32 %v3841, 7
  %v3843 = vsub.s32 5, %v3842
  %v3844 = vrot.slane %v49, %v3843
  %3846 = vrot.lane.b32.xlu0 %v3844, 64
  %v3847 = vpop.permute.xlu0 %3846
  %v3849 = vmul.f32 %v3840, %v3847
  %3851 = vrot.lane.b32.xlu0 %v3849, 64
  %v3852 = vpop.permute.xlu0 %3851
  %v3854 = vsel %vm204, %v3852, 0.0
  %3855 = vadd.xlane.f32.xlu0 %v3854
  %v3856 = vpop.xlane.xlu0 %3855
  %3857 = vrot.lane.b32.xlu0 %v3849, 32
  %v3858 = vpop.permute.xlu0 %3857
  %v3860 = vsel %vm204, %v3858, 0.0
  %3861 = vadd.xlane.f32.xlu0 %v3860
  %v3862 = vpop.xlane.xlu0 %3861
  %v3863 = vmax.f32 %v3738, %v3856
  %v3864 = vsub.f32 %v3738, %v3863
  %v3865 = vmul.f32 %v3864, 1.442695
  %v3866 = vpow.pop %v3865
  %v3867 = vsub.f32 %v3856, %v3863
  %v3868 = vmul.f32 %v3867, 1.442695
  %v3869 = vpow.pop %v3868
  %v3870 = vmul.f32 %v3866, %v3746
  %v3871 = vadd.f32 %v3870, %v3869
  %v3872 = vmul.f32 %v3866, %v3749
  %v3873 = vmul.f32 %v3869, %v3840
  %v3874 = vadd.f32 %v3872, %v3873
  %v3875 = vmax.f32 %v3750, %v3862
  %v3876 = vsub.f32 %v3750, %v3875
  %v3877 = vmul.f32 %v3876, 1.442695
  %v3878 = vpow.pop %v3877
  %v3879 = vsub.f32 %v3862, %v3875
  %v3880 = vmul.f32 %v3879, 1.442695
  %v3881 = vpow.pop %v3880
  %v3882 = vmul.f32 %v3878, %v3758
  %v3883 = vadd.f32 %v3882, %v3881
  %v3884 = vmul.f32 %v3878, %v3761
  %v3885 = vmul.f32 %v3881, %v3840
  %v3886 = vadd.f32 %v3884, %v3885
  %v3887 = vrcp.pop %v3871
  %v3888 = vmul.f32 %v3874, %v3887
  %v3889 = vrcp.pop %v3883
  %v3890 = vmul.f32 %v3886, %v3889
  %v3891 = vld [vmem:[%s5] sm:$0xff]
  %v3892 = vld [vmem:[%s5 + $0x8] sm:$0xff]
  %v3893 = vld [vmem:[%s5 + $0x10] sm:$0xff]
  %v3894 = vld [vmem:[%s5 + $0x18] sm:$0xff]
  %v3895 = vld [vmem:[%s6] sm:$0x1]
  %v3897 = vlaneseq
  %v3898 = vshrl.u32 %v3897, 7
  %v3899 = vsub.s32 0, %v3898
  %v3900 = vrot.slane %v3895, %v3899
  %3903 = vrot.lane.b32.xlu0 %v3888, 64
  %v3904 = vpop.permute.xlu0 %3903
  %v3905 = vsel %vm204, %v3904, 0
  %3907 = vmatprep.subr.mxu0 0.0
  %3908 = vmatpush1.msra.mxu0 0.0
  %3909 = vmatprep.subr.mxu0 0.0
  %3910 = vmatpush1.msra.mxu0 0.0
  %3911 = vmatprep.subr.mxu0 0.0
  %3912 = vmatpush1.msra.mxu0 0.0
  %3913 = vmatprep.subr.mxu0 0.0
  %3914 = vmatpush1.msra.mxu0 0.0
  %3915 = vmatprep.subr.mxu0 0.0
  %3916 = vmatpush1.msra.mxu0 0.0
  %3917 = vmatprep.subr.mxu0 0.0
  %3918 = vmatpush1.msra.mxu0 0.0
  %3919 = vmatprep.subr.mxu0 0.0
  %3920 = vmatpush1.msra.mxu0 0.0
  %3921 = vmatprep.subr.mxu0 0.0
  %3922 = vmatpush1.msra.mxu0 0.0
  %3923 = vmatprep.subr.mxu0 0.0
  %3924 = vmatpush1.msra.mxu0 0.0
  %3925 = vmatprep.subr.mxu0 0.0
  %3926 = vmatpush1.msra.mxu0 0.0
  %3927 = vmatprep.subr.mxu0 0.0
  %3928 = vmatpush1.msra.mxu0 0.0
  %3929 = vmatprep.subr.mxu0 0.0
  %3930 = vmatpush1.msra.mxu0 0.0
  %3931 = vmatprep.subr.mxu0 0.0
  %3932 = vmatpush1.msra.mxu0 %v3894
  %3933 = vmatprep.subr.mxu0 0.0
  %3934 = vmatpush1.msra.mxu0 %v3893
  %3935 = vmatprep.subr.mxu0 0.0
  %3936 = vmatpush1.msra.mxu0 %v3892
  %3937 = vmatprep.subr.mxu0 0.0
  %3938 = vmatpush1.msra.mxu0 %v3891
  %3939 = vmatprep.subr.mxu0 0.0
  %3940 = vmatpush2.msra.mxu0 0.0
  %3941 = vmatprep.subr.mxu0 0.0
  %3942 = vmatpush2.msra.mxu0 0.0
  %3943 = vmatprep.subr.mxu0 0.0
  %3944 = vmatpush2.msra.mxu0 0.0
  %3945 = vmatprep.subr.mxu0 0.0
  %3946 = vmatpush2.msra.mxu0 0.0
  %3947 = vmatprep.subr.mxu0 0.0
  %3948 = vmatpush2.msra.mxu0 0.0
  %3949 = vmatprep.subr.mxu0 0.0
  %3950 = vmatpush2.msra.mxu0 0.0
  %3951 = vmatprep.subr.mxu0 0.0
  %3952 = vmatpush2.msra.mxu0 0.0
  %3953 = vmatprep.subr.mxu0 0.0
  %3954 = vmatpush2.msra.mxu0 0.0
  %3955 = vmatprep.subr.mxu0 0.0
  %3956 = vmatpush2.msra.mxu0 0.0
  %3957 = vmatprep.subr.mxu0 0.0
  %3958 = vmatpush2.msra.mxu0 0.0
  %3959 = vmatprep.subr.mxu0 0.0
  %3960 = vmatpush2.msra.mxu0 0.0
  %3961 = vmatprep.subr.mxu0 0.0
  %3962 = vmatpush2.msra.mxu0 0.0
  %3963 = vmatprep.subr.mxu0 0.0
  %3964 = vmatpush2.msra.mxu0 0.0
  %3965 = vmatprep.subr.mxu0 0.0
  %3966 = vmatpush2.msra.mxu0 0.0
  %3967 = vmatprep.subr.mxu0 0.0
  %3968 = vmatpush2.msra.mxu0 0.0
  %3969 = vmatprep.subr.mxu0 0.0
  %3970 = vmatpush2.msra.mxu0 0.0
  %3971 = vmatprep.mubr.f32.mxu0 0.0
  %3972 = vmatmul.mubr.f32.gmra.mxu0 %v3905
  %v3973 = vpop.f32.mrf.mxu0
  %v3974 = vadd.f32 %v3900, %v3973
  %v3975 = vpop.f32.mrf.mxu0
  %3976 = vdwg.mxu0
  %v3977 = vmax.f32 %v3974, 0.0
  %3978 = vst.msk [vmem:[%s9] sm:$0xff] %vm204, %v3977
  %v3979 = vld [vmem:[%s7] sm:$0xff]
  %v3980 = vld [vmem:[%s7 + $0x8] sm:$0xff]
  %v3981 = vld [vmem:[%s7 + $0x10] sm:$0xff]
  %v3982 = vld [vmem:[%s7 + $0x18] sm:$0xff]
  %v3983 = vld [vmem:[%s8] sm:$0x1]
  %v3985 = vlaneseq
  %v3986 = vshrl.u32 %v3985, 7
  %v3987 = vsub.s32 0, %v3986
  %v3988 = vrot.slane %v3983, %v3987
  %3991 = vrot.lane.b32.xlu0 %v3890, 32
  %v3992 = vpop.permute.xlu0 %3991
  %v3993 = vsel %vm204, %v3992, 0
  %3995 = vmatprep.subr.mxu0 0.0
  %3996 = vmatpush1.msra.mxu0 0.0
  %3997 = vmatprep.subr.mxu0 0.0
  %3998 = vmatpush1.msra.mxu0 0.0
  %3999 = vmatprep.subr.mxu0 0.0
  %4000 = vmatpush1.msra.mxu0 0.0
  %4001 = vmatprep.subr.mxu0 0.0
  %4002 = vmatpush1.msra.mxu0 0.0
  %4003 = vmatprep.subr.mxu0 0.0
  %4004 = vmatpush1.msra.mxu0 0.0
  %4005 = vmatprep.subr.mxu0 0.0
  %4006 = vmatpush1.msra.mxu0 0.0
  %4007 = vmatprep.subr.mxu0 0.0
  %4008 = vmatpush1.msra.mxu0 0.0
  %4009 = vmatprep.subr.mxu0 0.0
  %4010 = vmatpush1.msra.mxu0 0.0
  %4011 = vmatprep.subr.mxu0 0.0
  %4012 = vmatpush1.msra.mxu0 0.0
  %4013 = vmatprep.subr.mxu0 0.0
  %4014 = vmatpush1.msra.mxu0 0.0
  %4015 = vmatprep.subr.mxu0 0.0
  %4016 = vmatpush1.msra.mxu0 0.0
  %4017 = vmatprep.subr.mxu0 0.0
  %4018 = vmatpush1.msra.mxu0 0.0
  %4019 = vmatprep.subr.mxu0 0.0
  %4020 = vmatpush1.msra.mxu0 %v3982
  %4021 = vmatprep.subr.mxu0 0.0
  %4022 = vmatpush1.msra.mxu0 %v3981
  %4023 = vmatprep.subr.mxu0 0.0
  %4024 = vmatpush1.msra.mxu0 %v3980
  %4025 = vmatprep.subr.mxu0 0.0
  %4026 = vmatpush1.msra.mxu0 %v3979
  %4027 = vmatprep.subr.mxu0 0.0
  %4028 = vmatpush2.msra.mxu0 0.0
  %4029 = vmatprep.subr.mxu0 0.0
  %4030 = vmatpush2.msra.mxu0 0.0
  %4031 = vmatprep.subr.mxu0 0.0
  %4032 = vmatpush2.msra.mxu0 0.0
  %4033 = vmatprep.subr.mxu0 0.0
  %4034 = vmatpush2.msra.mxu0 0.0
  %4035 = vmatprep.subr.mxu0 0.0
  %4036 = vmatpush2.msra.mxu0 0.0
  %4037 = vmatprep.subr.mxu0 0.0
  %4038 = vmatpush2.msra.mxu0 0.0
  %4039 = vmatprep.subr.mxu0 0.0
  %4040 = vmatpush2.msra.mxu0 0.0
  %4041 = vmatprep.subr.mxu0 0.0
  %4042 = vmatpush2.msra.mxu0 0.0
  %4043 = vmatprep.subr.mxu0 0.0
  %4044 = vmatpush2.msra.mxu0 0.0
  %4045 = vmatprep.subr.mxu0 0.0
  %4046 = vmatpush2.msra.mxu0 0.0
  %4047 = vmatprep.subr.mxu0 0.0
  %4048 = vmatpush2.msra.mxu0 0.0
  %4049 = vmatprep.subr.mxu0 0.0
  %4050 = vmatpush2.msra.mxu0 0.0
  %4051 = vmatprep.subr.mxu0 0.0
  %4052 = vmatpush2.msra.mxu0 0.0
  %4053 = vmatprep.subr.mxu0 0.0
  %4054 = vmatpush2.msra.mxu0 0.0
  %4055 = vmatprep.subr.mxu0 0.0
  %4056 = vmatpush2.msra.mxu0 0.0
  %4057 = vmatprep.subr.mxu0 0.0
  %4058 = vmatpush2.msra.mxu0 0.0
  %4059 = vmatprep.mubr.f32.mxu0 0.0
  %4060 = vmatmul.mubr.f32.gmra.mxu0 %v3993
  %v4061 = vpop.f32.mrf.mxu0
  %v4062 = vadd.f32 %v3988, %v4061
  %v4063 = vpop.f32.mrf.mxu0
  %4064 = vdwg.mxu0
  %v4065 = vmax.f32 %v4062, 0.0
  %4066 = vst.msk [vmem:[%s10] sm:$0xff] %vm204, %v4065
  // Predicated region
  $region38: #{trendspot2_forward.2} parent=0 // pred_check
    _
  $region39: #{trendspot2_forward.2} parent=0 // pred_check_branch
    %4068 = sbr.rel (0) target = $region41
  $region40: #{trendspot2_forward.2} parent=0 // pred_region
    _
  $region41: #{trendspot2_forward.2} parent=0 // pred_fallthru
    _
  // Predicated region
  $region42: #{trendspot2_forward.2} parent=0 // pred_check
    _
  $region43: #{trendspot2_forward.2} parent=0 // pred_check_branch
    %4070 = sbr.rel (0) target = $region45
  $region44: #{trendspot2_forward.2} parent=0 // pred_region
    _
  $region45: #{trendspot2_forward.2} parent=0 // pred_fallthru
    _
  // Predicated region
  $region46: #{trendspot2_forward.2} parent=0 // pred_check
    _
  $region47: #{trendspot2_forward.2} parent=0 // pred_check_branch
    %4072 = sbr.rel (0) target = $region49
  $region48: #{trendspot2_forward.2} parent=0 // pred_region
    _
  $region49: #{trendspot2_forward.2} parent=0 // pred_fallthru
    _
  // Predicated region
  $region50: #{trendspot2_forward.2} parent=0 // pred_check
    _
  $region51: #{trendspot2_forward.2} parent=0 // pred_check_branch
    %4074 = sbr.rel (0) target = $region53
  $region52: #{trendspot2_forward.2} parent=0 // pred_region
    _
  $region53: #{trendspot2_forward.2} parent=0 // pred_fallthru
    _

</llo_original>
